<compile_context>
chip_gen: v7x
topology: tpu7x:2x2x1
jax: 0.10.0
libtpu: 0.0.40
codegen_flags: <defaults>
</compile_context>

<pallas_src>
import jax
import jax.numpy as jnp
from jax import lax
from jax.experimental import pallas as pl
from jax.experimental.pallas import tpu as pltpu

C_IN = 3          # conv in-channels
H = W = 224       # spatial size forced by Linear(224*224, 5) + view(1, -1)
P = H * W         # 50176 = flattened spatial size / linear in_features
N_OUT = 5         # linear out_features
TK = 25088        # reduction tile along P (grid = 2; 25088 % 128 == 0)
                  # per-gen sweep: v5e -> 12544 or 25088, v6e -> 25088, v7x -> 50176


def _fused_kernel(wc_ref, cb_ref, x_ref, w_ref, lb_ref, o_ref, acc_ref, rs_ref):
    """Fused 1x1-conv + flatten + linear (channel mixing deferred).

    wc_ref : SMEM (3,)   f32     conv weight (1 out-channel, 1x1 kernel)
    cb_ref : SMEM (1,)   f32     conv bias
    x_ref  : VMEM (3, TK)        input tile, channel-major (lanes = spatial)
    w_ref  : VMEM (5, TK) bf16   linear weight tile, lane-dense
    lb_ref : VMEM (1, 5) f32     linear bias
    o_ref  : VMEM (1, 5)         output
    acc_ref: VMEM (3, 5) f32     partial Gram G[c, n] = sum_p x[c,p] * W[n,p]
    rs_ref : VMEM (1, 5) f32     partial row-sums rs[n] = sum_p W[n,p]
    """
    k = pl.program_id(0)

    @pl.when(k == 0)
    def _():
        acc_ref[...] = jnp.zeros_like(acc_ref)
        rs_ref[...] = jnp.zeros_like(rs_ref)

    # bf16 operands -> native MXU path; f32 accumulation.
    xb = x_ref[...].astype(jnp.bfloat16)          # (3, TK)
    wb = w_ref[...].astype(jnp.bfloat16)          # (5, TK) (no-op if already bf16)

    # Gram: contract the reduction (lane) axis of both operands on the MXU.
    acc_ref[...] += lax.dot_general(
        xb, wb,
        dimension_numbers=(((1,), (1,)), ((), ())),
        preferred_element_type=jnp.float32,
    )

    # Row-sums of W for the conv-bias fold, via a ones-row dot so the result
    # stays in lane orientation (1, 5).  Extra MXU push is hidden under DMA.
    ones_row = jnp.ones((1, TK), dtype=jnp.bfloat16)
    rs_ref[...] += lax.dot_general(
        ones_row, wb,
        dimension_numbers=(((1,), (1,)), ((), ())),
        preferred_element_type=jnp.float32,
    )

    @pl.when(k == pl.num_programs(0) - 1)
    def _():
        g = acc_ref[...]  # (3, 5)
        # Deferred channel mixing + bias fold:
        #   o[n] = sum_c wc[c] * G[c, n] + conv_b * rowsum(W)[n] + lin_b[n]
        o = (wc_ref[0] * g[0:1, :]
             + wc_ref[1] * g[1:2, :]
             + wc_ref[2] * g[2:3, :]
             + cb_ref[0] * rs_ref[...]
             + lb_ref[...])
        o_ref[...] = o.astype(o_ref.dtype)


@jax.jit
def fused_conv_linear(x_nchw, conv_w, conv_b, lin_w, lin_b):
    """x_nchw: (1, 3, 224, 224) f32; lin_w: (5, 224*224) (bf16 preferred).

    Returns (1, 5) f32.
    """
    # Glue: NCHW -> (C, P) channel-major (batch == 1); matches view(1, -1).
    x2d = x_nchw.reshape(C_IN, P)                 # (3, P)
    wc = conv_w.reshape(C_IN)                     # (3,)  from (1, 3, 1, 1)
    lb = lin_b.reshape(1, N_OUT)                  # (1, 5)

    grid = (P // TK,)  # (2,)
    out = pl.pallas_call(
        _fused_kernel,
        out_shape=jax.ShapeDtypeStruct((1, N_OUT), jnp.float32),
        grid_spec=pltpu.PrefetchScalarGridSpec(
            num_scalar_prefetch=0,
            grid=grid,
            in_specs=[
                pl.BlockSpec(memory_space=pltpu.MemorySpace.SMEM),   # wc (3,)
                pl.BlockSpec(memory_space=pltpu.MemorySpace.SMEM),   # conv_b (1,)
                pl.BlockSpec((C_IN, TK), lambda k: (0, k)),          # x  (3, TK)
                pl.BlockSpec((N_OUT, TK), lambda k: (0, k)),         # W  (5, TK)
                pl.BlockSpec((1, N_OUT), lambda k: (0, 0)),          # lin_b (1, 5)
            ],
            out_specs=pl.BlockSpec((1, N_OUT), lambda k: (0, 0)),
            scratch_shapes=[
                pltpu.VMEM((C_IN, N_OUT), jnp.float32),              # Gram acc
                pltpu.VMEM((1, N_OUT), jnp.float32),                 # row-sum acc
            ],
        ),
        compiler_params=pltpu.CompilerParams(
            dimension_semantics=("arbitrary",),
        ),
    )(wc, conv_b, x2d, lin_w, lb)
    return out


def _reference(x_nchw, conv_w, conv_b, lin_w, lin_b):
    # Plain-JAX reference mirroring the PyTorch forward (all f32).
    conv = (jnp.einsum("nchw,oc->nohw", x_nchw, conv_w.reshape(1, C_IN))
            + conv_b.reshape(1, 1, 1, 1))
    flat = conv.reshape(1, -1)                   # (1, 224*224)
    return flat @ lin_w.T + lin_b                # (1, 5)


if __name__ == "__main__":
    key = jax.random.PRNGKey(0)
    k_x, k_cw, k_cb, k_lw, k_lb = jax.random.split(key, 5)

    # Input shape implied by the module: (1, 3, 224, 224) NCHW
    # (spatial size is forced by Linear(224*224, 5) + view(1, -1)).
    x = jax.random.normal(k_x, (1, C_IN, H, W), dtype=jnp.float32)

    # Deterministic parameter init (shapes from Conv2d(3,1,1) and Linear(224*224, 5)).
    conv_w = jax.random.normal(k_cw, (1, C_IN, 1, 1), dtype=jnp.float32) * 0.1
    conv_b = jax.random.normal(k_cb, (1,), dtype=jnp.float32) * 0.1
    lin_w = jax.random.normal(k_lw, (N_OUT, P), dtype=jnp.float32) * 0.01
    lin_b = jax.random.normal(k_lb, (N_OUT,), dtype=jnp.float32) * 0.01

    # One-time static weight prep (outside the per-call jitted path):
    # bf16 halves the dominant HBM stream; accumulation stays f32 in-kernel.
    lin_w_bf16 = lin_w.astype(jnp.bfloat16)

    out = fused_conv_linear(x, conv_w, conv_b, lin_w_bf16, lin_b)
    out = jax.block_until_ready(out)

    ref = _reference(x, conv_w, conv_b, lin_w, lin_b)
    assert out.shape == (1, N_OUT), out.shape
    assert jnp.allclose(out, ref, rtol=2e-2, atol=2e-2), (out, ref)

    print("KERNEL_OK")
</pallas_src>

<mosaic_0001>
module attributes {stable_mosaic.version = 11 : i64} {
  func.func @_fused_kernel(%arg0: i32, %arg1: memref<3xf32, #tpu.memory_space<smem>>, %arg2: memref<1xf32, #tpu.memory_space<smem>>, %arg3: memref<3x25088xf32, #tpu.memory_space<vmem>>, %arg4: memref<5x25088xbf16, #tpu.memory_space<vmem>>, %arg5: memref<1x5xf32, #tpu.memory_space<vmem>>, %arg6: memref<1x5xf32, #tpu.memory_space<vmem>>, %arg7: memref<3x5xf32, #tpu.memory_space<vmem>>, %arg8: memref<1x5xf32, #tpu.memory_space<vmem>>) attributes {dimension_semantics = [#tpu.dimension_semantics<arbitrary>], iteration_bounds = array<i64: 2>, scalar_prefetch = 0 : i64, scratch_operands = 2 : i64, tpu.core_type = #tpu.core_type<tc>, window_params = [{transform_indices = @transform_0, window_bounds = array<i64: 3>}, {transform_indices = @transform_1, window_bounds = array<i64: 1>}, {transform_indices = @transform_2, window_bounds = array<i64: 3, 25088>}, {transform_indices = @transform_3, window_bounds = array<i64: 5, 25088>}, {pipeline_mode = #tpu.pipeline_mode<synchronous>, transform_indices = @transform_4, window_bounds = array<i64: 1, 5>}, {pipeline_mode = #tpu.pipeline_mode<synchronous>, transform_indices = @transform_5, window_bounds = array<i64: 1, 5>}]} {
    %c0_i32 = arith.constant 0 : i32
    %0 = arith.cmpi eq, %arg0, %c0_i32 : i32
    %1 = arith.extui %0 : i1 to i32
    %c0_i32_0 = arith.constant 0 : i32
    %2 = arith.cmpi ne, %1, %c0_i32_0 : i32
    scf.if %2 {
      %cst_15 = arith.constant 0.000000e+00 : f32
      %18 = vector.broadcast %cst_15 : f32 to vector<3x5xf32>
      %c0_16 = arith.constant 0 : index
      %c0_17 = arith.constant 0 : index
      %19 = vector.load %arg7[%c0_16, %c0_17] : memref<3x5xf32, #tpu.memory_space<vmem>>, vector<3x5xf32>
      tpu.vector_store %arg7[%c0_16, %c0_17], %18 {strides = array<i32>} : memref<3x5xf32, #tpu.memory_space<vmem>>, vector<3x5xf32>,
      %cst_18 = arith.constant 0.000000e+00 : f32
      %20 = vector.broadcast %cst_18 : f32 to vector<1x5xf32>
      %c0_19 = arith.constant 0 : index
      %c0_20 = arith.constant 0 : index
      %21 = vector.load %arg8[%c0_19, %c0_20] : memref<1x5xf32, #tpu.memory_space<vmem>>, vector<1x5xf32>
      tpu.vector_store %arg8[%c0_19, %c0_20], %20 {strides = array<i32>} : memref<1x5xf32, #tpu.memory_space<vmem>>, vector<1x5xf32>,
    } else {
    }
    %c0 = arith.constant 0 : index
    %c0_1 = arith.constant 0 : index
    %3 = vector.load %arg3[%c0, %c0_1] : memref<3x25088xf32, #tpu.memory_space<vmem>>, vector<3x25088xf32>
    %4 = arith.truncf %3 : vector<3x25088xf32> to vector<3x25088xbf16>
    %c0_2 = arith.constant 0 : index
    %c0_3 = arith.constant 0 : index
    %5 = vector.load %arg4[%c0_2, %c0_3] : memref<5x25088xbf16, #tpu.memory_space<vmem>>, vector<5x25088xbf16>
    %c0_4 = arith.constant 0 : index
    %c0_5 = arith.constant 0 : index
    %6 = vector.load %arg7[%c0_4, %c0_5] : memref<3x5xf32, #tpu.memory_space<vmem>>, vector<3x5xf32>
    %cst = arith.constant dense<0.000000e+00> : vector<3x5xf32>
    %7 = tpu.matmul %4, %5, %cst {dimension_numbers = #tpu.dot_dimension_numbers<[1], [1], [0], [0], [0, 0, 1, 0], [], []>} : vector<3x25088xbf16>, vector<5x25088xbf16>, vector<3x5xf32> -> vector<3x5xf32>
    %8 = arith.addf %6, %7 : vector<3x5xf32>
    %c0_6 = arith.constant 0 : index
    %c0_7 = arith.constant 0 : index
    %9 = vector.load %arg7[%c0_6, %c0_7] : memref<3x5xf32, #tpu.memory_space<vmem>>, vector<3x5xf32>
    tpu.vector_store %arg7[%c0_6, %c0_7], %8 {strides = array<i32>} : memref<3x5xf32, #tpu.memory_space<vmem>>, vector<3x5xf32>,
    %cst_8 = arith.constant 1.000000e+00 : bf16
    %10 = vector.broadcast %cst_8 : bf16 to vector<1x25088xbf16>
    %c0_9 = arith.constant 0 : index
    %c0_10 = arith.constant 0 : index
    %11 = vector.load %arg8[%c0_9, %c0_10] : memref<1x5xf32, #tpu.memory_space<vmem>>, vector<1x5xf32>
    %cst_11 = arith.constant dense<0.000000e+00> : vector<1x5xf32>
    %12 = tpu.matmul %10, %5, %cst_11 {dimension_numbers = #tpu.dot_dimension_numbers<[1], [1], [0], [0], [0, 0, 1, 0], [], []>} : vector<1x25088xbf16>, vector<5x25088xbf16>, vector<1x5xf32> -> vector<1x5xf32>
    %13 = arith.addf %11, %12 : vector<1x5xf32>
    %c0_12 = arith.constant 0 : index
    %c0_13 = arith.constant 0 : index
    %14 = vector.load %arg8[%c0_12, %c0_13] : memref<1x5xf32, #tpu.memory_space<vmem>>, vector<1x5xf32>
    tpu.vector_store %arg8[%c0_12, %c0_13], %13 {strides = array<i32>} : memref<1x5xf32, #tpu.memory_space<vmem>>, vector<1x5xf32>,
    %c1_i32 = arith.constant 1 : i32
    %15 = arith.cmpi eq, %arg0, %c1_i32 : i32
    %16 = arith.extui %15 : i1 to i32
    %c0_i32_14 = arith.constant 0 : i32
    %17 = arith.cmpi ne, %16, %c0_i32_14 : i32
    scf.if %17 {
      %c0_15 = arith.constant 0 : index
      %c0_16 = arith.constant 0 : index
      %18 = vector.load %arg7[%c0_15, %c0_16] : memref<3x5xf32, #tpu.memory_space<vmem>>, vector<3x5xf32>
      %c0_17 = arith.constant 0 : index
      %19 = memref.load %arg1[%c0_17] : memref<3xf32, #tpu.memory_space<smem>>
      %20 = vector.extract_strided_slice %18 {offsets = [0, 0], sizes = [1, 5], strides = [1, 1]} : vector<3x5xf32> to vector<1x5xf32>
      %21 = vector.broadcast %19 : f32 to vector<1x5xf32>
      %22 = arith.mulf %21, %20 : vector<1x5xf32>
      %c1 = arith.constant 1 : index
      %23 = memref.load %arg1[%c1] : memref<3xf32, #tpu.memory_space<smem>>
      %24 = vector.extract_strided_slice %18 {offsets = [1, 0], sizes = [1, 5], strides = [1, 1]} : vector<3x5xf32> to vector<1x5xf32>
      %25 = vector.broadcast %23 : f32 to vector<1x5xf32>
      %26 = arith.mulf %25, %24 : vector<1x5xf32>
      %27 = arith.addf %22, %26 : vector<1x5xf32>
      %c2 = arith.constant 2 : index
      %28 = memref.load %arg1[%c2] : memref<3xf32, #tpu.memory_space<smem>>
      %29 = vector.extract_strided_slice %18 {offsets = [2, 0], sizes = [1, 5], strides = [1, 1]} : vector<3x5xf32> to vector<1x5xf32>
      %30 = vector.broadcast %28 : f32 to vector<1x5xf32>
      %31 = arith.mulf %30, %29 : vector<1x5xf32>
      %32 = arith.addf %27, %31 : vector<1x5xf32>
      %c0_18 = arith.constant 0 : index
      %33 = memref.load %arg2[%c0_18] : memref<1xf32, #tpu.memory_space<smem>>
      %c0_19 = arith.constant 0 : index
      %c0_20 = arith.constant 0 : index
      %34 = vector.load %arg8[%c0_19, %c0_20] : memref<1x5xf32, #tpu.memory_space<vmem>>, vector<1x5xf32>
      %35 = vector.broadcast %33 : f32 to vector<1x5xf32>
      %36 = arith.mulf %35, %34 : vector<1x5xf32>
      %37 = arith.addf %32, %36 : vector<1x5xf32>
      %c0_21 = arith.constant 0 : index
      %c0_22 = arith.constant 0 : index
      %38 = vector.load %arg5[%c0_21, %c0_22] : memref<1x5xf32, #tpu.memory_space<vmem>>, vector<1x5xf32>
      %39 = arith.addf %37, %38 : vector<1x5xf32>
      %c0_23 = arith.constant 0 : index
      %c0_24 = arith.constant 0 : index
      %40 = vector.load %arg6[%c0_23, %c0_24] : memref<1x5xf32, #tpu.memory_space<vmem>>, vector<1x5xf32>
      tpu.vector_store %arg6[%c0_23, %c0_24], %39 {strides = array<i32>} : memref<1x5xf32, #tpu.memory_space<vmem>>, vector<1x5xf32>,
    } else {
    }
    return
  }
  func.func @transform_0(%arg0: i32) -> i32 {
    %c0_i32 = arith.constant 0 : i32
    %c0_i32_0 = arith.constant 0 : i32
    return %c0_i32 : i32
  }
  func.func @transform_1(%arg0: i32) -> i32 {
    %c0_i32 = arith.constant 0 : i32
    %c0_i32_0 = arith.constant 0 : i32
    return %c0_i32 : i32
  }
  func.func @transform_2(%arg0: i32) -> (i32, i32) {
    %c0_i32 = arith.constant 0 : i32
    %c0_i32_0 = arith.constant 0 : i32
    return %c0_i32, %arg0 : i32, i32
  }
  func.func @transform_3(%arg0: i32) -> (i32, i32) {
    %c0_i32 = arith.constant 0 : i32
    %c0_i32_0 = arith.constant 0 : i32
    return %c0_i32, %arg0 : i32, i32
  }
  func.func @transform_4(%arg0: i32) -> (i32, i32) {
    %c0_i32 = arith.constant 0 : i32
    %c0_i32_0 = arith.constant 0 : i32
    %c0_i32_1 = arith.constant 0 : i32
    return %c0_i32, %c0_i32_0 : i32, i32
  }
  func.func @transform_5(%arg0: i32) -> (i32, i32) {
    %c0_i32 = arith.constant 0 : i32
    %c0_i32_0 = arith.constant 0 : i32
    %c0_i32_1 = arith.constant 0 : i32
    return %c0_i32, %c0_i32_0 : i32, i32
  }
}

</mosaic_0001>

<llo_original>
// kernel: fused_conv_linear.1
$region0: #{fused_conv_linear.1}
  #allocation0 [shape = 'u32[]', space=smem, size = 0x4, offset = 0x4, fixed_abs, tag = 'smem constant byte address 0x4 - core index']
  #allocation1 [shape = 'u32[144,128]{1,0:T(1,128)}', space=vmem, size = 0x12000, scoped, tag = 'internal scratch']
  #allocation2 [shape = 'f32[3,5]{1,0:T(4,128)}', space=vmem, size = 0x800, scoped, tag = 'scratch operand']
  #allocation3 [shape = 'f32[1,5]{1,0:T(1,128)}', space=vmem, size = 0x200, scoped, tag = 'scratch operand']
  #allocation4 [shape = 'f32[1]{0:T(128)S(6)}', space=smem, size = 0x200, scoped, tag = 'scoped memory for fused_conv_linear.1']
  %s0 = inlined_call_operand.vmem [shape: f32[3], index: 0, kind: input, shape index: {}]
  %s1 = inlined_call_operand.<no memory space> [shape: f32[1], index: 1, kind: input, shape index: {}]
  %s2 = inlined_call_operand.vmem [shape: f32[3,50176], index: 2, kind: input, shape index: {}]
  %s3 = inlined_call_operand.vmem [shape: bf16[5,50176], index: 3, kind: input, shape index: {}]
  %s4 = inlined_call_operand.vmem [shape: f32[1,5], index: 4, kind: input, shape index: {}]
  %s5 = inlined_call_operand.hbm [shape: f32[1,5], index: 5, kind: output, shape index: {}]
  %s6 = sld [smem:[#allocation0]]
  $region65: #{fused_conv_linear.1} parent=0
    _
  %s8 = ssub.s32 1, %s6
  %s9 = scalar_select 0, %s8, %s6
  %10 = sst [smem:[#allocation4]] %s1
  $region1: #{fused_conv_linear.1} parent=0
    #allocation5 [shape = 'u8[512]{0}', space=smem, size = 0x200, scoped, tag = 'input window, operand 0, single buffered']
    #allocation6 [shape = 's32[2]{0}', space=sflag, size = 0x8, scoped, tag = 'scoped memory for fused_conv_linear.1']
    #allocation7 [shape = 's32[2]{0}', space=sflag, size = 0x8, scoped, tag = 'scoped memory for fused_conv_linear.1']
    #allocation8 [shape = 'u8[512]{0}', space=vmem, size = 0x400, scoped, tag = 'output window, operand 0, single buffered']
    %11 = vsyncpa [#allocation7], 0
    %12 = vsyncpa [#allocation6], 0
    loop: start=0, step=1, limit=4
    $region2: #{fused_conv_linear.1} parent=1 // loop_pre_header
      _
    $region3: #{fused_conv_linear.1} parent=1 // loop_header
      %s14 = sphi 0, %s18
      %p15 = scmp.ge.s32.totalorder %s14, 4
      %s22 = sphi 0, %s22
      %s24 = sphi 0, %s22
      %s25 = sphi 0, %s24
      %s39 = sphi 0, %s25
      %s43 = sphi 0, %s43
      %s45 = sphi 0, %s43
      %s46 = sphi 0, %s45
      %s60 = sphi 0, %s46
      %s66 = sphi 0, %s68
      %s69 = sphi 0, %s66
      %s70 = sphi 0, %s69
      %s86 = sphi 0, %s70
      %s92 = sphi 0, %s94
      %s95 = sphi 0, %s92
      %s96 = sphi 0, %s95
      %s112 = sphi 0, %s96
      %s116 = sphi 0, %s116
      %s118 = sphi 0, %s116
      %s119 = sphi 0, %s118
      %s133 = sphi 0, %s119
      %s137 = sphi 0, %s137
      %s139 = sphi 0, %s137
      %s140 = sphi 0, %s139
      %s154 = sphi 0, %s140
    $region4: #{fused_conv_linear.1} parent=1 // loop_header_branch
      %17 = sbr.rel (%p15) target = $region8
    $region5: #{fused_conv_linear.1} parent=1 // loop_body
      %s19 = ssub.s32 %s14, 1
      %s20 = ssub.s32 %s14, 2
      %s21 = sadd.s32 %s14, 1
      %s23 = sadd.s32 %s22, 1
      %p26 = scmp.eq.s32.totalorder %s14, 1
      %p27 = scmp.ne.s32.totalorder %s22, %s24
      %p28 = scmp.eq.s32.totalorder %s14, 0
      %p29 = por %p27, %p28
      %p30 = scmp.ne.s32.totalorder %s22, %s24
      %p31 = scmp.eq.s32.totalorder %s19, 1
      %p32 = por %p30, %p31
      %p33 = scmp.ne.s32.totalorder %s24, %s25
      %p34 = scmp.eq.s32.totalorder %s19, 0
      %p35 = por %p33, %p34
      %p36 = scmp.ne.s32.totalorder %s24, %s25
      %p37 = scmp.eq.s32.totalorder %s20, 1
      %p38 = por %p36, %p37
      %p40 = scmp.ne.s32.totalorder %s25, %s39
      %p41 = scmp.eq.s32.totalorder %s20, 0
      %p42 = por %p40, %p41
      %s44 = sadd.s32 %s43, 1
      %p47 = scmp.eq.s32.totalorder %s14, 1
      %p48 = scmp.ne.s32.totalorder %s43, %s45
      %p49 = scmp.eq.s32.totalorder %s14, 0
      %p50 = por %p48, %p49
      %p51 = scmp.ne.s32.totalorder %s43, %s45
      %p52 = scmp.eq.s32.totalorder %s19, 1
      %p53 = por %p51, %p52
      %p54 = scmp.ne.s32.totalorder %s45, %s46
      %p55 = scmp.eq.s32.totalorder %s19, 0
      %p56 = por %p54, %p55
      %p57 = scmp.ne.s32.totalorder %s45, %s46
      %p58 = scmp.eq.s32.totalorder %s20, 1
      %p59 = por %p57, %p58
      %p61 = scmp.ne.s32.totalorder %s46, %s60
      %p62 = scmp.eq.s32.totalorder %s20, 0
      %p63 = por %p61, %p62
      %s64 = ssub.s32 %s14, %s21
      %p65 = scmp.eq.s32.totalorder %s64, 0
      %s67 = sadd.s32 %s66, 1
      %s68 = scalar_select %p65, %s66, %s67
      %p71 = pneg %p65
      %p72 = scmp.eq.s32.totalorder %s14, 1
      %p73 = por %p71, %p72
      %p74 = scmp.ne.s32.totalorder %s66, %s69
      %p75 = scmp.eq.s32.totalorder %s14, 0
      %p76 = por %p74, %p75
      %p77 = scmp.ne.s32.totalorder %s66, %s69
      %p78 = scmp.eq.s32.totalorder %s19, 1
      %p79 = por %p77, %p78
      %p80 = scmp.ne.s32.totalorder %s69, %s70
      %p81 = scmp.eq.s32.totalorder %s19, 0
      %p82 = por %p80, %p81
      %p83 = scmp.ne.s32.totalorder %s69, %s70
      %p84 = scmp.eq.s32.totalorder %s20, 1
      %p85 = por %p83, %p84
      %p87 = scmp.ne.s32.totalorder %s70, %s86
      %p88 = scmp.eq.s32.totalorder %s20, 0
      %p89 = por %p87, %p88
      %s90 = ssub.s32 %s14, %s21
      %p91 = scmp.eq.s32.totalorder %s90, 0
      %s93 = sadd.s32 %s92, 1
      %s94 = scalar_select %p91, %s92, %s93
      %p97 = pneg %p91
      %p98 = scmp.eq.s32.totalorder %s14, 1
      %p99 = por %p97, %p98
      %p100 = scmp.ne.s32.totalorder %s92, %s95
      %p101 = scmp.eq.s32.totalorder %s14, 0
      %p102 = por %p100, %p101
      %p103 = scmp.ne.s32.totalorder %s92, %s95
      %p104 = scmp.eq.s32.totalorder %s19, 1
      %p105 = por %p103, %p104
      %p106 = scmp.ne.s32.totalorder %s95, %s96
      %p107 = scmp.eq.s32.totalorder %s19, 0
      %p108 = por %p106, %p107
      %p109 = scmp.ne.s32.totalorder %s95, %s96
      %p110 = scmp.eq.s32.totalorder %s20, 1
      %p111 = por %p109, %p110
      %p113 = scmp.ne.s32.totalorder %s96, %s112
      %p114 = scmp.eq.s32.totalorder %s20, 0
      %p115 = por %p113, %p114
      %s117 = sadd.s32 %s116, 1
      %p120 = scmp.eq.s32.totalorder %s14, 1
      %p121 = scmp.ne.s32.totalorder %s116, %s118
      %p122 = scmp.eq.s32.totalorder %s14, 0
      %p123 = por %p121, %p122
      %p124 = scmp.ne.s32.totalorder %s116, %s118
      %p125 = scmp.eq.s32.totalorder %s19, 1
      %p126 = por %p124, %p125
      %p127 = scmp.ne.s32.totalorder %s118, %s119
      %p128 = scmp.eq.s32.totalorder %s19, 0
      %p129 = por %p127, %p128
      %p130 = scmp.ne.s32.totalorder %s118, %s119
      %p131 = scmp.eq.s32.totalorder %s20, 1
      %p132 = por %p130, %p131
      %p134 = scmp.ne.s32.totalorder %s119, %s133
      %p135 = scmp.eq.s32.totalorder %s20, 0
      %p136 = por %p134, %p135
      %s138 = sadd.s32 %s137, 1
      %p141 = scmp.eq.s32.totalorder %s14, 1
      %p142 = scmp.ne.s32.totalorder %s137, %s139
      %p143 = scmp.eq.s32.totalorder %s14, 0
      %p144 = por %p142, %p143
      %p145 = scmp.ne.s32.totalorder %s137, %s139
      %p146 = scmp.eq.s32.totalorder %s19, 1
      %p147 = por %p145, %p146
      %p148 = scmp.ne.s32.totalorder %s139, %s140
      %p149 = scmp.eq.s32.totalorder %s19, 0
      %p150 = por %p148, %p149
      %p151 = scmp.ne.s32.totalorder %s139, %s140
      %p152 = scmp.eq.s32.totalorder %s20, 1
      %p153 = por %p151, %p152
      %p155 = scmp.ne.s32.totalorder %s140, %s154
      %p156 = scmp.eq.s32.totalorder %s20, 0
      %p157 = por %p155, %p156
      %p158 = scmp.le.s32.totalorder 1, %s14
      %p159 = scmp.lt.s32.totalorder %s14, 3
      %p160 = pnand %p158, %p159
      %p161 = pneg %p160
      // Predicated region
      $region9: #{fused_conv_linear.1} parent=5 // pred_check
        _
      $region10: #{fused_conv_linear.1} parent=5 // pred_check_branch
        %163 = sbr.rel (%p160) target = $region12
      $region11: #{fused_conv_linear.1} parent=5 // pred_region
        %s164 = ssub.s32 %s14, 1
        // Predicated region
        $region13: #{fused_conv_linear.1} parent=11 // pred_check
          %p165 = pneg %p35
        $region14: #{fused_conv_linear.1} parent=11 // pred_check_branch
          %167 = sbr.rel (%p165) target = $region16
        $region15: #{fused_conv_linear.1} parent=11 // pred_region
          %s169 = ssub.s32 16, 16
          %170 = vsyncadd [#allocation7], %s169
          %s172 = sshll.u32 %s0, 4
          %s173 = int_to_ptr.vmem [resolvable:$true] %s172
          %175 = dma.vmem_to_smem %s173, 16, [#allocation5], [#allocation7]
        $region16: #{fused_conv_linear.1} parent=11 // pred_fallthru
          _
        // Predicated region
        $region17: #{fused_conv_linear.1} parent=11 // pred_check
          %p176 = pneg %p56
        $region18: #{fused_conv_linear.1} parent=11 // pred_check_branch
          %178 = sbr.rel (%p176) target = $region20
        $region19: #{fused_conv_linear.1} parent=11 // pred_region
          _
        $region20: #{fused_conv_linear.1} parent=11 // pred_fallthru
          _
        // Predicated region
        $region21: #{fused_conv_linear.1} parent=11 // pred_check
          %p179 = pneg %p129
        $region22: #{fused_conv_linear.1} parent=11 // pred_check_branch
          %181 = sbr.rel (%p179) target = $region24
        $region23: #{fused_conv_linear.1} parent=11 // pred_region
          _
        $region24: #{fused_conv_linear.1} parent=11 // pred_fallthru
          _
      $region12: #{fused_conv_linear.1} parent=5 // pred_fallthru
        _
      %p182 = scmp.lt.s32.totalorder %s14, 2
      // Predicated region
      $region25: #{fused_conv_linear.1} parent=5 // pred_check
        %p183 = pneg %p182
      $region26: #{fused_conv_linear.1} parent=5 // pred_check_branch
        %185 = sbr.rel (%p183) target = $region28
      $region27: #{fused_conv_linear.1} parent=5 // pred_region
        // Predicated region
        $region29: #{fused_conv_linear.1} parent=27 // pred_check
          %p186 = pneg %p76
        $region30: #{fused_conv_linear.1} parent=27 // pred_check_branch
          %188 = sbr.rel (%p186) target = $region32
        $region31: #{fused_conv_linear.1} parent=27 // pred_region
          %s189 = smul.u32 196, %s14
          %p190 = scmp.lt.s32.totalorder %s189, 391
          %s191 = scalar_select %p190, %s189, 391
          %s192 = smul.addr %s191, 4
          %s193 = scalar_lea.vmem %s2, %s192
          %s194 = smul.u32 196, %s14
        $region32: #{fused_conv_linear.1} parent=27 // pred_fallthru
          _
        // Predicated region
        $region33: #{fused_conv_linear.1} parent=27 // pred_check
          %p195 = pneg %p102
        $region34: #{fused_conv_linear.1} parent=27 // pred_check_branch
          %197 = sbr.rel (%p195) target = $region36
        $region35: #{fused_conv_linear.1} parent=27 // pred_region
          %s198 = smul.u32 196, %s14
          %p199 = scmp.lt.s32.totalorder %s198, 391
          %s200 = scalar_select %p199, %s198, 391
          %s201 = smul.addr %s200, 4
          %s202 = scalar_lea.vmem %s3, %s201
          %s203 = smul.u32 196, %s14
        $region36: #{fused_conv_linear.1} parent=27 // pred_fallthru
          _
      $region28: #{fused_conv_linear.1} parent=5 // pred_fallthru
        _
      %p204 = scmp.le.s32.totalorder 1, %s14
      %p205 = scmp.lt.s32.totalorder %s14, 3
      %p206 = pnand %p204, %p205
      %p207 = pneg %p206
      // Predicated region
      $region37: #{fused_conv_linear.1} parent=5 // pred_check
        _
      $region38: #{fused_conv_linear.1} parent=5 // pred_check_branch
        %209 = sbr.rel (%p206) target = $region40
      $region39: #{fused_conv_linear.1} parent=5 // pred_region
        %s210 = ssub.s32 %s14, 1
        // Predicated region
        $region41: #{fused_conv_linear.1} parent=39 // pred_check
          %p211 = pneg %p35
        $region42: #{fused_conv_linear.1} parent=39 // pred_check_branch
          %213 = sbr.rel (%p211) target = $region44
        $region43: #{fused_conv_linear.1} parent=39 // pred_region
          %214 = dma.done [#allocation7], 16
        $region44: #{fused_conv_linear.1} parent=39 // pred_fallthru
          _
        %215 = sfence
        %p216 = pneg %p35
        %p217 = pneg %p32
        %p218 = pneg %p56
        %p219 = pneg %p53
        %s220 = smul.u32 196, %s19
        %p221 = scmp.lt.s32.totalorder %s220, 391
        %s222 = scalar_select %p221, %s220, 391
        %s223 = smul.addr %s222, 4
        %s224 = scalar_lea.vmem %s2, %s223
        %p225 = pneg %p82
        %p226 = pneg %p79
        %s227 = smul.u32 196, %s19
        %p228 = scmp.lt.s32.totalorder %s227, 391
        %s229 = scalar_select %p228, %s227, 391
        %s230 = smul.addr %s229, 4
        %s231 = scalar_lea.vmem %s3, %s230
        %p232 = pneg %p108
        %p233 = pneg %p105
        %p234 = pneg %p129
        %p235 = pneg %p126
        %p236 = pneg %p150
        %p237 = pneg %p147
        %s238 = smul.u32 196, %s19
        %p239 = scmp.lt.s32.totalorder %s238, 391
        %s240 = scalar_select %p239, %s238, 391
        %s241 = smul.addr %s240, 4
        %s242 = scalar_lea.vmem %s2, %s241
        %s243 = smul.u32 196, %s19
        %s244 = smul.u32 196, %s19
        %p245 = scmp.lt.s32.totalorder %s244, 391
        %s246 = scalar_select %p245, %s244, 391
        %s247 = smul.addr %s246, 4
        %s248 = scalar_lea.vmem %s3, %s247
        %s249 = smul.u32 196, %s19
        %p252 = scmp.eq.s32.totalorder %s19, 0
        // Predicated region
        $region45: #{fused_conv_linear.1} parent=39 // pred_check
          %p253 = pneg %p252
        $region46: #{fused_conv_linear.1} parent=39 // pred_check_branch
          %255 = sbr.rel (%p253) target = $region48
        $region47: #{fused_conv_linear.1} parent=39 // pred_region
          %vm256 = vcmask 34816
          %257 = vst.msk [vmem:[#allocation2] sm:$0x7] %vm256, 0.0
          %vm258 = vcmask 32768
          %259 = vst.msk [vmem:[#allocation3] sm:$0x1] %vm258, 0.0
        $region48: #{fused_conv_linear.1} parent=39 // pred_fallthru
          _
        %v260 = vld [vmem:[%s242] sm:$0x77]
        %v261 = vld [vmem:[%s242 + $0x8] sm:$0x77]
        %v262 = vld [vmem:[%s242 + $0x10] sm:$0x77]
        %v263 = vld [vmem:[%s242 + $0x18] sm:$0x77]
        %v264 = vld [vmem:[%s242 + $0x20] sm:$0x77]
        %v265 = vld [vmem:[%s242 + $0x28] sm:$0x77]
        %v266 = vld [vmem:[%s242 + $0x30] sm:$0x77]
        %v267 = vld [vmem:[%s242 + $0x38] sm:$0x77]
        %v268 = vld [vmem:[%s242 + $0x40] sm:$0x77]
        %v269 = vld [vmem:[%s242 + $0x48] sm:$0x77]
        %v270 = vld [vmem:[%s242 + $0x50] sm:$0x77]
        %v271 = vld [vmem:[%s242 + $0x58] sm:$0x77]
        %v272 = vld [vmem:[%s242 + $0x60] sm:$0x77]
        %v273 = vld [vmem:[%s242 + $0x68] sm:$0x77]
        %v274 = vld [vmem:[%s242 + $0x70] sm:$0x77]
        %v275 = vld [vmem:[%s242 + $0x78] sm:$0x77]
        %v276 = vld [vmem:[%s242 + $0x80] sm:$0x77]
        %v277 = vld [vmem:[%s242 + $0x88] sm:$0x77]
        %v278 = vld [vmem:[%s242 + $0x90] sm:$0x77]
        %v279 = vld [vmem:[%s242 + $0x98] sm:$0x77]
        %v280 = vld [vmem:[%s242 + $0xa0] sm:$0x77]
        %v281 = vld [vmem:[%s242 + $0xa8] sm:$0x77]
        %v282 = vld [vmem:[%s242 + $0xb0] sm:$0x77]
        %v283 = vld [vmem:[%s242 + $0xb8] sm:$0x77]
        %v284 = vld [vmem:[%s242 + $0xc0] sm:$0x77]
        %v285 = vld [vmem:[%s242 + $0xc8] sm:$0x77]
        %v286 = vld [vmem:[%s242 + $0xd0] sm:$0x77]
        %v287 = vld [vmem:[%s242 + $0xd8] sm:$0x77]
        %v288 = vld [vmem:[%s242 + $0xe0] sm:$0x77]
        %v289 = vld [vmem:[%s242 + $0xe8] sm:$0x77]
        %v290 = vld [vmem:[%s242 + $0xf0] sm:$0x77]
        %v291 = vld [vmem:[%s242 + $0xf8] sm:$0x77]
        %v292 = vld [vmem:[%s242 + $0x100] sm:$0x77]
        %v293 = vld [vmem:[%s242 + $0x108] sm:$0x77]
        %v294 = vld [vmem:[%s242 + $0x110] sm:$0x77]
        %v295 = vld [vmem:[%s242 + $0x118] sm:$0x77]
        %v296 = vld [vmem:[%s242 + $0x120] sm:$0x77]
        %v297 = vld [vmem:[%s242 + $0x128] sm:$0x77]
        %v298 = vld [vmem:[%s242 + $0x130] sm:$0x77]
        %v299 = vld [vmem:[%s242 + $0x138] sm:$0x77]
        %v300 = vld [vmem:[%s242 + $0x140] sm:$0x77]
        %v301 = vld [vmem:[%s242 + $0x148] sm:$0x77]
        %v302 = vld [vmem:[%s242 + $0x150] sm:$0x77]
        %v303 = vld [vmem:[%s242 + $0x158] sm:$0x77]
        %v304 = vld [vmem:[%s242 + $0x160] sm:$0x77]
        %v305 = vld [vmem:[%s242 + $0x168] sm:$0x77]
        %v306 = vld [vmem:[%s242 + $0x170] sm:$0x77]
        %v307 = vld [vmem:[%s242 + $0x178] sm:$0x77]
        %v308 = vld [vmem:[%s242 + $0x180] sm:$0x77]
        %v309 = vld [vmem:[%s242 + $0x188] sm:$0x77]
        %v310 = vld [vmem:[%s242 + $0x190] sm:$0x77]
        %v311 = vld [vmem:[%s242 + $0x198] sm:$0x77]
        %v312 = vld [vmem:[%s242 + $0x1a0] sm:$0x77]
        %v313 = vld [vmem:[%s242 + $0x1a8] sm:$0x77]
        %v314 = vld [vmem:[%s242 + $0x1b0] sm:$0x77]
        %v315 = vld [vmem:[%s242 + $0x1b8] sm:$0x77]
        %v316 = vld [vmem:[%s242 + $0x1c0] sm:$0x77]
        %v317 = vld [vmem:[%s242 + $0x1c8] sm:$0x77]
        %v318 = vld [vmem:[%s242 + $0x1d0] sm:$0x77]
        %v319 = vld [vmem:[%s242 + $0x1d8] sm:$0x77]
        %v320 = vld [vmem:[%s242 + $0x1e0] sm:$0x77]
        %v321 = vld [vmem:[%s242 + $0x1e8] sm:$0x77]
        %v322 = vld [vmem:[%s242 + $0x1f0] sm:$0x77]
        %v323 = vld [vmem:[%s242 + $0x1f8] sm:$0x77]
        %v324 = vld [vmem:[%s242 + $0x200] sm:$0x77]
        %v325 = vld [vmem:[%s242 + $0x208] sm:$0x77]
        %v326 = vld [vmem:[%s242 + $0x210] sm:$0x77]
        %v327 = vld [vmem:[%s242 + $0x218] sm:$0x77]
        %v328 = vld [vmem:[%s242 + $0x220] sm:$0x77]
        %v329 = vld [vmem:[%s242 + $0x228] sm:$0x77]
        %v330 = vld [vmem:[%s242 + $0x230] sm:$0x77]
        %v331 = vld [vmem:[%s242 + $0x238] sm:$0x77]
        %v332 = vld [vmem:[%s242 + $0x240] sm:$0x77]
        %v333 = vld [vmem:[%s242 + $0x248] sm:$0x77]
        %v334 = vld [vmem:[%s242 + $0x250] sm:$0x77]
        %v335 = vld [vmem:[%s242 + $0x258] sm:$0x77]
        %v336 = vld [vmem:[%s242 + $0x260] sm:$0x77]
        %v337 = vld [vmem:[%s242 + $0x268] sm:$0x77]
        %v338 = vld [vmem:[%s242 + $0x270] sm:$0x77]
        %v339 = vld [vmem:[%s242 + $0x278] sm:$0x77]
        %v340 = vld [vmem:[%s242 + $0x280] sm:$0x77]
        %v341 = vld [vmem:[%s242 + $0x288] sm:$0x77]
        %v342 = vld [vmem:[%s242 + $0x290] sm:$0x77]
        %v343 = vld [vmem:[%s242 + $0x298] sm:$0x77]
        %v344 = vld [vmem:[%s242 + $0x2a0] sm:$0x77]
        %v345 = vld [vmem:[%s242 + $0x2a8] sm:$0x77]
        %v346 = vld [vmem:[%s242 + $0x2b0] sm:$0x77]
        %v347 = vld [vmem:[%s242 + $0x2b8] sm:$0x77]
        %v348 = vld [vmem:[%s242 + $0x2c0] sm:$0x77]
        %v349 = vld [vmem:[%s242 + $0x2c8] sm:$0x77]
        %v350 = vld [vmem:[%s242 + $0x2d0] sm:$0x77]
        %v351 = vld [vmem:[%s242 + $0x2d8] sm:$0x77]
        %v352 = vld [vmem:[%s242 + $0x2e0] sm:$0x77]
        %v353 = vld [vmem:[%s242 + $0x2e8] sm:$0x77]
        %v354 = vld [vmem:[%s242 + $0x2f0] sm:$0x77]
        %v355 = vld [vmem:[%s242 + $0x2f8] sm:$0x77]
        %v356 = vld [vmem:[%s242 + $0x300] sm:$0x77]
        %v357 = vld [vmem:[%s242 + $0x308] sm:$0x77]
        %v456 = vcombine.high %v260, %v260
        %v457 = vcombine.high %v261, %v261
        %v458 = vcombine.high %v262, %v262
        %v459 = vcombine.high %v263, %v263
        %v460 = vcombine.high %v264, %v264
        %v461 = vcombine.high %v265, %v265
        %v462 = vcombine.high %v266, %v266
        %v463 = vcombine.high %v267, %v267
        %v464 = vcombine.high %v268, %v268
        %v465 = vcombine.high %v269, %v269
        %v466 = vcombine.high %v270, %v270
        %v467 = vcombine.high %v271, %v271
        %v468 = vcombine.high %v272, %v272
        %v469 = vcombine.high %v273, %v273
        %v470 = vcombine.high %v274, %v274
        %v471 = vcombine.high %v275, %v275
        %v472 = vcombine.high %v276, %v276
        %v473 = vcombine.high %v277, %v277
        %v474 = vcombine.high %v278, %v278
        %v475 = vcombine.high %v279, %v279
        %v476 = vcombine.high %v280, %v280
        %v477 = vcombine.high %v281, %v281
        %v478 = vcombine.high %v282, %v282
        %v479 = vcombine.high %v283, %v283
        %v480 = vcombine.high %v284, %v284
        %v481 = vcombine.high %v285, %v285
        %v482 = vcombine.high %v286, %v286
        %v483 = vcombine.high %v287, %v287
        %v484 = vcombine.high %v288, %v288
        %v485 = vcombine.high %v289, %v289
        %v486 = vcombine.high %v290, %v290
        %v487 = vcombine.high %v291, %v291
        %v488 = vcombine.high %v292, %v292
        %v489 = vcombine.high %v293, %v293
        %v490 = vcombine.high %v294, %v294
        %v491 = vcombine.high %v295, %v295
        %v492 = vcombine.high %v296, %v296
        %v493 = vcombine.high %v297, %v297
        %v494 = vcombine.high %v298, %v298
        %v495 = vcombine.high %v299, %v299
        %v496 = vcombine.high %v300, %v300
        %v497 = vcombine.high %v301, %v301
        %v498 = vcombine.high %v302, %v302
        %v499 = vcombine.high %v303, %v303
        %v500 = vcombine.high %v304, %v304
        %v501 = vcombine.high %v305, %v305
        %v502 = vcombine.high %v306, %v306
        %v503 = vcombine.high %v307, %v307
        %v504 = vcombine.high %v308, %v308
        %v505 = vcombine.high %v309, %v309
        %v506 = vcombine.high %v310, %v310
        %v507 = vcombine.high %v311, %v311
        %v508 = vcombine.high %v312, %v312
        %v509 = vcombine.high %v313, %v313
        %v510 = vcombine.high %v314, %v314
        %v511 = vcombine.high %v315, %v315
        %v512 = vcombine.high %v316, %v316
        %v513 = vcombine.high %v317, %v317
        %v514 = vcombine.high %v318, %v318
        %v515 = vcombine.high %v319, %v319
        %v516 = vcombine.high %v320, %v320
        %v517 = vcombine.high %v321, %v321
        %v518 = vcombine.high %v322, %v322
        %v519 = vcombine.high %v323, %v323
        %v520 = vcombine.high %v324, %v324
        %v521 = vcombine.high %v325, %v325
        %v522 = vcombine.high %v326, %v326
        %v523 = vcombine.high %v327, %v327
        %v524 = vcombine.high %v328, %v328
        %v525 = vcombine.high %v329, %v329
        %v526 = vcombine.high %v330, %v330
        %v527 = vcombine.high %v331, %v331
        %v528 = vcombine.high %v332, %v332
        %v529 = vcombine.high %v333, %v333
        %v530 = vcombine.high %v334, %v334
        %v531 = vcombine.high %v335, %v335
        %v532 = vcombine.high %v336, %v336
        %v533 = vcombine.high %v337, %v337
        %v534 = vcombine.high %v338, %v338
        %v535 = vcombine.high %v339, %v339
        %v536 = vcombine.high %v340, %v340
        %v537 = vcombine.high %v341, %v341
        %v538 = vcombine.high %v342, %v342
        %v539 = vcombine.high %v343, %v343
        %v540 = vcombine.high %v344, %v344
        %v541 = vcombine.high %v345, %v345
        %v542 = vcombine.high %v346, %v346
        %v543 = vcombine.high %v347, %v347
        %v544 = vcombine.high %v348, %v348
        %v545 = vcombine.high %v349, %v349
        %v546 = vcombine.high %v350, %v350
        %v547 = vcombine.high %v351, %v351
        %v548 = vcombine.high %v352, %v352
        %v549 = vcombine.high %v353, %v353
        %v550 = vcombine.high %v354, %v354
        %v551 = vcombine.high %v355, %v355
        %v552 = vcombine.high %v356, %v356
        %v553 = vcombine.high %v357, %v357
        %v652 = vpack.c.bf16 %v260, %v260
        %v653 = vpack.c.bf16 %v456, %v456
        %v654 = vpack.c.bf16 %v261, %v261
        %v655 = vpack.c.bf16 %v457, %v457
        %v656 = vpack.c.bf16 %v262, %v262
        %v657 = vpack.c.bf16 %v458, %v458
        %v658 = vpack.c.bf16 %v263, %v263
        %v659 = vpack.c.bf16 %v459, %v459
        %v660 = vpack.c.bf16 %v264, %v264
        %v661 = vpack.c.bf16 %v460, %v460
        %v662 = vpack.c.bf16 %v265, %v265
        %v663 = vpack.c.bf16 %v461, %v461
        %v664 = vpack.c.bf16 %v266, %v266
        %v665 = vpack.c.bf16 %v462, %v462
        %v666 = vpack.c.bf16 %v267, %v267
        %v667 = vpack.c.bf16 %v463, %v463
        %v668 = vpack.c.bf16 %v268, %v268
        %v669 = vpack.c.bf16 %v464, %v464
        %v670 = vpack.c.bf16 %v269, %v269
        %v671 = vpack.c.bf16 %v465, %v465
        %v672 = vpack.c.bf16 %v270, %v270
        %v673 = vpack.c.bf16 %v466, %v466
        %v674 = vpack.c.bf16 %v271, %v271
        %v675 = vpack.c.bf16 %v467, %v467
        %v676 = vpack.c.bf16 %v272, %v272
        %v677 = vpack.c.bf16 %v468, %v468
        %v678 = vpack.c.bf16 %v273, %v273
        %v679 = vpack.c.bf16 %v469, %v469
        %v680 = vpack.c.bf16 %v274, %v274
        %v681 = vpack.c.bf16 %v470, %v470
        %v682 = vpack.c.bf16 %v275, %v275
        %v683 = vpack.c.bf16 %v471, %v471
        %v684 = vpack.c.bf16 %v276, %v276
        %v685 = vpack.c.bf16 %v472, %v472
        %v686 = vpack.c.bf16 %v277, %v277
        %v687 = vpack.c.bf16 %v473, %v473
        %v688 = vpack.c.bf16 %v278, %v278
        %v689 = vpack.c.bf16 %v474, %v474
        %v690 = vpack.c.bf16 %v279, %v279
        %v691 = vpack.c.bf16 %v475, %v475
        %v692 = vpack.c.bf16 %v280, %v280
        %v693 = vpack.c.bf16 %v476, %v476
        %v694 = vpack.c.bf16 %v281, %v281
        %v695 = vpack.c.bf16 %v477, %v477
        %v696 = vpack.c.bf16 %v282, %v282
        %v697 = vpack.c.bf16 %v478, %v478
        %v698 = vpack.c.bf16 %v283, %v283
        %v699 = vpack.c.bf16 %v479, %v479
        %v700 = vpack.c.bf16 %v284, %v284
        %v701 = vpack.c.bf16 %v480, %v480
        %v702 = vpack.c.bf16 %v285, %v285
        %v703 = vpack.c.bf16 %v481, %v481
        %v704 = vpack.c.bf16 %v286, %v286
        %v705 = vpack.c.bf16 %v482, %v482
        %v706 = vpack.c.bf16 %v287, %v287
        %v707 = vpack.c.bf16 %v483, %v483
        %v708 = vpack.c.bf16 %v288, %v288
        %v709 = vpack.c.bf16 %v484, %v484
        %v710 = vpack.c.bf16 %v289, %v289
        %v711 = vpack.c.bf16 %v485, %v485
        %v712 = vpack.c.bf16 %v290, %v290
        %v713 = vpack.c.bf16 %v486, %v486
        %v714 = vpack.c.bf16 %v291, %v291
        %v715 = vpack.c.bf16 %v487, %v487
        %v716 = vpack.c.bf16 %v292, %v292
        %v717 = vpack.c.bf16 %v488, %v488
        %v718 = vpack.c.bf16 %v293, %v293
        %v719 = vpack.c.bf16 %v489, %v489
        %v720 = vpack.c.bf16 %v294, %v294
        %v721 = vpack.c.bf16 %v490, %v490
        %v722 = vpack.c.bf16 %v295, %v295
        %v723 = vpack.c.bf16 %v491, %v491
        %v724 = vpack.c.bf16 %v296, %v296
        %v725 = vpack.c.bf16 %v492, %v492
        %v726 = vpack.c.bf16 %v297, %v297
        %v727 = vpack.c.bf16 %v493, %v493
        %v728 = vpack.c.bf16 %v298, %v298
        %v729 = vpack.c.bf16 %v494, %v494
        %v730 = vpack.c.bf16 %v299, %v299
        %v731 = vpack.c.bf16 %v495, %v495
        %v732 = vpack.c.bf16 %v300, %v300
        %v733 = vpack.c.bf16 %v496, %v496
        %v734 = vpack.c.bf16 %v301, %v301
        %v735 = vpack.c.bf16 %v497, %v497
        %v736 = vpack.c.bf16 %v302, %v302
        %v737 = vpack.c.bf16 %v498, %v498
        %v738 = vpack.c.bf16 %v303, %v303
        %v739 = vpack.c.bf16 %v499, %v499
        %v740 = vpack.c.bf16 %v304, %v304
        %v741 = vpack.c.bf16 %v500, %v500
        %v742 = vpack.c.bf16 %v305, %v305
        %v743 = vpack.c.bf16 %v501, %v501
        %v744 = vpack.c.bf16 %v306, %v306
        %v745 = vpack.c.bf16 %v502, %v502
        %v746 = vpack.c.bf16 %v307, %v307
        %v747 = vpack.c.bf16 %v503, %v503
        %v748 = vpack.c.bf16 %v308, %v308
        %v749 = vpack.c.bf16 %v504, %v504
        %v750 = vpack.c.bf16 %v309, %v309
        %v751 = vpack.c.bf16 %v505, %v505
        %v752 = vpack.c.bf16 %v310, %v310
        %v753 = vpack.c.bf16 %v506, %v506
        %v754 = vpack.c.bf16 %v311, %v311
        %v755 = vpack.c.bf16 %v507, %v507
        %v756 = vpack.c.bf16 %v312, %v312
        %v757 = vpack.c.bf16 %v508, %v508
        %v758 = vpack.c.bf16 %v313, %v313
        %v759 = vpack.c.bf16 %v509, %v509
        %v760 = vpack.c.bf16 %v314, %v314
        %v761 = vpack.c.bf16 %v510, %v510
        %v762 = vpack.c.bf16 %v315, %v315
        %v763 = vpack.c.bf16 %v511, %v511
        %v764 = vpack.c.bf16 %v316, %v316
        %v765 = vpack.c.bf16 %v512, %v512
        %v766 = vpack.c.bf16 %v317, %v317
        %v767 = vpack.c.bf16 %v513, %v513
        %v768 = vpack.c.bf16 %v318, %v318
        %v769 = vpack.c.bf16 %v514, %v514
        %v770 = vpack.c.bf16 %v319, %v319
        %v771 = vpack.c.bf16 %v515, %v515
        %v772 = vpack.c.bf16 %v320, %v320
        %v773 = vpack.c.bf16 %v516, %v516
        %v774 = vpack.c.bf16 %v321, %v321
        %v775 = vpack.c.bf16 %v517, %v517
        %v776 = vpack.c.bf16 %v322, %v322
        %v777 = vpack.c.bf16 %v518, %v518
        %v778 = vpack.c.bf16 %v323, %v323
        %v779 = vpack.c.bf16 %v519, %v519
        %v780 = vpack.c.bf16 %v324, %v324
        %v781 = vpack.c.bf16 %v520, %v520
        %v782 = vpack.c.bf16 %v325, %v325
        %v783 = vpack.c.bf16 %v521, %v521
        %v784 = vpack.c.bf16 %v326, %v326
        %v785 = vpack.c.bf16 %v522, %v522
        %v786 = vpack.c.bf16 %v327, %v327
        %v787 = vpack.c.bf16 %v523, %v523
        %v788 = vpack.c.bf16 %v328, %v328
        %v789 = vpack.c.bf16 %v524, %v524
        %v790 = vpack.c.bf16 %v329, %v329
        %v791 = vpack.c.bf16 %v525, %v525
        %v792 = vpack.c.bf16 %v330, %v330
        %v793 = vpack.c.bf16 %v526, %v526
        %v794 = vpack.c.bf16 %v331, %v331
        %v795 = vpack.c.bf16 %v527, %v527
        %v796 = vpack.c.bf16 %v332, %v332
        %v797 = vpack.c.bf16 %v528, %v528
        %v798 = vpack.c.bf16 %v333, %v333
        %v799 = vpack.c.bf16 %v529, %v529
        %v800 = vpack.c.bf16 %v334, %v334
        %v801 = vpack.c.bf16 %v530, %v530
        %v802 = vpack.c.bf16 %v335, %v335
        %v803 = vpack.c.bf16 %v531, %v531
        %v804 = vpack.c.bf16 %v336, %v336
        %v805 = vpack.c.bf16 %v532, %v532
        %v806 = vpack.c.bf16 %v337, %v337
        %v807 = vpack.c.bf16 %v533, %v533
        %v808 = vpack.c.bf16 %v338, %v338
        %v809 = vpack.c.bf16 %v534, %v534
        %v810 = vpack.c.bf16 %v339, %v339
        %v811 = vpack.c.bf16 %v535, %v535
        %v812 = vpack.c.bf16 %v340, %v340
        %v813 = vpack.c.bf16 %v536, %v536
        %v814 = vpack.c.bf16 %v341, %v341
        %v815 = vpack.c.bf16 %v537, %v537
        %v816 = vpack.c.bf16 %v342, %v342
        %v817 = vpack.c.bf16 %v538, %v538
        %v818 = vpack.c.bf16 %v343, %v343
        %v819 = vpack.c.bf16 %v539, %v539
        %v820 = vpack.c.bf16 %v344, %v344
        %v821 = vpack.c.bf16 %v540, %v540
        %v822 = vpack.c.bf16 %v345, %v345
        %v823 = vpack.c.bf16 %v541, %v541
        %v824 = vpack.c.bf16 %v346, %v346
        %v825 = vpack.c.bf16 %v542, %v542
        %v826 = vpack.c.bf16 %v347, %v347
        %v827 = vpack.c.bf16 %v543, %v543
        %v828 = vpack.c.bf16 %v348, %v348
        %v829 = vpack.c.bf16 %v544, %v544
        %v830 = vpack.c.bf16 %v349, %v349
        %v831 = vpack.c.bf16 %v545, %v545
        %v832 = vpack.c.bf16 %v350, %v350
        %v833 = vpack.c.bf16 %v546, %v546
        %v834 = vpack.c.bf16 %v351, %v351
        %v835 = vpack.c.bf16 %v547, %v547
        %v836 = vpack.c.bf16 %v352, %v352
        %v837 = vpack.c.bf16 %v548, %v548
        %v838 = vpack.c.bf16 %v353, %v353
        %v839 = vpack.c.bf16 %v549, %v549
        %v840 = vpack.c.bf16 %v354, %v354
        %v841 = vpack.c.bf16 %v550, %v550
        %v842 = vpack.c.bf16 %v355, %v355
        %v843 = vpack.c.bf16 %v551, %v551
        %v844 = vpack.c.bf16 %v356, %v356
        %v845 = vpack.c.bf16 %v552, %v552
        %v846 = vpack.c.bf16 %v357, %v357
        %v847 = vpack.c.bf16 %v553, %v553
        %v848 = vld [vmem:[%s248] sm:$0x77]
        %v849 = vld [vmem:[%s248 + $0x8] sm:$0x77]
        %v850 = vld [vmem:[%s248 + $0x10] sm:$0x77]
        %v851 = vld [vmem:[%s248 + $0x18] sm:$0x77]
        %v852 = vld [vmem:[%s248 + $0x20] sm:$0x77]
        %v853 = vld [vmem:[%s248 + $0x28] sm:$0x77]
        %v854 = vld [vmem:[%s248 + $0x30] sm:$0x77]
        %v855 = vld [vmem:[%s248 + $0x38] sm:$0x77]
        %v856 = vld [vmem:[%s248 + $0x40] sm:$0x77]
        %v857 = vld [vmem:[%s248 + $0x48] sm:$0x77]
        %v858 = vld [vmem:[%s248 + $0x50] sm:$0x77]
        %v859 = vld [vmem:[%s248 + $0x58] sm:$0x77]
        %v860 = vld [vmem:[%s248 + $0x60] sm:$0x77]
        %v861 = vld [vmem:[%s248 + $0x68] sm:$0x77]
        %v862 = vld [vmem:[%s248 + $0x70] sm:$0x77]
        %v863 = vld [vmem:[%s248 + $0x78] sm:$0x77]
        %v864 = vld [vmem:[%s248 + $0x80] sm:$0x77]
        %v865 = vld [vmem:[%s248 + $0x88] sm:$0x77]
        %v866 = vld [vmem:[%s248 + $0x90] sm:$0x77]
        %v867 = vld [vmem:[%s248 + $0x98] sm:$0x77]
        %v868 = vld [vmem:[%s248 + $0xa0] sm:$0x77]
        %v869 = vld [vmem:[%s248 + $0xa8] sm:$0x77]
        %v870 = vld [vmem:[%s248 + $0xb0] sm:$0x77]
        %v871 = vld [vmem:[%s248 + $0xb8] sm:$0x77]
        %v872 = vld [vmem:[%s248 + $0xc0] sm:$0x77]
        %v873 = vld [vmem:[%s248 + $0xc8] sm:$0x77]
        %v874 = vld [vmem:[%s248 + $0xd0] sm:$0x77]
        %v875 = vld [vmem:[%s248 + $0xd8] sm:$0x77]
        %v876 = vld [vmem:[%s248 + $0xe0] sm:$0x77]
        %v877 = vld [vmem:[%s248 + $0xe8] sm:$0x77]
        %v878 = vld [vmem:[%s248 + $0xf0] sm:$0x77]
        %v879 = vld [vmem:[%s248 + $0xf8] sm:$0x77]
        %v880 = vld [vmem:[%s248 + $0x100] sm:$0x77]
        %v881 = vld [vmem:[%s248 + $0x108] sm:$0x77]
        %v882 = vld [vmem:[%s248 + $0x110] sm:$0x77]
        %v883 = vld [vmem:[%s248 + $0x118] sm:$0x77]
        %v884 = vld [vmem:[%s248 + $0x120] sm:$0x77]
        %v885 = vld [vmem:[%s248 + $0x128] sm:$0x77]
        %v886 = vld [vmem:[%s248 + $0x130] sm:$0x77]
        %v887 = vld [vmem:[%s248 + $0x138] sm:$0x77]
        %v888 = vld [vmem:[%s248 + $0x140] sm:$0x77]
        %v889 = vld [vmem:[%s248 + $0x148] sm:$0x77]
        %v890 = vld [vmem:[%s248 + $0x150] sm:$0x77]
        %v891 = vld [vmem:[%s248 + $0x158] sm:$0x77]
        %v892 = vld [vmem:[%s248 + $0x160] sm:$0x77]
        %v893 = vld [vmem:[%s248 + $0x168] sm:$0x77]
        %v894 = vld [vmem:[%s248 + $0x170] sm:$0x77]
        %v895 = vld [vmem:[%s248 + $0x178] sm:$0x77]
        %v896 = vld [vmem:[%s248 + $0x180] sm:$0x77]
        %v897 = vld [vmem:[%s248 + $0x188] sm:$0x77]
        %v898 = vld [vmem:[%s248 + $0x190] sm:$0x77]
        %v899 = vld [vmem:[%s248 + $0x198] sm:$0x77]
        %v900 = vld [vmem:[%s248 + $0x1a0] sm:$0x77]
        %v901 = vld [vmem:[%s248 + $0x1a8] sm:$0x77]
        %v902 = vld [vmem:[%s248 + $0x1b0] sm:$0x77]
        %v903 = vld [vmem:[%s248 + $0x1b8] sm:$0x77]
        %v904 = vld [vmem:[%s248 + $0x1c0] sm:$0x77]
        %v905 = vld [vmem:[%s248 + $0x1c8] sm:$0x77]
        %v906 = vld [vmem:[%s248 + $0x1d0] sm:$0x77]
        %v907 = vld [vmem:[%s248 + $0x1d8] sm:$0x77]
        %v908 = vld [vmem:[%s248 + $0x1e0] sm:$0x77]
        %v909 = vld [vmem:[%s248 + $0x1e8] sm:$0x77]
        %v910 = vld [vmem:[%s248 + $0x1f0] sm:$0x77]
        %v911 = vld [vmem:[%s248 + $0x1f8] sm:$0x77]
        %v912 = vld [vmem:[%s248 + $0x200] sm:$0x77]
        %v913 = vld [vmem:[%s248 + $0x208] sm:$0x77]
        %v914 = vld [vmem:[%s248 + $0x210] sm:$0x77]
        %v915 = vld [vmem:[%s248 + $0x218] sm:$0x77]
        %v916 = vld [vmem:[%s248 + $0x220] sm:$0x77]
        %v917 = vld [vmem:[%s248 + $0x228] sm:$0x77]
        %v918 = vld [vmem:[%s248 + $0x230] sm:$0x77]
        %v919 = vld [vmem:[%s248 + $0x238] sm:$0x77]
        %v920 = vld [vmem:[%s248 + $0x240] sm:$0x77]
        %v921 = vld [vmem:[%s248 + $0x248] sm:$0x77]
        %v922 = vld [vmem:[%s248 + $0x250] sm:$0x77]
        %v923 = vld [vmem:[%s248 + $0x258] sm:$0x77]
        %v924 = vld [vmem:[%s248 + $0x260] sm:$0x77]
        %v925 = vld [vmem:[%s248 + $0x268] sm:$0x77]
        %v926 = vld [vmem:[%s248 + $0x270] sm:$0x77]
        %v927 = vld [vmem:[%s248 + $0x278] sm:$0x77]
        %v928 = vld [vmem:[%s248 + $0x280] sm:$0x77]
        %v929 = vld [vmem:[%s248 + $0x288] sm:$0x77]
        %v930 = vld [vmem:[%s248 + $0x290] sm:$0x77]
        %v931 = vld [vmem:[%s248 + $0x298] sm:$0x77]
        %v932 = vld [vmem:[%s248 + $0x2a0] sm:$0x77]
        %v933 = vld [vmem:[%s248 + $0x2a8] sm:$0x77]
        %v934 = vld [vmem:[%s248 + $0x2b0] sm:$0x77]
        %v935 = vld [vmem:[%s248 + $0x2b8] sm:$0x77]
        %v936 = vld [vmem:[%s248 + $0x2c0] sm:$0x77]
        %v937 = vld [vmem:[%s248 + $0x2c8] sm:$0x77]
        %v938 = vld [vmem:[%s248 + $0x2d0] sm:$0x77]
        %v939 = vld [vmem:[%s248 + $0x2d8] sm:$0x77]
        %v940 = vld [vmem:[%s248 + $0x2e0] sm:$0x77]
        %v941 = vld [vmem:[%s248 + $0x2e8] sm:$0x77]
        %v942 = vld [vmem:[%s248 + $0x2f0] sm:$0x77]
        %v943 = vld [vmem:[%s248 + $0x2f8] sm:$0x77]
        %v944 = vld [vmem:[%s248 + $0x300] sm:$0x77]
        %v945 = vld [vmem:[%s248 + $0x308] sm:$0x77]
        %v946 = vld [vmem:[#allocation2] sm:$0x7]
        %v1045 = vunpack.c.l.b16 %v848
        %v1046 = vunpack.c.h.b16 %v848
        %v1047 = vunpack.c.l.b16 %v849
        %v1048 = vunpack.c.h.b16 %v849
        %v1049 = vunpack.c.l.b16 %v850
        %v1050 = vunpack.c.h.b16 %v850
        %v1051 = vunpack.c.l.b16 %v851
        %v1052 = vunpack.c.h.b16 %v851
        %v1053 = vunpack.c.l.b16 %v852
        %v1054 = vunpack.c.h.b16 %v852
        %v1055 = vunpack.c.l.b16 %v853
        %v1056 = vunpack.c.h.b16 %v853
        %v1057 = vunpack.c.l.b16 %v854
        %v1058 = vunpack.c.h.b16 %v854
        %v1059 = vunpack.c.l.b16 %v855
        %v1060 = vunpack.c.h.b16 %v855
        %v1061 = vunpack.c.l.b16 %v856
        %v1062 = vunpack.c.h.b16 %v856
        %v1063 = vunpack.c.l.b16 %v857
        %v1064 = vunpack.c.h.b16 %v857
        %v1065 = vunpack.c.l.b16 %v858
        %v1066 = vunpack.c.h.b16 %v858
        %v1067 = vunpack.c.l.b16 %v859
        %v1068 = vunpack.c.h.b16 %v859
        %v1069 = vunpack.c.l.b16 %v860
        %v1070 = vunpack.c.h.b16 %v860
        %v1071 = vunpack.c.l.b16 %v861
        %v1072 = vunpack.c.h.b16 %v861
        %v1073 = vunpack.c.l.b16 %v862
        %v1074 = vunpack.c.h.b16 %v862
        %v1075 = vunpack.c.l.b16 %v863
        %v1076 = vunpack.c.h.b16 %v863
        %v1077 = vunpack.c.l.b16 %v864
        %v1078 = vunpack.c.h.b16 %v864
        %v1079 = vunpack.c.l.b16 %v865
        %v1080 = vunpack.c.h.b16 %v865
        %v1081 = vunpack.c.l.b16 %v866
        %v1082 = vunpack.c.h.b16 %v866
        %v1083 = vunpack.c.l.b16 %v867
        %v1084 = vunpack.c.h.b16 %v867
        %v1085 = vunpack.c.l.b16 %v868
        %v1086 = vunpack.c.h.b16 %v868
        %v1087 = vunpack.c.l.b16 %v869
        %v1088 = vunpack.c.h.b16 %v869
        %v1089 = vunpack.c.l.b16 %v870
        %v1090 = vunpack.c.h.b16 %v870
        %v1091 = vunpack.c.l.b16 %v871
        %v1092 = vunpack.c.h.b16 %v871
        %v1093 = vunpack.c.l.b16 %v872
        %v1094 = vunpack.c.h.b16 %v872
        %v1095 = vunpack.c.l.b16 %v873
        %v1096 = vunpack.c.h.b16 %v873
        %v1097 = vunpack.c.l.b16 %v874
        %v1098 = vunpack.c.h.b16 %v874
        %v1099 = vunpack.c.l.b16 %v875
        %v1100 = vunpack.c.h.b16 %v875
        %v1101 = vunpack.c.l.b16 %v876
        %v1102 = vunpack.c.h.b16 %v876
        %v1103 = vunpack.c.l.b16 %v877
        %v1104 = vunpack.c.h.b16 %v877
        %v1105 = vunpack.c.l.b16 %v878
        %v1106 = vunpack.c.h.b16 %v878
        %v1107 = vunpack.c.l.b16 %v879
        %v1108 = vunpack.c.h.b16 %v879
        %v1109 = vunpack.c.l.b16 %v880
        %v1110 = vunpack.c.h.b16 %v880
        %v1111 = vunpack.c.l.b16 %v881
        %v1112 = vunpack.c.h.b16 %v881
        %v1113 = vunpack.c.l.b16 %v882
        %v1114 = vunpack.c.h.b16 %v882
        %v1115 = vunpack.c.l.b16 %v883
        %v1116 = vunpack.c.h.b16 %v883
        %v1117 = vunpack.c.l.b16 %v884
        %v1118 = vunpack.c.h.b16 %v884
        %v1119 = vunpack.c.l.b16 %v885
        %v1120 = vunpack.c.h.b16 %v885
        %v1121 = vunpack.c.l.b16 %v886
        %v1122 = vunpack.c.h.b16 %v886
        %v1123 = vunpack.c.l.b16 %v887
        %v1124 = vunpack.c.h.b16 %v887
        %v1125 = vunpack.c.l.b16 %v888
        %v1126 = vunpack.c.h.b16 %v888
        %v1127 = vunpack.c.l.b16 %v889
        %v1128 = vunpack.c.h.b16 %v889
        %v1129 = vunpack.c.l.b16 %v890
        %v1130 = vunpack.c.h.b16 %v890
        %v1131 = vunpack.c.l.b16 %v891
        %v1132 = vunpack.c.h.b16 %v891
        %v1133 = vunpack.c.l.b16 %v892
        %v1134 = vunpack.c.h.b16 %v892
        %v1135 = vunpack.c.l.b16 %v893
        %v1136 = vunpack.c.h.b16 %v893
        %v1137 = vunpack.c.l.b16 %v894
        %v1138 = vunpack.c.h.b16 %v894
        %v1139 = vunpack.c.l.b16 %v895
        %v1140 = vunpack.c.h.b16 %v895
        %v1141 = vunpack.c.l.b16 %v896
        %v1142 = vunpack.c.h.b16 %v896
        %v1143 = vunpack.c.l.b16 %v897
        %v1144 = vunpack.c.h.b16 %v897
        %v1145 = vunpack.c.l.b16 %v898
        %v1146 = vunpack.c.h.b16 %v898
        %v1147 = vunpack.c.l.b16 %v899
        %v1148 = vunpack.c.h.b16 %v899
        %v1149 = vunpack.c.l.b16 %v900
        %v1150 = vunpack.c.h.b16 %v900
        %v1151 = vunpack.c.l.b16 %v901
        %v1152 = vunpack.c.h.b16 %v901
        %v1153 = vunpack.c.l.b16 %v902
        %v1154 = vunpack.c.h.b16 %v902
        %v1155 = vunpack.c.l.b16 %v903
        %v1156 = vunpack.c.h.b16 %v903
        %v1157 = vunpack.c.l.b16 %v904
        %v1158 = vunpack.c.h.b16 %v904
        %v1159 = vunpack.c.l.b16 %v905
        %v1160 = vunpack.c.h.b16 %v905
        %v1161 = vunpack.c.l.b16 %v906
        %v1162 = vunpack.c.h.b16 %v906
        %v1163 = vunpack.c.l.b16 %v907
        %v1164 = vunpack.c.h.b16 %v907
        %v1165 = vunpack.c.l.b16 %v908
        %v1166 = vunpack.c.h.b16 %v908
        %v1167 = vunpack.c.l.b16 %v909
        %v1168 = vunpack.c.h.b16 %v909
        %v1169 = vunpack.c.l.b16 %v910
        %v1170 = vunpack.c.h.b16 %v910
        %v1171 = vunpack.c.l.b16 %v911
        %v1172 = vunpack.c.h.b16 %v911
        %v1173 = vunpack.c.l.b16 %v912
        %v1174 = vunpack.c.h.b16 %v912
        %v1175 = vunpack.c.l.b16 %v913
        %v1176 = vunpack.c.h.b16 %v913
        %v1177 = vunpack.c.l.b16 %v914
        %v1178 = vunpack.c.h.b16 %v914
        %v1179 = vunpack.c.l.b16 %v915
        %v1180 = vunpack.c.h.b16 %v915
        %v1181 = vunpack.c.l.b16 %v916
        %v1182 = vunpack.c.h.b16 %v916
        %v1183 = vunpack.c.l.b16 %v917
        %v1184 = vunpack.c.h.b16 %v917
        %v1185 = vunpack.c.l.b16 %v918
        %v1186 = vunpack.c.h.b16 %v918
        %v1187 = vunpack.c.l.b16 %v919
        %v1188 = vunpack.c.h.b16 %v919
        %v1189 = vunpack.c.l.b16 %v920
        %v1190 = vunpack.c.h.b16 %v920
        %v1191 = vunpack.c.l.b16 %v921
        %v1192 = vunpack.c.h.b16 %v921
        %v1193 = vunpack.c.l.b16 %v922
        %v1194 = vunpack.c.h.b16 %v922
        %v1195 = vunpack.c.l.b16 %v923
        %v1196 = vunpack.c.h.b16 %v923
        %v1197 = vunpack.c.l.b16 %v924
        %v1198 = vunpack.c.h.b16 %v924
        %v1199 = vunpack.c.l.b16 %v925
        %v1200 = vunpack.c.h.b16 %v925
        %v1201 = vunpack.c.l.b16 %v926
        %v1202 = vunpack.c.h.b16 %v926
        %v1203 = vunpack.c.l.b16 %v927
        %v1204 = vunpack.c.h.b16 %v927
        %v1205 = vunpack.c.l.b16 %v928
        %v1206 = vunpack.c.h.b16 %v928
        %v1207 = vunpack.c.l.b16 %v929
        %v1208 = vunpack.c.h.b16 %v929
        %v1209 = vunpack.c.l.b16 %v930
        %v1210 = vunpack.c.h.b16 %v930
        %v1211 = vunpack.c.l.b16 %v931
        %v1212 = vunpack.c.h.b16 %v931
        %v1213 = vunpack.c.l.b16 %v932
        %v1214 = vunpack.c.h.b16 %v932
        %v1215 = vunpack.c.l.b16 %v933
        %v1216 = vunpack.c.h.b16 %v933
        %v1217 = vunpack.c.l.b16 %v934
        %v1218 = vunpack.c.h.b16 %v934
        %v1219 = vunpack.c.l.b16 %v935
        %v1220 = vunpack.c.h.b16 %v935
        %v1221 = vunpack.c.l.b16 %v936
        %v1222 = vunpack.c.h.b16 %v936
        %v1223 = vunpack.c.l.b16 %v937
        %v1224 = vunpack.c.h.b16 %v937
        %v1225 = vunpack.c.l.b16 %v938
        %v1226 = vunpack.c.h.b16 %v938
        %v1227 = vunpack.c.l.b16 %v939
        %v1228 = vunpack.c.h.b16 %v939
        %v1229 = vunpack.c.l.b16 %v940
        %v1230 = vunpack.c.h.b16 %v940
        %v1231 = vunpack.c.l.b16 %v941
        %v1232 = vunpack.c.h.b16 %v941
        %v1233 = vunpack.c.l.b16 %v942
        %v1234 = vunpack.c.h.b16 %v942
        %v1235 = vunpack.c.l.b16 %v943
        %v1236 = vunpack.c.h.b16 %v943
        %v1237 = vunpack.c.l.b16 %v944
        %v1238 = vunpack.c.h.b16 %v944
        %v1239 = vunpack.c.l.b16 %v945
        %v1240 = vunpack.c.h.b16 %v945
        %v1241 = vpack.c.b16 %v1045, %v1045
        %v1242 = vpack.c.b16 %v1046, %v1046
        %v1243 = vpack.c.b16 %v1047, %v1047
        %v1244 = vpack.c.b16 %v1048, %v1048
        %v1245 = vpack.c.b16 %v1049, %v1049
        %v1246 = vpack.c.b16 %v1050, %v1050
        %v1247 = vpack.c.b16 %v1051, %v1051
        %v1248 = vpack.c.b16 %v1052, %v1052
        %v1249 = vpack.c.b16 %v1053, %v1053
        %v1250 = vpack.c.b16 %v1054, %v1054
        %v1251 = vpack.c.b16 %v1055, %v1055
        %v1252 = vpack.c.b16 %v1056, %v1056
        %v1253 = vpack.c.b16 %v1057, %v1057
        %v1254 = vpack.c.b16 %v1058, %v1058
        %v1255 = vpack.c.b16 %v1059, %v1059
        %v1256 = vpack.c.b16 %v1060, %v1060
        %v1257 = vpack.c.b16 %v1061, %v1061
        %v1258 = vpack.c.b16 %v1062, %v1062
        %v1259 = vpack.c.b16 %v1063, %v1063
        %v1260 = vpack.c.b16 %v1064, %v1064
        %v1261 = vpack.c.b16 %v1065, %v1065
        %v1262 = vpack.c.b16 %v1066, %v1066
        %v1263 = vpack.c.b16 %v1067, %v1067
        %v1264 = vpack.c.b16 %v1068, %v1068
        %v1265 = vpack.c.b16 %v1069, %v1069
        %v1266 = vpack.c.b16 %v1070, %v1070
        %v1267 = vpack.c.b16 %v1071, %v1071
        %v1268 = vpack.c.b16 %v1072, %v1072
        %v1269 = vpack.c.b16 %v1073, %v1073
        %v1270 = vpack.c.b16 %v1074, %v1074
        %v1271 = vpack.c.b16 %v1075, %v1075
        %v1272 = vpack.c.b16 %v1076, %v1076
        %v1273 = vpack.c.b16 %v1077, %v1077
        %v1274 = vpack.c.b16 %v1078, %v1078
        %v1275 = vpack.c.b16 %v1079, %v1079
        %v1276 = vpack.c.b16 %v1080, %v1080
        %v1277 = vpack.c.b16 %v1081, %v1081
        %v1278 = vpack.c.b16 %v1082, %v1082
        %v1279 = vpack.c.b16 %v1083, %v1083
        %v1280 = vpack.c.b16 %v1084, %v1084
        %v1281 = vpack.c.b16 %v1085, %v1085
        %v1282 = vpack.c.b16 %v1086, %v1086
        %v1283 = vpack.c.b16 %v1087, %v1087
        %v1284 = vpack.c.b16 %v1088, %v1088
        %v1285 = vpack.c.b16 %v1089, %v1089
        %v1286 = vpack.c.b16 %v1090, %v1090
        %v1287 = vpack.c.b16 %v1091, %v1091
        %v1288 = vpack.c.b16 %v1092, %v1092
        %v1289 = vpack.c.b16 %v1093, %v1093
        %v1290 = vpack.c.b16 %v1094, %v1094
        %v1291 = vpack.c.b16 %v1095, %v1095
        %v1292 = vpack.c.b16 %v1096, %v1096
        %v1293 = vpack.c.b16 %v1097, %v1097
        %v1294 = vpack.c.b16 %v1098, %v1098
        %v1295 = vpack.c.b16 %v1099, %v1099
        %v1296 = vpack.c.b16 %v1100, %v1100
        %v1297 = vpack.c.b16 %v1101, %v1101
        %v1298 = vpack.c.b16 %v1102, %v1102
        %v1299 = vpack.c.b16 %v1103, %v1103
        %v1300 = vpack.c.b16 %v1104, %v1104
        %v1301 = vpack.c.b16 %v1105, %v1105
        %v1302 = vpack.c.b16 %v1106, %v1106
        %v1303 = vpack.c.b16 %v1107, %v1107
        %v1304 = vpack.c.b16 %v1108, %v1108
        %v1305 = vpack.c.b16 %v1109, %v1109
        %v1306 = vpack.c.b16 %v1110, %v1110
        %v1307 = vpack.c.b16 %v1111, %v1111
        %v1308 = vpack.c.b16 %v1112, %v1112
        %v1309 = vpack.c.b16 %v1113, %v1113
        %v1310 = vpack.c.b16 %v1114, %v1114
        %v1311 = vpack.c.b16 %v1115, %v1115
        %v1312 = vpack.c.b16 %v1116, %v1116
        %v1313 = vpack.c.b16 %v1117, %v1117
        %v1314 = vpack.c.b16 %v1118, %v1118
        %v1315 = vpack.c.b16 %v1119, %v1119
        %v1316 = vpack.c.b16 %v1120, %v1120
        %v1317 = vpack.c.b16 %v1121, %v1121
        %v1318 = vpack.c.b16 %v1122, %v1122
        %v1319 = vpack.c.b16 %v1123, %v1123
        %v1320 = vpack.c.b16 %v1124, %v1124
        %v1321 = vpack.c.b16 %v1125, %v1125
        %v1322 = vpack.c.b16 %v1126, %v1126
        %v1323 = vpack.c.b16 %v1127, %v1127
        %v1324 = vpack.c.b16 %v1128, %v1128
        %v1325 = vpack.c.b16 %v1129, %v1129
        %v1326 = vpack.c.b16 %v1130, %v1130
        %v1327 = vpack.c.b16 %v1131, %v1131
        %v1328 = vpack.c.b16 %v1132, %v1132
        %v1329 = vpack.c.b16 %v1133, %v1133
        %v1330 = vpack.c.b16 %v1134, %v1134
        %v1331 = vpack.c.b16 %v1135, %v1135
        %v1332 = vpack.c.b16 %v1136, %v1136
        %v1333 = vpack.c.b16 %v1137, %v1137
        %v1334 = vpack.c.b16 %v1138, %v1138
        %v1335 = vpack.c.b16 %v1139, %v1139
        %v1336 = vpack.c.b16 %v1140, %v1140
        %v1337 = vpack.c.b16 %v1141, %v1141
        %v1338 = vpack.c.b16 %v1142, %v1142
        %v1339 = vpack.c.b16 %v1143, %v1143
        %v1340 = vpack.c.b16 %v1144, %v1144
        %v1341 = vpack.c.b16 %v1145, %v1145
        %v1342 = vpack.c.b16 %v1146, %v1146
        %v1343 = vpack.c.b16 %v1147, %v1147
        %v1344 = vpack.c.b16 %v1148, %v1148
        %v1345 = vpack.c.b16 %v1149, %v1149
        %v1346 = vpack.c.b16 %v1150, %v1150
        %v1347 = vpack.c.b16 %v1151, %v1151
        %v1348 = vpack.c.b16 %v1152, %v1152
        %v1349 = vpack.c.b16 %v1153, %v1153
        %v1350 = vpack.c.b16 %v1154, %v1154
        %v1351 = vpack.c.b16 %v1155, %v1155
        %v1352 = vpack.c.b16 %v1156, %v1156
        %v1353 = vpack.c.b16 %v1157, %v1157
        %v1354 = vpack.c.b16 %v1158, %v1158
        %v1355 = vpack.c.b16 %v1159, %v1159
        %v1356 = vpack.c.b16 %v1160, %v1160
        %v1357 = vpack.c.b16 %v1161, %v1161
        %v1358 = vpack.c.b16 %v1162, %v1162
        %v1359 = vpack.c.b16 %v1163, %v1163
        %v1360 = vpack.c.b16 %v1164, %v1164
        %v1361 = vpack.c.b16 %v1165, %v1165
        %v1362 = vpack.c.b16 %v1166, %v1166
        %v1363 = vpack.c.b16 %v1167, %v1167
        %v1364 = vpack.c.b16 %v1168, %v1168
        %v1365 = vpack.c.b16 %v1169, %v1169
        %v1366 = vpack.c.b16 %v1170, %v1170
        %v1367 = vpack.c.b16 %v1171, %v1171
        %v1368 = vpack.c.b16 %v1172, %v1172
        %v1369 = vpack.c.b16 %v1173, %v1173
        %v1370 = vpack.c.b16 %v1174, %v1174
        %v1371 = vpack.c.b16 %v1175, %v1175
        %v1372 = vpack.c.b16 %v1176, %v1176
        %v1373 = vpack.c.b16 %v1177, %v1177
        %v1374 = vpack.c.b16 %v1178, %v1178
        %v1375 = vpack.c.b16 %v1179, %v1179
        %v1376 = vpack.c.b16 %v1180, %v1180
        %v1377 = vpack.c.b16 %v1181, %v1181
        %v1378 = vpack.c.b16 %v1182, %v1182
        %v1379 = vpack.c.b16 %v1183, %v1183
        %v1380 = vpack.c.b16 %v1184, %v1184
        %v1381 = vpack.c.b16 %v1185, %v1185
        %v1382 = vpack.c.b16 %v1186, %v1186
        %v1383 = vpack.c.b16 %v1187, %v1187
        %v1384 = vpack.c.b16 %v1188, %v1188
        %v1385 = vpack.c.b16 %v1189, %v1189
        %v1386 = vpack.c.b16 %v1190, %v1190
        %v1387 = vpack.c.b16 %v1191, %v1191
        %v1388 = vpack.c.b16 %v1192, %v1192
        %v1389 = vpack.c.b16 %v1193, %v1193
        %v1390 = vpack.c.b16 %v1194, %v1194
        %v1391 = vpack.c.b16 %v1195, %v1195
        %v1392 = vpack.c.b16 %v1196, %v1196
        %v1393 = vpack.c.b16 %v1197, %v1197
        %v1394 = vpack.c.b16 %v1198, %v1198
        %v1395 = vpack.c.b16 %v1199, %v1199
        %v1396 = vpack.c.b16 %v1200, %v1200
        %v1397 = vpack.c.b16 %v1201, %v1201
        %v1398 = vpack.c.b16 %v1202, %v1202
        %v1399 = vpack.c.b16 %v1203, %v1203
        %v1400 = vpack.c.b16 %v1204, %v1204
        %v1401 = vpack.c.b16 %v1205, %v1205
        %v1402 = vpack.c.b16 %v1206, %v1206
        %v1403 = vpack.c.b16 %v1207, %v1207
        %v1404 = vpack.c.b16 %v1208, %v1208
        %v1405 = vpack.c.b16 %v1209, %v1209
        %v1406 = vpack.c.b16 %v1210, %v1210
        %v1407 = vpack.c.b16 %v1211, %v1211
        %v1408 = vpack.c.b16 %v1212, %v1212
        %v1409 = vpack.c.b16 %v1213, %v1213
        %v1410 = vpack.c.b16 %v1214, %v1214
        %v1411 = vpack.c.b16 %v1215, %v1215
        %v1412 = vpack.c.b16 %v1216, %v1216
        %v1413 = vpack.c.b16 %v1217, %v1217
        %v1414 = vpack.c.b16 %v1218, %v1218
        %v1415 = vpack.c.b16 %v1219, %v1219
        %v1416 = vpack.c.b16 %v1220, %v1220
        %v1417 = vpack.c.b16 %v1221, %v1221
        %v1418 = vpack.c.b16 %v1222, %v1222
        %v1419 = vpack.c.b16 %v1223, %v1223
        %v1420 = vpack.c.b16 %v1224, %v1224
        %v1421 = vpack.c.b16 %v1225, %v1225
        %v1422 = vpack.c.b16 %v1226, %v1226
        %v1423 = vpack.c.b16 %v1227, %v1227
        %v1424 = vpack.c.b16 %v1228, %v1228
        %v1425 = vpack.c.b16 %v1229, %v1229
        %v1426 = vpack.c.b16 %v1230, %v1230
        %v1427 = vpack.c.b16 %v1231, %v1231
        %v1428 = vpack.c.b16 %v1232, %v1232
        %v1429 = vpack.c.b16 %v1233, %v1233
        %v1430 = vpack.c.b16 %v1234, %v1234
        %v1431 = vpack.c.b16 %v1235, %v1235
        %v1432 = vpack.c.b16 %v1236, %v1236
        %v1433 = vpack.c.b16 %v1237, %v1237
        %v1434 = vpack.c.b16 %v1238, %v1238
        %v1435 = vpack.c.b16 %v1239, %v1239
        %v1436 = vpack.c.b16 %v1240, %v1240
        %1633 = vmatprep.subr.bf16.mxu0 %v1242
        %1634 = vmatpush1.bf16.xpose.msra.mxu0 %v1241
        %1635 = vmatprep.subr.bf16.mxu0 0
        %1636 = vmatpush1.bf16.xpose.msra.mxu0 0
        %1637 = vmatprep.subr.bf16.mxu0 0
        %1638 = vmatpush1.bf16.xpose.msra.mxu0 0
        %1639 = vmatprep.subr.bf16.mxu0 0
        %1640 = vmatpush1.bf16.xpose.msra.mxu0 0
        %1641 = vmatprep.subr.bf16.mxu0 0
        %1642 = vmatpush1.bf16.xpose.msra.mxu0 0
        %1643 = vmatprep.subr.bf16.mxu0 0
        %1644 = vmatpush1.bf16.xpose.msra.mxu0 0
        %1645 = vmatprep.subr.bf16.mxu0 0
        %1646 = vmatpush1.bf16.xpose.msra.mxu0 0
        %1647 = vmatprep.subr.bf16.mxu0 0
        %1648 = vmatpush1.bf16.xpose.msra.mxu0 0
        %1649 = vmatprep.subr.bf16.mxu0 0
        %1650 = vmatpush1.bf16.xpose.msra.mxu0 0
        %1651 = vmatprep.subr.bf16.mxu0 0
        %1652 = vmatpush1.bf16.xpose.msra.mxu0 0
        %1653 = vmatprep.subr.bf16.mxu0 0
        %1654 = vmatpush1.bf16.xpose.msra.mxu0 0
        %1655 = vmatprep.subr.bf16.mxu0 0
        %1656 = vmatpush1.bf16.xpose.msra.mxu0 0
        %1657 = vmatprep.subr.bf16.mxu0 0
        %1658 = vmatpush1.bf16.xpose.msra.mxu0 0
        %1659 = vmatprep.subr.bf16.mxu0 0
        %1660 = vmatpush1.bf16.xpose.msra.mxu0 0
        %1661 = vmatprep.subr.bf16.mxu0 0
        %1662 = vmatpush1.bf16.xpose.msra.mxu0 0
        %1663 = vmatprep.subr.bf16.mxu0 0
        %1664 = vmatpush1.bf16.xpose.msra.mxu0 0
        %1665 = vmatprep.mubr.bf16.mxu0 %v653
        %1666 = vmatmul.mubr.bf16.gmra.mrb[0].mxu0 %v652
        %v1667 = vpop.f32.mrb[0].mxu0
        %v1668 = vadd.f32 0.0, %v1667
        %v1669 = vpop.f32.mrb[0].mxu0
        %v1670 = vpop.f32.mrb[0].mxu0
        %v1671 = vpop.f32.mrb[0].mxu0
        %1672 = vdwg.mxu0
        %1673 = vmatprep.subr.bf16.mxu0 %v1244
        %1674 = vmatpush1.bf16.xpose.msra.mxu0 %v1243
        %1675 = vmatprep.subr.bf16.mxu0 0
        %1676 = vmatpush1.bf16.xpose.msra.mxu0 0
        %1677 = vmatprep.subr.bf16.mxu0 0
        %1678 = vmatpush1.bf16.xpose.msra.mxu0 0
        %1679 = vmatprep.subr.bf16.mxu0 0
        %1680 = vmatpush1.bf16.xpose.msra.mxu0 0
        %1681 = vmatprep.subr.bf16.mxu0 0
        %1682 = vmatpush1.bf16.xpose.msra.mxu0 0
        %1683 = vmatprep.subr.bf16.mxu0 0
        %1684 = vmatpush1.bf16.xpose.msra.mxu0 0
        %1685 = vmatprep.subr.bf16.mxu0 0
        %1686 = vmatpush1.bf16.xpose.msra.mxu0 0
        %1687 = vmatprep.subr.bf16.mxu0 0
        %1688 = vmatpush1.bf16.xpose.msra.mxu0 0
        %1689 = vmatprep.subr.bf16.mxu0 0
        %1690 = vmatpush1.bf16.xpose.msra.mxu0 0
        %1691 = vmatprep.subr.bf16.mxu0 0
        %1692 = vmatpush1.bf16.xpose.msra.mxu0 0
        %1693 = vmatprep.subr.bf16.mxu0 0
        %1694 = vmatpush1.bf16.xpose.msra.mxu0 0
        %1695 = vmatprep.subr.bf16.mxu0 0
        %1696 = vmatpush1.bf16.xpose.msra.mxu0 0
        %1697 = vmatprep.subr.bf16.mxu0 0
        %1698 = vmatpush1.bf16.xpose.msra.mxu0 0
        %1699 = vmatprep.subr.bf16.mxu0 0
        %1700 = vmatpush1.bf16.xpose.msra.mxu0 0
        %1701 = vmatprep.subr.bf16.mxu0 0
        %1702 = vmatpush1.bf16.xpose.msra.mxu0 0
        %1703 = vmatprep.subr.bf16.mxu0 0
        %1704 = vmatpush1.bf16.xpose.msra.mxu0 0
        %1705 = vmatprep.mubr.bf16.mxu0 %v655
        %1706 = vmatmul.mubr.bf16.gmra.mrb[0].mxu0 %v654
        %v1707 = vpop.f32.mrb[0].mxu0
        %v1708 = vadd.f32 %v1668, %v1707
        %v1709 = vpop.f32.mrb[0].mxu0
        %v1710 = vpop.f32.mrb[0].mxu0
        %v1711 = vpop.f32.mrb[0].mxu0
        %1712 = vdwg.mxu0
        %1713 = vmatprep.subr.bf16.mxu0 %v1246
        %1714 = vmatpush1.bf16.xpose.msra.mxu0 %v1245
        %1715 = vmatprep.subr.bf16.mxu0 0
        %1716 = vmatpush1.bf16.xpose.msra.mxu0 0
        %1717 = vmatprep.subr.bf16.mxu0 0
        %1718 = vmatpush1.bf16.xpose.msra.mxu0 0
        %1719 = vmatprep.subr.bf16.mxu0 0
        %1720 = vmatpush1.bf16.xpose.msra.mxu0 0
        %1721 = vmatprep.subr.bf16.mxu0 0
        %1722 = vmatpush1.bf16.xpose.msra.mxu0 0
        %1723 = vmatprep.subr.bf16.mxu0 0
        %1724 = vmatpush1.bf16.xpose.msra.mxu0 0
        %1725 = vmatprep.subr.bf16.mxu0 0
        %1726 = vmatpush1.bf16.xpose.msra.mxu0 0
        %1727 = vmatprep.subr.bf16.mxu0 0
        %1728 = vmatpush1.bf16.xpose.msra.mxu0 0
        %1729 = vmatprep.subr.bf16.mxu0 0
        %1730 = vmatpush1.bf16.xpose.msra.mxu0 0
        %1731 = vmatprep.subr.bf16.mxu0 0
        %1732 = vmatpush1.bf16.xpose.msra.mxu0 0
        %1733 = vmatprep.subr.bf16.mxu0 0
        %1734 = vmatpush1.bf16.xpose.msra.mxu0 0
        %1735 = vmatprep.subr.bf16.mxu0 0
        %1736 = vmatpush1.bf16.xpose.msra.mxu0 0
        %1737 = vmatprep.subr.bf16.mxu0 0
        %1738 = vmatpush1.bf16.xpose.msra.mxu0 0
        %1739 = vmatprep.subr.bf16.mxu0 0
        %1740 = vmatpush1.bf16.xpose.msra.mxu0 0
        %1741 = vmatprep.subr.bf16.mxu0 0
        %1742 = vmatpush1.bf16.xpose.msra.mxu0 0
        %1743 = vmatprep.subr.bf16.mxu0 0
        %1744 = vmatpush1.bf16.xpose.msra.mxu0 0
        %1745 = vmatprep.mubr.bf16.mxu0 %v657
        %1746 = vmatmul.mubr.bf16.gmra.mrb[0].mxu0 %v656
        %v1747 = vpop.f32.mrb[0].mxu0
        %v1748 = vadd.f32 %v1708, %v1747
        %v1749 = vpop.f32.mrb[0].mxu0
        %v1750 = vpop.f32.mrb[0].mxu0
        %v1751 = vpop.f32.mrb[0].mxu0
        %1752 = vdwg.mxu0
        %1753 = vmatprep.subr.bf16.mxu0 %v1248
        %1754 = vmatpush1.bf16.xpose.msra.mxu0 %v1247
        %1755 = vmatprep.subr.bf16.mxu0 0
        %1756 = vmatpush1.bf16.xpose.msra.mxu0 0
        %1757 = vmatprep.subr.bf16.mxu0 0
        %1758 = vmatpush1.bf16.xpose.msra.mxu0 0
        %1759 = vmatprep.subr.bf16.mxu0 0
        %1760 = vmatpush1.bf16.xpose.msra.mxu0 0
        %1761 = vmatprep.subr.bf16.mxu0 0
        %1762 = vmatpush1.bf16.xpose.msra.mxu0 0
        %1763 = vmatprep.subr.bf16.mxu0 0
        %1764 = vmatpush1.bf16.xpose.msra.mxu0 0
        %1765 = vmatprep.subr.bf16.mxu0 0
        %1766 = vmatpush1.bf16.xpose.msra.mxu0 0
        %1767 = vmatprep.subr.bf16.mxu0 0
        %1768 = vmatpush1.bf16.xpose.msra.mxu0 0
        %1769 = vmatprep.subr.bf16.mxu0 0
        %1770 = vmatpush1.bf16.xpose.msra.mxu0 0
        %1771 = vmatprep.subr.bf16.mxu0 0
        %1772 = vmatpush1.bf16.xpose.msra.mxu0 0
        %1773 = vmatprep.subr.bf16.mxu0 0
        %1774 = vmatpush1.bf16.xpose.msra.mxu0 0
        %1775 = vmatprep.subr.bf16.mxu0 0
        %1776 = vmatpush1.bf16.xpose.msra.mxu0 0
        %1777 = vmatprep.subr.bf16.mxu0 0
        %1778 = vmatpush1.bf16.xpose.msra.mxu0 0
        %1779 = vmatprep.subr.bf16.mxu0 0
        %1780 = vmatpush1.bf16.xpose.msra.mxu0 0
        %1781 = vmatprep.subr.bf16.mxu0 0
        %1782 = vmatpush1.bf16.xpose.msra.mxu0 0
        %1783 = vmatprep.subr.bf16.mxu0 0
        %1784 = vmatpush1.bf16.xpose.msra.mxu0 0
        %1785 = vmatprep.mubr.bf16.mxu0 %v659
        %1786 = vmatmul.mubr.bf16.gmra.mrb[0].mxu0 %v658
        %v1787 = vpop.f32.mrb[0].mxu0
        %v1788 = vadd.f32 %v1748, %v1787
        %v1789 = vpop.f32.mrb[0].mxu0
        %v1790 = vpop.f32.mrb[0].mxu0
        %v1791 = vpop.f32.mrb[0].mxu0
        %1792 = vdwg.mxu0
        %1793 = vmatprep.subr.bf16.mxu0 %v1250
        %1794 = vmatpush1.bf16.xpose.msra.mxu0 %v1249
        %1795 = vmatprep.subr.bf16.mxu0 0
        %1796 = vmatpush1.bf16.xpose.msra.mxu0 0
        %1797 = vmatprep.subr.bf16.mxu0 0
        %1798 = vmatpush1.bf16.xpose.msra.mxu0 0
        %1799 = vmatprep.subr.bf16.mxu0 0
        %1800 = vmatpush1.bf16.xpose.msra.mxu0 0
        %1801 = vmatprep.subr.bf16.mxu0 0
        %1802 = vmatpush1.bf16.xpose.msra.mxu0 0
        %1803 = vmatprep.subr.bf16.mxu0 0
        %1804 = vmatpush1.bf16.xpose.msra.mxu0 0
        %1805 = vmatprep.subr.bf16.mxu0 0
        %1806 = vmatpush1.bf16.xpose.msra.mxu0 0
        %1807 = vmatprep.subr.bf16.mxu0 0
        %1808 = vmatpush1.bf16.xpose.msra.mxu0 0
        %1809 = vmatprep.subr.bf16.mxu0 0
        %1810 = vmatpush1.bf16.xpose.msra.mxu0 0
        %1811 = vmatprep.subr.bf16.mxu0 0
        %1812 = vmatpush1.bf16.xpose.msra.mxu0 0
        %1813 = vmatprep.subr.bf16.mxu0 0
        %1814 = vmatpush1.bf16.xpose.msra.mxu0 0
        %1815 = vmatprep.subr.bf16.mxu0 0
        %1816 = vmatpush1.bf16.xpose.msra.mxu0 0
        %1817 = vmatprep.subr.bf16.mxu0 0
        %1818 = vmatpush1.bf16.xpose.msra.mxu0 0
        %1819 = vmatprep.subr.bf16.mxu0 0
        %1820 = vmatpush1.bf16.xpose.msra.mxu0 0
        %1821 = vmatprep.subr.bf16.mxu0 0
        %1822 = vmatpush1.bf16.xpose.msra.mxu0 0
        %1823 = vmatprep.subr.bf16.mxu0 0
        %1824 = vmatpush1.bf16.xpose.msra.mxu0 0
        %1825 = vmatprep.mubr.bf16.mxu0 %v661
        %1826 = vmatmul.mubr.bf16.gmra.mrb[0].mxu0 %v660
        %v1827 = vpop.f32.mrb[0].mxu0
        %v1828 = vadd.f32 %v1788, %v1827
        %v1829 = vpop.f32.mrb[0].mxu0
        %v1830 = vpop.f32.mrb[0].mxu0
        %v1831 = vpop.f32.mrb[0].mxu0
        %1832 = vdwg.mxu0
        %1833 = vmatprep.subr.bf16.mxu0 %v1252
        %1834 = vmatpush1.bf16.xpose.msra.mxu0 %v1251
        %1835 = vmatprep.subr.bf16.mxu0 0
        %1836 = vmatpush1.bf16.xpose.msra.mxu0 0
        %1837 = vmatprep.subr.bf16.mxu0 0
        %1838 = vmatpush1.bf16.xpose.msra.mxu0 0
        %1839 = vmatprep.subr.bf16.mxu0 0
        %1840 = vmatpush1.bf16.xpose.msra.mxu0 0
        %1841 = vmatprep.subr.bf16.mxu0 0
        %1842 = vmatpush1.bf16.xpose.msra.mxu0 0
        %1843 = vmatprep.subr.bf16.mxu0 0
        %1844 = vmatpush1.bf16.xpose.msra.mxu0 0
        %1845 = vmatprep.subr.bf16.mxu0 0
        %1846 = vmatpush1.bf16.xpose.msra.mxu0 0
        %1847 = vmatprep.subr.bf16.mxu0 0
        %1848 = vmatpush1.bf16.xpose.msra.mxu0 0
        %1849 = vmatprep.subr.bf16.mxu0 0
        %1850 = vmatpush1.bf16.xpose.msra.mxu0 0
        %1851 = vmatprep.subr.bf16.mxu0 0
        %1852 = vmatpush1.bf16.xpose.msra.mxu0 0
        %1853 = vmatprep.subr.bf16.mxu0 0
        %1854 = vmatpush1.bf16.xpose.msra.mxu0 0
        %1855 = vmatprep.subr.bf16.mxu0 0
        %1856 = vmatpush1.bf16.xpose.msra.mxu0 0
        %1857 = vmatprep.subr.bf16.mxu0 0
        %1858 = vmatpush1.bf16.xpose.msra.mxu0 0
        %1859 = vmatprep.subr.bf16.mxu0 0
        %1860 = vmatpush1.bf16.xpose.msra.mxu0 0
        %1861 = vmatprep.subr.bf16.mxu0 0
        %1862 = vmatpush1.bf16.xpose.msra.mxu0 0
        %1863 = vmatprep.subr.bf16.mxu0 0
        %1864 = vmatpush1.bf16.xpose.msra.mxu0 0
        %1865 = vmatprep.mubr.bf16.mxu0 %v663
        %1866 = vmatmul.mubr.bf16.gmra.mrb[0].mxu0 %v662
        %v1867 = vpop.f32.mrb[0].mxu0
        %v1868 = vadd.f32 %v1828, %v1867
        %v1869 = vpop.f32.mrb[0].mxu0
        %v1870 = vpop.f32.mrb[0].mxu0
        %v1871 = vpop.f32.mrb[0].mxu0
        %1872 = vdwg.mxu0
        %1873 = vmatprep.subr.bf16.mxu0 %v1254
        %1874 = vmatpush1.bf16.xpose.msra.mxu0 %v1253
        %1875 = vmatprep.subr.bf16.mxu0 0
        %1876 = vmatpush1.bf16.xpose.msra.mxu0 0
        %1877 = vmatprep.subr.bf16.mxu0 0
        %1878 = vmatpush1.bf16.xpose.msra.mxu0 0
        %1879 = vmatprep.subr.bf16.mxu0 0
        %1880 = vmatpush1.bf16.xpose.msra.mxu0 0
        %1881 = vmatprep.subr.bf16.mxu0 0
        %1882 = vmatpush1.bf16.xpose.msra.mxu0 0
        %1883 = vmatprep.subr.bf16.mxu0 0
        %1884 = vmatpush1.bf16.xpose.msra.mxu0 0
        %1885 = vmatprep.subr.bf16.mxu0 0
        %1886 = vmatpush1.bf16.xpose.msra.mxu0 0
        %1887 = vmatprep.subr.bf16.mxu0 0
        %1888 = vmatpush1.bf16.xpose.msra.mxu0 0
        %1889 = vmatprep.subr.bf16.mxu0 0
        %1890 = vmatpush1.bf16.xpose.msra.mxu0 0
        %1891 = vmatprep.subr.bf16.mxu0 0
        %1892 = vmatpush1.bf16.xpose.msra.mxu0 0
        %1893 = vmatprep.subr.bf16.mxu0 0
        %1894 = vmatpush1.bf16.xpose.msra.mxu0 0
        %1895 = vmatprep.subr.bf16.mxu0 0
        %1896 = vmatpush1.bf16.xpose.msra.mxu0 0
        %1897 = vmatprep.subr.bf16.mxu0 0
        %1898 = vmatpush1.bf16.xpose.msra.mxu0 0
        %1899 = vmatprep.subr.bf16.mxu0 0
        %1900 = vmatpush1.bf16.xpose.msra.mxu0 0
        %1901 = vmatprep.subr.bf16.mxu0 0
        %1902 = vmatpush1.bf16.xpose.msra.mxu0 0
        %1903 = vmatprep.subr.bf16.mxu0 0
        %1904 = vmatpush1.bf16.xpose.msra.mxu0 0
        %1905 = vmatprep.mubr.bf16.mxu0 %v665
        %1906 = vmatmul.mubr.bf16.gmra.mrb[0].mxu0 %v664
        %v1907 = vpop.f32.mrb[0].mxu0
        %v1908 = vadd.f32 %v1868, %v1907
        %v1909 = vpop.f32.mrb[0].mxu0
        %v1910 = vpop.f32.mrb[0].mxu0
        %v1911 = vpop.f32.mrb[0].mxu0
        %1912 = vdwg.mxu0
        %1913 = vmatprep.subr.bf16.mxu0 %v1256
        %1914 = vmatpush1.bf16.xpose.msra.mxu0 %v1255
        %1915 = vmatprep.subr.bf16.mxu0 0
        %1916 = vmatpush1.bf16.xpose.msra.mxu0 0
        %1917 = vmatprep.subr.bf16.mxu0 0
        %1918 = vmatpush1.bf16.xpose.msra.mxu0 0
        %1919 = vmatprep.subr.bf16.mxu0 0
        %1920 = vmatpush1.bf16.xpose.msra.mxu0 0
        %1921 = vmatprep.subr.bf16.mxu0 0
        %1922 = vmatpush1.bf16.xpose.msra.mxu0 0
        %1923 = vmatprep.subr.bf16.mxu0 0
        %1924 = vmatpush1.bf16.xpose.msra.mxu0 0
        %1925 = vmatprep.subr.bf16.mxu0 0
        %1926 = vmatpush1.bf16.xpose.msra.mxu0 0
        %1927 = vmatprep.subr.bf16.mxu0 0
        %1928 = vmatpush1.bf16.xpose.msra.mxu0 0
        %1929 = vmatprep.subr.bf16.mxu0 0
        %1930 = vmatpush1.bf16.xpose.msra.mxu0 0
        %1931 = vmatprep.subr.bf16.mxu0 0
        %1932 = vmatpush1.bf16.xpose.msra.mxu0 0
        %1933 = vmatprep.subr.bf16.mxu0 0
        %1934 = vmatpush1.bf16.xpose.msra.mxu0 0
        %1935 = vmatprep.subr.bf16.mxu0 0
        %1936 = vmatpush1.bf16.xpose.msra.mxu0 0
        %1937 = vmatprep.subr.bf16.mxu0 0
        %1938 = vmatpush1.bf16.xpose.msra.mxu0 0
        %1939 = vmatprep.subr.bf16.mxu0 0
        %1940 = vmatpush1.bf16.xpose.msra.mxu0 0
        %1941 = vmatprep.subr.bf16.mxu0 0
        %1942 = vmatpush1.bf16.xpose.msra.mxu0 0
        %1943 = vmatprep.subr.bf16.mxu0 0
        %1944 = vmatpush1.bf16.xpose.msra.mxu0 0
        %1945 = vmatprep.mubr.bf16.mxu0 %v667
        %1946 = vmatmul.mubr.bf16.gmra.mrb[0].mxu0 %v666
        %v1947 = vpop.f32.mrb[0].mxu0
        %v1948 = vadd.f32 %v1908, %v1947
        %v1949 = vpop.f32.mrb[0].mxu0
        %v1950 = vpop.f32.mrb[0].mxu0
        %v1951 = vpop.f32.mrb[0].mxu0
        %1952 = vdwg.mxu0
        %1953 = vmatprep.subr.bf16.mxu0 %v1258
        %1954 = vmatpush1.bf16.xpose.msra.mxu0 %v1257
        %1955 = vmatprep.subr.bf16.mxu0 0
        %1956 = vmatpush1.bf16.xpose.msra.mxu0 0
        %1957 = vmatprep.subr.bf16.mxu0 0
        %1958 = vmatpush1.bf16.xpose.msra.mxu0 0
        %1959 = vmatprep.subr.bf16.mxu0 0
        %1960 = vmatpush1.bf16.xpose.msra.mxu0 0
        %1961 = vmatprep.subr.bf16.mxu0 0
        %1962 = vmatpush1.bf16.xpose.msra.mxu0 0
        %1963 = vmatprep.subr.bf16.mxu0 0
        %1964 = vmatpush1.bf16.xpose.msra.mxu0 0
        %1965 = vmatprep.subr.bf16.mxu0 0
        %1966 = vmatpush1.bf16.xpose.msra.mxu0 0
        %1967 = vmatprep.subr.bf16.mxu0 0
        %1968 = vmatpush1.bf16.xpose.msra.mxu0 0
        %1969 = vmatprep.subr.bf16.mxu0 0
        %1970 = vmatpush1.bf16.xpose.msra.mxu0 0
        %1971 = vmatprep.subr.bf16.mxu0 0
        %1972 = vmatpush1.bf16.xpose.msra.mxu0 0
        %1973 = vmatprep.subr.bf16.mxu0 0
        %1974 = vmatpush1.bf16.xpose.msra.mxu0 0
        %1975 = vmatprep.subr.bf16.mxu0 0
        %1976 = vmatpush1.bf16.xpose.msra.mxu0 0
        %1977 = vmatprep.subr.bf16.mxu0 0
        %1978 = vmatpush1.bf16.xpose.msra.mxu0 0
        %1979 = vmatprep.subr.bf16.mxu0 0
        %1980 = vmatpush1.bf16.xpose.msra.mxu0 0
        %1981 = vmatprep.subr.bf16.mxu0 0
        %1982 = vmatpush1.bf16.xpose.msra.mxu0 0
        %1983 = vmatprep.subr.bf16.mxu0 0
        %1984 = vmatpush1.bf16.xpose.msra.mxu0 0
        %1985 = vmatprep.mubr.bf16.mxu0 %v669
        %1986 = vmatmul.mubr.bf16.gmra.mrb[0].mxu0 %v668
        %v1987 = vpop.f32.mrb[0].mxu0
        %v1988 = vadd.f32 %v1948, %v1987
        %v1989 = vpop.f32.mrb[0].mxu0
        %v1990 = vpop.f32.mrb[0].mxu0
        %v1991 = vpop.f32.mrb[0].mxu0
        %1992 = vdwg.mxu0
        %1993 = vmatprep.subr.bf16.mxu0 %v1260
        %1994 = vmatpush1.bf16.xpose.msra.mxu0 %v1259
        %1995 = vmatprep.subr.bf16.mxu0 0
        %1996 = vmatpush1.bf16.xpose.msra.mxu0 0
        %1997 = vmatprep.subr.bf16.mxu0 0
        %1998 = vmatpush1.bf16.xpose.msra.mxu0 0
        %1999 = vmatprep.subr.bf16.mxu0 0
        %2000 = vmatpush1.bf16.xpose.msra.mxu0 0
        %2001 = vmatprep.subr.bf16.mxu0 0
        %2002 = vmatpush1.bf16.xpose.msra.mxu0 0
        %2003 = vmatprep.subr.bf16.mxu0 0
        %2004 = vmatpush1.bf16.xpose.msra.mxu0 0
        %2005 = vmatprep.subr.bf16.mxu0 0
        %2006 = vmatpush1.bf16.xpose.msra.mxu0 0
        %2007 = vmatprep.subr.bf16.mxu0 0
        %2008 = vmatpush1.bf16.xpose.msra.mxu0 0
        %2009 = vmatprep.subr.bf16.mxu0 0
        %2010 = vmatpush1.bf16.xpose.msra.mxu0 0
        %2011 = vmatprep.subr.bf16.mxu0 0
        %2012 = vmatpush1.bf16.xpose.msra.mxu0 0
        %2013 = vmatprep.subr.bf16.mxu0 0
        %2014 = vmatpush1.bf16.xpose.msra.mxu0 0
        %2015 = vmatprep.subr.bf16.mxu0 0
        %2016 = vmatpush1.bf16.xpose.msra.mxu0 0
        %2017 = vmatprep.subr.bf16.mxu0 0
        %2018 = vmatpush1.bf16.xpose.msra.mxu0 0
        %2019 = vmatprep.subr.bf16.mxu0 0
        %2020 = vmatpush1.bf16.xpose.msra.mxu0 0
        %2021 = vmatprep.subr.bf16.mxu0 0
        %2022 = vmatpush1.bf16.xpose.msra.mxu0 0
        %2023 = vmatprep.subr.bf16.mxu0 0
        %2024 = vmatpush1.bf16.xpose.msra.mxu0 0
        %2025 = vmatprep.mubr.bf16.mxu0 %v671
        %2026 = vmatmul.mubr.bf16.gmra.mrb[0].mxu0 %v670
        %v2027 = vpop.f32.mrb[0].mxu0
        %v2028 = vadd.f32 %v1988, %v2027
        %v2029 = vpop.f32.mrb[0].mxu0
        %v2030 = vpop.f32.mrb[0].mxu0
        %v2031 = vpop.f32.mrb[0].mxu0
        %2032 = vdwg.mxu0
        %2033 = vmatprep.subr.bf16.mxu0 %v1262
        %2034 = vmatpush1.bf16.xpose.msra.mxu0 %v1261
        %2035 = vmatprep.subr.bf16.mxu0 0
        %2036 = vmatpush1.bf16.xpose.msra.mxu0 0
        %2037 = vmatprep.subr.bf16.mxu0 0
        %2038 = vmatpush1.bf16.xpose.msra.mxu0 0
        %2039 = vmatprep.subr.bf16.mxu0 0
        %2040 = vmatpush1.bf16.xpose.msra.mxu0 0
        %2041 = vmatprep.subr.bf16.mxu0 0
        %2042 = vmatpush1.bf16.xpose.msra.mxu0 0
        %2043 = vmatprep.subr.bf16.mxu0 0
        %2044 = vmatpush1.bf16.xpose.msra.mxu0 0
        %2045 = vmatprep.subr.bf16.mxu0 0
        %2046 = vmatpush1.bf16.xpose.msra.mxu0 0
        %2047 = vmatprep.subr.bf16.mxu0 0
        %2048 = vmatpush1.bf16.xpose.msra.mxu0 0
        %2049 = vmatprep.subr.bf16.mxu0 0
        %2050 = vmatpush1.bf16.xpose.msra.mxu0 0
        %2051 = vmatprep.subr.bf16.mxu0 0
        %2052 = vmatpush1.bf16.xpose.msra.mxu0 0
        %2053 = vmatprep.subr.bf16.mxu0 0
        %2054 = vmatpush1.bf16.xpose.msra.mxu0 0
        %2055 = vmatprep.subr.bf16.mxu0 0
        %2056 = vmatpush1.bf16.xpose.msra.mxu0 0
        %2057 = vmatprep.subr.bf16.mxu0 0
        %2058 = vmatpush1.bf16.xpose.msra.mxu0 0
        %2059 = vmatprep.subr.bf16.mxu0 0
        %2060 = vmatpush1.bf16.xpose.msra.mxu0 0
        %2061 = vmatprep.subr.bf16.mxu0 0
        %2062 = vmatpush1.bf16.xpose.msra.mxu0 0
        %2063 = vmatprep.subr.bf16.mxu0 0
        %2064 = vmatpush1.bf16.xpose.msra.mxu0 0
        %2065 = vmatprep.mubr.bf16.mxu0 %v673
        %2066 = vmatmul.mubr.bf16.gmra.mrb[0].mxu0 %v672
        %v2067 = vpop.f32.mrb[0].mxu0
        %v2068 = vadd.f32 %v2028, %v2067
        %v2069 = vpop.f32.mrb[0].mxu0
        %v2070 = vpop.f32.mrb[0].mxu0
        %v2071 = vpop.f32.mrb[0].mxu0
        %2072 = vdwg.mxu0
        %2073 = vmatprep.subr.bf16.mxu0 %v1264
        %2074 = vmatpush1.bf16.xpose.msra.mxu0 %v1263
        %2075 = vmatprep.subr.bf16.mxu0 0
        %2076 = vmatpush1.bf16.xpose.msra.mxu0 0
        %2077 = vmatprep.subr.bf16.mxu0 0
        %2078 = vmatpush1.bf16.xpose.msra.mxu0 0
        %2079 = vmatprep.subr.bf16.mxu0 0
        %2080 = vmatpush1.bf16.xpose.msra.mxu0 0
        %2081 = vmatprep.subr.bf16.mxu0 0
        %2082 = vmatpush1.bf16.xpose.msra.mxu0 0
        %2083 = vmatprep.subr.bf16.mxu0 0
        %2084 = vmatpush1.bf16.xpose.msra.mxu0 0
        %2085 = vmatprep.subr.bf16.mxu0 0
        %2086 = vmatpush1.bf16.xpose.msra.mxu0 0
        %2087 = vmatprep.subr.bf16.mxu0 0
        %2088 = vmatpush1.bf16.xpose.msra.mxu0 0
        %2089 = vmatprep.subr.bf16.mxu0 0
        %2090 = vmatpush1.bf16.xpose.msra.mxu0 0
        %2091 = vmatprep.subr.bf16.mxu0 0
        %2092 = vmatpush1.bf16.xpose.msra.mxu0 0
        %2093 = vmatprep.subr.bf16.mxu0 0
        %2094 = vmatpush1.bf16.xpose.msra.mxu0 0
        %2095 = vmatprep.subr.bf16.mxu0 0
        %2096 = vmatpush1.bf16.xpose.msra.mxu0 0
        %2097 = vmatprep.subr.bf16.mxu0 0
        %2098 = vmatpush1.bf16.xpose.msra.mxu0 0
        %2099 = vmatprep.subr.bf16.mxu0 0
        %2100 = vmatpush1.bf16.xpose.msra.mxu0 0
        %2101 = vmatprep.subr.bf16.mxu0 0
        %2102 = vmatpush1.bf16.xpose.msra.mxu0 0
        %2103 = vmatprep.subr.bf16.mxu0 0
        %2104 = vmatpush1.bf16.xpose.msra.mxu0 0
        %2105 = vmatprep.mubr.bf16.mxu0 %v675
        %2106 = vmatmul.mubr.bf16.gmra.mrb[0].mxu0 %v674
        %v2107 = vpop.f32.mrb[0].mxu0
        %v2108 = vadd.f32 %v2068, %v2107
        %v2109 = vpop.f32.mrb[0].mxu0
        %v2110 = vpop.f32.mrb[0].mxu0
        %v2111 = vpop.f32.mrb[0].mxu0
        %2112 = vdwg.mxu0
        %2113 = vmatprep.subr.bf16.mxu0 %v1266
        %2114 = vmatpush1.bf16.xpose.msra.mxu0 %v1265
        %2115 = vmatprep.subr.bf16.mxu0 0
        %2116 = vmatpush1.bf16.xpose.msra.mxu0 0
        %2117 = vmatprep.subr.bf16.mxu0 0
        %2118 = vmatpush1.bf16.xpose.msra.mxu0 0
        %2119 = vmatprep.subr.bf16.mxu0 0
        %2120 = vmatpush1.bf16.xpose.msra.mxu0 0
        %2121 = vmatprep.subr.bf16.mxu0 0
        %2122 = vmatpush1.bf16.xpose.msra.mxu0 0
        %2123 = vmatprep.subr.bf16.mxu0 0
        %2124 = vmatpush1.bf16.xpose.msra.mxu0 0
        %2125 = vmatprep.subr.bf16.mxu0 0
        %2126 = vmatpush1.bf16.xpose.msra.mxu0 0
        %2127 = vmatprep.subr.bf16.mxu0 0
        %2128 = vmatpush1.bf16.xpose.msra.mxu0 0
        %2129 = vmatprep.subr.bf16.mxu0 0
        %2130 = vmatpush1.bf16.xpose.msra.mxu0 0
        %2131 = vmatprep.subr.bf16.mxu0 0
        %2132 = vmatpush1.bf16.xpose.msra.mxu0 0
        %2133 = vmatprep.subr.bf16.mxu0 0
        %2134 = vmatpush1.bf16.xpose.msra.mxu0 0
        %2135 = vmatprep.subr.bf16.mxu0 0
        %2136 = vmatpush1.bf16.xpose.msra.mxu0 0
        %2137 = vmatprep.subr.bf16.mxu0 0
        %2138 = vmatpush1.bf16.xpose.msra.mxu0 0
        %2139 = vmatprep.subr.bf16.mxu0 0
        %2140 = vmatpush1.bf16.xpose.msra.mxu0 0
        %2141 = vmatprep.subr.bf16.mxu0 0
        %2142 = vmatpush1.bf16.xpose.msra.mxu0 0
        %2143 = vmatprep.subr.bf16.mxu0 0
        %2144 = vmatpush1.bf16.xpose.msra.mxu0 0
        %2145 = vmatprep.mubr.bf16.mxu0 %v677
        %2146 = vmatmul.mubr.bf16.gmra.mrb[0].mxu0 %v676
        %v2147 = vpop.f32.mrb[0].mxu0
        %v2148 = vadd.f32 %v2108, %v2147
        %v2149 = vpop.f32.mrb[0].mxu0
        %v2150 = vpop.f32.mrb[0].mxu0
        %v2151 = vpop.f32.mrb[0].mxu0
        %2152 = vdwg.mxu0
        %2153 = vmatprep.subr.bf16.mxu0 %v1268
        %2154 = vmatpush1.bf16.xpose.msra.mxu0 %v1267
        %2155 = vmatprep.subr.bf16.mxu0 0
        %2156 = vmatpush1.bf16.xpose.msra.mxu0 0
        %2157 = vmatprep.subr.bf16.mxu0 0
        %2158 = vmatpush1.bf16.xpose.msra.mxu0 0
        %2159 = vmatprep.subr.bf16.mxu0 0
        %2160 = vmatpush1.bf16.xpose.msra.mxu0 0
        %2161 = vmatprep.subr.bf16.mxu0 0
        %2162 = vmatpush1.bf16.xpose.msra.mxu0 0
        %2163 = vmatprep.subr.bf16.mxu0 0
        %2164 = vmatpush1.bf16.xpose.msra.mxu0 0
        %2165 = vmatprep.subr.bf16.mxu0 0
        %2166 = vmatpush1.bf16.xpose.msra.mxu0 0
        %2167 = vmatprep.subr.bf16.mxu0 0
        %2168 = vmatpush1.bf16.xpose.msra.mxu0 0
        %2169 = vmatprep.subr.bf16.mxu0 0
        %2170 = vmatpush1.bf16.xpose.msra.mxu0 0
        %2171 = vmatprep.subr.bf16.mxu0 0
        %2172 = vmatpush1.bf16.xpose.msra.mxu0 0
        %2173 = vmatprep.subr.bf16.mxu0 0
        %2174 = vmatpush1.bf16.xpose.msra.mxu0 0
        %2175 = vmatprep.subr.bf16.mxu0 0
        %2176 = vmatpush1.bf16.xpose.msra.mxu0 0
        %2177 = vmatprep.subr.bf16.mxu0 0
        %2178 = vmatpush1.bf16.xpose.msra.mxu0 0
        %2179 = vmatprep.subr.bf16.mxu0 0
        %2180 = vmatpush1.bf16.xpose.msra.mxu0 0
        %2181 = vmatprep.subr.bf16.mxu0 0
        %2182 = vmatpush1.bf16.xpose.msra.mxu0 0
        %2183 = vmatprep.subr.bf16.mxu0 0
        %2184 = vmatpush1.bf16.xpose.msra.mxu0 0
        %2185 = vmatprep.mubr.bf16.mxu0 %v679
        %2186 = vmatmul.mubr.bf16.gmra.mrb[0].mxu0 %v678
        %v2187 = vpop.f32.mrb[0].mxu0
        %v2188 = vadd.f32 %v2148, %v2187
        %v2189 = vpop.f32.mrb[0].mxu0
        %v2190 = vpop.f32.mrb[0].mxu0
        %v2191 = vpop.f32.mrb[0].mxu0
        %2192 = vdwg.mxu0
        %2193 = vmatprep.subr.bf16.mxu0 %v1270
        %2194 = vmatpush1.bf16.xpose.msra.mxu0 %v1269
        %2195 = vmatprep.subr.bf16.mxu0 0
        %2196 = vmatpush1.bf16.xpose.msra.mxu0 0
        %2197 = vmatprep.subr.bf16.mxu0 0
        %2198 = vmatpush1.bf16.xpose.msra.mxu0 0
        %2199 = vmatprep.subr.bf16.mxu0 0
        %2200 = vmatpush1.bf16.xpose.msra.mxu0 0
        %2201 = vmatprep.subr.bf16.mxu0 0
        %2202 = vmatpush1.bf16.xpose.msra.mxu0 0
        %2203 = vmatprep.subr.bf16.mxu0 0
        %2204 = vmatpush1.bf16.xpose.msra.mxu0 0
        %2205 = vmatprep.subr.bf16.mxu0 0
        %2206 = vmatpush1.bf16.xpose.msra.mxu0 0
        %2207 = vmatprep.subr.bf16.mxu0 0
        %2208 = vmatpush1.bf16.xpose.msra.mxu0 0
        %2209 = vmatprep.subr.bf16.mxu0 0
        %2210 = vmatpush1.bf16.xpose.msra.mxu0 0
        %2211 = vmatprep.subr.bf16.mxu0 0
        %2212 = vmatpush1.bf16.xpose.msra.mxu0 0
        %2213 = vmatprep.subr.bf16.mxu0 0
        %2214 = vmatpush1.bf16.xpose.msra.mxu0 0
        %2215 = vmatprep.subr.bf16.mxu0 0
        %2216 = vmatpush1.bf16.xpose.msra.mxu0 0
        %2217 = vmatprep.subr.bf16.mxu0 0
        %2218 = vmatpush1.bf16.xpose.msra.mxu0 0
        %2219 = vmatprep.subr.bf16.mxu0 0
        %2220 = vmatpush1.bf16.xpose.msra.mxu0 0
        %2221 = vmatprep.subr.bf16.mxu0 0
        %2222 = vmatpush1.bf16.xpose.msra.mxu0 0
        %2223 = vmatprep.subr.bf16.mxu0 0
        %2224 = vmatpush1.bf16.xpose.msra.mxu0 0
        %2225 = vmatprep.mubr.bf16.mxu0 %v681
        %2226 = vmatmul.mubr.bf16.gmra.mrb[0].mxu0 %v680
        %v2227 = vpop.f32.mrb[0].mxu0
        %v2228 = vadd.f32 %v2188, %v2227
        %v2229 = vpop.f32.mrb[0].mxu0
        %v2230 = vpop.f32.mrb[0].mxu0
        %v2231 = vpop.f32.mrb[0].mxu0
        %2232 = vdwg.mxu0
        %2233 = vmatprep.subr.bf16.mxu0 %v1272
        %2234 = vmatpush1.bf16.xpose.msra.mxu0 %v1271
        %2235 = vmatprep.subr.bf16.mxu0 0
        %2236 = vmatpush1.bf16.xpose.msra.mxu0 0
        %2237 = vmatprep.subr.bf16.mxu0 0
        %2238 = vmatpush1.bf16.xpose.msra.mxu0 0
        %2239 = vmatprep.subr.bf16.mxu0 0
        %2240 = vmatpush1.bf16.xpose.msra.mxu0 0
        %2241 = vmatprep.subr.bf16.mxu0 0
        %2242 = vmatpush1.bf16.xpose.msra.mxu0 0
        %2243 = vmatprep.subr.bf16.mxu0 0
        %2244 = vmatpush1.bf16.xpose.msra.mxu0 0
        %2245 = vmatprep.subr.bf16.mxu0 0
        %2246 = vmatpush1.bf16.xpose.msra.mxu0 0
        %2247 = vmatprep.subr.bf16.mxu0 0
        %2248 = vmatpush1.bf16.xpose.msra.mxu0 0
        %2249 = vmatprep.subr.bf16.mxu0 0
        %2250 = vmatpush1.bf16.xpose.msra.mxu0 0
        %2251 = vmatprep.subr.bf16.mxu0 0
        %2252 = vmatpush1.bf16.xpose.msra.mxu0 0
        %2253 = vmatprep.subr.bf16.mxu0 0
        %2254 = vmatpush1.bf16.xpose.msra.mxu0 0
        %2255 = vmatprep.subr.bf16.mxu0 0
        %2256 = vmatpush1.bf16.xpose.msra.mxu0 0
        %2257 = vmatprep.subr.bf16.mxu0 0
        %2258 = vmatpush1.bf16.xpose.msra.mxu0 0
        %2259 = vmatprep.subr.bf16.mxu0 0
        %2260 = vmatpush1.bf16.xpose.msra.mxu0 0
        %2261 = vmatprep.subr.bf16.mxu0 0
        %2262 = vmatpush1.bf16.xpose.msra.mxu0 0
        %2263 = vmatprep.subr.bf16.mxu0 0
        %2264 = vmatpush1.bf16.xpose.msra.mxu0 0
        %2265 = vmatprep.mubr.bf16.mxu0 %v683
        %2266 = vmatmul.mubr.bf16.gmra.mrb[0].mxu0 %v682
        %v2267 = vpop.f32.mrb[0].mxu0
        %v2268 = vadd.f32 %v2228, %v2267
        %v2269 = vpop.f32.mrb[0].mxu0
        %v2270 = vpop.f32.mrb[0].mxu0
        %v2271 = vpop.f32.mrb[0].mxu0
        %2272 = vdwg.mxu0
        %2273 = vmatprep.subr.bf16.mxu0 %v1274
        %2274 = vmatpush1.bf16.xpose.msra.mxu0 %v1273
        %2275 = vmatprep.subr.bf16.mxu0 0
        %2276 = vmatpush1.bf16.xpose.msra.mxu0 0
        %2277 = vmatprep.subr.bf16.mxu0 0
        %2278 = vmatpush1.bf16.xpose.msra.mxu0 0
        %2279 = vmatprep.subr.bf16.mxu0 0
        %2280 = vmatpush1.bf16.xpose.msra.mxu0 0
        %2281 = vmatprep.subr.bf16.mxu0 0
        %2282 = vmatpush1.bf16.xpose.msra.mxu0 0
        %2283 = vmatprep.subr.bf16.mxu0 0
        %2284 = vmatpush1.bf16.xpose.msra.mxu0 0
        %2285 = vmatprep.subr.bf16.mxu0 0
        %2286 = vmatpush1.bf16.xpose.msra.mxu0 0
        %2287 = vmatprep.subr.bf16.mxu0 0
        %2288 = vmatpush1.bf16.xpose.msra.mxu0 0
        %2289 = vmatprep.subr.bf16.mxu0 0
        %2290 = vmatpush1.bf16.xpose.msra.mxu0 0
        %2291 = vmatprep.subr.bf16.mxu0 0
        %2292 = vmatpush1.bf16.xpose.msra.mxu0 0
        %2293 = vmatprep.subr.bf16.mxu0 0
        %2294 = vmatpush1.bf16.xpose.msra.mxu0 0
        %2295 = vmatprep.subr.bf16.mxu0 0
        %2296 = vmatpush1.bf16.xpose.msra.mxu0 0
        %2297 = vmatprep.subr.bf16.mxu0 0
        %2298 = vmatpush1.bf16.xpose.msra.mxu0 0
        %2299 = vmatprep.subr.bf16.mxu0 0
        %2300 = vmatpush1.bf16.xpose.msra.mxu0 0
        %2301 = vmatprep.subr.bf16.mxu0 0
        %2302 = vmatpush1.bf16.xpose.msra.mxu0 0
        %2303 = vmatprep.subr.bf16.mxu0 0
        %2304 = vmatpush1.bf16.xpose.msra.mxu0 0
        %2305 = vmatprep.mubr.bf16.mxu0 %v685
        %2306 = vmatmul.mubr.bf16.gmra.mrb[0].mxu0 %v684
        %v2307 = vpop.f32.mrb[0].mxu0
        %v2308 = vadd.f32 %v2268, %v2307
        %v2309 = vpop.f32.mrb[0].mxu0
        %v2310 = vpop.f32.mrb[0].mxu0
        %v2311 = vpop.f32.mrb[0].mxu0
        %2312 = vdwg.mxu0
        %2313 = vmatprep.subr.bf16.mxu0 %v1276
        %2314 = vmatpush1.bf16.xpose.msra.mxu0 %v1275
        %2315 = vmatprep.subr.bf16.mxu0 0
        %2316 = vmatpush1.bf16.xpose.msra.mxu0 0
        %2317 = vmatprep.subr.bf16.mxu0 0
        %2318 = vmatpush1.bf16.xpose.msra.mxu0 0
        %2319 = vmatprep.subr.bf16.mxu0 0
        %2320 = vmatpush1.bf16.xpose.msra.mxu0 0
        %2321 = vmatprep.subr.bf16.mxu0 0
        %2322 = vmatpush1.bf16.xpose.msra.mxu0 0
        %2323 = vmatprep.subr.bf16.mxu0 0
        %2324 = vmatpush1.bf16.xpose.msra.mxu0 0
        %2325 = vmatprep.subr.bf16.mxu0 0
        %2326 = vmatpush1.bf16.xpose.msra.mxu0 0
        %2327 = vmatprep.subr.bf16.mxu0 0
        %2328 = vmatpush1.bf16.xpose.msra.mxu0 0
        %2329 = vmatprep.subr.bf16.mxu0 0
        %2330 = vmatpush1.bf16.xpose.msra.mxu0 0
        %2331 = vmatprep.subr.bf16.mxu0 0
        %2332 = vmatpush1.bf16.xpose.msra.mxu0 0
        %2333 = vmatprep.subr.bf16.mxu0 0
        %2334 = vmatpush1.bf16.xpose.msra.mxu0 0
        %2335 = vmatprep.subr.bf16.mxu0 0
        %2336 = vmatpush1.bf16.xpose.msra.mxu0 0
        %2337 = vmatprep.subr.bf16.mxu0 0
        %2338 = vmatpush1.bf16.xpose.msra.mxu0 0
        %2339 = vmatprep.subr.bf16.mxu0 0
        %2340 = vmatpush1.bf16.xpose.msra.mxu0 0
        %2341 = vmatprep.subr.bf16.mxu0 0
        %2342 = vmatpush1.bf16.xpose.msra.mxu0 0
        %2343 = vmatprep.subr.bf16.mxu0 0
        %2344 = vmatpush1.bf16.xpose.msra.mxu0 0
        %2345 = vmatprep.mubr.bf16.mxu0 %v687
        %2346 = vmatmul.mubr.bf16.gmra.mrb[0].mxu0 %v686
        %v2347 = vpop.f32.mrb[0].mxu0
        %v2348 = vadd.f32 %v2308, %v2347
        %v2349 = vpop.f32.mrb[0].mxu0
        %v2350 = vpop.f32.mrb[0].mxu0
        %v2351 = vpop.f32.mrb[0].mxu0
        %2352 = vdwg.mxu0
        %2353 = vmatprep.subr.bf16.mxu0 %v1278
        %2354 = vmatpush1.bf16.xpose.msra.mxu0 %v1277
        %2355 = vmatprep.subr.bf16.mxu0 0
        %2356 = vmatpush1.bf16.xpose.msra.mxu0 0
        %2357 = vmatprep.subr.bf16.mxu0 0
        %2358 = vmatpush1.bf16.xpose.msra.mxu0 0
        %2359 = vmatprep.subr.bf16.mxu0 0
        %2360 = vmatpush1.bf16.xpose.msra.mxu0 0
        %2361 = vmatprep.subr.bf16.mxu0 0
        %2362 = vmatpush1.bf16.xpose.msra.mxu0 0
        %2363 = vmatprep.subr.bf16.mxu0 0
        %2364 = vmatpush1.bf16.xpose.msra.mxu0 0
        %2365 = vmatprep.subr.bf16.mxu0 0
        %2366 = vmatpush1.bf16.xpose.msra.mxu0 0
        %2367 = vmatprep.subr.bf16.mxu0 0
        %2368 = vmatpush1.bf16.xpose.msra.mxu0 0
        %2369 = vmatprep.subr.bf16.mxu0 0
        %2370 = vmatpush1.bf16.xpose.msra.mxu0 0
        %2371 = vmatprep.subr.bf16.mxu0 0
        %2372 = vmatpush1.bf16.xpose.msra.mxu0 0
        %2373 = vmatprep.subr.bf16.mxu0 0
        %2374 = vmatpush1.bf16.xpose.msra.mxu0 0
        %2375 = vmatprep.subr.bf16.mxu0 0
        %2376 = vmatpush1.bf16.xpose.msra.mxu0 0
        %2377 = vmatprep.subr.bf16.mxu0 0
        %2378 = vmatpush1.bf16.xpose.msra.mxu0 0
        %2379 = vmatprep.subr.bf16.mxu0 0
        %2380 = vmatpush1.bf16.xpose.msra.mxu0 0
        %2381 = vmatprep.subr.bf16.mxu0 0
        %2382 = vmatpush1.bf16.xpose.msra.mxu0 0
        %2383 = vmatprep.subr.bf16.mxu0 0
        %2384 = vmatpush1.bf16.xpose.msra.mxu0 0
        %2385 = vmatprep.mubr.bf16.mxu0 %v689
        %2386 = vmatmul.mubr.bf16.gmra.mrb[0].mxu0 %v688
        %v2387 = vpop.f32.mrb[0].mxu0
        %v2388 = vadd.f32 %v2348, %v2387
        %v2389 = vpop.f32.mrb[0].mxu0
        %v2390 = vpop.f32.mrb[0].mxu0
        %v2391 = vpop.f32.mrb[0].mxu0
        %2392 = vdwg.mxu0
        %2393 = vmatprep.subr.bf16.mxu0 %v1280
        %2394 = vmatpush1.bf16.xpose.msra.mxu0 %v1279
        %2395 = vmatprep.subr.bf16.mxu0 0
        %2396 = vmatpush1.bf16.xpose.msra.mxu0 0
        %2397 = vmatprep.subr.bf16.mxu0 0
        %2398 = vmatpush1.bf16.xpose.msra.mxu0 0
        %2399 = vmatprep.subr.bf16.mxu0 0
        %2400 = vmatpush1.bf16.xpose.msra.mxu0 0
        %2401 = vmatprep.subr.bf16.mxu0 0
        %2402 = vmatpush1.bf16.xpose.msra.mxu0 0
        %2403 = vmatprep.subr.bf16.mxu0 0
        %2404 = vmatpush1.bf16.xpose.msra.mxu0 0
        %2405 = vmatprep.subr.bf16.mxu0 0
        %2406 = vmatpush1.bf16.xpose.msra.mxu0 0
        %2407 = vmatprep.subr.bf16.mxu0 0
        %2408 = vmatpush1.bf16.xpose.msra.mxu0 0
        %2409 = vmatprep.subr.bf16.mxu0 0
        %2410 = vmatpush1.bf16.xpose.msra.mxu0 0
        %2411 = vmatprep.subr.bf16.mxu0 0
        %2412 = vmatpush1.bf16.xpose.msra.mxu0 0
        %2413 = vmatprep.subr.bf16.mxu0 0
        %2414 = vmatpush1.bf16.xpose.msra.mxu0 0
        %2415 = vmatprep.subr.bf16.mxu0 0
        %2416 = vmatpush1.bf16.xpose.msra.mxu0 0
        %2417 = vmatprep.subr.bf16.mxu0 0
        %2418 = vmatpush1.bf16.xpose.msra.mxu0 0
        %2419 = vmatprep.subr.bf16.mxu0 0
        %2420 = vmatpush1.bf16.xpose.msra.mxu0 0
        %2421 = vmatprep.subr.bf16.mxu0 0
        %2422 = vmatpush1.bf16.xpose.msra.mxu0 0
        %2423 = vmatprep.subr.bf16.mxu0 0
        %2424 = vmatpush1.bf16.xpose.msra.mxu0 0
        %2425 = vmatprep.mubr.bf16.mxu0 %v691
        %2426 = vmatmul.mubr.bf16.gmra.mrb[0].mxu0 %v690
        %v2427 = vpop.f32.mrb[0].mxu0
        %v2428 = vadd.f32 %v2388, %v2427
        %v2429 = vpop.f32.mrb[0].mxu0
        %v2430 = vpop.f32.mrb[0].mxu0
        %v2431 = vpop.f32.mrb[0].mxu0
        %2432 = vdwg.mxu0
        %2433 = vmatprep.subr.bf16.mxu0 %v1282
        %2434 = vmatpush1.bf16.xpose.msra.mxu0 %v1281
        %2435 = vmatprep.subr.bf16.mxu0 0
        %2436 = vmatpush1.bf16.xpose.msra.mxu0 0
        %2437 = vmatprep.subr.bf16.mxu0 0
        %2438 = vmatpush1.bf16.xpose.msra.mxu0 0
        %2439 = vmatprep.subr.bf16.mxu0 0
        %2440 = vmatpush1.bf16.xpose.msra.mxu0 0
        %2441 = vmatprep.subr.bf16.mxu0 0
        %2442 = vmatpush1.bf16.xpose.msra.mxu0 0
        %2443 = vmatprep.subr.bf16.mxu0 0
        %2444 = vmatpush1.bf16.xpose.msra.mxu0 0
        %2445 = vmatprep.subr.bf16.mxu0 0
        %2446 = vmatpush1.bf16.xpose.msra.mxu0 0
        %2447 = vmatprep.subr.bf16.mxu0 0
        %2448 = vmatpush1.bf16.xpose.msra.mxu0 0
        %2449 = vmatprep.subr.bf16.mxu0 0
        %2450 = vmatpush1.bf16.xpose.msra.mxu0 0
        %2451 = vmatprep.subr.bf16.mxu0 0
        %2452 = vmatpush1.bf16.xpose.msra.mxu0 0
        %2453 = vmatprep.subr.bf16.mxu0 0
        %2454 = vmatpush1.bf16.xpose.msra.mxu0 0
        %2455 = vmatprep.subr.bf16.mxu0 0
        %2456 = vmatpush1.bf16.xpose.msra.mxu0 0
        %2457 = vmatprep.subr.bf16.mxu0 0
        %2458 = vmatpush1.bf16.xpose.msra.mxu0 0
        %2459 = vmatprep.subr.bf16.mxu0 0
        %2460 = vmatpush1.bf16.xpose.msra.mxu0 0
        %2461 = vmatprep.subr.bf16.mxu0 0
        %2462 = vmatpush1.bf16.xpose.msra.mxu0 0
        %2463 = vmatprep.subr.bf16.mxu0 0
        %2464 = vmatpush1.bf16.xpose.msra.mxu0 0
        %2465 = vmatprep.mubr.bf16.mxu0 %v693
        %2466 = vmatmul.mubr.bf16.gmra.mrb[0].mxu0 %v692
        %v2467 = vpop.f32.mrb[0].mxu0
        %v2468 = vadd.f32 %v2428, %v2467
        %v2469 = vpop.f32.mrb[0].mxu0
        %v2470 = vpop.f32.mrb[0].mxu0
        %v2471 = vpop.f32.mrb[0].mxu0
        %2472 = vdwg.mxu0
        %2473 = vmatprep.subr.bf16.mxu0 %v1284
        %2474 = vmatpush1.bf16.xpose.msra.mxu0 %v1283
        %2475 = vmatprep.subr.bf16.mxu0 0
        %2476 = vmatpush1.bf16.xpose.msra.mxu0 0
        %2477 = vmatprep.subr.bf16.mxu0 0
        %2478 = vmatpush1.bf16.xpose.msra.mxu0 0
        %2479 = vmatprep.subr.bf16.mxu0 0
        %2480 = vmatpush1.bf16.xpose.msra.mxu0 0
        %2481 = vmatprep.subr.bf16.mxu0 0
        %2482 = vmatpush1.bf16.xpose.msra.mxu0 0
        %2483 = vmatprep.subr.bf16.mxu0 0
        %2484 = vmatpush1.bf16.xpose.msra.mxu0 0
        %2485 = vmatprep.subr.bf16.mxu0 0
        %2486 = vmatpush1.bf16.xpose.msra.mxu0 0
        %2487 = vmatprep.subr.bf16.mxu0 0
        %2488 = vmatpush1.bf16.xpose.msra.mxu0 0
        %2489 = vmatprep.subr.bf16.mxu0 0
        %2490 = vmatpush1.bf16.xpose.msra.mxu0 0
        %2491 = vmatprep.subr.bf16.mxu0 0
        %2492 = vmatpush1.bf16.xpose.msra.mxu0 0
        %2493 = vmatprep.subr.bf16.mxu0 0
        %2494 = vmatpush1.bf16.xpose.msra.mxu0 0
        %2495 = vmatprep.subr.bf16.mxu0 0
        %2496 = vmatpush1.bf16.xpose.msra.mxu0 0
        %2497 = vmatprep.subr.bf16.mxu0 0
        %2498 = vmatpush1.bf16.xpose.msra.mxu0 0
        %2499 = vmatprep.subr.bf16.mxu0 0
        %2500 = vmatpush1.bf16.xpose.msra.mxu0 0
        %2501 = vmatprep.subr.bf16.mxu0 0
        %2502 = vmatpush1.bf16.xpose.msra.mxu0 0
        %2503 = vmatprep.subr.bf16.mxu0 0
        %2504 = vmatpush1.bf16.xpose.msra.mxu0 0
        %2505 = vmatprep.mubr.bf16.mxu0 %v695
        %2506 = vmatmul.mubr.bf16.gmra.mrb[0].mxu0 %v694
        %v2507 = vpop.f32.mrb[0].mxu0
        %v2508 = vadd.f32 %v2468, %v2507
        %v2509 = vpop.f32.mrb[0].mxu0
        %v2510 = vpop.f32.mrb[0].mxu0
        %v2511 = vpop.f32.mrb[0].mxu0
        %2512 = vdwg.mxu0
        %2513 = vmatprep.subr.bf16.mxu0 %v1286
        %2514 = vmatpush1.bf16.xpose.msra.mxu0 %v1285
        %2515 = vmatprep.subr.bf16.mxu0 0
        %2516 = vmatpush1.bf16.xpose.msra.mxu0 0
        %2517 = vmatprep.subr.bf16.mxu0 0
        %2518 = vmatpush1.bf16.xpose.msra.mxu0 0
        %2519 = vmatprep.subr.bf16.mxu0 0
        %2520 = vmatpush1.bf16.xpose.msra.mxu0 0
        %2521 = vmatprep.subr.bf16.mxu0 0
        %2522 = vmatpush1.bf16.xpose.msra.mxu0 0
        %2523 = vmatprep.subr.bf16.mxu0 0
        %2524 = vmatpush1.bf16.xpose.msra.mxu0 0
        %2525 = vmatprep.subr.bf16.mxu0 0
        %2526 = vmatpush1.bf16.xpose.msra.mxu0 0
        %2527 = vmatprep.subr.bf16.mxu0 0
        %2528 = vmatpush1.bf16.xpose.msra.mxu0 0
        %2529 = vmatprep.subr.bf16.mxu0 0
        %2530 = vmatpush1.bf16.xpose.msra.mxu0 0
        %2531 = vmatprep.subr.bf16.mxu0 0
        %2532 = vmatpush1.bf16.xpose.msra.mxu0 0
        %2533 = vmatprep.subr.bf16.mxu0 0
        %2534 = vmatpush1.bf16.xpose.msra.mxu0 0
        %2535 = vmatprep.subr.bf16.mxu0 0
        %2536 = vmatpush1.bf16.xpose.msra.mxu0 0
        %2537 = vmatprep.subr.bf16.mxu0 0
        %2538 = vmatpush1.bf16.xpose.msra.mxu0 0
        %2539 = vmatprep.subr.bf16.mxu0 0
        %2540 = vmatpush1.bf16.xpose.msra.mxu0 0
        %2541 = vmatprep.subr.bf16.mxu0 0
        %2542 = vmatpush1.bf16.xpose.msra.mxu0 0
        %2543 = vmatprep.subr.bf16.mxu0 0
        %2544 = vmatpush1.bf16.xpose.msra.mxu0 0
        %2545 = vmatprep.mubr.bf16.mxu0 %v697
        %2546 = vmatmul.mubr.bf16.gmra.mrb[0].mxu0 %v696
        %v2547 = vpop.f32.mrb[0].mxu0
        %v2548 = vadd.f32 %v2508, %v2547
        %v2549 = vpop.f32.mrb[0].mxu0
        %v2550 = vpop.f32.mrb[0].mxu0
        %v2551 = vpop.f32.mrb[0].mxu0
        %2552 = vdwg.mxu0
        %2553 = vmatprep.subr.bf16.mxu0 %v1288
        %2554 = vmatpush1.bf16.xpose.msra.mxu0 %v1287
        %2555 = vmatprep.subr.bf16.mxu0 0
        %2556 = vmatpush1.bf16.xpose.msra.mxu0 0
        %2557 = vmatprep.subr.bf16.mxu0 0
        %2558 = vmatpush1.bf16.xpose.msra.mxu0 0
        %2559 = vmatprep.subr.bf16.mxu0 0
        %2560 = vmatpush1.bf16.xpose.msra.mxu0 0
        %2561 = vmatprep.subr.bf16.mxu0 0
        %2562 = vmatpush1.bf16.xpose.msra.mxu0 0
        %2563 = vmatprep.subr.bf16.mxu0 0
        %2564 = vmatpush1.bf16.xpose.msra.mxu0 0
        %2565 = vmatprep.subr.bf16.mxu0 0
        %2566 = vmatpush1.bf16.xpose.msra.mxu0 0
        %2567 = vmatprep.subr.bf16.mxu0 0
        %2568 = vmatpush1.bf16.xpose.msra.mxu0 0
        %2569 = vmatprep.subr.bf16.mxu0 0
        %2570 = vmatpush1.bf16.xpose.msra.mxu0 0
        %2571 = vmatprep.subr.bf16.mxu0 0
        %2572 = vmatpush1.bf16.xpose.msra.mxu0 0
        %2573 = vmatprep.subr.bf16.mxu0 0
        %2574 = vmatpush1.bf16.xpose.msra.mxu0 0
        %2575 = vmatprep.subr.bf16.mxu0 0
        %2576 = vmatpush1.bf16.xpose.msra.mxu0 0
        %2577 = vmatprep.subr.bf16.mxu0 0
        %2578 = vmatpush1.bf16.xpose.msra.mxu0 0
        %2579 = vmatprep.subr.bf16.mxu0 0
        %2580 = vmatpush1.bf16.xpose.msra.mxu0 0
        %2581 = vmatprep.subr.bf16.mxu0 0
        %2582 = vmatpush1.bf16.xpose.msra.mxu0 0
        %2583 = vmatprep.subr.bf16.mxu0 0
        %2584 = vmatpush1.bf16.xpose.msra.mxu0 0
        %2585 = vmatprep.mubr.bf16.mxu0 %v699
        %2586 = vmatmul.mubr.bf16.gmra.mrb[0].mxu0 %v698
        %v2587 = vpop.f32.mrb[0].mxu0
        %v2588 = vadd.f32 %v2548, %v2587
        %v2589 = vpop.f32.mrb[0].mxu0
        %v2590 = vpop.f32.mrb[0].mxu0
        %v2591 = vpop.f32.mrb[0].mxu0
        %2592 = vdwg.mxu0
        %2593 = vmatprep.subr.bf16.mxu0 %v1290
        %2594 = vmatpush1.bf16.xpose.msra.mxu0 %v1289
        %2595 = vmatprep.subr.bf16.mxu0 0
        %2596 = vmatpush1.bf16.xpose.msra.mxu0 0
        %2597 = vmatprep.subr.bf16.mxu0 0
        %2598 = vmatpush1.bf16.xpose.msra.mxu0 0
        %2599 = vmatprep.subr.bf16.mxu0 0
        %2600 = vmatpush1.bf16.xpose.msra.mxu0 0
        %2601 = vmatprep.subr.bf16.mxu0 0
        %2602 = vmatpush1.bf16.xpose.msra.mxu0 0
        %2603 = vmatprep.subr.bf16.mxu0 0
        %2604 = vmatpush1.bf16.xpose.msra.mxu0 0
        %2605 = vmatprep.subr.bf16.mxu0 0
        %2606 = vmatpush1.bf16.xpose.msra.mxu0 0
        %2607 = vmatprep.subr.bf16.mxu0 0
        %2608 = vmatpush1.bf16.xpose.msra.mxu0 0
        %2609 = vmatprep.subr.bf16.mxu0 0
        %2610 = vmatpush1.bf16.xpose.msra.mxu0 0
        %2611 = vmatprep.subr.bf16.mxu0 0
        %2612 = vmatpush1.bf16.xpose.msra.mxu0 0
        %2613 = vmatprep.subr.bf16.mxu0 0
        %2614 = vmatpush1.bf16.xpose.msra.mxu0 0
        %2615 = vmatprep.subr.bf16.mxu0 0
        %2616 = vmatpush1.bf16.xpose.msra.mxu0 0
        %2617 = vmatprep.subr.bf16.mxu0 0
        %2618 = vmatpush1.bf16.xpose.msra.mxu0 0
        %2619 = vmatprep.subr.bf16.mxu0 0
        %2620 = vmatpush1.bf16.xpose.msra.mxu0 0
        %2621 = vmatprep.subr.bf16.mxu0 0
        %2622 = vmatpush1.bf16.xpose.msra.mxu0 0
        %2623 = vmatprep.subr.bf16.mxu0 0
        %2624 = vmatpush1.bf16.xpose.msra.mxu0 0
        %2625 = vmatprep.mubr.bf16.mxu0 %v701
        %2626 = vmatmul.mubr.bf16.gmra.mrb[0].mxu0 %v700
        %v2627 = vpop.f32.mrb[0].mxu0
        %v2628 = vadd.f32 %v2588, %v2627
        %v2629 = vpop.f32.mrb[0].mxu0
        %v2630 = vpop.f32.mrb[0].mxu0
        %v2631 = vpop.f32.mrb[0].mxu0
        %2632 = vdwg.mxu0
        %2633 = vmatprep.subr.bf16.mxu0 %v1292
        %2634 = vmatpush1.bf16.xpose.msra.mxu0 %v1291
        %2635 = vmatprep.subr.bf16.mxu0 0
        %2636 = vmatpush1.bf16.xpose.msra.mxu0 0
        %2637 = vmatprep.subr.bf16.mxu0 0
        %2638 = vmatpush1.bf16.xpose.msra.mxu0 0
        %2639 = vmatprep.subr.bf16.mxu0 0
        %2640 = vmatpush1.bf16.xpose.msra.mxu0 0
        %2641 = vmatprep.subr.bf16.mxu0 0
        %2642 = vmatpush1.bf16.xpose.msra.mxu0 0
        %2643 = vmatprep.subr.bf16.mxu0 0
        %2644 = vmatpush1.bf16.xpose.msra.mxu0 0
        %2645 = vmatprep.subr.bf16.mxu0 0
        %2646 = vmatpush1.bf16.xpose.msra.mxu0 0
        %2647 = vmatprep.subr.bf16.mxu0 0
        %2648 = vmatpush1.bf16.xpose.msra.mxu0 0
        %2649 = vmatprep.subr.bf16.mxu0 0
        %2650 = vmatpush1.bf16.xpose.msra.mxu0 0
        %2651 = vmatprep.subr.bf16.mxu0 0
        %2652 = vmatpush1.bf16.xpose.msra.mxu0 0
        %2653 = vmatprep.subr.bf16.mxu0 0
        %2654 = vmatpush1.bf16.xpose.msra.mxu0 0
        %2655 = vmatprep.subr.bf16.mxu0 0
        %2656 = vmatpush1.bf16.xpose.msra.mxu0 0
        %2657 = vmatprep.subr.bf16.mxu0 0
        %2658 = vmatpush1.bf16.xpose.msra.mxu0 0
        %2659 = vmatprep.subr.bf16.mxu0 0
        %2660 = vmatpush1.bf16.xpose.msra.mxu0 0
        %2661 = vmatprep.subr.bf16.mxu0 0
        %2662 = vmatpush1.bf16.xpose.msra.mxu0 0
        %2663 = vmatprep.subr.bf16.mxu0 0
        %2664 = vmatpush1.bf16.xpose.msra.mxu0 0
        %2665 = vmatprep.mubr.bf16.mxu0 %v703
        %2666 = vmatmul.mubr.bf16.gmra.mrb[0].mxu0 %v702
        %v2667 = vpop.f32.mrb[0].mxu0
        %v2668 = vadd.f32 %v2628, %v2667
        %v2669 = vpop.f32.mrb[0].mxu0
        %v2670 = vpop.f32.mrb[0].mxu0
        %v2671 = vpop.f32.mrb[0].mxu0
        %2672 = vdwg.mxu0
        %2673 = vmatprep.subr.bf16.mxu0 %v1294
        %2674 = vmatpush1.bf16.xpose.msra.mxu0 %v1293
        %2675 = vmatprep.subr.bf16.mxu0 0
        %2676 = vmatpush1.bf16.xpose.msra.mxu0 0
        %2677 = vmatprep.subr.bf16.mxu0 0
        %2678 = vmatpush1.bf16.xpose.msra.mxu0 0
        %2679 = vmatprep.subr.bf16.mxu0 0
        %2680 = vmatpush1.bf16.xpose.msra.mxu0 0
        %2681 = vmatprep.subr.bf16.mxu0 0
        %2682 = vmatpush1.bf16.xpose.msra.mxu0 0
        %2683 = vmatprep.subr.bf16.mxu0 0
        %2684 = vmatpush1.bf16.xpose.msra.mxu0 0
        %2685 = vmatprep.subr.bf16.mxu0 0
        %2686 = vmatpush1.bf16.xpose.msra.mxu0 0
        %2687 = vmatprep.subr.bf16.mxu0 0
        %2688 = vmatpush1.bf16.xpose.msra.mxu0 0
        %2689 = vmatprep.subr.bf16.mxu0 0
        %2690 = vmatpush1.bf16.xpose.msra.mxu0 0
        %2691 = vmatprep.subr.bf16.mxu0 0
        %2692 = vmatpush1.bf16.xpose.msra.mxu0 0
        %2693 = vmatprep.subr.bf16.mxu0 0
        %2694 = vmatpush1.bf16.xpose.msra.mxu0 0
        %2695 = vmatprep.subr.bf16.mxu0 0
        %2696 = vmatpush1.bf16.xpose.msra.mxu0 0
        %2697 = vmatprep.subr.bf16.mxu0 0
        %2698 = vmatpush1.bf16.xpose.msra.mxu0 0
        %2699 = vmatprep.subr.bf16.mxu0 0
        %2700 = vmatpush1.bf16.xpose.msra.mxu0 0
        %2701 = vmatprep.subr.bf16.mxu0 0
        %2702 = vmatpush1.bf16.xpose.msra.mxu0 0
        %2703 = vmatprep.subr.bf16.mxu0 0
        %2704 = vmatpush1.bf16.xpose.msra.mxu0 0
        %2705 = vmatprep.mubr.bf16.mxu0 %v705
        %2706 = vmatmul.mubr.bf16.gmra.mrb[0].mxu0 %v704
        %v2707 = vpop.f32.mrb[0].mxu0
        %v2708 = vadd.f32 %v2668, %v2707
        %v2709 = vpop.f32.mrb[0].mxu0
        %v2710 = vpop.f32.mrb[0].mxu0
        %v2711 = vpop.f32.mrb[0].mxu0
        %2712 = vdwg.mxu0
        %2713 = vmatprep.subr.bf16.mxu0 %v1296
        %2714 = vmatpush1.bf16.xpose.msra.mxu0 %v1295
        %2715 = vmatprep.subr.bf16.mxu0 0
        %2716 = vmatpush1.bf16.xpose.msra.mxu0 0
        %2717 = vmatprep.subr.bf16.mxu0 0
        %2718 = vmatpush1.bf16.xpose.msra.mxu0 0
        %2719 = vmatprep.subr.bf16.mxu0 0
        %2720 = vmatpush1.bf16.xpose.msra.mxu0 0
        %2721 = vmatprep.subr.bf16.mxu0 0
        %2722 = vmatpush1.bf16.xpose.msra.mxu0 0
        %2723 = vmatprep.subr.bf16.mxu0 0
        %2724 = vmatpush1.bf16.xpose.msra.mxu0 0
        %2725 = vmatprep.subr.bf16.mxu0 0
        %2726 = vmatpush1.bf16.xpose.msra.mxu0 0
        %2727 = vmatprep.subr.bf16.mxu0 0
        %2728 = vmatpush1.bf16.xpose.msra.mxu0 0
        %2729 = vmatprep.subr.bf16.mxu0 0
        %2730 = vmatpush1.bf16.xpose.msra.mxu0 0
        %2731 = vmatprep.subr.bf16.mxu0 0
        %2732 = vmatpush1.bf16.xpose.msra.mxu0 0
        %2733 = vmatprep.subr.bf16.mxu0 0
        %2734 = vmatpush1.bf16.xpose.msra.mxu0 0
        %2735 = vmatprep.subr.bf16.mxu0 0
        %2736 = vmatpush1.bf16.xpose.msra.mxu0 0
        %2737 = vmatprep.subr.bf16.mxu0 0
        %2738 = vmatpush1.bf16.xpose.msra.mxu0 0
        %2739 = vmatprep.subr.bf16.mxu0 0
        %2740 = vmatpush1.bf16.xpose.msra.mxu0 0
        %2741 = vmatprep.subr.bf16.mxu0 0
        %2742 = vmatpush1.bf16.xpose.msra.mxu0 0
        %2743 = vmatprep.subr.bf16.mxu0 0
        %2744 = vmatpush1.bf16.xpose.msra.mxu0 0
        %2745 = vmatprep.mubr.bf16.mxu0 %v707
        %2746 = vmatmul.mubr.bf16.gmra.mrb[0].mxu0 %v706
        %v2747 = vpop.f32.mrb[0].mxu0
        %v2748 = vadd.f32 %v2708, %v2747
        %v2749 = vpop.f32.mrb[0].mxu0
        %v2750 = vpop.f32.mrb[0].mxu0
        %v2751 = vpop.f32.mrb[0].mxu0
        %2752 = vdwg.mxu0
        %2753 = vmatprep.subr.bf16.mxu0 %v1298
        %2754 = vmatpush1.bf16.xpose.msra.mxu0 %v1297
        %2755 = vmatprep.subr.bf16.mxu0 0
        %2756 = vmatpush1.bf16.xpose.msra.mxu0 0
        %2757 = vmatprep.subr.bf16.mxu0 0
        %2758 = vmatpush1.bf16.xpose.msra.mxu0 0
        %2759 = vmatprep.subr.bf16.mxu0 0
        %2760 = vmatpush1.bf16.xpose.msra.mxu0 0
        %2761 = vmatprep.subr.bf16.mxu0 0
        %2762 = vmatpush1.bf16.xpose.msra.mxu0 0
        %2763 = vmatprep.subr.bf16.mxu0 0
        %2764 = vmatpush1.bf16.xpose.msra.mxu0 0
        %2765 = vmatprep.subr.bf16.mxu0 0
        %2766 = vmatpush1.bf16.xpose.msra.mxu0 0
        %2767 = vmatprep.subr.bf16.mxu0 0
        %2768 = vmatpush1.bf16.xpose.msra.mxu0 0
        %2769 = vmatprep.subr.bf16.mxu0 0
        %2770 = vmatpush1.bf16.xpose.msra.mxu0 0
        %2771 = vmatprep.subr.bf16.mxu0 0
        %2772 = vmatpush1.bf16.xpose.msra.mxu0 0
        %2773 = vmatprep.subr.bf16.mxu0 0
        %2774 = vmatpush1.bf16.xpose.msra.mxu0 0
        %2775 = vmatprep.subr.bf16.mxu0 0
        %2776 = vmatpush1.bf16.xpose.msra.mxu0 0
        %2777 = vmatprep.subr.bf16.mxu0 0
        %2778 = vmatpush1.bf16.xpose.msra.mxu0 0
        %2779 = vmatprep.subr.bf16.mxu0 0
        %2780 = vmatpush1.bf16.xpose.msra.mxu0 0
        %2781 = vmatprep.subr.bf16.mxu0 0
        %2782 = vmatpush1.bf16.xpose.msra.mxu0 0
        %2783 = vmatprep.subr.bf16.mxu0 0
        %2784 = vmatpush1.bf16.xpose.msra.mxu0 0
        %2785 = vmatprep.mubr.bf16.mxu0 %v709
        %2786 = vmatmul.mubr.bf16.gmra.mrb[0].mxu0 %v708
        %v2787 = vpop.f32.mrb[0].mxu0
        %v2788 = vadd.f32 %v2748, %v2787
        %v2789 = vpop.f32.mrb[0].mxu0
        %v2790 = vpop.f32.mrb[0].mxu0
        %v2791 = vpop.f32.mrb[0].mxu0
        %2792 = vdwg.mxu0
        %2793 = vmatprep.subr.bf16.mxu0 %v1300
        %2794 = vmatpush1.bf16.xpose.msra.mxu0 %v1299
        %2795 = vmatprep.subr.bf16.mxu0 0
        %2796 = vmatpush1.bf16.xpose.msra.mxu0 0
        %2797 = vmatprep.subr.bf16.mxu0 0
        %2798 = vmatpush1.bf16.xpose.msra.mxu0 0
        %2799 = vmatprep.subr.bf16.mxu0 0
        %2800 = vmatpush1.bf16.xpose.msra.mxu0 0
        %2801 = vmatprep.subr.bf16.mxu0 0
        %2802 = vmatpush1.bf16.xpose.msra.mxu0 0
        %2803 = vmatprep.subr.bf16.mxu0 0
        %2804 = vmatpush1.bf16.xpose.msra.mxu0 0
        %2805 = vmatprep.subr.bf16.mxu0 0
        %2806 = vmatpush1.bf16.xpose.msra.mxu0 0
        %2807 = vmatprep.subr.bf16.mxu0 0
        %2808 = vmatpush1.bf16.xpose.msra.mxu0 0
        %2809 = vmatprep.subr.bf16.mxu0 0
        %2810 = vmatpush1.bf16.xpose.msra.mxu0 0
        %2811 = vmatprep.subr.bf16.mxu0 0
        %2812 = vmatpush1.bf16.xpose.msra.mxu0 0
        %2813 = vmatprep.subr.bf16.mxu0 0
        %2814 = vmatpush1.bf16.xpose.msra.mxu0 0
        %2815 = vmatprep.subr.bf16.mxu0 0
        %2816 = vmatpush1.bf16.xpose.msra.mxu0 0
        %2817 = vmatprep.subr.bf16.mxu0 0
        %2818 = vmatpush1.bf16.xpose.msra.mxu0 0
        %2819 = vmatprep.subr.bf16.mxu0 0
        %2820 = vmatpush1.bf16.xpose.msra.mxu0 0
        %2821 = vmatprep.subr.bf16.mxu0 0
        %2822 = vmatpush1.bf16.xpose.msra.mxu0 0
        %2823 = vmatprep.subr.bf16.mxu0 0
        %2824 = vmatpush1.bf16.xpose.msra.mxu0 0
        %2825 = vmatprep.mubr.bf16.mxu0 %v711
        %2826 = vmatmul.mubr.bf16.gmra.mrb[0].mxu0 %v710
        %v2827 = vpop.f32.mrb[0].mxu0
        %v2828 = vadd.f32 %v2788, %v2827
        %v2829 = vpop.f32.mrb[0].mxu0
        %v2830 = vpop.f32.mrb[0].mxu0
        %v2831 = vpop.f32.mrb[0].mxu0
        %2832 = vdwg.mxu0
        %2833 = vmatprep.subr.bf16.mxu0 %v1302
        %2834 = vmatpush1.bf16.xpose.msra.mxu0 %v1301
        %2835 = vmatprep.subr.bf16.mxu0 0
        %2836 = vmatpush1.bf16.xpose.msra.mxu0 0
        %2837 = vmatprep.subr.bf16.mxu0 0
        %2838 = vmatpush1.bf16.xpose.msra.mxu0 0
        %2839 = vmatprep.subr.bf16.mxu0 0
        %2840 = vmatpush1.bf16.xpose.msra.mxu0 0
        %2841 = vmatprep.subr.bf16.mxu0 0
        %2842 = vmatpush1.bf16.xpose.msra.mxu0 0
        %2843 = vmatprep.subr.bf16.mxu0 0
        %2844 = vmatpush1.bf16.xpose.msra.mxu0 0
        %2845 = vmatprep.subr.bf16.mxu0 0
        %2846 = vmatpush1.bf16.xpose.msra.mxu0 0
        %2847 = vmatprep.subr.bf16.mxu0 0
        %2848 = vmatpush1.bf16.xpose.msra.mxu0 0
        %2849 = vmatprep.subr.bf16.mxu0 0
        %2850 = vmatpush1.bf16.xpose.msra.mxu0 0
        %2851 = vmatprep.subr.bf16.mxu0 0
        %2852 = vmatpush1.bf16.xpose.msra.mxu0 0
        %2853 = vmatprep.subr.bf16.mxu0 0
        %2854 = vmatpush1.bf16.xpose.msra.mxu0 0
        %2855 = vmatprep.subr.bf16.mxu0 0
        %2856 = vmatpush1.bf16.xpose.msra.mxu0 0
        %2857 = vmatprep.subr.bf16.mxu0 0
        %2858 = vmatpush1.bf16.xpose.msra.mxu0 0
        %2859 = vmatprep.subr.bf16.mxu0 0
        %2860 = vmatpush1.bf16.xpose.msra.mxu0 0
        %2861 = vmatprep.subr.bf16.mxu0 0
        %2862 = vmatpush1.bf16.xpose.msra.mxu0 0
        %2863 = vmatprep.subr.bf16.mxu0 0
        %2864 = vmatpush1.bf16.xpose.msra.mxu0 0
        %2865 = vmatprep.mubr.bf16.mxu0 %v713
        %2866 = vmatmul.mubr.bf16.gmra.mrb[0].mxu0 %v712
        %v2867 = vpop.f32.mrb[0].mxu0
        %v2868 = vadd.f32 %v2828, %v2867
        %v2869 = vpop.f32.mrb[0].mxu0
        %v2870 = vpop.f32.mrb[0].mxu0
        %v2871 = vpop.f32.mrb[0].mxu0
        %2872 = vdwg.mxu0
        %2873 = vmatprep.subr.bf16.mxu0 %v1304
        %2874 = vmatpush1.bf16.xpose.msra.mxu0 %v1303
        %2875 = vmatprep.subr.bf16.mxu0 0
        %2876 = vmatpush1.bf16.xpose.msra.mxu0 0
        %2877 = vmatprep.subr.bf16.mxu0 0
        %2878 = vmatpush1.bf16.xpose.msra.mxu0 0
        %2879 = vmatprep.subr.bf16.mxu0 0
        %2880 = vmatpush1.bf16.xpose.msra.mxu0 0
        %2881 = vmatprep.subr.bf16.mxu0 0
        %2882 = vmatpush1.bf16.xpose.msra.mxu0 0
        %2883 = vmatprep.subr.bf16.mxu0 0
        %2884 = vmatpush1.bf16.xpose.msra.mxu0 0
        %2885 = vmatprep.subr.bf16.mxu0 0
        %2886 = vmatpush1.bf16.xpose.msra.mxu0 0
        %2887 = vmatprep.subr.bf16.mxu0 0
        %2888 = vmatpush1.bf16.xpose.msra.mxu0 0
        %2889 = vmatprep.subr.bf16.mxu0 0
        %2890 = vmatpush1.bf16.xpose.msra.mxu0 0
        %2891 = vmatprep.subr.bf16.mxu0 0
        %2892 = vmatpush1.bf16.xpose.msra.mxu0 0
        %2893 = vmatprep.subr.bf16.mxu0 0
        %2894 = vmatpush1.bf16.xpose.msra.mxu0 0
        %2895 = vmatprep.subr.bf16.mxu0 0
        %2896 = vmatpush1.bf16.xpose.msra.mxu0 0
        %2897 = vmatprep.subr.bf16.mxu0 0
        %2898 = vmatpush1.bf16.xpose.msra.mxu0 0
        %2899 = vmatprep.subr.bf16.mxu0 0
        %2900 = vmatpush1.bf16.xpose.msra.mxu0 0
        %2901 = vmatprep.subr.bf16.mxu0 0
        %2902 = vmatpush1.bf16.xpose.msra.mxu0 0
        %2903 = vmatprep.subr.bf16.mxu0 0
        %2904 = vmatpush1.bf16.xpose.msra.mxu0 0
        %2905 = vmatprep.mubr.bf16.mxu0 %v715
        %2906 = vmatmul.mubr.bf16.gmra.mrb[0].mxu0 %v714
        %v2907 = vpop.f32.mrb[0].mxu0
        %v2908 = vadd.f32 %v2868, %v2907
        %v2909 = vpop.f32.mrb[0].mxu0
        %v2910 = vpop.f32.mrb[0].mxu0
        %v2911 = vpop.f32.mrb[0].mxu0
        %2912 = vdwg.mxu0
        %2913 = vmatprep.subr.bf16.mxu0 %v1306
        %2914 = vmatpush1.bf16.xpose.msra.mxu0 %v1305
        %2915 = vmatprep.subr.bf16.mxu0 0
        %2916 = vmatpush1.bf16.xpose.msra.mxu0 0
        %2917 = vmatprep.subr.bf16.mxu0 0
        %2918 = vmatpush1.bf16.xpose.msra.mxu0 0
        %2919 = vmatprep.subr.bf16.mxu0 0
        %2920 = vmatpush1.bf16.xpose.msra.mxu0 0
        %2921 = vmatprep.subr.bf16.mxu0 0
        %2922 = vmatpush1.bf16.xpose.msra.mxu0 0
        %2923 = vmatprep.subr.bf16.mxu0 0
        %2924 = vmatpush1.bf16.xpose.msra.mxu0 0
        %2925 = vmatprep.subr.bf16.mxu0 0
        %2926 = vmatpush1.bf16.xpose.msra.mxu0 0
        %2927 = vmatprep.subr.bf16.mxu0 0
        %2928 = vmatpush1.bf16.xpose.msra.mxu0 0
        %2929 = vmatprep.subr.bf16.mxu0 0
        %2930 = vmatpush1.bf16.xpose.msra.mxu0 0
        %2931 = vmatprep.subr.bf16.mxu0 0
        %2932 = vmatpush1.bf16.xpose.msra.mxu0 0
        %2933 = vmatprep.subr.bf16.mxu0 0
        %2934 = vmatpush1.bf16.xpose.msra.mxu0 0
        %2935 = vmatprep.subr.bf16.mxu0 0
        %2936 = vmatpush1.bf16.xpose.msra.mxu0 0
        %2937 = vmatprep.subr.bf16.mxu0 0
        %2938 = vmatpush1.bf16.xpose.msra.mxu0 0
        %2939 = vmatprep.subr.bf16.mxu0 0
        %2940 = vmatpush1.bf16.xpose.msra.mxu0 0
        %2941 = vmatprep.subr.bf16.mxu0 0
        %2942 = vmatpush1.bf16.xpose.msra.mxu0 0
        %2943 = vmatprep.subr.bf16.mxu0 0
        %2944 = vmatpush1.bf16.xpose.msra.mxu0 0
        %2945 = vmatprep.mubr.bf16.mxu0 %v717
        %2946 = vmatmul.mubr.bf16.gmra.mrb[0].mxu0 %v716
        %v2947 = vpop.f32.mrb[0].mxu0
        %v2948 = vadd.f32 %v2908, %v2947
        %v2949 = vpop.f32.mrb[0].mxu0
        %v2950 = vpop.f32.mrb[0].mxu0
        %v2951 = vpop.f32.mrb[0].mxu0
        %2952 = vdwg.mxu0
        %2953 = vmatprep.subr.bf16.mxu0 %v1308
        %2954 = vmatpush1.bf16.xpose.msra.mxu0 %v1307
        %2955 = vmatprep.subr.bf16.mxu0 0
        %2956 = vmatpush1.bf16.xpose.msra.mxu0 0
        %2957 = vmatprep.subr.bf16.mxu0 0
        %2958 = vmatpush1.bf16.xpose.msra.mxu0 0
        %2959 = vmatprep.subr.bf16.mxu0 0
        %2960 = vmatpush1.bf16.xpose.msra.mxu0 0
        %2961 = vmatprep.subr.bf16.mxu0 0
        %2962 = vmatpush1.bf16.xpose.msra.mxu0 0
        %2963 = vmatprep.subr.bf16.mxu0 0
        %2964 = vmatpush1.bf16.xpose.msra.mxu0 0
        %2965 = vmatprep.subr.bf16.mxu0 0
        %2966 = vmatpush1.bf16.xpose.msra.mxu0 0
        %2967 = vmatprep.subr.bf16.mxu0 0
        %2968 = vmatpush1.bf16.xpose.msra.mxu0 0
        %2969 = vmatprep.subr.bf16.mxu0 0
        %2970 = vmatpush1.bf16.xpose.msra.mxu0 0
        %2971 = vmatprep.subr.bf16.mxu0 0
        %2972 = vmatpush1.bf16.xpose.msra.mxu0 0
        %2973 = vmatprep.subr.bf16.mxu0 0
        %2974 = vmatpush1.bf16.xpose.msra.mxu0 0
        %2975 = vmatprep.subr.bf16.mxu0 0
        %2976 = vmatpush1.bf16.xpose.msra.mxu0 0
        %2977 = vmatprep.subr.bf16.mxu0 0
        %2978 = vmatpush1.bf16.xpose.msra.mxu0 0
        %2979 = vmatprep.subr.bf16.mxu0 0
        %2980 = vmatpush1.bf16.xpose.msra.mxu0 0
        %2981 = vmatprep.subr.bf16.mxu0 0
        %2982 = vmatpush1.bf16.xpose.msra.mxu0 0
        %2983 = vmatprep.subr.bf16.mxu0 0
        %2984 = vmatpush1.bf16.xpose.msra.mxu0 0
        %2985 = vmatprep.mubr.bf16.mxu0 %v719
        %2986 = vmatmul.mubr.bf16.gmra.mrb[0].mxu0 %v718
        %v2987 = vpop.f32.mrb[0].mxu0
        %v2988 = vadd.f32 %v2948, %v2987
        %v2989 = vpop.f32.mrb[0].mxu0
        %v2990 = vpop.f32.mrb[0].mxu0
        %v2991 = vpop.f32.mrb[0].mxu0
        %2992 = vdwg.mxu0
        %2993 = vmatprep.subr.bf16.mxu0 %v1310
        %2994 = vmatpush1.bf16.xpose.msra.mxu0 %v1309
        %2995 = vmatprep.subr.bf16.mxu0 0
        %2996 = vmatpush1.bf16.xpose.msra.mxu0 0
        %2997 = vmatprep.subr.bf16.mxu0 0
        %2998 = vmatpush1.bf16.xpose.msra.mxu0 0
        %2999 = vmatprep.subr.bf16.mxu0 0
        %3000 = vmatpush1.bf16.xpose.msra.mxu0 0
        %3001 = vmatprep.subr.bf16.mxu0 0
        %3002 = vmatpush1.bf16.xpose.msra.mxu0 0
        %3003 = vmatprep.subr.bf16.mxu0 0
        %3004 = vmatpush1.bf16.xpose.msra.mxu0 0
        %3005 = vmatprep.subr.bf16.mxu0 0
        %3006 = vmatpush1.bf16.xpose.msra.mxu0 0
        %3007 = vmatprep.subr.bf16.mxu0 0
        %3008 = vmatpush1.bf16.xpose.msra.mxu0 0
        %3009 = vmatprep.subr.bf16.mxu0 0
        %3010 = vmatpush1.bf16.xpose.msra.mxu0 0
        %3011 = vmatprep.subr.bf16.mxu0 0
        %3012 = vmatpush1.bf16.xpose.msra.mxu0 0
        %3013 = vmatprep.subr.bf16.mxu0 0
        %3014 = vmatpush1.bf16.xpose.msra.mxu0 0
        %3015 = vmatprep.subr.bf16.mxu0 0
        %3016 = vmatpush1.bf16.xpose.msra.mxu0 0
        %3017 = vmatprep.subr.bf16.mxu0 0
        %3018 = vmatpush1.bf16.xpose.msra.mxu0 0
        %3019 = vmatprep.subr.bf16.mxu0 0
        %3020 = vmatpush1.bf16.xpose.msra.mxu0 0
        %3021 = vmatprep.subr.bf16.mxu0 0
        %3022 = vmatpush1.bf16.xpose.msra.mxu0 0
        %3023 = vmatprep.subr.bf16.mxu0 0
        %3024 = vmatpush1.bf16.xpose.msra.mxu0 0
        %3025 = vmatprep.mubr.bf16.mxu0 %v721
        %3026 = vmatmul.mubr.bf16.gmra.mrb[0].mxu0 %v720
        %v3027 = vpop.f32.mrb[0].mxu0
        %v3028 = vadd.f32 %v2988, %v3027
        %v3029 = vpop.f32.mrb[0].mxu0
        %v3030 = vpop.f32.mrb[0].mxu0
        %v3031 = vpop.f32.mrb[0].mxu0
        %3032 = vdwg.mxu0
        %3033 = vmatprep.subr.bf16.mxu0 %v1312
        %3034 = vmatpush1.bf16.xpose.msra.mxu0 %v1311
        %3035 = vmatprep.subr.bf16.mxu0 0
        %3036 = vmatpush1.bf16.xpose.msra.mxu0 0
        %3037 = vmatprep.subr.bf16.mxu0 0
        %3038 = vmatpush1.bf16.xpose.msra.mxu0 0
        %3039 = vmatprep.subr.bf16.mxu0 0
        %3040 = vmatpush1.bf16.xpose.msra.mxu0 0
        %3041 = vmatprep.subr.bf16.mxu0 0
        %3042 = vmatpush1.bf16.xpose.msra.mxu0 0
        %3043 = vmatprep.subr.bf16.mxu0 0
        %3044 = vmatpush1.bf16.xpose.msra.mxu0 0
        %3045 = vmatprep.subr.bf16.mxu0 0
        %3046 = vmatpush1.bf16.xpose.msra.mxu0 0
        %3047 = vmatprep.subr.bf16.mxu0 0
        %3048 = vmatpush1.bf16.xpose.msra.mxu0 0
        %3049 = vmatprep.subr.bf16.mxu0 0
        %3050 = vmatpush1.bf16.xpose.msra.mxu0 0
        %3051 = vmatprep.subr.bf16.mxu0 0
        %3052 = vmatpush1.bf16.xpose.msra.mxu0 0
        %3053 = vmatprep.subr.bf16.mxu0 0
        %3054 = vmatpush1.bf16.xpose.msra.mxu0 0
        %3055 = vmatprep.subr.bf16.mxu0 0
        %3056 = vmatpush1.bf16.xpose.msra.mxu0 0
        %3057 = vmatprep.subr.bf16.mxu0 0
        %3058 = vmatpush1.bf16.xpose.msra.mxu0 0
        %3059 = vmatprep.subr.bf16.mxu0 0
        %3060 = vmatpush1.bf16.xpose.msra.mxu0 0
        %3061 = vmatprep.subr.bf16.mxu0 0
        %3062 = vmatpush1.bf16.xpose.msra.mxu0 0
        %3063 = vmatprep.subr.bf16.mxu0 0
        %3064 = vmatpush1.bf16.xpose.msra.mxu0 0
        %3065 = vmatprep.mubr.bf16.mxu0 %v723
        %3066 = vmatmul.mubr.bf16.gmra.mrb[0].mxu0 %v722
        %v3067 = vpop.f32.mrb[0].mxu0
        %v3068 = vadd.f32 %v3028, %v3067
        %v3069 = vpop.f32.mrb[0].mxu0
        %v3070 = vpop.f32.mrb[0].mxu0
        %v3071 = vpop.f32.mrb[0].mxu0
        %3072 = vdwg.mxu0
        %3073 = vmatprep.subr.bf16.mxu0 %v1314
        %3074 = vmatpush1.bf16.xpose.msra.mxu0 %v1313
        %3075 = vmatprep.subr.bf16.mxu0 0
        %3076 = vmatpush1.bf16.xpose.msra.mxu0 0
        %3077 = vmatprep.subr.bf16.mxu0 0
        %3078 = vmatpush1.bf16.xpose.msra.mxu0 0
        %3079 = vmatprep.subr.bf16.mxu0 0
        %3080 = vmatpush1.bf16.xpose.msra.mxu0 0
        %3081 = vmatprep.subr.bf16.mxu0 0
        %3082 = vmatpush1.bf16.xpose.msra.mxu0 0
        %3083 = vmatprep.subr.bf16.mxu0 0
        %3084 = vmatpush1.bf16.xpose.msra.mxu0 0
        %3085 = vmatprep.subr.bf16.mxu0 0
        %3086 = vmatpush1.bf16.xpose.msra.mxu0 0
        %3087 = vmatprep.subr.bf16.mxu0 0
        %3088 = vmatpush1.bf16.xpose.msra.mxu0 0
        %3089 = vmatprep.subr.bf16.mxu0 0
        %3090 = vmatpush1.bf16.xpose.msra.mxu0 0
        %3091 = vmatprep.subr.bf16.mxu0 0
        %3092 = vmatpush1.bf16.xpose.msra.mxu0 0
        %3093 = vmatprep.subr.bf16.mxu0 0
        %3094 = vmatpush1.bf16.xpose.msra.mxu0 0
        %3095 = vmatprep.subr.bf16.mxu0 0
        %3096 = vmatpush1.bf16.xpose.msra.mxu0 0
        %3097 = vmatprep.subr.bf16.mxu0 0
        %3098 = vmatpush1.bf16.xpose.msra.mxu0 0
        %3099 = vmatprep.subr.bf16.mxu0 0
        %3100 = vmatpush1.bf16.xpose.msra.mxu0 0
        %3101 = vmatprep.subr.bf16.mxu0 0
        %3102 = vmatpush1.bf16.xpose.msra.mxu0 0
        %3103 = vmatprep.subr.bf16.mxu0 0
        %3104 = vmatpush1.bf16.xpose.msra.mxu0 0
        %3105 = vmatprep.mubr.bf16.mxu0 %v725
        %3106 = vmatmul.mubr.bf16.gmra.mrb[0].mxu0 %v724
        %v3107 = vpop.f32.mrb[0].mxu0
        %v3108 = vadd.f32 %v3068, %v3107
        %v3109 = vpop.f32.mrb[0].mxu0
        %v3110 = vpop.f32.mrb[0].mxu0
        %v3111 = vpop.f32.mrb[0].mxu0
        %3112 = vdwg.mxu0
        %3113 = vmatprep.subr.bf16.mxu0 %v1316
        %3114 = vmatpush1.bf16.xpose.msra.mxu0 %v1315
        %3115 = vmatprep.subr.bf16.mxu0 0
        %3116 = vmatpush1.bf16.xpose.msra.mxu0 0
        %3117 = vmatprep.subr.bf16.mxu0 0
        %3118 = vmatpush1.bf16.xpose.msra.mxu0 0
        %3119 = vmatprep.subr.bf16.mxu0 0
        %3120 = vmatpush1.bf16.xpose.msra.mxu0 0
        %3121 = vmatprep.subr.bf16.mxu0 0
        %3122 = vmatpush1.bf16.xpose.msra.mxu0 0
        %3123 = vmatprep.subr.bf16.mxu0 0
        %3124 = vmatpush1.bf16.xpose.msra.mxu0 0
        %3125 = vmatprep.subr.bf16.mxu0 0
        %3126 = vmatpush1.bf16.xpose.msra.mxu0 0
        %3127 = vmatprep.subr.bf16.mxu0 0
        %3128 = vmatpush1.bf16.xpose.msra.mxu0 0
        %3129 = vmatprep.subr.bf16.mxu0 0
        %3130 = vmatpush1.bf16.xpose.msra.mxu0 0
        %3131 = vmatprep.subr.bf16.mxu0 0
        %3132 = vmatpush1.bf16.xpose.msra.mxu0 0
        %3133 = vmatprep.subr.bf16.mxu0 0
        %3134 = vmatpush1.bf16.xpose.msra.mxu0 0
        %3135 = vmatprep.subr.bf16.mxu0 0
        %3136 = vmatpush1.bf16.xpose.msra.mxu0 0
        %3137 = vmatprep.subr.bf16.mxu0 0
        %3138 = vmatpush1.bf16.xpose.msra.mxu0 0
        %3139 = vmatprep.subr.bf16.mxu0 0
        %3140 = vmatpush1.bf16.xpose.msra.mxu0 0
        %3141 = vmatprep.subr.bf16.mxu0 0
        %3142 = vmatpush1.bf16.xpose.msra.mxu0 0
        %3143 = vmatprep.subr.bf16.mxu0 0
        %3144 = vmatpush1.bf16.xpose.msra.mxu0 0
        %3145 = vmatprep.mubr.bf16.mxu0 %v727
        %3146 = vmatmul.mubr.bf16.gmra.mrb[0].mxu0 %v726
        %v3147 = vpop.f32.mrb[0].mxu0
        %v3148 = vadd.f32 %v3108, %v3147
        %v3149 = vpop.f32.mrb[0].mxu0
        %v3150 = vpop.f32.mrb[0].mxu0
        %v3151 = vpop.f32.mrb[0].mxu0
        %3152 = vdwg.mxu0
        %3153 = vmatprep.subr.bf16.mxu0 %v1318
        %3154 = vmatpush1.bf16.xpose.msra.mxu0 %v1317
        %3155 = vmatprep.subr.bf16.mxu0 0
        %3156 = vmatpush1.bf16.xpose.msra.mxu0 0
        %3157 = vmatprep.subr.bf16.mxu0 0
        %3158 = vmatpush1.bf16.xpose.msra.mxu0 0
        %3159 = vmatprep.subr.bf16.mxu0 0
        %3160 = vmatpush1.bf16.xpose.msra.mxu0 0
        %3161 = vmatprep.subr.bf16.mxu0 0
        %3162 = vmatpush1.bf16.xpose.msra.mxu0 0
        %3163 = vmatprep.subr.bf16.mxu0 0
        %3164 = vmatpush1.bf16.xpose.msra.mxu0 0
        %3165 = vmatprep.subr.bf16.mxu0 0
        %3166 = vmatpush1.bf16.xpose.msra.mxu0 0
        %3167 = vmatprep.subr.bf16.mxu0 0
        %3168 = vmatpush1.bf16.xpose.msra.mxu0 0
        %3169 = vmatprep.subr.bf16.mxu0 0
        %3170 = vmatpush1.bf16.xpose.msra.mxu0 0
        %3171 = vmatprep.subr.bf16.mxu0 0
        %3172 = vmatpush1.bf16.xpose.msra.mxu0 0
        %3173 = vmatprep.subr.bf16.mxu0 0
        %3174 = vmatpush1.bf16.xpose.msra.mxu0 0
        %3175 = vmatprep.subr.bf16.mxu0 0
        %3176 = vmatpush1.bf16.xpose.msra.mxu0 0
        %3177 = vmatprep.subr.bf16.mxu0 0
        %3178 = vmatpush1.bf16.xpose.msra.mxu0 0
        %3179 = vmatprep.subr.bf16.mxu0 0
        %3180 = vmatpush1.bf16.xpose.msra.mxu0 0
        %3181 = vmatprep.subr.bf16.mxu0 0
        %3182 = vmatpush1.bf16.xpose.msra.mxu0 0
        %3183 = vmatprep.subr.bf16.mxu0 0
        %3184 = vmatpush1.bf16.xpose.msra.mxu0 0
        %3185 = vmatprep.mubr.bf16.mxu0 %v729
        %3186 = vmatmul.mubr.bf16.gmra.mrb[0].mxu0 %v728
        %v3187 = vpop.f32.mrb[0].mxu0
        %v3188 = vadd.f32 %v3148, %v3187
        %v3189 = vpop.f32.mrb[0].mxu0
        %v3190 = vpop.f32.mrb[0].mxu0
        %v3191 = vpop.f32.mrb[0].mxu0
        %3192 = vdwg.mxu0
        %3193 = vmatprep.subr.bf16.mxu0 %v1320
        %3194 = vmatpush1.bf16.xpose.msra.mxu0 %v1319
        %3195 = vmatprep.subr.bf16.mxu0 0
        %3196 = vmatpush1.bf16.xpose.msra.mxu0 0
        %3197 = vmatprep.subr.bf16.mxu0 0
        %3198 = vmatpush1.bf16.xpose.msra.mxu0 0
        %3199 = vmatprep.subr.bf16.mxu0 0
        %3200 = vmatpush1.bf16.xpose.msra.mxu0 0
        %3201 = vmatprep.subr.bf16.mxu0 0
        %3202 = vmatpush1.bf16.xpose.msra.mxu0 0
        %3203 = vmatprep.subr.bf16.mxu0 0
        %3204 = vmatpush1.bf16.xpose.msra.mxu0 0
        %3205 = vmatprep.subr.bf16.mxu0 0
        %3206 = vmatpush1.bf16.xpose.msra.mxu0 0
        %3207 = vmatprep.subr.bf16.mxu0 0
        %3208 = vmatpush1.bf16.xpose.msra.mxu0 0
        %3209 = vmatprep.subr.bf16.mxu0 0
        %3210 = vmatpush1.bf16.xpose.msra.mxu0 0
        %3211 = vmatprep.subr.bf16.mxu0 0
        %3212 = vmatpush1.bf16.xpose.msra.mxu0 0
        %3213 = vmatprep.subr.bf16.mxu0 0
        %3214 = vmatpush1.bf16.xpose.msra.mxu0 0
        %3215 = vmatprep.subr.bf16.mxu0 0
        %3216 = vmatpush1.bf16.xpose.msra.mxu0 0
        %3217 = vmatprep.subr.bf16.mxu0 0
        %3218 = vmatpush1.bf16.xpose.msra.mxu0 0
        %3219 = vmatprep.subr.bf16.mxu0 0
        %3220 = vmatpush1.bf16.xpose.msra.mxu0 0
        %3221 = vmatprep.subr.bf16.mxu0 0
        %3222 = vmatpush1.bf16.xpose.msra.mxu0 0
        %3223 = vmatprep.subr.bf16.mxu0 0
        %3224 = vmatpush1.bf16.xpose.msra.mxu0 0
        %3225 = vmatprep.mubr.bf16.mxu0 %v731
        %3226 = vmatmul.mubr.bf16.gmra.mrb[0].mxu0 %v730
        %v3227 = vpop.f32.mrb[0].mxu0
        %v3228 = vadd.f32 %v3188, %v3227
        %v3229 = vpop.f32.mrb[0].mxu0
        %v3230 = vpop.f32.mrb[0].mxu0
        %v3231 = vpop.f32.mrb[0].mxu0
        %3232 = vdwg.mxu0
        %3233 = vmatprep.subr.bf16.mxu0 %v1322
        %3234 = vmatpush1.bf16.xpose.msra.mxu0 %v1321
        %3235 = vmatprep.subr.bf16.mxu0 0
        %3236 = vmatpush1.bf16.xpose.msra.mxu0 0
        %3237 = vmatprep.subr.bf16.mxu0 0
        %3238 = vmatpush1.bf16.xpose.msra.mxu0 0
        %3239 = vmatprep.subr.bf16.mxu0 0
        %3240 = vmatpush1.bf16.xpose.msra.mxu0 0
        %3241 = vmatprep.subr.bf16.mxu0 0
        %3242 = vmatpush1.bf16.xpose.msra.mxu0 0
        %3243 = vmatprep.subr.bf16.mxu0 0
        %3244 = vmatpush1.bf16.xpose.msra.mxu0 0
        %3245 = vmatprep.subr.bf16.mxu0 0
        %3246 = vmatpush1.bf16.xpose.msra.mxu0 0
        %3247 = vmatprep.subr.bf16.mxu0 0
        %3248 = vmatpush1.bf16.xpose.msra.mxu0 0
        %3249 = vmatprep.subr.bf16.mxu0 0
        %3250 = vmatpush1.bf16.xpose.msra.mxu0 0
        %3251 = vmatprep.subr.bf16.mxu0 0
        %3252 = vmatpush1.bf16.xpose.msra.mxu0 0
        %3253 = vmatprep.subr.bf16.mxu0 0
        %3254 = vmatpush1.bf16.xpose.msra.mxu0 0
        %3255 = vmatprep.subr.bf16.mxu0 0
        %3256 = vmatpush1.bf16.xpose.msra.mxu0 0
        %3257 = vmatprep.subr.bf16.mxu0 0
        %3258 = vmatpush1.bf16.xpose.msra.mxu0 0
        %3259 = vmatprep.subr.bf16.mxu0 0
        %3260 = vmatpush1.bf16.xpose.msra.mxu0 0
        %3261 = vmatprep.subr.bf16.mxu0 0
        %3262 = vmatpush1.bf16.xpose.msra.mxu0 0
        %3263 = vmatprep.subr.bf16.mxu0 0
        %3264 = vmatpush1.bf16.xpose.msra.mxu0 0
        %3265 = vmatprep.mubr.bf16.mxu0 %v733
        %3266 = vmatmul.mubr.bf16.gmra.mrb[0].mxu0 %v732
        %v3267 = vpop.f32.mrb[0].mxu0
        %v3268 = vadd.f32 %v3228, %v3267
        %v3269 = vpop.f32.mrb[0].mxu0
        %v3270 = vpop.f32.mrb[0].mxu0
        %v3271 = vpop.f32.mrb[0].mxu0
        %3272 = vdwg.mxu0
        %3273 = vmatprep.subr.bf16.mxu0 %v1324
        %3274 = vmatpush1.bf16.xpose.msra.mxu0 %v1323
        %3275 = vmatprep.subr.bf16.mxu0 0
        %3276 = vmatpush1.bf16.xpose.msra.mxu0 0
        %3277 = vmatprep.subr.bf16.mxu0 0
        %3278 = vmatpush1.bf16.xpose.msra.mxu0 0
        %3279 = vmatprep.subr.bf16.mxu0 0
        %3280 = vmatpush1.bf16.xpose.msra.mxu0 0
        %3281 = vmatprep.subr.bf16.mxu0 0
        %3282 = vmatpush1.bf16.xpose.msra.mxu0 0
        %3283 = vmatprep.subr.bf16.mxu0 0
        %3284 = vmatpush1.bf16.xpose.msra.mxu0 0
        %3285 = vmatprep.subr.bf16.mxu0 0
        %3286 = vmatpush1.bf16.xpose.msra.mxu0 0
        %3287 = vmatprep.subr.bf16.mxu0 0
        %3288 = vmatpush1.bf16.xpose.msra.mxu0 0
        %3289 = vmatprep.subr.bf16.mxu0 0
        %3290 = vmatpush1.bf16.xpose.msra.mxu0 0
        %3291 = vmatprep.subr.bf16.mxu0 0
        %3292 = vmatpush1.bf16.xpose.msra.mxu0 0
        %3293 = vmatprep.subr.bf16.mxu0 0
        %3294 = vmatpush1.bf16.xpose.msra.mxu0 0
        %3295 = vmatprep.subr.bf16.mxu0 0
        %3296 = vmatpush1.bf16.xpose.msra.mxu0 0
        %3297 = vmatprep.subr.bf16.mxu0 0
        %3298 = vmatpush1.bf16.xpose.msra.mxu0 0
        %3299 = vmatprep.subr.bf16.mxu0 0
        %3300 = vmatpush1.bf16.xpose.msra.mxu0 0
        %3301 = vmatprep.subr.bf16.mxu0 0
        %3302 = vmatpush1.bf16.xpose.msra.mxu0 0
        %3303 = vmatprep.subr.bf16.mxu0 0
        %3304 = vmatpush1.bf16.xpose.msra.mxu0 0
        %3305 = vmatprep.mubr.bf16.mxu0 %v735
        %3306 = vmatmul.mubr.bf16.gmra.mrb[0].mxu0 %v734
        %v3307 = vpop.f32.mrb[0].mxu0
        %v3308 = vadd.f32 %v3268, %v3307
        %v3309 = vpop.f32.mrb[0].mxu0
        %v3310 = vpop.f32.mrb[0].mxu0
        %v3311 = vpop.f32.mrb[0].mxu0
        %3312 = vdwg.mxu0
        %3313 = vmatprep.subr.bf16.mxu0 %v1326
        %3314 = vmatpush1.bf16.xpose.msra.mxu0 %v1325
        %3315 = vmatprep.subr.bf16.mxu0 0
        %3316 = vmatpush1.bf16.xpose.msra.mxu0 0
        %3317 = vmatprep.subr.bf16.mxu0 0
        %3318 = vmatpush1.bf16.xpose.msra.mxu0 0
        %3319 = vmatprep.subr.bf16.mxu0 0
        %3320 = vmatpush1.bf16.xpose.msra.mxu0 0
        %3321 = vmatprep.subr.bf16.mxu0 0
        %3322 = vmatpush1.bf16.xpose.msra.mxu0 0
        %3323 = vmatprep.subr.bf16.mxu0 0
        %3324 = vmatpush1.bf16.xpose.msra.mxu0 0
        %3325 = vmatprep.subr.bf16.mxu0 0
        %3326 = vmatpush1.bf16.xpose.msra.mxu0 0
        %3327 = vmatprep.subr.bf16.mxu0 0
        %3328 = vmatpush1.bf16.xpose.msra.mxu0 0
        %3329 = vmatprep.subr.bf16.mxu0 0
        %3330 = vmatpush1.bf16.xpose.msra.mxu0 0
        %3331 = vmatprep.subr.bf16.mxu0 0
        %3332 = vmatpush1.bf16.xpose.msra.mxu0 0
        %3333 = vmatprep.subr.bf16.mxu0 0
        %3334 = vmatpush1.bf16.xpose.msra.mxu0 0
        %3335 = vmatprep.subr.bf16.mxu0 0
        %3336 = vmatpush1.bf16.xpose.msra.mxu0 0
        %3337 = vmatprep.subr.bf16.mxu0 0
        %3338 = vmatpush1.bf16.xpose.msra.mxu0 0
        %3339 = vmatprep.subr.bf16.mxu0 0
        %3340 = vmatpush1.bf16.xpose.msra.mxu0 0
        %3341 = vmatprep.subr.bf16.mxu0 0
        %3342 = vmatpush1.bf16.xpose.msra.mxu0 0
        %3343 = vmatprep.subr.bf16.mxu0 0
        %3344 = vmatpush1.bf16.xpose.msra.mxu0 0
        %3345 = vmatprep.mubr.bf16.mxu0 %v737
        %3346 = vmatmul.mubr.bf16.gmra.mrb[0].mxu0 %v736
        %v3347 = vpop.f32.mrb[0].mxu0
        %v3348 = vadd.f32 %v3308, %v3347
        %v3349 = vpop.f32.mrb[0].mxu0
        %v3350 = vpop.f32.mrb[0].mxu0
        %v3351 = vpop.f32.mrb[0].mxu0
        %3352 = vdwg.mxu0
        %3353 = vmatprep.subr.bf16.mxu0 %v1328
        %3354 = vmatpush1.bf16.xpose.msra.mxu0 %v1327
        %3355 = vmatprep.subr.bf16.mxu0 0
        %3356 = vmatpush1.bf16.xpose.msra.mxu0 0
        %3357 = vmatprep.subr.bf16.mxu0 0
        %3358 = vmatpush1.bf16.xpose.msra.mxu0 0
        %3359 = vmatprep.subr.bf16.mxu0 0
        %3360 = vmatpush1.bf16.xpose.msra.mxu0 0
        %3361 = vmatprep.subr.bf16.mxu0 0
        %3362 = vmatpush1.bf16.xpose.msra.mxu0 0
        %3363 = vmatprep.subr.bf16.mxu0 0
        %3364 = vmatpush1.bf16.xpose.msra.mxu0 0
        %3365 = vmatprep.subr.bf16.mxu0 0
        %3366 = vmatpush1.bf16.xpose.msra.mxu0 0
        %3367 = vmatprep.subr.bf16.mxu0 0
        %3368 = vmatpush1.bf16.xpose.msra.mxu0 0
        %3369 = vmatprep.subr.bf16.mxu0 0
        %3370 = vmatpush1.bf16.xpose.msra.mxu0 0
        %3371 = vmatprep.subr.bf16.mxu0 0
        %3372 = vmatpush1.bf16.xpose.msra.mxu0 0
        %3373 = vmatprep.subr.bf16.mxu0 0
        %3374 = vmatpush1.bf16.xpose.msra.mxu0 0
        %3375 = vmatprep.subr.bf16.mxu0 0
        %3376 = vmatpush1.bf16.xpose.msra.mxu0 0
        %3377 = vmatprep.subr.bf16.mxu0 0
        %3378 = vmatpush1.bf16.xpose.msra.mxu0 0
        %3379 = vmatprep.subr.bf16.mxu0 0
        %3380 = vmatpush1.bf16.xpose.msra.mxu0 0
        %3381 = vmatprep.subr.bf16.mxu0 0
        %3382 = vmatpush1.bf16.xpose.msra.mxu0 0
        %3383 = vmatprep.subr.bf16.mxu0 0
        %3384 = vmatpush1.bf16.xpose.msra.mxu0 0
        %3385 = vmatprep.mubr.bf16.mxu0 %v739
        %3386 = vmatmul.mubr.bf16.gmra.mrb[0].mxu0 %v738
        %v3387 = vpop.f32.mrb[0].mxu0
        %v3388 = vadd.f32 %v3348, %v3387
        %v3389 = vpop.f32.mrb[0].mxu0
        %v3390 = vpop.f32.mrb[0].mxu0
        %v3391 = vpop.f32.mrb[0].mxu0
        %3392 = vdwg.mxu0
        %3393 = vmatprep.subr.bf16.mxu0 %v1330
        %3394 = vmatpush1.bf16.xpose.msra.mxu0 %v1329
        %3395 = vmatprep.subr.bf16.mxu0 0
        %3396 = vmatpush1.bf16.xpose.msra.mxu0 0
        %3397 = vmatprep.subr.bf16.mxu0 0
        %3398 = vmatpush1.bf16.xpose.msra.mxu0 0
        %3399 = vmatprep.subr.bf16.mxu0 0
        %3400 = vmatpush1.bf16.xpose.msra.mxu0 0
        %3401 = vmatprep.subr.bf16.mxu0 0
        %3402 = vmatpush1.bf16.xpose.msra.mxu0 0
        %3403 = vmatprep.subr.bf16.mxu0 0
        %3404 = vmatpush1.bf16.xpose.msra.mxu0 0
        %3405 = vmatprep.subr.bf16.mxu0 0
        %3406 = vmatpush1.bf16.xpose.msra.mxu0 0
        %3407 = vmatprep.subr.bf16.mxu0 0
        %3408 = vmatpush1.bf16.xpose.msra.mxu0 0
        %3409 = vmatprep.subr.bf16.mxu0 0
        %3410 = vmatpush1.bf16.xpose.msra.mxu0 0
        %3411 = vmatprep.subr.bf16.mxu0 0
        %3412 = vmatpush1.bf16.xpose.msra.mxu0 0
        %3413 = vmatprep.subr.bf16.mxu0 0
        %3414 = vmatpush1.bf16.xpose.msra.mxu0 0
        %3415 = vmatprep.subr.bf16.mxu0 0
        %3416 = vmatpush1.bf16.xpose.msra.mxu0 0
        %3417 = vmatprep.subr.bf16.mxu0 0
        %3418 = vmatpush1.bf16.xpose.msra.mxu0 0
        %3419 = vmatprep.subr.bf16.mxu0 0
        %3420 = vmatpush1.bf16.xpose.msra.mxu0 0
        %3421 = vmatprep.subr.bf16.mxu0 0
        %3422 = vmatpush1.bf16.xpose.msra.mxu0 0
        %3423 = vmatprep.subr.bf16.mxu0 0
        %3424 = vmatpush1.bf16.xpose.msra.mxu0 0
        %3425 = vmatprep.mubr.bf16.mxu0 %v741
        %3426 = vmatmul.mubr.bf16.gmra.mrb[0].mxu0 %v740
        %v3427 = vpop.f32.mrb[0].mxu0
        %v3428 = vadd.f32 %v3388, %v3427
        %v3429 = vpop.f32.mrb[0].mxu0
        %v3430 = vpop.f32.mrb[0].mxu0
        %v3431 = vpop.f32.mrb[0].mxu0
        %3432 = vdwg.mxu0
        %3433 = vmatprep.subr.bf16.mxu0 %v1332
        %3434 = vmatpush1.bf16.xpose.msra.mxu0 %v1331
        %3435 = vmatprep.subr.bf16.mxu0 0
        %3436 = vmatpush1.bf16.xpose.msra.mxu0 0
        %3437 = vmatprep.subr.bf16.mxu0 0
        %3438 = vmatpush1.bf16.xpose.msra.mxu0 0
        %3439 = vmatprep.subr.bf16.mxu0 0
        %3440 = vmatpush1.bf16.xpose.msra.mxu0 0
        %3441 = vmatprep.subr.bf16.mxu0 0
        %3442 = vmatpush1.bf16.xpose.msra.mxu0 0
        %3443 = vmatprep.subr.bf16.mxu0 0
        %3444 = vmatpush1.bf16.xpose.msra.mxu0 0
        %3445 = vmatprep.subr.bf16.mxu0 0
        %3446 = vmatpush1.bf16.xpose.msra.mxu0 0
        %3447 = vmatprep.subr.bf16.mxu0 0
        %3448 = vmatpush1.bf16.xpose.msra.mxu0 0
        %3449 = vmatprep.subr.bf16.mxu0 0
        %3450 = vmatpush1.bf16.xpose.msra.mxu0 0
        %3451 = vmatprep.subr.bf16.mxu0 0
        %3452 = vmatpush1.bf16.xpose.msra.mxu0 0
        %3453 = vmatprep.subr.bf16.mxu0 0
        %3454 = vmatpush1.bf16.xpose.msra.mxu0 0
        %3455 = vmatprep.subr.bf16.mxu0 0
        %3456 = vmatpush1.bf16.xpose.msra.mxu0 0
        %3457 = vmatprep.subr.bf16.mxu0 0
        %3458 = vmatpush1.bf16.xpose.msra.mxu0 0
        %3459 = vmatprep.subr.bf16.mxu0 0
        %3460 = vmatpush1.bf16.xpose.msra.mxu0 0
        %3461 = vmatprep.subr.bf16.mxu0 0
        %3462 = vmatpush1.bf16.xpose.msra.mxu0 0
        %3463 = vmatprep.subr.bf16.mxu0 0
        %3464 = vmatpush1.bf16.xpose.msra.mxu0 0
        %3465 = vmatprep.mubr.bf16.mxu0 %v743
        %3466 = vmatmul.mubr.bf16.gmra.mrb[0].mxu0 %v742
        %v3467 = vpop.f32.mrb[0].mxu0
        %v3468 = vadd.f32 %v3428, %v3467
        %v3469 = vpop.f32.mrb[0].mxu0
        %v3470 = vpop.f32.mrb[0].mxu0
        %v3471 = vpop.f32.mrb[0].mxu0
        %3472 = vdwg.mxu0
        %3473 = vmatprep.subr.bf16.mxu0 %v1334
        %3474 = vmatpush1.bf16.xpose.msra.mxu0 %v1333
        %3475 = vmatprep.subr.bf16.mxu0 0
        %3476 = vmatpush1.bf16.xpose.msra.mxu0 0
        %3477 = vmatprep.subr.bf16.mxu0 0
        %3478 = vmatpush1.bf16.xpose.msra.mxu0 0
        %3479 = vmatprep.subr.bf16.mxu0 0
        %3480 = vmatpush1.bf16.xpose.msra.mxu0 0
        %3481 = vmatprep.subr.bf16.mxu0 0
        %3482 = vmatpush1.bf16.xpose.msra.mxu0 0
        %3483 = vmatprep.subr.bf16.mxu0 0
        %3484 = vmatpush1.bf16.xpose.msra.mxu0 0
        %3485 = vmatprep.subr.bf16.mxu0 0
        %3486 = vmatpush1.bf16.xpose.msra.mxu0 0
        %3487 = vmatprep.subr.bf16.mxu0 0
        %3488 = vmatpush1.bf16.xpose.msra.mxu0 0
        %3489 = vmatprep.subr.bf16.mxu0 0
        %3490 = vmatpush1.bf16.xpose.msra.mxu0 0
        %3491 = vmatprep.subr.bf16.mxu0 0
        %3492 = vmatpush1.bf16.xpose.msra.mxu0 0
        %3493 = vmatprep.subr.bf16.mxu0 0
        %3494 = vmatpush1.bf16.xpose.msra.mxu0 0
        %3495 = vmatprep.subr.bf16.mxu0 0
        %3496 = vmatpush1.bf16.xpose.msra.mxu0 0
        %3497 = vmatprep.subr.bf16.mxu0 0
        %3498 = vmatpush1.bf16.xpose.msra.mxu0 0
        %3499 = vmatprep.subr.bf16.mxu0 0
        %3500 = vmatpush1.bf16.xpose.msra.mxu0 0
        %3501 = vmatprep.subr.bf16.mxu0 0
        %3502 = vmatpush1.bf16.xpose.msra.mxu0 0
        %3503 = vmatprep.subr.bf16.mxu0 0
        %3504 = vmatpush1.bf16.xpose.msra.mxu0 0
        %3505 = vmatprep.mubr.bf16.mxu0 %v745
        %3506 = vmatmul.mubr.bf16.gmra.mrb[0].mxu0 %v744
        %v3507 = vpop.f32.mrb[0].mxu0
        %v3508 = vadd.f32 %v3468, %v3507
        %v3509 = vpop.f32.mrb[0].mxu0
        %v3510 = vpop.f32.mrb[0].mxu0
        %v3511 = vpop.f32.mrb[0].mxu0
        %3512 = vdwg.mxu0
        %3513 = vmatprep.subr.bf16.mxu0 %v1336
        %3514 = vmatpush1.bf16.xpose.msra.mxu0 %v1335
        %3515 = vmatprep.subr.bf16.mxu0 0
        %3516 = vmatpush1.bf16.xpose.msra.mxu0 0
        %3517 = vmatprep.subr.bf16.mxu0 0
        %3518 = vmatpush1.bf16.xpose.msra.mxu0 0
        %3519 = vmatprep.subr.bf16.mxu0 0
        %3520 = vmatpush1.bf16.xpose.msra.mxu0 0
        %3521 = vmatprep.subr.bf16.mxu0 0
        %3522 = vmatpush1.bf16.xpose.msra.mxu0 0
        %3523 = vmatprep.subr.bf16.mxu0 0
        %3524 = vmatpush1.bf16.xpose.msra.mxu0 0
        %3525 = vmatprep.subr.bf16.mxu0 0
        %3526 = vmatpush1.bf16.xpose.msra.mxu0 0
        %3527 = vmatprep.subr.bf16.mxu0 0
        %3528 = vmatpush1.bf16.xpose.msra.mxu0 0
        %3529 = vmatprep.subr.bf16.mxu0 0
        %3530 = vmatpush1.bf16.xpose.msra.mxu0 0
        %3531 = vmatprep.subr.bf16.mxu0 0
        %3532 = vmatpush1.bf16.xpose.msra.mxu0 0
        %3533 = vmatprep.subr.bf16.mxu0 0
        %3534 = vmatpush1.bf16.xpose.msra.mxu0 0
        %3535 = vmatprep.subr.bf16.mxu0 0
        %3536 = vmatpush1.bf16.xpose.msra.mxu0 0
        %3537 = vmatprep.subr.bf16.mxu0 0
        %3538 = vmatpush1.bf16.xpose.msra.mxu0 0
        %3539 = vmatprep.subr.bf16.mxu0 0
        %3540 = vmatpush1.bf16.xpose.msra.mxu0 0
        %3541 = vmatprep.subr.bf16.mxu0 0
        %3542 = vmatpush1.bf16.xpose.msra.mxu0 0
        %3543 = vmatprep.subr.bf16.mxu0 0
        %3544 = vmatpush1.bf16.xpose.msra.mxu0 0
        %3545 = vmatprep.mubr.bf16.mxu0 %v747
        %3546 = vmatmul.mubr.bf16.gmra.mrb[0].mxu0 %v746
        %v3547 = vpop.f32.mrb[0].mxu0
        %v3548 = vadd.f32 %v3508, %v3547
        %v3549 = vpop.f32.mrb[0].mxu0
        %v3550 = vpop.f32.mrb[0].mxu0
        %v3551 = vpop.f32.mrb[0].mxu0
        %3552 = vdwg.mxu0
        %3553 = vmatprep.subr.bf16.mxu0 %v1338
        %3554 = vmatpush1.bf16.xpose.msra.mxu0 %v1337
        %3555 = vmatprep.subr.bf16.mxu0 0
        %3556 = vmatpush1.bf16.xpose.msra.mxu0 0
        %3557 = vmatprep.subr.bf16.mxu0 0
        %3558 = vmatpush1.bf16.xpose.msra.mxu0 0
        %3559 = vmatprep.subr.bf16.mxu0 0
        %3560 = vmatpush1.bf16.xpose.msra.mxu0 0
        %3561 = vmatprep.subr.bf16.mxu0 0
        %3562 = vmatpush1.bf16.xpose.msra.mxu0 0
        %3563 = vmatprep.subr.bf16.mxu0 0
        %3564 = vmatpush1.bf16.xpose.msra.mxu0 0
        %3565 = vmatprep.subr.bf16.mxu0 0
        %3566 = vmatpush1.bf16.xpose.msra.mxu0 0
        %3567 = vmatprep.subr.bf16.mxu0 0
        %3568 = vmatpush1.bf16.xpose.msra.mxu0 0
        %3569 = vmatprep.subr.bf16.mxu0 0
        %3570 = vmatpush1.bf16.xpose.msra.mxu0 0
        %3571 = vmatprep.subr.bf16.mxu0 0
        %3572 = vmatpush1.bf16.xpose.msra.mxu0 0
        %3573 = vmatprep.subr.bf16.mxu0 0
        %3574 = vmatpush1.bf16.xpose.msra.mxu0 0
        %3575 = vmatprep.subr.bf16.mxu0 0
        %3576 = vmatpush1.bf16.xpose.msra.mxu0 0
        %3577 = vmatprep.subr.bf16.mxu0 0
        %3578 = vmatpush1.bf16.xpose.msra.mxu0 0
        %3579 = vmatprep.subr.bf16.mxu0 0
        %3580 = vmatpush1.bf16.xpose.msra.mxu0 0
        %3581 = vmatprep.subr.bf16.mxu0 0
        %3582 = vmatpush1.bf16.xpose.msra.mxu0 0
        %3583 = vmatprep.subr.bf16.mxu0 0
        %3584 = vmatpush1.bf16.xpose.msra.mxu0 0
        %3585 = vmatprep.mubr.bf16.mxu0 %v749
        %3586 = vmatmul.mubr.bf16.gmra.mrb[0].mxu0 %v748
        %v3587 = vpop.f32.mrb[0].mxu0
        %v3588 = vadd.f32 %v3548, %v3587
        %v3589 = vpop.f32.mrb[0].mxu0
        %v3590 = vpop.f32.mrb[0].mxu0
        %v3591 = vpop.f32.mrb[0].mxu0
        %3592 = vdwg.mxu0
        %3593 = vmatprep.subr.bf16.mxu0 %v1340
        %3594 = vmatpush1.bf16.xpose.msra.mxu0 %v1339
        %3595 = vmatprep.subr.bf16.mxu0 0
        %3596 = vmatpush1.bf16.xpose.msra.mxu0 0
        %3597 = vmatprep.subr.bf16.mxu0 0
        %3598 = vmatpush1.bf16.xpose.msra.mxu0 0
        %3599 = vmatprep.subr.bf16.mxu0 0
        %3600 = vmatpush1.bf16.xpose.msra.mxu0 0
        %3601 = vmatprep.subr.bf16.mxu0 0
        %3602 = vmatpush1.bf16.xpose.msra.mxu0 0
        %3603 = vmatprep.subr.bf16.mxu0 0
        %3604 = vmatpush1.bf16.xpose.msra.mxu0 0
        %3605 = vmatprep.subr.bf16.mxu0 0
        %3606 = vmatpush1.bf16.xpose.msra.mxu0 0
        %3607 = vmatprep.subr.bf16.mxu0 0
        %3608 = vmatpush1.bf16.xpose.msra.mxu0 0
        %3609 = vmatprep.subr.bf16.mxu0 0
        %3610 = vmatpush1.bf16.xpose.msra.mxu0 0
        %3611 = vmatprep.subr.bf16.mxu0 0
        %3612 = vmatpush1.bf16.xpose.msra.mxu0 0
        %3613 = vmatprep.subr.bf16.mxu0 0
        %3614 = vmatpush1.bf16.xpose.msra.mxu0 0
        %3615 = vmatprep.subr.bf16.mxu0 0
        %3616 = vmatpush1.bf16.xpose.msra.mxu0 0
        %3617 = vmatprep.subr.bf16.mxu0 0
        %3618 = vmatpush1.bf16.xpose.msra.mxu0 0
        %3619 = vmatprep.subr.bf16.mxu0 0
        %3620 = vmatpush1.bf16.xpose.msra.mxu0 0
        %3621 = vmatprep.subr.bf16.mxu0 0
        %3622 = vmatpush1.bf16.xpose.msra.mxu0 0
        %3623 = vmatprep.subr.bf16.mxu0 0
        %3624 = vmatpush1.bf16.xpose.msra.mxu0 0
        %3625 = vmatprep.mubr.bf16.mxu0 %v751
        %3626 = vmatmul.mubr.bf16.gmra.mrb[0].mxu0 %v750
        %v3627 = vpop.f32.mrb[0].mxu0
        %v3628 = vadd.f32 %v3588, %v3627
        %v3629 = vpop.f32.mrb[0].mxu0
        %v3630 = vpop.f32.mrb[0].mxu0
        %v3631 = vpop.f32.mrb[0].mxu0
        %3632 = vdwg.mxu0
        %3633 = vmatprep.subr.bf16.mxu0 %v1342
        %3634 = vmatpush1.bf16.xpose.msra.mxu0 %v1341
        %3635 = vmatprep.subr.bf16.mxu0 0
        %3636 = vmatpush1.bf16.xpose.msra.mxu0 0
        %3637 = vmatprep.subr.bf16.mxu0 0
        %3638 = vmatpush1.bf16.xpose.msra.mxu0 0
        %3639 = vmatprep.subr.bf16.mxu0 0
        %3640 = vmatpush1.bf16.xpose.msra.mxu0 0
        %3641 = vmatprep.subr.bf16.mxu0 0
        %3642 = vmatpush1.bf16.xpose.msra.mxu0 0
        %3643 = vmatprep.subr.bf16.mxu0 0
        %3644 = vmatpush1.bf16.xpose.msra.mxu0 0
        %3645 = vmatprep.subr.bf16.mxu0 0
        %3646 = vmatpush1.bf16.xpose.msra.mxu0 0
        %3647 = vmatprep.subr.bf16.mxu0 0
        %3648 = vmatpush1.bf16.xpose.msra.mxu0 0
        %3649 = vmatprep.subr.bf16.mxu0 0
        %3650 = vmatpush1.bf16.xpose.msra.mxu0 0
        %3651 = vmatprep.subr.bf16.mxu0 0
        %3652 = vmatpush1.bf16.xpose.msra.mxu0 0
        %3653 = vmatprep.subr.bf16.mxu0 0
        %3654 = vmatpush1.bf16.xpose.msra.mxu0 0
        %3655 = vmatprep.subr.bf16.mxu0 0
        %3656 = vmatpush1.bf16.xpose.msra.mxu0 0
        %3657 = vmatprep.subr.bf16.mxu0 0
        %3658 = vmatpush1.bf16.xpose.msra.mxu0 0
        %3659 = vmatprep.subr.bf16.mxu0 0
        %3660 = vmatpush1.bf16.xpose.msra.mxu0 0
        %3661 = vmatprep.subr.bf16.mxu0 0
        %3662 = vmatpush1.bf16.xpose.msra.mxu0 0
        %3663 = vmatprep.subr.bf16.mxu0 0
        %3664 = vmatpush1.bf16.xpose.msra.mxu0 0
        %3665 = vmatprep.mubr.bf16.mxu0 %v753
        %3666 = vmatmul.mubr.bf16.gmra.mrb[0].mxu0 %v752
        %v3667 = vpop.f32.mrb[0].mxu0
        %v3668 = vadd.f32 %v3628, %v3667
        %v3669 = vpop.f32.mrb[0].mxu0
        %v3670 = vpop.f32.mrb[0].mxu0
        %v3671 = vpop.f32.mrb[0].mxu0
        %3672 = vdwg.mxu0
        %3673 = vmatprep.subr.bf16.mxu0 %v1344
        %3674 = vmatpush1.bf16.xpose.msra.mxu0 %v1343
        %3675 = vmatprep.subr.bf16.mxu0 0
        %3676 = vmatpush1.bf16.xpose.msra.mxu0 0
        %3677 = vmatprep.subr.bf16.mxu0 0
        %3678 = vmatpush1.bf16.xpose.msra.mxu0 0
        %3679 = vmatprep.subr.bf16.mxu0 0
        %3680 = vmatpush1.bf16.xpose.msra.mxu0 0
        %3681 = vmatprep.subr.bf16.mxu0 0
        %3682 = vmatpush1.bf16.xpose.msra.mxu0 0
        %3683 = vmatprep.subr.bf16.mxu0 0
        %3684 = vmatpush1.bf16.xpose.msra.mxu0 0
        %3685 = vmatprep.subr.bf16.mxu0 0
        %3686 = vmatpush1.bf16.xpose.msra.mxu0 0
        %3687 = vmatprep.subr.bf16.mxu0 0
        %3688 = vmatpush1.bf16.xpose.msra.mxu0 0
        %3689 = vmatprep.subr.bf16.mxu0 0
        %3690 = vmatpush1.bf16.xpose.msra.mxu0 0
        %3691 = vmatprep.subr.bf16.mxu0 0
        %3692 = vmatpush1.bf16.xpose.msra.mxu0 0
        %3693 = vmatprep.subr.bf16.mxu0 0
        %3694 = vmatpush1.bf16.xpose.msra.mxu0 0
        %3695 = vmatprep.subr.bf16.mxu0 0
        %3696 = vmatpush1.bf16.xpose.msra.mxu0 0
        %3697 = vmatprep.subr.bf16.mxu0 0
        %3698 = vmatpush1.bf16.xpose.msra.mxu0 0
        %3699 = vmatprep.subr.bf16.mxu0 0
        %3700 = vmatpush1.bf16.xpose.msra.mxu0 0
        %3701 = vmatprep.subr.bf16.mxu0 0
        %3702 = vmatpush1.bf16.xpose.msra.mxu0 0
        %3703 = vmatprep.subr.bf16.mxu0 0
        %3704 = vmatpush1.bf16.xpose.msra.mxu0 0
        %3705 = vmatprep.mubr.bf16.mxu0 %v755
        %3706 = vmatmul.mubr.bf16.gmra.mrb[0].mxu0 %v754
        %v3707 = vpop.f32.mrb[0].mxu0
        %v3708 = vadd.f32 %v3668, %v3707
        %v3709 = vpop.f32.mrb[0].mxu0
        %v3710 = vpop.f32.mrb[0].mxu0
        %v3711 = vpop.f32.mrb[0].mxu0
        %3712 = vdwg.mxu0
        %3713 = vmatprep.subr.bf16.mxu0 %v1346
        %3714 = vmatpush1.bf16.xpose.msra.mxu0 %v1345
        %3715 = vmatprep.subr.bf16.mxu0 0
        %3716 = vmatpush1.bf16.xpose.msra.mxu0 0
        %3717 = vmatprep.subr.bf16.mxu0 0
        %3718 = vmatpush1.bf16.xpose.msra.mxu0 0
        %3719 = vmatprep.subr.bf16.mxu0 0
        %3720 = vmatpush1.bf16.xpose.msra.mxu0 0
        %3721 = vmatprep.subr.bf16.mxu0 0
        %3722 = vmatpush1.bf16.xpose.msra.mxu0 0
        %3723 = vmatprep.subr.bf16.mxu0 0
        %3724 = vmatpush1.bf16.xpose.msra.mxu0 0
        %3725 = vmatprep.subr.bf16.mxu0 0
        %3726 = vmatpush1.bf16.xpose.msra.mxu0 0
        %3727 = vmatprep.subr.bf16.mxu0 0
        %3728 = vmatpush1.bf16.xpose.msra.mxu0 0
        %3729 = vmatprep.subr.bf16.mxu0 0
        %3730 = vmatpush1.bf16.xpose.msra.mxu0 0
        %3731 = vmatprep.subr.bf16.mxu0 0
        %3732 = vmatpush1.bf16.xpose.msra.mxu0 0
        %3733 = vmatprep.subr.bf16.mxu0 0
        %3734 = vmatpush1.bf16.xpose.msra.mxu0 0
        %3735 = vmatprep.subr.bf16.mxu0 0
        %3736 = vmatpush1.bf16.xpose.msra.mxu0 0
        %3737 = vmatprep.subr.bf16.mxu0 0
        %3738 = vmatpush1.bf16.xpose.msra.mxu0 0
        %3739 = vmatprep.subr.bf16.mxu0 0
        %3740 = vmatpush1.bf16.xpose.msra.mxu0 0
        %3741 = vmatprep.subr.bf16.mxu0 0
        %3742 = vmatpush1.bf16.xpose.msra.mxu0 0
        %3743 = vmatprep.subr.bf16.mxu0 0
        %3744 = vmatpush1.bf16.xpose.msra.mxu0 0
        %3745 = vmatprep.mubr.bf16.mxu0 %v757
        %3746 = vmatmul.mubr.bf16.gmra.mrb[0].mxu0 %v756
        %v3747 = vpop.f32.mrb[0].mxu0
        %v3748 = vadd.f32 %v3708, %v3747
        %v3749 = vpop.f32.mrb[0].mxu0
        %v3750 = vpop.f32.mrb[0].mxu0
        %v3751 = vpop.f32.mrb[0].mxu0
        %3752 = vdwg.mxu0
        %3753 = vmatprep.subr.bf16.mxu0 %v1348
        %3754 = vmatpush1.bf16.xpose.msra.mxu0 %v1347
        %3755 = vmatprep.subr.bf16.mxu0 0
        %3756 = vmatpush1.bf16.xpose.msra.mxu0 0
        %3757 = vmatprep.subr.bf16.mxu0 0
        %3758 = vmatpush1.bf16.xpose.msra.mxu0 0
        %3759 = vmatprep.subr.bf16.mxu0 0
        %3760 = vmatpush1.bf16.xpose.msra.mxu0 0
        %3761 = vmatprep.subr.bf16.mxu0 0
        %3762 = vmatpush1.bf16.xpose.msra.mxu0 0
        %3763 = vmatprep.subr.bf16.mxu0 0
        %3764 = vmatpush1.bf16.xpose.msra.mxu0 0
        %3765 = vmatprep.subr.bf16.mxu0 0
        %3766 = vmatpush1.bf16.xpose.msra.mxu0 0
        %3767 = vmatprep.subr.bf16.mxu0 0
        %3768 = vmatpush1.bf16.xpose.msra.mxu0 0
        %3769 = vmatprep.subr.bf16.mxu0 0
        %3770 = vmatpush1.bf16.xpose.msra.mxu0 0
        %3771 = vmatprep.subr.bf16.mxu0 0
        %3772 = vmatpush1.bf16.xpose.msra.mxu0 0
        %3773 = vmatprep.subr.bf16.mxu0 0
        %3774 = vmatpush1.bf16.xpose.msra.mxu0 0
        %3775 = vmatprep.subr.bf16.mxu0 0
        %3776 = vmatpush1.bf16.xpose.msra.mxu0 0
        %3777 = vmatprep.subr.bf16.mxu0 0
        %3778 = vmatpush1.bf16.xpose.msra.mxu0 0
        %3779 = vmatprep.subr.bf16.mxu0 0
        %3780 = vmatpush1.bf16.xpose.msra.mxu0 0
        %3781 = vmatprep.subr.bf16.mxu0 0
        %3782 = vmatpush1.bf16.xpose.msra.mxu0 0
        %3783 = vmatprep.subr.bf16.mxu0 0
        %3784 = vmatpush1.bf16.xpose.msra.mxu0 0
        %3785 = vmatprep.mubr.bf16.mxu0 %v759
        %3786 = vmatmul.mubr.bf16.gmra.mrb[0].mxu0 %v758
        %v3787 = vpop.f32.mrb[0].mxu0
        %v3788 = vadd.f32 %v3748, %v3787
        %v3789 = vpop.f32.mrb[0].mxu0
        %v3790 = vpop.f32.mrb[0].mxu0
        %v3791 = vpop.f32.mrb[0].mxu0
        %3792 = vdwg.mxu0
        %3793 = vmatprep.subr.bf16.mxu0 %v1350
        %3794 = vmatpush1.bf16.xpose.msra.mxu0 %v1349
        %3795 = vmatprep.subr.bf16.mxu0 0
        %3796 = vmatpush1.bf16.xpose.msra.mxu0 0
        %3797 = vmatprep.subr.bf16.mxu0 0
        %3798 = vmatpush1.bf16.xpose.msra.mxu0 0
        %3799 = vmatprep.subr.bf16.mxu0 0
        %3800 = vmatpush1.bf16.xpose.msra.mxu0 0
        %3801 = vmatprep.subr.bf16.mxu0 0
        %3802 = vmatpush1.bf16.xpose.msra.mxu0 0
        %3803 = vmatprep.subr.bf16.mxu0 0
        %3804 = vmatpush1.bf16.xpose.msra.mxu0 0
        %3805 = vmatprep.subr.bf16.mxu0 0
        %3806 = vmatpush1.bf16.xpose.msra.mxu0 0
        %3807 = vmatprep.subr.bf16.mxu0 0
        %3808 = vmatpush1.bf16.xpose.msra.mxu0 0
        %3809 = vmatprep.subr.bf16.mxu0 0
        %3810 = vmatpush1.bf16.xpose.msra.mxu0 0
        %3811 = vmatprep.subr.bf16.mxu0 0
        %3812 = vmatpush1.bf16.xpose.msra.mxu0 0
        %3813 = vmatprep.subr.bf16.mxu0 0
        %3814 = vmatpush1.bf16.xpose.msra.mxu0 0
        %3815 = vmatprep.subr.bf16.mxu0 0
        %3816 = vmatpush1.bf16.xpose.msra.mxu0 0
        %3817 = vmatprep.subr.bf16.mxu0 0
        %3818 = vmatpush1.bf16.xpose.msra.mxu0 0
        %3819 = vmatprep.subr.bf16.mxu0 0
        %3820 = vmatpush1.bf16.xpose.msra.mxu0 0
        %3821 = vmatprep.subr.bf16.mxu0 0
        %3822 = vmatpush1.bf16.xpose.msra.mxu0 0
        %3823 = vmatprep.subr.bf16.mxu0 0
        %3824 = vmatpush1.bf16.xpose.msra.mxu0 0
        %3825 = vmatprep.mubr.bf16.mxu0 %v761
        %3826 = vmatmul.mubr.bf16.gmra.mrb[0].mxu0 %v760
        %v3827 = vpop.f32.mrb[0].mxu0
        %v3828 = vadd.f32 %v3788, %v3827
        %v3829 = vpop.f32.mrb[0].mxu0
        %v3830 = vpop.f32.mrb[0].mxu0
        %v3831 = vpop.f32.mrb[0].mxu0
        %3832 = vdwg.mxu0
        %3833 = vmatprep.subr.bf16.mxu0 %v1352
        %3834 = vmatpush1.bf16.xpose.msra.mxu0 %v1351
        %3835 = vmatprep.subr.bf16.mxu0 0
        %3836 = vmatpush1.bf16.xpose.msra.mxu0 0
        %3837 = vmatprep.subr.bf16.mxu0 0
        %3838 = vmatpush1.bf16.xpose.msra.mxu0 0
        %3839 = vmatprep.subr.bf16.mxu0 0
        %3840 = vmatpush1.bf16.xpose.msra.mxu0 0
        %3841 = vmatprep.subr.bf16.mxu0 0
        %3842 = vmatpush1.bf16.xpose.msra.mxu0 0
        %3843 = vmatprep.subr.bf16.mxu0 0
        %3844 = vmatpush1.bf16.xpose.msra.mxu0 0
        %3845 = vmatprep.subr.bf16.mxu0 0
        %3846 = vmatpush1.bf16.xpose.msra.mxu0 0
        %3847 = vmatprep.subr.bf16.mxu0 0
        %3848 = vmatpush1.bf16.xpose.msra.mxu0 0
        %3849 = vmatprep.subr.bf16.mxu0 0
        %3850 = vmatpush1.bf16.xpose.msra.mxu0 0
        %3851 = vmatprep.subr.bf16.mxu0 0
        %3852 = vmatpush1.bf16.xpose.msra.mxu0 0
        %3853 = vmatprep.subr.bf16.mxu0 0
        %3854 = vmatpush1.bf16.xpose.msra.mxu0 0
        %3855 = vmatprep.subr.bf16.mxu0 0
        %3856 = vmatpush1.bf16.xpose.msra.mxu0 0
        %3857 = vmatprep.subr.bf16.mxu0 0
        %3858 = vmatpush1.bf16.xpose.msra.mxu0 0
        %3859 = vmatprep.subr.bf16.mxu0 0
        %3860 = vmatpush1.bf16.xpose.msra.mxu0 0
        %3861 = vmatprep.subr.bf16.mxu0 0
        %3862 = vmatpush1.bf16.xpose.msra.mxu0 0
        %3863 = vmatprep.subr.bf16.mxu0 0
        %3864 = vmatpush1.bf16.xpose.msra.mxu0 0
        %3865 = vmatprep.mubr.bf16.mxu0 %v763
        %3866 = vmatmul.mubr.bf16.gmra.mrb[0].mxu0 %v762
        %v3867 = vpop.f32.mrb[0].mxu0
        %v3868 = vadd.f32 %v3828, %v3867
        %v3869 = vpop.f32.mrb[0].mxu0
        %v3870 = vpop.f32.mrb[0].mxu0
        %v3871 = vpop.f32.mrb[0].mxu0
        %3872 = vdwg.mxu0
        %3873 = vmatprep.subr.bf16.mxu0 %v1354
        %3874 = vmatpush1.bf16.xpose.msra.mxu0 %v1353
        %3875 = vmatprep.subr.bf16.mxu0 0
        %3876 = vmatpush1.bf16.xpose.msra.mxu0 0
        %3877 = vmatprep.subr.bf16.mxu0 0
        %3878 = vmatpush1.bf16.xpose.msra.mxu0 0
        %3879 = vmatprep.subr.bf16.mxu0 0
        %3880 = vmatpush1.bf16.xpose.msra.mxu0 0
        %3881 = vmatprep.subr.bf16.mxu0 0
        %3882 = vmatpush1.bf16.xpose.msra.mxu0 0
        %3883 = vmatprep.subr.bf16.mxu0 0
        %3884 = vmatpush1.bf16.xpose.msra.mxu0 0
        %3885 = vmatprep.subr.bf16.mxu0 0
        %3886 = vmatpush1.bf16.xpose.msra.mxu0 0
        %3887 = vmatprep.subr.bf16.mxu0 0
        %3888 = vmatpush1.bf16.xpose.msra.mxu0 0
        %3889 = vmatprep.subr.bf16.mxu0 0
        %3890 = vmatpush1.bf16.xpose.msra.mxu0 0
        %3891 = vmatprep.subr.bf16.mxu0 0
        %3892 = vmatpush1.bf16.xpose.msra.mxu0 0
        %3893 = vmatprep.subr.bf16.mxu0 0
        %3894 = vmatpush1.bf16.xpose.msra.mxu0 0
        %3895 = vmatprep.subr.bf16.mxu0 0
        %3896 = vmatpush1.bf16.xpose.msra.mxu0 0
        %3897 = vmatprep.subr.bf16.mxu0 0
        %3898 = vmatpush1.bf16.xpose.msra.mxu0 0
        %3899 = vmatprep.subr.bf16.mxu0 0
        %3900 = vmatpush1.bf16.xpose.msra.mxu0 0
        %3901 = vmatprep.subr.bf16.mxu0 0
        %3902 = vmatpush1.bf16.xpose.msra.mxu0 0
        %3903 = vmatprep.subr.bf16.mxu0 0
        %3904 = vmatpush1.bf16.xpose.msra.mxu0 0
        %3905 = vmatprep.mubr.bf16.mxu0 %v765
        %3906 = vmatmul.mubr.bf16.gmra.mrb[0].mxu0 %v764
        %v3907 = vpop.f32.mrb[0].mxu0
        %v3908 = vadd.f32 %v3868, %v3907
        %v3909 = vpop.f32.mrb[0].mxu0
        %v3910 = vpop.f32.mrb[0].mxu0
        %v3911 = vpop.f32.mrb[0].mxu0
        %3912 = vdwg.mxu0
        %3913 = vmatprep.subr.bf16.mxu0 %v1356
        %3914 = vmatpush1.bf16.xpose.msra.mxu0 %v1355
        %3915 = vmatprep.subr.bf16.mxu0 0
        %3916 = vmatpush1.bf16.xpose.msra.mxu0 0
        %3917 = vmatprep.subr.bf16.mxu0 0
        %3918 = vmatpush1.bf16.xpose.msra.mxu0 0
        %3919 = vmatprep.subr.bf16.mxu0 0
        %3920 = vmatpush1.bf16.xpose.msra.mxu0 0
        %3921 = vmatprep.subr.bf16.mxu0 0
        %3922 = vmatpush1.bf16.xpose.msra.mxu0 0
        %3923 = vmatprep.subr.bf16.mxu0 0
        %3924 = vmatpush1.bf16.xpose.msra.mxu0 0
        %3925 = vmatprep.subr.bf16.mxu0 0
        %3926 = vmatpush1.bf16.xpose.msra.mxu0 0
        %3927 = vmatprep.subr.bf16.mxu0 0
        %3928 = vmatpush1.bf16.xpose.msra.mxu0 0
        %3929 = vmatprep.subr.bf16.mxu0 0
        %3930 = vmatpush1.bf16.xpose.msra.mxu0 0
        %3931 = vmatprep.subr.bf16.mxu0 0
        %3932 = vmatpush1.bf16.xpose.msra.mxu0 0
        %3933 = vmatprep.subr.bf16.mxu0 0
        %3934 = vmatpush1.bf16.xpose.msra.mxu0 0
        %3935 = vmatprep.subr.bf16.mxu0 0
        %3936 = vmatpush1.bf16.xpose.msra.mxu0 0
        %3937 = vmatprep.subr.bf16.mxu0 0
        %3938 = vmatpush1.bf16.xpose.msra.mxu0 0
        %3939 = vmatprep.subr.bf16.mxu0 0
        %3940 = vmatpush1.bf16.xpose.msra.mxu0 0
        %3941 = vmatprep.subr.bf16.mxu0 0
        %3942 = vmatpush1.bf16.xpose.msra.mxu0 0
        %3943 = vmatprep.subr.bf16.mxu0 0
        %3944 = vmatpush1.bf16.xpose.msra.mxu0 0
        %3945 = vmatprep.mubr.bf16.mxu0 %v767
        %3946 = vmatmul.mubr.bf16.gmra.mrb[0].mxu0 %v766
        %v3947 = vpop.f32.mrb[0].mxu0
        %v3948 = vadd.f32 %v3908, %v3947
        %v3949 = vpop.f32.mrb[0].mxu0
        %v3950 = vpop.f32.mrb[0].mxu0
        %v3951 = vpop.f32.mrb[0].mxu0
        %3952 = vdwg.mxu0
        %3953 = vmatprep.subr.bf16.mxu0 %v1358
        %3954 = vmatpush1.bf16.xpose.msra.mxu0 %v1357
        %3955 = vmatprep.subr.bf16.mxu0 0
        %3956 = vmatpush1.bf16.xpose.msra.mxu0 0
        %3957 = vmatprep.subr.bf16.mxu0 0
        %3958 = vmatpush1.bf16.xpose.msra.mxu0 0
        %3959 = vmatprep.subr.bf16.mxu0 0
        %3960 = vmatpush1.bf16.xpose.msra.mxu0 0
        %3961 = vmatprep.subr.bf16.mxu0 0
        %3962 = vmatpush1.bf16.xpose.msra.mxu0 0
        %3963 = vmatprep.subr.bf16.mxu0 0
        %3964 = vmatpush1.bf16.xpose.msra.mxu0 0
        %3965 = vmatprep.subr.bf16.mxu0 0
        %3966 = vmatpush1.bf16.xpose.msra.mxu0 0
        %3967 = vmatprep.subr.bf16.mxu0 0
        %3968 = vmatpush1.bf16.xpose.msra.mxu0 0
        %3969 = vmatprep.subr.bf16.mxu0 0
        %3970 = vmatpush1.bf16.xpose.msra.mxu0 0
        %3971 = vmatprep.subr.bf16.mxu0 0
        %3972 = vmatpush1.bf16.xpose.msra.mxu0 0
        %3973 = vmatprep.subr.bf16.mxu0 0
        %3974 = vmatpush1.bf16.xpose.msra.mxu0 0
        %3975 = vmatprep.subr.bf16.mxu0 0
        %3976 = vmatpush1.bf16.xpose.msra.mxu0 0
        %3977 = vmatprep.subr.bf16.mxu0 0
        %3978 = vmatpush1.bf16.xpose.msra.mxu0 0
        %3979 = vmatprep.subr.bf16.mxu0 0
        %3980 = vmatpush1.bf16.xpose.msra.mxu0 0
        %3981 = vmatprep.subr.bf16.mxu0 0
        %3982 = vmatpush1.bf16.xpose.msra.mxu0 0
        %3983 = vmatprep.subr.bf16.mxu0 0
        %3984 = vmatpush1.bf16.xpose.msra.mxu0 0
        %3985 = vmatprep.mubr.bf16.mxu0 %v769
        %3986 = vmatmul.mubr.bf16.gmra.mrb[0].mxu0 %v768
        %v3987 = vpop.f32.mrb[0].mxu0
        %v3988 = vadd.f32 %v3948, %v3987
        %v3989 = vpop.f32.mrb[0].mxu0
        %v3990 = vpop.f32.mrb[0].mxu0
        %v3991 = vpop.f32.mrb[0].mxu0
        %3992 = vdwg.mxu0
        %3993 = vmatprep.subr.bf16.mxu0 %v1360
        %3994 = vmatpush1.bf16.xpose.msra.mxu0 %v1359
        %3995 = vmatprep.subr.bf16.mxu0 0
        %3996 = vmatpush1.bf16.xpose.msra.mxu0 0
        %3997 = vmatprep.subr.bf16.mxu0 0
        %3998 = vmatpush1.bf16.xpose.msra.mxu0 0
        %3999 = vmatprep.subr.bf16.mxu0 0
        %4000 = vmatpush1.bf16.xpose.msra.mxu0 0
        %4001 = vmatprep.subr.bf16.mxu0 0
        %4002 = vmatpush1.bf16.xpose.msra.mxu0 0
        %4003 = vmatprep.subr.bf16.mxu0 0
        %4004 = vmatpush1.bf16.xpose.msra.mxu0 0
        %4005 = vmatprep.subr.bf16.mxu0 0
        %4006 = vmatpush1.bf16.xpose.msra.mxu0 0
        %4007 = vmatprep.subr.bf16.mxu0 0
        %4008 = vmatpush1.bf16.xpose.msra.mxu0 0
        %4009 = vmatprep.subr.bf16.mxu0 0
        %4010 = vmatpush1.bf16.xpose.msra.mxu0 0
        %4011 = vmatprep.subr.bf16.mxu0 0
        %4012 = vmatpush1.bf16.xpose.msra.mxu0 0
        %4013 = vmatprep.subr.bf16.mxu0 0
        %4014 = vmatpush1.bf16.xpose.msra.mxu0 0
        %4015 = vmatprep.subr.bf16.mxu0 0
        %4016 = vmatpush1.bf16.xpose.msra.mxu0 0
        %4017 = vmatprep.subr.bf16.mxu0 0
        %4018 = vmatpush1.bf16.xpose.msra.mxu0 0
        %4019 = vmatprep.subr.bf16.mxu0 0
        %4020 = vmatpush1.bf16.xpose.msra.mxu0 0
        %4021 = vmatprep.subr.bf16.mxu0 0
        %4022 = vmatpush1.bf16.xpose.msra.mxu0 0
        %4023 = vmatprep.subr.bf16.mxu0 0
        %4024 = vmatpush1.bf16.xpose.msra.mxu0 0
        %4025 = vmatprep.mubr.bf16.mxu0 %v771
        %4026 = vmatmul.mubr.bf16.gmra.mrb[0].mxu0 %v770
        %v4027 = vpop.f32.mrb[0].mxu0
        %v4028 = vadd.f32 %v3988, %v4027
        %v4029 = vpop.f32.mrb[0].mxu0
        %v4030 = vpop.f32.mrb[0].mxu0
        %v4031 = vpop.f32.mrb[0].mxu0
        %4032 = vdwg.mxu0
        %4033 = vmatprep.subr.bf16.mxu0 %v1362
        %4034 = vmatpush1.bf16.xpose.msra.mxu0 %v1361
        %4035 = vmatprep.subr.bf16.mxu0 0
        %4036 = vmatpush1.bf16.xpose.msra.mxu0 0
        %4037 = vmatprep.subr.bf16.mxu0 0
        %4038 = vmatpush1.bf16.xpose.msra.mxu0 0
        %4039 = vmatprep.subr.bf16.mxu0 0
        %4040 = vmatpush1.bf16.xpose.msra.mxu0 0
        %4041 = vmatprep.subr.bf16.mxu0 0
        %4042 = vmatpush1.bf16.xpose.msra.mxu0 0
        %4043 = vmatprep.subr.bf16.mxu0 0
        %4044 = vmatpush1.bf16.xpose.msra.mxu0 0
        %4045 = vmatprep.subr.bf16.mxu0 0
        %4046 = vmatpush1.bf16.xpose.msra.mxu0 0
        %4047 = vmatprep.subr.bf16.mxu0 0
        %4048 = vmatpush1.bf16.xpose.msra.mxu0 0
        %4049 = vmatprep.subr.bf16.mxu0 0
        %4050 = vmatpush1.bf16.xpose.msra.mxu0 0
        %4051 = vmatprep.subr.bf16.mxu0 0
        %4052 = vmatpush1.bf16.xpose.msra.mxu0 0
        %4053 = vmatprep.subr.bf16.mxu0 0
        %4054 = vmatpush1.bf16.xpose.msra.mxu0 0
        %4055 = vmatprep.subr.bf16.mxu0 0
        %4056 = vmatpush1.bf16.xpose.msra.mxu0 0
        %4057 = vmatprep.subr.bf16.mxu0 0
        %4058 = vmatpush1.bf16.xpose.msra.mxu0 0
        %4059 = vmatprep.subr.bf16.mxu0 0
        %4060 = vmatpush1.bf16.xpose.msra.mxu0 0
        %4061 = vmatprep.subr.bf16.mxu0 0
        %4062 = vmatpush1.bf16.xpose.msra.mxu0 0
        %4063 = vmatprep.subr.bf16.mxu0 0
        %4064 = vmatpush1.bf16.xpose.msra.mxu0 0
        %4065 = vmatprep.mubr.bf16.mxu0 %v773
        %4066 = vmatmul.mubr.bf16.gmra.mrb[0].mxu0 %v772
        %v4067 = vpop.f32.mrb[0].mxu0
        %v4068 = vadd.f32 %v4028, %v4067
        %v4069 = vpop.f32.mrb[0].mxu0
        %v4070 = vpop.f32.mrb[0].mxu0
        %v4071 = vpop.f32.mrb[0].mxu0
        %4072 = vdwg.mxu0
        %4073 = vmatprep.subr.bf16.mxu0 %v1364
        %4074 = vmatpush1.bf16.xpose.msra.mxu0 %v1363
        %4075 = vmatprep.subr.bf16.mxu0 0
        %4076 = vmatpush1.bf16.xpose.msra.mxu0 0
        %4077 = vmatprep.subr.bf16.mxu0 0
        %4078 = vmatpush1.bf16.xpose.msra.mxu0 0
        %4079 = vmatprep.subr.bf16.mxu0 0
        %4080 = vmatpush1.bf16.xpose.msra.mxu0 0
        %4081 = vmatprep.subr.bf16.mxu0 0
        %4082 = vmatpush1.bf16.xpose.msra.mxu0 0
        %4083 = vmatprep.subr.bf16.mxu0 0
        %4084 = vmatpush1.bf16.xpose.msra.mxu0 0
        %4085 = vmatprep.subr.bf16.mxu0 0
        %4086 = vmatpush1.bf16.xpose.msra.mxu0 0
        %4087 = vmatprep.subr.bf16.mxu0 0
        %4088 = vmatpush1.bf16.xpose.msra.mxu0 0
        %4089 = vmatprep.subr.bf16.mxu0 0
        %4090 = vmatpush1.bf16.xpose.msra.mxu0 0
        %4091 = vmatprep.subr.bf16.mxu0 0
        %4092 = vmatpush1.bf16.xpose.msra.mxu0 0
        %4093 = vmatprep.subr.bf16.mxu0 0
        %4094 = vmatpush1.bf16.xpose.msra.mxu0 0
        %4095 = vmatprep.subr.bf16.mxu0 0
        %4096 = vmatpush1.bf16.xpose.msra.mxu0 0
        %4097 = vmatprep.subr.bf16.mxu0 0
        %4098 = vmatpush1.bf16.xpose.msra.mxu0 0
        %4099 = vmatprep.subr.bf16.mxu0 0
        %4100 = vmatpush1.bf16.xpose.msra.mxu0 0
        %4101 = vmatprep.subr.bf16.mxu0 0
        %4102 = vmatpush1.bf16.xpose.msra.mxu0 0
        %4103 = vmatprep.subr.bf16.mxu0 0
        %4104 = vmatpush1.bf16.xpose.msra.mxu0 0
        %4105 = vmatprep.mubr.bf16.mxu0 %v775
        %4106 = vmatmul.mubr.bf16.gmra.mrb[0].mxu0 %v774
        %v4107 = vpop.f32.mrb[0].mxu0
        %v4108 = vadd.f32 %v4068, %v4107
        %v4109 = vpop.f32.mrb[0].mxu0
        %v4110 = vpop.f32.mrb[0].mxu0
        %v4111 = vpop.f32.mrb[0].mxu0
        %4112 = vdwg.mxu0
        %4113 = vmatprep.subr.bf16.mxu0 %v1366
        %4114 = vmatpush1.bf16.xpose.msra.mxu0 %v1365
        %4115 = vmatprep.subr.bf16.mxu0 0
        %4116 = vmatpush1.bf16.xpose.msra.mxu0 0
        %4117 = vmatprep.subr.bf16.mxu0 0
        %4118 = vmatpush1.bf16.xpose.msra.mxu0 0
        %4119 = vmatprep.subr.bf16.mxu0 0
        %4120 = vmatpush1.bf16.xpose.msra.mxu0 0
        %4121 = vmatprep.subr.bf16.mxu0 0
        %4122 = vmatpush1.bf16.xpose.msra.mxu0 0
        %4123 = vmatprep.subr.bf16.mxu0 0
        %4124 = vmatpush1.bf16.xpose.msra.mxu0 0
        %4125 = vmatprep.subr.bf16.mxu0 0
        %4126 = vmatpush1.bf16.xpose.msra.mxu0 0
        %4127 = vmatprep.subr.bf16.mxu0 0
        %4128 = vmatpush1.bf16.xpose.msra.mxu0 0
        %4129 = vmatprep.subr.bf16.mxu0 0
        %4130 = vmatpush1.bf16.xpose.msra.mxu0 0
        %4131 = vmatprep.subr.bf16.mxu0 0
        %4132 = vmatpush1.bf16.xpose.msra.mxu0 0
        %4133 = vmatprep.subr.bf16.mxu0 0
        %4134 = vmatpush1.bf16.xpose.msra.mxu0 0
        %4135 = vmatprep.subr.bf16.mxu0 0
        %4136 = vmatpush1.bf16.xpose.msra.mxu0 0
        %4137 = vmatprep.subr.bf16.mxu0 0
        %4138 = vmatpush1.bf16.xpose.msra.mxu0 0
        %4139 = vmatprep.subr.bf16.mxu0 0
        %4140 = vmatpush1.bf16.xpose.msra.mxu0 0
        %4141 = vmatprep.subr.bf16.mxu0 0
        %4142 = vmatpush1.bf16.xpose.msra.mxu0 0
        %4143 = vmatprep.subr.bf16.mxu0 0
        %4144 = vmatpush1.bf16.xpose.msra.mxu0 0
        %4145 = vmatprep.mubr.bf16.mxu0 %v777
        %4146 = vmatmul.mubr.bf16.gmra.mrb[0].mxu0 %v776
        %v4147 = vpop.f32.mrb[0].mxu0
        %v4148 = vadd.f32 %v4108, %v4147
        %v4149 = vpop.f32.mrb[0].mxu0
        %v4150 = vpop.f32.mrb[0].mxu0
        %v4151 = vpop.f32.mrb[0].mxu0
        %4152 = vdwg.mxu0
        %4153 = vmatprep.subr.bf16.mxu0 %v1368
        %4154 = vmatpush1.bf16.xpose.msra.mxu0 %v1367
        %4155 = vmatprep.subr.bf16.mxu0 0
        %4156 = vmatpush1.bf16.xpose.msra.mxu0 0
        %4157 = vmatprep.subr.bf16.mxu0 0
        %4158 = vmatpush1.bf16.xpose.msra.mxu0 0
        %4159 = vmatprep.subr.bf16.mxu0 0
        %4160 = vmatpush1.bf16.xpose.msra.mxu0 0
        %4161 = vmatprep.subr.bf16.mxu0 0
        %4162 = vmatpush1.bf16.xpose.msra.mxu0 0
        %4163 = vmatprep.subr.bf16.mxu0 0
        %4164 = vmatpush1.bf16.xpose.msra.mxu0 0
        %4165 = vmatprep.subr.bf16.mxu0 0
        %4166 = vmatpush1.bf16.xpose.msra.mxu0 0
        %4167 = vmatprep.subr.bf16.mxu0 0
        %4168 = vmatpush1.bf16.xpose.msra.mxu0 0
        %4169 = vmatprep.subr.bf16.mxu0 0
        %4170 = vmatpush1.bf16.xpose.msra.mxu0 0
        %4171 = vmatprep.subr.bf16.mxu0 0
        %4172 = vmatpush1.bf16.xpose.msra.mxu0 0
        %4173 = vmatprep.subr.bf16.mxu0 0
        %4174 = vmatpush1.bf16.xpose.msra.mxu0 0
        %4175 = vmatprep.subr.bf16.mxu0 0
        %4176 = vmatpush1.bf16.xpose.msra.mxu0 0
        %4177 = vmatprep.subr.bf16.mxu0 0
        %4178 = vmatpush1.bf16.xpose.msra.mxu0 0
        %4179 = vmatprep.subr.bf16.mxu0 0
        %4180 = vmatpush1.bf16.xpose.msra.mxu0 0
        %4181 = vmatprep.subr.bf16.mxu0 0
        %4182 = vmatpush1.bf16.xpose.msra.mxu0 0
        %4183 = vmatprep.subr.bf16.mxu0 0
        %4184 = vmatpush1.bf16.xpose.msra.mxu0 0
        %4185 = vmatprep.mubr.bf16.mxu0 %v779
        %4186 = vmatmul.mubr.bf16.gmra.mrb[0].mxu0 %v778
        %v4187 = vpop.f32.mrb[0].mxu0
        %v4188 = vadd.f32 %v4148, %v4187
        %v4189 = vpop.f32.mrb[0].mxu0
        %v4190 = vpop.f32.mrb[0].mxu0
        %v4191 = vpop.f32.mrb[0].mxu0
        %4192 = vdwg.mxu0
        %4193 = vmatprep.subr.bf16.mxu0 %v1370
        %4194 = vmatpush1.bf16.xpose.msra.mxu0 %v1369
        %4195 = vmatprep.subr.bf16.mxu0 0
        %4196 = vmatpush1.bf16.xpose.msra.mxu0 0
        %4197 = vmatprep.subr.bf16.mxu0 0
        %4198 = vmatpush1.bf16.xpose.msra.mxu0 0
        %4199 = vmatprep.subr.bf16.mxu0 0
        %4200 = vmatpush1.bf16.xpose.msra.mxu0 0
        %4201 = vmatprep.subr.bf16.mxu0 0
        %4202 = vmatpush1.bf16.xpose.msra.mxu0 0
        %4203 = vmatprep.subr.bf16.mxu0 0
        %4204 = vmatpush1.bf16.xpose.msra.mxu0 0
        %4205 = vmatprep.subr.bf16.mxu0 0
        %4206 = vmatpush1.bf16.xpose.msra.mxu0 0
        %4207 = vmatprep.subr.bf16.mxu0 0
        %4208 = vmatpush1.bf16.xpose.msra.mxu0 0
        %4209 = vmatprep.subr.bf16.mxu0 0
        %4210 = vmatpush1.bf16.xpose.msra.mxu0 0
        %4211 = vmatprep.subr.bf16.mxu0 0
        %4212 = vmatpush1.bf16.xpose.msra.mxu0 0
        %4213 = vmatprep.subr.bf16.mxu0 0
        %4214 = vmatpush1.bf16.xpose.msra.mxu0 0
        %4215 = vmatprep.subr.bf16.mxu0 0
        %4216 = vmatpush1.bf16.xpose.msra.mxu0 0
        %4217 = vmatprep.subr.bf16.mxu0 0
        %4218 = vmatpush1.bf16.xpose.msra.mxu0 0
        %4219 = vmatprep.subr.bf16.mxu0 0
        %4220 = vmatpush1.bf16.xpose.msra.mxu0 0
        %4221 = vmatprep.subr.bf16.mxu0 0
        %4222 = vmatpush1.bf16.xpose.msra.mxu0 0
        %4223 = vmatprep.subr.bf16.mxu0 0
        %4224 = vmatpush1.bf16.xpose.msra.mxu0 0
        %4225 = vmatprep.mubr.bf16.mxu0 %v781
        %4226 = vmatmul.mubr.bf16.gmra.mrb[0].mxu0 %v780
        %v4227 = vpop.f32.mrb[0].mxu0
        %v4228 = vadd.f32 %v4188, %v4227
        %v4229 = vpop.f32.mrb[0].mxu0
        %v4230 = vpop.f32.mrb[0].mxu0
        %v4231 = vpop.f32.mrb[0].mxu0
        %4232 = vdwg.mxu0
        %4233 = vmatprep.subr.bf16.mxu0 %v1372
        %4234 = vmatpush1.bf16.xpose.msra.mxu0 %v1371
        %4235 = vmatprep.subr.bf16.mxu0 0
        %4236 = vmatpush1.bf16.xpose.msra.mxu0 0
        %4237 = vmatprep.subr.bf16.mxu0 0
        %4238 = vmatpush1.bf16.xpose.msra.mxu0 0
        %4239 = vmatprep.subr.bf16.mxu0 0
        %4240 = vmatpush1.bf16.xpose.msra.mxu0 0
        %4241 = vmatprep.subr.bf16.mxu0 0
        %4242 = vmatpush1.bf16.xpose.msra.mxu0 0
        %4243 = vmatprep.subr.bf16.mxu0 0
        %4244 = vmatpush1.bf16.xpose.msra.mxu0 0
        %4245 = vmatprep.subr.bf16.mxu0 0
        %4246 = vmatpush1.bf16.xpose.msra.mxu0 0
        %4247 = vmatprep.subr.bf16.mxu0 0
        %4248 = vmatpush1.bf16.xpose.msra.mxu0 0
        %4249 = vmatprep.subr.bf16.mxu0 0
        %4250 = vmatpush1.bf16.xpose.msra.mxu0 0
        %4251 = vmatprep.subr.bf16.mxu0 0
        %4252 = vmatpush1.bf16.xpose.msra.mxu0 0
        %4253 = vmatprep.subr.bf16.mxu0 0
        %4254 = vmatpush1.bf16.xpose.msra.mxu0 0
        %4255 = vmatprep.subr.bf16.mxu0 0
        %4256 = vmatpush1.bf16.xpose.msra.mxu0 0
        %4257 = vmatprep.subr.bf16.mxu0 0
        %4258 = vmatpush1.bf16.xpose.msra.mxu0 0
        %4259 = vmatprep.subr.bf16.mxu0 0
        %4260 = vmatpush1.bf16.xpose.msra.mxu0 0
        %4261 = vmatprep.subr.bf16.mxu0 0
        %4262 = vmatpush1.bf16.xpose.msra.mxu0 0
        %4263 = vmatprep.subr.bf16.mxu0 0
        %4264 = vmatpush1.bf16.xpose.msra.mxu0 0
        %4265 = vmatprep.mubr.bf16.mxu0 %v783
        %4266 = vmatmul.mubr.bf16.gmra.mrb[0].mxu0 %v782
        %v4267 = vpop.f32.mrb[0].mxu0
        %v4268 = vadd.f32 %v4228, %v4267
        %v4269 = vpop.f32.mrb[0].mxu0
        %v4270 = vpop.f32.mrb[0].mxu0
        %v4271 = vpop.f32.mrb[0].mxu0
        %4272 = vdwg.mxu0
        %4273 = vmatprep.subr.bf16.mxu0 %v1374
        %4274 = vmatpush1.bf16.xpose.msra.mxu0 %v1373
        %4275 = vmatprep.subr.bf16.mxu0 0
        %4276 = vmatpush1.bf16.xpose.msra.mxu0 0
        %4277 = vmatprep.subr.bf16.mxu0 0
        %4278 = vmatpush1.bf16.xpose.msra.mxu0 0
        %4279 = vmatprep.subr.bf16.mxu0 0
        %4280 = vmatpush1.bf16.xpose.msra.mxu0 0
        %4281 = vmatprep.subr.bf16.mxu0 0
        %4282 = vmatpush1.bf16.xpose.msra.mxu0 0
        %4283 = vmatprep.subr.bf16.mxu0 0
        %4284 = vmatpush1.bf16.xpose.msra.mxu0 0
        %4285 = vmatprep.subr.bf16.mxu0 0
        %4286 = vmatpush1.bf16.xpose.msra.mxu0 0
        %4287 = vmatprep.subr.bf16.mxu0 0
        %4288 = vmatpush1.bf16.xpose.msra.mxu0 0
        %4289 = vmatprep.subr.bf16.mxu0 0
        %4290 = vmatpush1.bf16.xpose.msra.mxu0 0
        %4291 = vmatprep.subr.bf16.mxu0 0
        %4292 = vmatpush1.bf16.xpose.msra.mxu0 0
        %4293 = vmatprep.subr.bf16.mxu0 0
        %4294 = vmatpush1.bf16.xpose.msra.mxu0 0
        %4295 = vmatprep.subr.bf16.mxu0 0
        %4296 = vmatpush1.bf16.xpose.msra.mxu0 0
        %4297 = vmatprep.subr.bf16.mxu0 0
        %4298 = vmatpush1.bf16.xpose.msra.mxu0 0
        %4299 = vmatprep.subr.bf16.mxu0 0
        %4300 = vmatpush1.bf16.xpose.msra.mxu0 0
        %4301 = vmatprep.subr.bf16.mxu0 0
        %4302 = vmatpush1.bf16.xpose.msra.mxu0 0
        %4303 = vmatprep.subr.bf16.mxu0 0
        %4304 = vmatpush1.bf16.xpose.msra.mxu0 0
        %4305 = vmatprep.mubr.bf16.mxu0 %v785
        %4306 = vmatmul.mubr.bf16.gmra.mrb[0].mxu0 %v784
        %v4307 = vpop.f32.mrb[0].mxu0
        %v4308 = vadd.f32 %v4268, %v4307
        %v4309 = vpop.f32.mrb[0].mxu0
        %v4310 = vpop.f32.mrb[0].mxu0
        %v4311 = vpop.f32.mrb[0].mxu0
        %4312 = vdwg.mxu0
        %4313 = vmatprep.subr.bf16.mxu0 %v1376
        %4314 = vmatpush1.bf16.xpose.msra.mxu0 %v1375
        %4315 = vmatprep.subr.bf16.mxu0 0
        %4316 = vmatpush1.bf16.xpose.msra.mxu0 0
        %4317 = vmatprep.subr.bf16.mxu0 0
        %4318 = vmatpush1.bf16.xpose.msra.mxu0 0
        %4319 = vmatprep.subr.bf16.mxu0 0
        %4320 = vmatpush1.bf16.xpose.msra.mxu0 0
        %4321 = vmatprep.subr.bf16.mxu0 0
        %4322 = vmatpush1.bf16.xpose.msra.mxu0 0
        %4323 = vmatprep.subr.bf16.mxu0 0
        %4324 = vmatpush1.bf16.xpose.msra.mxu0 0
        %4325 = vmatprep.subr.bf16.mxu0 0
        %4326 = vmatpush1.bf16.xpose.msra.mxu0 0
        %4327 = vmatprep.subr.bf16.mxu0 0
        %4328 = vmatpush1.bf16.xpose.msra.mxu0 0
        %4329 = vmatprep.subr.bf16.mxu0 0
        %4330 = vmatpush1.bf16.xpose.msra.mxu0 0
        %4331 = vmatprep.subr.bf16.mxu0 0
        %4332 = vmatpush1.bf16.xpose.msra.mxu0 0
        %4333 = vmatprep.subr.bf16.mxu0 0
        %4334 = vmatpush1.bf16.xpose.msra.mxu0 0
        %4335 = vmatprep.subr.bf16.mxu0 0
        %4336 = vmatpush1.bf16.xpose.msra.mxu0 0
        %4337 = vmatprep.subr.bf16.mxu0 0
        %4338 = vmatpush1.bf16.xpose.msra.mxu0 0
        %4339 = vmatprep.subr.bf16.mxu0 0
        %4340 = vmatpush1.bf16.xpose.msra.mxu0 0
        %4341 = vmatprep.subr.bf16.mxu0 0
        %4342 = vmatpush1.bf16.xpose.msra.mxu0 0
        %4343 = vmatprep.subr.bf16.mxu0 0
        %4344 = vmatpush1.bf16.xpose.msra.mxu0 0
        %4345 = vmatprep.mubr.bf16.mxu0 %v787
        %4346 = vmatmul.mubr.bf16.gmra.mrb[0].mxu0 %v786
        %v4347 = vpop.f32.mrb[0].mxu0
        %v4348 = vadd.f32 %v4308, %v4347
        %v4349 = vpop.f32.mrb[0].mxu0
        %v4350 = vpop.f32.mrb[0].mxu0
        %v4351 = vpop.f32.mrb[0].mxu0
        %4352 = vdwg.mxu0
        %4353 = vmatprep.subr.bf16.mxu0 %v1378
        %4354 = vmatpush1.bf16.xpose.msra.mxu0 %v1377
        %4355 = vmatprep.subr.bf16.mxu0 0
        %4356 = vmatpush1.bf16.xpose.msra.mxu0 0
        %4357 = vmatprep.subr.bf16.mxu0 0
        %4358 = vmatpush1.bf16.xpose.msra.mxu0 0
        %4359 = vmatprep.subr.bf16.mxu0 0
        %4360 = vmatpush1.bf16.xpose.msra.mxu0 0
        %4361 = vmatprep.subr.bf16.mxu0 0
        %4362 = vmatpush1.bf16.xpose.msra.mxu0 0
        %4363 = vmatprep.subr.bf16.mxu0 0
        %4364 = vmatpush1.bf16.xpose.msra.mxu0 0
        %4365 = vmatprep.subr.bf16.mxu0 0
        %4366 = vmatpush1.bf16.xpose.msra.mxu0 0
        %4367 = vmatprep.subr.bf16.mxu0 0
        %4368 = vmatpush1.bf16.xpose.msra.mxu0 0
        %4369 = vmatprep.subr.bf16.mxu0 0
        %4370 = vmatpush1.bf16.xpose.msra.mxu0 0
        %4371 = vmatprep.subr.bf16.mxu0 0
        %4372 = vmatpush1.bf16.xpose.msra.mxu0 0
        %4373 = vmatprep.subr.bf16.mxu0 0
        %4374 = vmatpush1.bf16.xpose.msra.mxu0 0
        %4375 = vmatprep.subr.bf16.mxu0 0
        %4376 = vmatpush1.bf16.xpose.msra.mxu0 0
        %4377 = vmatprep.subr.bf16.mxu0 0
        %4378 = vmatpush1.bf16.xpose.msra.mxu0 0
        %4379 = vmatprep.subr.bf16.mxu0 0
        %4380 = vmatpush1.bf16.xpose.msra.mxu0 0
        %4381 = vmatprep.subr.bf16.mxu0 0
        %4382 = vmatpush1.bf16.xpose.msra.mxu0 0
        %4383 = vmatprep.subr.bf16.mxu0 0
        %4384 = vmatpush1.bf16.xpose.msra.mxu0 0
        %4385 = vmatprep.mubr.bf16.mxu0 %v789
        %4386 = vmatmul.mubr.bf16.gmra.mrb[0].mxu0 %v788
        %v4387 = vpop.f32.mrb[0].mxu0
        %v4388 = vadd.f32 %v4348, %v4387
        %v4389 = vpop.f32.mrb[0].mxu0
        %v4390 = vpop.f32.mrb[0].mxu0
        %v4391 = vpop.f32.mrb[0].mxu0
        %4392 = vdwg.mxu0
        %4393 = vmatprep.subr.bf16.mxu0 %v1380
        %4394 = vmatpush1.bf16.xpose.msra.mxu0 %v1379
        %4395 = vmatprep.subr.bf16.mxu0 0
        %4396 = vmatpush1.bf16.xpose.msra.mxu0 0
        %4397 = vmatprep.subr.bf16.mxu0 0
        %4398 = vmatpush1.bf16.xpose.msra.mxu0 0
        %4399 = vmatprep.subr.bf16.mxu0 0
        %4400 = vmatpush1.bf16.xpose.msra.mxu0 0
        %4401 = vmatprep.subr.bf16.mxu0 0
        %4402 = vmatpush1.bf16.xpose.msra.mxu0 0
        %4403 = vmatprep.subr.bf16.mxu0 0
        %4404 = vmatpush1.bf16.xpose.msra.mxu0 0
        %4405 = vmatprep.subr.bf16.mxu0 0
        %4406 = vmatpush1.bf16.xpose.msra.mxu0 0
        %4407 = vmatprep.subr.bf16.mxu0 0
        %4408 = vmatpush1.bf16.xpose.msra.mxu0 0
        %4409 = vmatprep.subr.bf16.mxu0 0
        %4410 = vmatpush1.bf16.xpose.msra.mxu0 0
        %4411 = vmatprep.subr.bf16.mxu0 0
        %4412 = vmatpush1.bf16.xpose.msra.mxu0 0
        %4413 = vmatprep.subr.bf16.mxu0 0
        %4414 = vmatpush1.bf16.xpose.msra.mxu0 0
        %4415 = vmatprep.subr.bf16.mxu0 0
        %4416 = vmatpush1.bf16.xpose.msra.mxu0 0
        %4417 = vmatprep.subr.bf16.mxu0 0
        %4418 = vmatpush1.bf16.xpose.msra.mxu0 0
        %4419 = vmatprep.subr.bf16.mxu0 0
        %4420 = vmatpush1.bf16.xpose.msra.mxu0 0
        %4421 = vmatprep.subr.bf16.mxu0 0
        %4422 = vmatpush1.bf16.xpose.msra.mxu0 0
        %4423 = vmatprep.subr.bf16.mxu0 0
        %4424 = vmatpush1.bf16.xpose.msra.mxu0 0
        %4425 = vmatprep.mubr.bf16.mxu0 %v791
        %4426 = vmatmul.mubr.bf16.gmra.mrb[0].mxu0 %v790
        %v4427 = vpop.f32.mrb[0].mxu0
        %v4428 = vadd.f32 %v4388, %v4427
        %v4429 = vpop.f32.mrb[0].mxu0
        %v4430 = vpop.f32.mrb[0].mxu0
        %v4431 = vpop.f32.mrb[0].mxu0
        %4432 = vdwg.mxu0
        %4433 = vmatprep.subr.bf16.mxu0 %v1382
        %4434 = vmatpush1.bf16.xpose.msra.mxu0 %v1381
        %4435 = vmatprep.subr.bf16.mxu0 0
        %4436 = vmatpush1.bf16.xpose.msra.mxu0 0
        %4437 = vmatprep.subr.bf16.mxu0 0
        %4438 = vmatpush1.bf16.xpose.msra.mxu0 0
        %4439 = vmatprep.subr.bf16.mxu0 0
        %4440 = vmatpush1.bf16.xpose.msra.mxu0 0
        %4441 = vmatprep.subr.bf16.mxu0 0
        %4442 = vmatpush1.bf16.xpose.msra.mxu0 0
        %4443 = vmatprep.subr.bf16.mxu0 0
        %4444 = vmatpush1.bf16.xpose.msra.mxu0 0
        %4445 = vmatprep.subr.bf16.mxu0 0
        %4446 = vmatpush1.bf16.xpose.msra.mxu0 0
        %4447 = vmatprep.subr.bf16.mxu0 0
        %4448 = vmatpush1.bf16.xpose.msra.mxu0 0
        %4449 = vmatprep.subr.bf16.mxu0 0
        %4450 = vmatpush1.bf16.xpose.msra.mxu0 0
        %4451 = vmatprep.subr.bf16.mxu0 0
        %4452 = vmatpush1.bf16.xpose.msra.mxu0 0
        %4453 = vmatprep.subr.bf16.mxu0 0
        %4454 = vmatpush1.bf16.xpose.msra.mxu0 0
        %4455 = vmatprep.subr.bf16.mxu0 0
        %4456 = vmatpush1.bf16.xpose.msra.mxu0 0
        %4457 = vmatprep.subr.bf16.mxu0 0
        %4458 = vmatpush1.bf16.xpose.msra.mxu0 0
        %4459 = vmatprep.subr.bf16.mxu0 0
        %4460 = vmatpush1.bf16.xpose.msra.mxu0 0
        %4461 = vmatprep.subr.bf16.mxu0 0
        %4462 = vmatpush1.bf16.xpose.msra.mxu0 0
        %4463 = vmatprep.subr.bf16.mxu0 0
        %4464 = vmatpush1.bf16.xpose.msra.mxu0 0
        %4465 = vmatprep.mubr.bf16.mxu0 %v793
        %4466 = vmatmul.mubr.bf16.gmra.mrb[0].mxu0 %v792
        %v4467 = vpop.f32.mrb[0].mxu0
        %v4468 = vadd.f32 %v4428, %v4467
        %v4469 = vpop.f32.mrb[0].mxu0
        %v4470 = vpop.f32.mrb[0].mxu0
        %v4471 = vpop.f32.mrb[0].mxu0
        %4472 = vdwg.mxu0
        %4473 = vmatprep.subr.bf16.mxu0 %v1384
        %4474 = vmatpush1.bf16.xpose.msra.mxu0 %v1383
        %4475 = vmatprep.subr.bf16.mxu0 0
        %4476 = vmatpush1.bf16.xpose.msra.mxu0 0
        %4477 = vmatprep.subr.bf16.mxu0 0
        %4478 = vmatpush1.bf16.xpose.msra.mxu0 0
        %4479 = vmatprep.subr.bf16.mxu0 0
        %4480 = vmatpush1.bf16.xpose.msra.mxu0 0
        %4481 = vmatprep.subr.bf16.mxu0 0
        %4482 = vmatpush1.bf16.xpose.msra.mxu0 0
        %4483 = vmatprep.subr.bf16.mxu0 0
        %4484 = vmatpush1.bf16.xpose.msra.mxu0 0
        %4485 = vmatprep.subr.bf16.mxu0 0
        %4486 = vmatpush1.bf16.xpose.msra.mxu0 0
        %4487 = vmatprep.subr.bf16.mxu0 0
        %4488 = vmatpush1.bf16.xpose.msra.mxu0 0
        %4489 = vmatprep.subr.bf16.mxu0 0
        %4490 = vmatpush1.bf16.xpose.msra.mxu0 0
        %4491 = vmatprep.subr.bf16.mxu0 0
        %4492 = vmatpush1.bf16.xpose.msra.mxu0 0
        %4493 = vmatprep.subr.bf16.mxu0 0
        %4494 = vmatpush1.bf16.xpose.msra.mxu0 0
        %4495 = vmatprep.subr.bf16.mxu0 0
        %4496 = vmatpush1.bf16.xpose.msra.mxu0 0
        %4497 = vmatprep.subr.bf16.mxu0 0
        %4498 = vmatpush1.bf16.xpose.msra.mxu0 0
        %4499 = vmatprep.subr.bf16.mxu0 0
        %4500 = vmatpush1.bf16.xpose.msra.mxu0 0
        %4501 = vmatprep.subr.bf16.mxu0 0
        %4502 = vmatpush1.bf16.xpose.msra.mxu0 0
        %4503 = vmatprep.subr.bf16.mxu0 0
        %4504 = vmatpush1.bf16.xpose.msra.mxu0 0
        %4505 = vmatprep.mubr.bf16.mxu0 %v795
        %4506 = vmatmul.mubr.bf16.gmra.mrb[0].mxu0 %v794
        %v4507 = vpop.f32.mrb[0].mxu0
        %v4508 = vadd.f32 %v4468, %v4507
        %v4509 = vpop.f32.mrb[0].mxu0
        %v4510 = vpop.f32.mrb[0].mxu0
        %v4511 = vpop.f32.mrb[0].mxu0
        %4512 = vdwg.mxu0
        %4513 = vmatprep.subr.bf16.mxu0 %v1386
        %4514 = vmatpush1.bf16.xpose.msra.mxu0 %v1385
        %4515 = vmatprep.subr.bf16.mxu0 0
        %4516 = vmatpush1.bf16.xpose.msra.mxu0 0
        %4517 = vmatprep.subr.bf16.mxu0 0
        %4518 = vmatpush1.bf16.xpose.msra.mxu0 0
        %4519 = vmatprep.subr.bf16.mxu0 0
        %4520 = vmatpush1.bf16.xpose.msra.mxu0 0
        %4521 = vmatprep.subr.bf16.mxu0 0
        %4522 = vmatpush1.bf16.xpose.msra.mxu0 0
        %4523 = vmatprep.subr.bf16.mxu0 0
        %4524 = vmatpush1.bf16.xpose.msra.mxu0 0
        %4525 = vmatprep.subr.bf16.mxu0 0
        %4526 = vmatpush1.bf16.xpose.msra.mxu0 0
        %4527 = vmatprep.subr.bf16.mxu0 0
        %4528 = vmatpush1.bf16.xpose.msra.mxu0 0
        %4529 = vmatprep.subr.bf16.mxu0 0
        %4530 = vmatpush1.bf16.xpose.msra.mxu0 0
        %4531 = vmatprep.subr.bf16.mxu0 0
        %4532 = vmatpush1.bf16.xpose.msra.mxu0 0
        %4533 = vmatprep.subr.bf16.mxu0 0
        %4534 = vmatpush1.bf16.xpose.msra.mxu0 0
        %4535 = vmatprep.subr.bf16.mxu0 0
        %4536 = vmatpush1.bf16.xpose.msra.mxu0 0
        %4537 = vmatprep.subr.bf16.mxu0 0
        %4538 = vmatpush1.bf16.xpose.msra.mxu0 0
        %4539 = vmatprep.subr.bf16.mxu0 0
        %4540 = vmatpush1.bf16.xpose.msra.mxu0 0
        %4541 = vmatprep.subr.bf16.mxu0 0
        %4542 = vmatpush1.bf16.xpose.msra.mxu0 0
        %4543 = vmatprep.subr.bf16.mxu0 0
        %4544 = vmatpush1.bf16.xpose.msra.mxu0 0
        %4545 = vmatprep.mubr.bf16.mxu0 %v797
        %4546 = vmatmul.mubr.bf16.gmra.mrb[0].mxu0 %v796
        %v4547 = vpop.f32.mrb[0].mxu0
        %v4548 = vadd.f32 %v4508, %v4547
        %v4549 = vpop.f32.mrb[0].mxu0
        %v4550 = vpop.f32.mrb[0].mxu0
        %v4551 = vpop.f32.mrb[0].mxu0
        %4552 = vdwg.mxu0
        %4553 = vmatprep.subr.bf16.mxu0 %v1388
        %4554 = vmatpush1.bf16.xpose.msra.mxu0 %v1387
        %4555 = vmatprep.subr.bf16.mxu0 0
        %4556 = vmatpush1.bf16.xpose.msra.mxu0 0
        %4557 = vmatprep.subr.bf16.mxu0 0
        %4558 = vmatpush1.bf16.xpose.msra.mxu0 0
        %4559 = vmatprep.subr.bf16.mxu0 0
        %4560 = vmatpush1.bf16.xpose.msra.mxu0 0
        %4561 = vmatprep.subr.bf16.mxu0 0
        %4562 = vmatpush1.bf16.xpose.msra.mxu0 0
        %4563 = vmatprep.subr.bf16.mxu0 0
        %4564 = vmatpush1.bf16.xpose.msra.mxu0 0
        %4565 = vmatprep.subr.bf16.mxu0 0
        %4566 = vmatpush1.bf16.xpose.msra.mxu0 0
        %4567 = vmatprep.subr.bf16.mxu0 0
        %4568 = vmatpush1.bf16.xpose.msra.mxu0 0
        %4569 = vmatprep.subr.bf16.mxu0 0
        %4570 = vmatpush1.bf16.xpose.msra.mxu0 0
        %4571 = vmatprep.subr.bf16.mxu0 0
        %4572 = vmatpush1.bf16.xpose.msra.mxu0 0
        %4573 = vmatprep.subr.bf16.mxu0 0
        %4574 = vmatpush1.bf16.xpose.msra.mxu0 0
        %4575 = vmatprep.subr.bf16.mxu0 0
        %4576 = vmatpush1.bf16.xpose.msra.mxu0 0
        %4577 = vmatprep.subr.bf16.mxu0 0
        %4578 = vmatpush1.bf16.xpose.msra.mxu0 0
        %4579 = vmatprep.subr.bf16.mxu0 0
        %4580 = vmatpush1.bf16.xpose.msra.mxu0 0
        %4581 = vmatprep.subr.bf16.mxu0 0
        %4582 = vmatpush1.bf16.xpose.msra.mxu0 0
        %4583 = vmatprep.subr.bf16.mxu0 0
        %4584 = vmatpush1.bf16.xpose.msra.mxu0 0
        %4585 = vmatprep.mubr.bf16.mxu0 %v799
        %4586 = vmatmul.mubr.bf16.gmra.mrb[0].mxu0 %v798
        %v4587 = vpop.f32.mrb[0].mxu0
        %v4588 = vadd.f32 %v4548, %v4587
        %v4589 = vpop.f32.mrb[0].mxu0
        %v4590 = vpop.f32.mrb[0].mxu0
        %v4591 = vpop.f32.mrb[0].mxu0
        %4592 = vdwg.mxu0
        %4593 = vmatprep.subr.bf16.mxu0 %v1390
        %4594 = vmatpush1.bf16.xpose.msra.mxu0 %v1389
        %4595 = vmatprep.subr.bf16.mxu0 0
        %4596 = vmatpush1.bf16.xpose.msra.mxu0 0
        %4597 = vmatprep.subr.bf16.mxu0 0
        %4598 = vmatpush1.bf16.xpose.msra.mxu0 0
        %4599 = vmatprep.subr.bf16.mxu0 0
        %4600 = vmatpush1.bf16.xpose.msra.mxu0 0
        %4601 = vmatprep.subr.bf16.mxu0 0
        %4602 = vmatpush1.bf16.xpose.msra.mxu0 0
        %4603 = vmatprep.subr.bf16.mxu0 0
        %4604 = vmatpush1.bf16.xpose.msra.mxu0 0
        %4605 = vmatprep.subr.bf16.mxu0 0
        %4606 = vmatpush1.bf16.xpose.msra.mxu0 0
        %4607 = vmatprep.subr.bf16.mxu0 0
        %4608 = vmatpush1.bf16.xpose.msra.mxu0 0
        %4609 = vmatprep.subr.bf16.mxu0 0
        %4610 = vmatpush1.bf16.xpose.msra.mxu0 0
        %4611 = vmatprep.subr.bf16.mxu0 0
        %4612 = vmatpush1.bf16.xpose.msra.mxu0 0
        %4613 = vmatprep.subr.bf16.mxu0 0
        %4614 = vmatpush1.bf16.xpose.msra.mxu0 0
        %4615 = vmatprep.subr.bf16.mxu0 0
        %4616 = vmatpush1.bf16.xpose.msra.mxu0 0
        %4617 = vmatprep.subr.bf16.mxu0 0
        %4618 = vmatpush1.bf16.xpose.msra.mxu0 0
        %4619 = vmatprep.subr.bf16.mxu0 0
        %4620 = vmatpush1.bf16.xpose.msra.mxu0 0
        %4621 = vmatprep.subr.bf16.mxu0 0
        %4622 = vmatpush1.bf16.xpose.msra.mxu0 0
        %4623 = vmatprep.subr.bf16.mxu0 0
        %4624 = vmatpush1.bf16.xpose.msra.mxu0 0
        %4625 = vmatprep.mubr.bf16.mxu0 %v801
        %4626 = vmatmul.mubr.bf16.gmra.mrb[0].mxu0 %v800
        %v4627 = vpop.f32.mrb[0].mxu0
        %v4628 = vadd.f32 %v4588, %v4627
        %v4629 = vpop.f32.mrb[0].mxu0
        %v4630 = vpop.f32.mrb[0].mxu0
        %v4631 = vpop.f32.mrb[0].mxu0
        %4632 = vdwg.mxu0
        %4633 = vmatprep.subr.bf16.mxu0 %v1392
        %4634 = vmatpush1.bf16.xpose.msra.mxu0 %v1391
        %4635 = vmatprep.subr.bf16.mxu0 0
        %4636 = vmatpush1.bf16.xpose.msra.mxu0 0
        %4637 = vmatprep.subr.bf16.mxu0 0
        %4638 = vmatpush1.bf16.xpose.msra.mxu0 0
        %4639 = vmatprep.subr.bf16.mxu0 0
        %4640 = vmatpush1.bf16.xpose.msra.mxu0 0
        %4641 = vmatprep.subr.bf16.mxu0 0
        %4642 = vmatpush1.bf16.xpose.msra.mxu0 0
        %4643 = vmatprep.subr.bf16.mxu0 0
        %4644 = vmatpush1.bf16.xpose.msra.mxu0 0
        %4645 = vmatprep.subr.bf16.mxu0 0
        %4646 = vmatpush1.bf16.xpose.msra.mxu0 0
        %4647 = vmatprep.subr.bf16.mxu0 0
        %4648 = vmatpush1.bf16.xpose.msra.mxu0 0
        %4649 = vmatprep.subr.bf16.mxu0 0
        %4650 = vmatpush1.bf16.xpose.msra.mxu0 0
        %4651 = vmatprep.subr.bf16.mxu0 0
        %4652 = vmatpush1.bf16.xpose.msra.mxu0 0
        %4653 = vmatprep.subr.bf16.mxu0 0
        %4654 = vmatpush1.bf16.xpose.msra.mxu0 0
        %4655 = vmatprep.subr.bf16.mxu0 0
        %4656 = vmatpush1.bf16.xpose.msra.mxu0 0
        %4657 = vmatprep.subr.bf16.mxu0 0
        %4658 = vmatpush1.bf16.xpose.msra.mxu0 0
        %4659 = vmatprep.subr.bf16.mxu0 0
        %4660 = vmatpush1.bf16.xpose.msra.mxu0 0
        %4661 = vmatprep.subr.bf16.mxu0 0
        %4662 = vmatpush1.bf16.xpose.msra.mxu0 0
        %4663 = vmatprep.subr.bf16.mxu0 0
        %4664 = vmatpush1.bf16.xpose.msra.mxu0 0
        %4665 = vmatprep.mubr.bf16.mxu0 %v803
        %4666 = vmatmul.mubr.bf16.gmra.mrb[0].mxu0 %v802
        %v4667 = vpop.f32.mrb[0].mxu0
        %v4668 = vadd.f32 %v4628, %v4667
        %v4669 = vpop.f32.mrb[0].mxu0
        %v4670 = vpop.f32.mrb[0].mxu0
        %v4671 = vpop.f32.mrb[0].mxu0
        %4672 = vdwg.mxu0
        %4673 = vmatprep.subr.bf16.mxu0 %v1394
        %4674 = vmatpush1.bf16.xpose.msra.mxu0 %v1393
        %4675 = vmatprep.subr.bf16.mxu0 0
        %4676 = vmatpush1.bf16.xpose.msra.mxu0 0
        %4677 = vmatprep.subr.bf16.mxu0 0
        %4678 = vmatpush1.bf16.xpose.msra.mxu0 0
        %4679 = vmatprep.subr.bf16.mxu0 0
        %4680 = vmatpush1.bf16.xpose.msra.mxu0 0
        %4681 = vmatprep.subr.bf16.mxu0 0
        %4682 = vmatpush1.bf16.xpose.msra.mxu0 0
        %4683 = vmatprep.subr.bf16.mxu0 0
        %4684 = vmatpush1.bf16.xpose.msra.mxu0 0
        %4685 = vmatprep.subr.bf16.mxu0 0
        %4686 = vmatpush1.bf16.xpose.msra.mxu0 0
        %4687 = vmatprep.subr.bf16.mxu0 0
        %4688 = vmatpush1.bf16.xpose.msra.mxu0 0
        %4689 = vmatprep.subr.bf16.mxu0 0
        %4690 = vmatpush1.bf16.xpose.msra.mxu0 0
        %4691 = vmatprep.subr.bf16.mxu0 0
        %4692 = vmatpush1.bf16.xpose.msra.mxu0 0
        %4693 = vmatprep.subr.bf16.mxu0 0
        %4694 = vmatpush1.bf16.xpose.msra.mxu0 0
        %4695 = vmatprep.subr.bf16.mxu0 0
        %4696 = vmatpush1.bf16.xpose.msra.mxu0 0
        %4697 = vmatprep.subr.bf16.mxu0 0
        %4698 = vmatpush1.bf16.xpose.msra.mxu0 0
        %4699 = vmatprep.subr.bf16.mxu0 0
        %4700 = vmatpush1.bf16.xpose.msra.mxu0 0
        %4701 = vmatprep.subr.bf16.mxu0 0
        %4702 = vmatpush1.bf16.xpose.msra.mxu0 0
        %4703 = vmatprep.subr.bf16.mxu0 0
        %4704 = vmatpush1.bf16.xpose.msra.mxu0 0
        %4705 = vmatprep.mubr.bf16.mxu0 %v805
        %4706 = vmatmul.mubr.bf16.gmra.mrb[0].mxu0 %v804
        %v4707 = vpop.f32.mrb[0].mxu0
        %v4708 = vadd.f32 %v4668, %v4707
        %v4709 = vpop.f32.mrb[0].mxu0
        %v4710 = vpop.f32.mrb[0].mxu0
        %v4711 = vpop.f32.mrb[0].mxu0
        %4712 = vdwg.mxu0
        %4713 = vmatprep.subr.bf16.mxu0 %v1396
        %4714 = vmatpush1.bf16.xpose.msra.mxu0 %v1395
        %4715 = vmatprep.subr.bf16.mxu0 0
        %4716 = vmatpush1.bf16.xpose.msra.mxu0 0
        %4717 = vmatprep.subr.bf16.mxu0 0
        %4718 = vmatpush1.bf16.xpose.msra.mxu0 0
        %4719 = vmatprep.subr.bf16.mxu0 0
        %4720 = vmatpush1.bf16.xpose.msra.mxu0 0
        %4721 = vmatprep.subr.bf16.mxu0 0
        %4722 = vmatpush1.bf16.xpose.msra.mxu0 0
        %4723 = vmatprep.subr.bf16.mxu0 0
        %4724 = vmatpush1.bf16.xpose.msra.mxu0 0
        %4725 = vmatprep.subr.bf16.mxu0 0
        %4726 = vmatpush1.bf16.xpose.msra.mxu0 0
        %4727 = vmatprep.subr.bf16.mxu0 0
        %4728 = vmatpush1.bf16.xpose.msra.mxu0 0
        %4729 = vmatprep.subr.bf16.mxu0 0
        %4730 = vmatpush1.bf16.xpose.msra.mxu0 0
        %4731 = vmatprep.subr.bf16.mxu0 0
        %4732 = vmatpush1.bf16.xpose.msra.mxu0 0
        %4733 = vmatprep.subr.bf16.mxu0 0
        %4734 = vmatpush1.bf16.xpose.msra.mxu0 0
        %4735 = vmatprep.subr.bf16.mxu0 0
        %4736 = vmatpush1.bf16.xpose.msra.mxu0 0
        %4737 = vmatprep.subr.bf16.mxu0 0
        %4738 = vmatpush1.bf16.xpose.msra.mxu0 0
        %4739 = vmatprep.subr.bf16.mxu0 0
        %4740 = vmatpush1.bf16.xpose.msra.mxu0 0
        %4741 = vmatprep.subr.bf16.mxu0 0
        %4742 = vmatpush1.bf16.xpose.msra.mxu0 0
        %4743 = vmatprep.subr.bf16.mxu0 0
        %4744 = vmatpush1.bf16.xpose.msra.mxu0 0
        %4745 = vmatprep.mubr.bf16.mxu0 %v807
        %4746 = vmatmul.mubr.bf16.gmra.mrb[0].mxu0 %v806
        %v4747 = vpop.f32.mrb[0].mxu0
        %v4748 = vadd.f32 %v4708, %v4747
        %v4749 = vpop.f32.mrb[0].mxu0
        %v4750 = vpop.f32.mrb[0].mxu0
        %v4751 = vpop.f32.mrb[0].mxu0
        %4752 = vdwg.mxu0
        %4753 = vmatprep.subr.bf16.mxu0 %v1398
        %4754 = vmatpush1.bf16.xpose.msra.mxu0 %v1397
        %4755 = vmatprep.subr.bf16.mxu0 0
        %4756 = vmatpush1.bf16.xpose.msra.mxu0 0
        %4757 = vmatprep.subr.bf16.mxu0 0
        %4758 = vmatpush1.bf16.xpose.msra.mxu0 0
        %4759 = vmatprep.subr.bf16.mxu0 0
        %4760 = vmatpush1.bf16.xpose.msra.mxu0 0
        %4761 = vmatprep.subr.bf16.mxu0 0
        %4762 = vmatpush1.bf16.xpose.msra.mxu0 0
        %4763 = vmatprep.subr.bf16.mxu0 0
        %4764 = vmatpush1.bf16.xpose.msra.mxu0 0
        %4765 = vmatprep.subr.bf16.mxu0 0
        %4766 = vmatpush1.bf16.xpose.msra.mxu0 0
        %4767 = vmatprep.subr.bf16.mxu0 0
        %4768 = vmatpush1.bf16.xpose.msra.mxu0 0
        %4769 = vmatprep.subr.bf16.mxu0 0
        %4770 = vmatpush1.bf16.xpose.msra.mxu0 0
        %4771 = vmatprep.subr.bf16.mxu0 0
        %4772 = vmatpush1.bf16.xpose.msra.mxu0 0
        %4773 = vmatprep.subr.bf16.mxu0 0
        %4774 = vmatpush1.bf16.xpose.msra.mxu0 0
        %4775 = vmatprep.subr.bf16.mxu0 0
        %4776 = vmatpush1.bf16.xpose.msra.mxu0 0
        %4777 = vmatprep.subr.bf16.mxu0 0
        %4778 = vmatpush1.bf16.xpose.msra.mxu0 0
        %4779 = vmatprep.subr.bf16.mxu0 0
        %4780 = vmatpush1.bf16.xpose.msra.mxu0 0
        %4781 = vmatprep.subr.bf16.mxu0 0
        %4782 = vmatpush1.bf16.xpose.msra.mxu0 0
        %4783 = vmatprep.subr.bf16.mxu0 0
        %4784 = vmatpush1.bf16.xpose.msra.mxu0 0
        %4785 = vmatprep.mubr.bf16.mxu0 %v809
        %4786 = vmatmul.mubr.bf16.gmra.mrb[0].mxu0 %v808
        %v4787 = vpop.f32.mrb[0].mxu0
        %v4788 = vadd.f32 %v4748, %v4787
        %v4789 = vpop.f32.mrb[0].mxu0
        %v4790 = vpop.f32.mrb[0].mxu0
        %v4791 = vpop.f32.mrb[0].mxu0
        %4792 = vdwg.mxu0
        %4793 = vmatprep.subr.bf16.mxu0 %v1400
        %4794 = vmatpush1.bf16.xpose.msra.mxu0 %v1399
        %4795 = vmatprep.subr.bf16.mxu0 0
        %4796 = vmatpush1.bf16.xpose.msra.mxu0 0
        %4797 = vmatprep.subr.bf16.mxu0 0
        %4798 = vmatpush1.bf16.xpose.msra.mxu0 0
        %4799 = vmatprep.subr.bf16.mxu0 0
        %4800 = vmatpush1.bf16.xpose.msra.mxu0 0
        %4801 = vmatprep.subr.bf16.mxu0 0
        %4802 = vmatpush1.bf16.xpose.msra.mxu0 0
        %4803 = vmatprep.subr.bf16.mxu0 0
        %4804 = vmatpush1.bf16.xpose.msra.mxu0 0
        %4805 = vmatprep.subr.bf16.mxu0 0
        %4806 = vmatpush1.bf16.xpose.msra.mxu0 0
        %4807 = vmatprep.subr.bf16.mxu0 0
        %4808 = vmatpush1.bf16.xpose.msra.mxu0 0
        %4809 = vmatprep.subr.bf16.mxu0 0
        %4810 = vmatpush1.bf16.xpose.msra.mxu0 0
        %4811 = vmatprep.subr.bf16.mxu0 0
        %4812 = vmatpush1.bf16.xpose.msra.mxu0 0
        %4813 = vmatprep.subr.bf16.mxu0 0
        %4814 = vmatpush1.bf16.xpose.msra.mxu0 0
        %4815 = vmatprep.subr.bf16.mxu0 0
        %4816 = vmatpush1.bf16.xpose.msra.mxu0 0
        %4817 = vmatprep.subr.bf16.mxu0 0
        %4818 = vmatpush1.bf16.xpose.msra.mxu0 0
        %4819 = vmatprep.subr.bf16.mxu0 0
        %4820 = vmatpush1.bf16.xpose.msra.mxu0 0
        %4821 = vmatprep.subr.bf16.mxu0 0
        %4822 = vmatpush1.bf16.xpose.msra.mxu0 0
        %4823 = vmatprep.subr.bf16.mxu0 0
        %4824 = vmatpush1.bf16.xpose.msra.mxu0 0
        %4825 = vmatprep.mubr.bf16.mxu0 %v811
        %4826 = vmatmul.mubr.bf16.gmra.mrb[0].mxu0 %v810
        %v4827 = vpop.f32.mrb[0].mxu0
        %v4828 = vadd.f32 %v4788, %v4827
        %v4829 = vpop.f32.mrb[0].mxu0
        %v4830 = vpop.f32.mrb[0].mxu0
        %v4831 = vpop.f32.mrb[0].mxu0
        %4832 = vdwg.mxu0
        %4833 = vmatprep.subr.bf16.mxu0 %v1402
        %4834 = vmatpush1.bf16.xpose.msra.mxu0 %v1401
        %4835 = vmatprep.subr.bf16.mxu0 0
        %4836 = vmatpush1.bf16.xpose.msra.mxu0 0
        %4837 = vmatprep.subr.bf16.mxu0 0
        %4838 = vmatpush1.bf16.xpose.msra.mxu0 0
        %4839 = vmatprep.subr.bf16.mxu0 0
        %4840 = vmatpush1.bf16.xpose.msra.mxu0 0
        %4841 = vmatprep.subr.bf16.mxu0 0
        %4842 = vmatpush1.bf16.xpose.msra.mxu0 0
        %4843 = vmatprep.subr.bf16.mxu0 0
        %4844 = vmatpush1.bf16.xpose.msra.mxu0 0
        %4845 = vmatprep.subr.bf16.mxu0 0
        %4846 = vmatpush1.bf16.xpose.msra.mxu0 0
        %4847 = vmatprep.subr.bf16.mxu0 0
        %4848 = vmatpush1.bf16.xpose.msra.mxu0 0
        %4849 = vmatprep.subr.bf16.mxu0 0
        %4850 = vmatpush1.bf16.xpose.msra.mxu0 0
        %4851 = vmatprep.subr.bf16.mxu0 0
        %4852 = vmatpush1.bf16.xpose.msra.mxu0 0
        %4853 = vmatprep.subr.bf16.mxu0 0
        %4854 = vmatpush1.bf16.xpose.msra.mxu0 0
        %4855 = vmatprep.subr.bf16.mxu0 0
        %4856 = vmatpush1.bf16.xpose.msra.mxu0 0
        %4857 = vmatprep.subr.bf16.mxu0 0
        %4858 = vmatpush1.bf16.xpose.msra.mxu0 0
        %4859 = vmatprep.subr.bf16.mxu0 0
        %4860 = vmatpush1.bf16.xpose.msra.mxu0 0
        %4861 = vmatprep.subr.bf16.mxu0 0
        %4862 = vmatpush1.bf16.xpose.msra.mxu0 0
        %4863 = vmatprep.subr.bf16.mxu0 0
        %4864 = vmatpush1.bf16.xpose.msra.mxu0 0
        %4865 = vmatprep.mubr.bf16.mxu0 %v813
        %4866 = vmatmul.mubr.bf16.gmra.mrb[0].mxu0 %v812
        %v4867 = vpop.f32.mrb[0].mxu0
        %v4868 = vadd.f32 %v4828, %v4867
        %v4869 = vpop.f32.mrb[0].mxu0
        %v4870 = vpop.f32.mrb[0].mxu0
        %v4871 = vpop.f32.mrb[0].mxu0
        %4872 = vdwg.mxu0
        %4873 = vmatprep.subr.bf16.mxu0 %v1404
        %4874 = vmatpush1.bf16.xpose.msra.mxu0 %v1403
        %4875 = vmatprep.subr.bf16.mxu0 0
        %4876 = vmatpush1.bf16.xpose.msra.mxu0 0
        %4877 = vmatprep.subr.bf16.mxu0 0
        %4878 = vmatpush1.bf16.xpose.msra.mxu0 0
        %4879 = vmatprep.subr.bf16.mxu0 0
        %4880 = vmatpush1.bf16.xpose.msra.mxu0 0
        %4881 = vmatprep.subr.bf16.mxu0 0
        %4882 = vmatpush1.bf16.xpose.msra.mxu0 0
        %4883 = vmatprep.subr.bf16.mxu0 0
        %4884 = vmatpush1.bf16.xpose.msra.mxu0 0
        %4885 = vmatprep.subr.bf16.mxu0 0
        %4886 = vmatpush1.bf16.xpose.msra.mxu0 0
        %4887 = vmatprep.subr.bf16.mxu0 0
        %4888 = vmatpush1.bf16.xpose.msra.mxu0 0
        %4889 = vmatprep.subr.bf16.mxu0 0
        %4890 = vmatpush1.bf16.xpose.msra.mxu0 0
        %4891 = vmatprep.subr.bf16.mxu0 0
        %4892 = vmatpush1.bf16.xpose.msra.mxu0 0
        %4893 = vmatprep.subr.bf16.mxu0 0
        %4894 = vmatpush1.bf16.xpose.msra.mxu0 0
        %4895 = vmatprep.subr.bf16.mxu0 0
        %4896 = vmatpush1.bf16.xpose.msra.mxu0 0
        %4897 = vmatprep.subr.bf16.mxu0 0
        %4898 = vmatpush1.bf16.xpose.msra.mxu0 0
        %4899 = vmatprep.subr.bf16.mxu0 0
        %4900 = vmatpush1.bf16.xpose.msra.mxu0 0
        %4901 = vmatprep.subr.bf16.mxu0 0
        %4902 = vmatpush1.bf16.xpose.msra.mxu0 0
        %4903 = vmatprep.subr.bf16.mxu0 0
        %4904 = vmatpush1.bf16.xpose.msra.mxu0 0
        %4905 = vmatprep.mubr.bf16.mxu0 %v815
        %4906 = vmatmul.mubr.bf16.gmra.mrb[0].mxu0 %v814
        %v4907 = vpop.f32.mrb[0].mxu0
        %v4908 = vadd.f32 %v4868, %v4907
        %v4909 = vpop.f32.mrb[0].mxu0
        %v4910 = vpop.f32.mrb[0].mxu0
        %v4911 = vpop.f32.mrb[0].mxu0
        %4912 = vdwg.mxu0
        %4913 = vmatprep.subr.bf16.mxu0 %v1406
        %4914 = vmatpush1.bf16.xpose.msra.mxu0 %v1405
        %4915 = vmatprep.subr.bf16.mxu0 0
        %4916 = vmatpush1.bf16.xpose.msra.mxu0 0
        %4917 = vmatprep.subr.bf16.mxu0 0
        %4918 = vmatpush1.bf16.xpose.msra.mxu0 0
        %4919 = vmatprep.subr.bf16.mxu0 0
        %4920 = vmatpush1.bf16.xpose.msra.mxu0 0
        %4921 = vmatprep.subr.bf16.mxu0 0
        %4922 = vmatpush1.bf16.xpose.msra.mxu0 0
        %4923 = vmatprep.subr.bf16.mxu0 0
        %4924 = vmatpush1.bf16.xpose.msra.mxu0 0
        %4925 = vmatprep.subr.bf16.mxu0 0
        %4926 = vmatpush1.bf16.xpose.msra.mxu0 0
        %4927 = vmatprep.subr.bf16.mxu0 0
        %4928 = vmatpush1.bf16.xpose.msra.mxu0 0
        %4929 = vmatprep.subr.bf16.mxu0 0
        %4930 = vmatpush1.bf16.xpose.msra.mxu0 0
        %4931 = vmatprep.subr.bf16.mxu0 0
        %4932 = vmatpush1.bf16.xpose.msra.mxu0 0
        %4933 = vmatprep.subr.bf16.mxu0 0
        %4934 = vmatpush1.bf16.xpose.msra.mxu0 0
        %4935 = vmatprep.subr.bf16.mxu0 0
        %4936 = vmatpush1.bf16.xpose.msra.mxu0 0
        %4937 = vmatprep.subr.bf16.mxu0 0
        %4938 = vmatpush1.bf16.xpose.msra.mxu0 0
        %4939 = vmatprep.subr.bf16.mxu0 0
        %4940 = vmatpush1.bf16.xpose.msra.mxu0 0
        %4941 = vmatprep.subr.bf16.mxu0 0
        %4942 = vmatpush1.bf16.xpose.msra.mxu0 0
        %4943 = vmatprep.subr.bf16.mxu0 0
        %4944 = vmatpush1.bf16.xpose.msra.mxu0 0
        %4945 = vmatprep.mubr.bf16.mxu0 %v817
        %4946 = vmatmul.mubr.bf16.gmra.mrb[0].mxu0 %v816
        %v4947 = vpop.f32.mrb[0].mxu0
        %v4948 = vadd.f32 %v4908, %v4947
        %v4949 = vpop.f32.mrb[0].mxu0
        %v4950 = vpop.f32.mrb[0].mxu0
        %v4951 = vpop.f32.mrb[0].mxu0
        %4952 = vdwg.mxu0
        %4953 = vmatprep.subr.bf16.mxu0 %v1408
        %4954 = vmatpush1.bf16.xpose.msra.mxu0 %v1407
        %4955 = vmatprep.subr.bf16.mxu0 0
        %4956 = vmatpush1.bf16.xpose.msra.mxu0 0
        %4957 = vmatprep.subr.bf16.mxu0 0
        %4958 = vmatpush1.bf16.xpose.msra.mxu0 0
        %4959 = vmatprep.subr.bf16.mxu0 0
        %4960 = vmatpush1.bf16.xpose.msra.mxu0 0
        %4961 = vmatprep.subr.bf16.mxu0 0
        %4962 = vmatpush1.bf16.xpose.msra.mxu0 0
        %4963 = vmatprep.subr.bf16.mxu0 0
        %4964 = vmatpush1.bf16.xpose.msra.mxu0 0
        %4965 = vmatprep.subr.bf16.mxu0 0
        %4966 = vmatpush1.bf16.xpose.msra.mxu0 0
        %4967 = vmatprep.subr.bf16.mxu0 0
        %4968 = vmatpush1.bf16.xpose.msra.mxu0 0
        %4969 = vmatprep.subr.bf16.mxu0 0
        %4970 = vmatpush1.bf16.xpose.msra.mxu0 0
        %4971 = vmatprep.subr.bf16.mxu0 0
        %4972 = vmatpush1.bf16.xpose.msra.mxu0 0
        %4973 = vmatprep.subr.bf16.mxu0 0
        %4974 = vmatpush1.bf16.xpose.msra.mxu0 0
        %4975 = vmatprep.subr.bf16.mxu0 0
        %4976 = vmatpush1.bf16.xpose.msra.mxu0 0
        %4977 = vmatprep.subr.bf16.mxu0 0
        %4978 = vmatpush1.bf16.xpose.msra.mxu0 0
        %4979 = vmatprep.subr.bf16.mxu0 0
        %4980 = vmatpush1.bf16.xpose.msra.mxu0 0
        %4981 = vmatprep.subr.bf16.mxu0 0
        %4982 = vmatpush1.bf16.xpose.msra.mxu0 0
        %4983 = vmatprep.subr.bf16.mxu0 0
        %4984 = vmatpush1.bf16.xpose.msra.mxu0 0
        %4985 = vmatprep.mubr.bf16.mxu0 %v819
        %4986 = vmatmul.mubr.bf16.gmra.mrb[0].mxu0 %v818
        %v4987 = vpop.f32.mrb[0].mxu0
        %v4988 = vadd.f32 %v4948, %v4987
        %v4989 = vpop.f32.mrb[0].mxu0
        %v4990 = vpop.f32.mrb[0].mxu0
        %v4991 = vpop.f32.mrb[0].mxu0
        %4992 = vdwg.mxu0
        %4993 = vmatprep.subr.bf16.mxu0 %v1410
        %4994 = vmatpush1.bf16.xpose.msra.mxu0 %v1409
        %4995 = vmatprep.subr.bf16.mxu0 0
        %4996 = vmatpush1.bf16.xpose.msra.mxu0 0
        %4997 = vmatprep.subr.bf16.mxu0 0
        %4998 = vmatpush1.bf16.xpose.msra.mxu0 0
        %4999 = vmatprep.subr.bf16.mxu0 0
        %5000 = vmatpush1.bf16.xpose.msra.mxu0 0
        %5001 = vmatprep.subr.bf16.mxu0 0
        %5002 = vmatpush1.bf16.xpose.msra.mxu0 0
        %5003 = vmatprep.subr.bf16.mxu0 0
        %5004 = vmatpush1.bf16.xpose.msra.mxu0 0
        %5005 = vmatprep.subr.bf16.mxu0 0
        %5006 = vmatpush1.bf16.xpose.msra.mxu0 0
        %5007 = vmatprep.subr.bf16.mxu0 0
        %5008 = vmatpush1.bf16.xpose.msra.mxu0 0
        %5009 = vmatprep.subr.bf16.mxu0 0
        %5010 = vmatpush1.bf16.xpose.msra.mxu0 0
        %5011 = vmatprep.subr.bf16.mxu0 0
        %5012 = vmatpush1.bf16.xpose.msra.mxu0 0
        %5013 = vmatprep.subr.bf16.mxu0 0
        %5014 = vmatpush1.bf16.xpose.msra.mxu0 0
        %5015 = vmatprep.subr.bf16.mxu0 0
        %5016 = vmatpush1.bf16.xpose.msra.mxu0 0
        %5017 = vmatprep.subr.bf16.mxu0 0
        %5018 = vmatpush1.bf16.xpose.msra.mxu0 0
        %5019 = vmatprep.subr.bf16.mxu0 0
        %5020 = vmatpush1.bf16.xpose.msra.mxu0 0
        %5021 = vmatprep.subr.bf16.mxu0 0
        %5022 = vmatpush1.bf16.xpose.msra.mxu0 0
        %5023 = vmatprep.subr.bf16.mxu0 0
        %5024 = vmatpush1.bf16.xpose.msra.mxu0 0
        %5025 = vmatprep.mubr.bf16.mxu0 %v821
        %5026 = vmatmul.mubr.bf16.gmra.mrb[0].mxu0 %v820
        %v5027 = vpop.f32.mrb[0].mxu0
        %v5028 = vadd.f32 %v4988, %v5027
        %v5029 = vpop.f32.mrb[0].mxu0
        %v5030 = vpop.f32.mrb[0].mxu0
        %v5031 = vpop.f32.mrb[0].mxu0
        %5032 = vdwg.mxu0
        %5033 = vmatprep.subr.bf16.mxu0 %v1412
        %5034 = vmatpush1.bf16.xpose.msra.mxu0 %v1411
        %5035 = vmatprep.subr.bf16.mxu0 0
        %5036 = vmatpush1.bf16.xpose.msra.mxu0 0
        %5037 = vmatprep.subr.bf16.mxu0 0
        %5038 = vmatpush1.bf16.xpose.msra.mxu0 0
        %5039 = vmatprep.subr.bf16.mxu0 0
        %5040 = vmatpush1.bf16.xpose.msra.mxu0 0
        %5041 = vmatprep.subr.bf16.mxu0 0
        %5042 = vmatpush1.bf16.xpose.msra.mxu0 0
        %5043 = vmatprep.subr.bf16.mxu0 0
        %5044 = vmatpush1.bf16.xpose.msra.mxu0 0
        %5045 = vmatprep.subr.bf16.mxu0 0
        %5046 = vmatpush1.bf16.xpose.msra.mxu0 0
        %5047 = vmatprep.subr.bf16.mxu0 0
        %5048 = vmatpush1.bf16.xpose.msra.mxu0 0
        %5049 = vmatprep.subr.bf16.mxu0 0
        %5050 = vmatpush1.bf16.xpose.msra.mxu0 0
        %5051 = vmatprep.subr.bf16.mxu0 0
        %5052 = vmatpush1.bf16.xpose.msra.mxu0 0
        %5053 = vmatprep.subr.bf16.mxu0 0
        %5054 = vmatpush1.bf16.xpose.msra.mxu0 0
        %5055 = vmatprep.subr.bf16.mxu0 0
        %5056 = vmatpush1.bf16.xpose.msra.mxu0 0
        %5057 = vmatprep.subr.bf16.mxu0 0
        %5058 = vmatpush1.bf16.xpose.msra.mxu0 0
        %5059 = vmatprep.subr.bf16.mxu0 0
        %5060 = vmatpush1.bf16.xpose.msra.mxu0 0
        %5061 = vmatprep.subr.bf16.mxu0 0
        %5062 = vmatpush1.bf16.xpose.msra.mxu0 0
        %5063 = vmatprep.subr.bf16.mxu0 0
        %5064 = vmatpush1.bf16.xpose.msra.mxu0 0
        %5065 = vmatprep.mubr.bf16.mxu0 %v823
        %5066 = vmatmul.mubr.bf16.gmra.mrb[0].mxu0 %v822
        %v5067 = vpop.f32.mrb[0].mxu0
        %v5068 = vadd.f32 %v5028, %v5067
        %v5069 = vpop.f32.mrb[0].mxu0
        %v5070 = vpop.f32.mrb[0].mxu0
        %v5071 = vpop.f32.mrb[0].mxu0
        %5072 = vdwg.mxu0
        %5073 = vmatprep.subr.bf16.mxu0 %v1414
        %5074 = vmatpush1.bf16.xpose.msra.mxu0 %v1413
        %5075 = vmatprep.subr.bf16.mxu0 0
        %5076 = vmatpush1.bf16.xpose.msra.mxu0 0
        %5077 = vmatprep.subr.bf16.mxu0 0
        %5078 = vmatpush1.bf16.xpose.msra.mxu0 0
        %5079 = vmatprep.subr.bf16.mxu0 0
        %5080 = vmatpush1.bf16.xpose.msra.mxu0 0
        %5081 = vmatprep.subr.bf16.mxu0 0
        %5082 = vmatpush1.bf16.xpose.msra.mxu0 0
        %5083 = vmatprep.subr.bf16.mxu0 0
        %5084 = vmatpush1.bf16.xpose.msra.mxu0 0
        %5085 = vmatprep.subr.bf16.mxu0 0
        %5086 = vmatpush1.bf16.xpose.msra.mxu0 0
        %5087 = vmatprep.subr.bf16.mxu0 0
        %5088 = vmatpush1.bf16.xpose.msra.mxu0 0
        %5089 = vmatprep.subr.bf16.mxu0 0
        %5090 = vmatpush1.bf16.xpose.msra.mxu0 0
        %5091 = vmatprep.subr.bf16.mxu0 0
        %5092 = vmatpush1.bf16.xpose.msra.mxu0 0
        %5093 = vmatprep.subr.bf16.mxu0 0
        %5094 = vmatpush1.bf16.xpose.msra.mxu0 0
        %5095 = vmatprep.subr.bf16.mxu0 0
        %5096 = vmatpush1.bf16.xpose.msra.mxu0 0
        %5097 = vmatprep.subr.bf16.mxu0 0
        %5098 = vmatpush1.bf16.xpose.msra.mxu0 0
        %5099 = vmatprep.subr.bf16.mxu0 0
        %5100 = vmatpush1.bf16.xpose.msra.mxu0 0
        %5101 = vmatprep.subr.bf16.mxu0 0
        %5102 = vmatpush1.bf16.xpose.msra.mxu0 0
        %5103 = vmatprep.subr.bf16.mxu0 0
        %5104 = vmatpush1.bf16.xpose.msra.mxu0 0
        %5105 = vmatprep.mubr.bf16.mxu0 %v825
        %5106 = vmatmul.mubr.bf16.gmra.mrb[0].mxu0 %v824
        %v5107 = vpop.f32.mrb[0].mxu0
        %v5108 = vadd.f32 %v5068, %v5107
        %v5109 = vpop.f32.mrb[0].mxu0
        %v5110 = vpop.f32.mrb[0].mxu0
        %v5111 = vpop.f32.mrb[0].mxu0
        %5112 = vdwg.mxu0
        %5113 = vmatprep.subr.bf16.mxu0 %v1416
        %5114 = vmatpush1.bf16.xpose.msra.mxu0 %v1415
        %5115 = vmatprep.subr.bf16.mxu0 0
        %5116 = vmatpush1.bf16.xpose.msra.mxu0 0
        %5117 = vmatprep.subr.bf16.mxu0 0
        %5118 = vmatpush1.bf16.xpose.msra.mxu0 0
        %5119 = vmatprep.subr.bf16.mxu0 0
        %5120 = vmatpush1.bf16.xpose.msra.mxu0 0
        %5121 = vmatprep.subr.bf16.mxu0 0
        %5122 = vmatpush1.bf16.xpose.msra.mxu0 0
        %5123 = vmatprep.subr.bf16.mxu0 0
        %5124 = vmatpush1.bf16.xpose.msra.mxu0 0
        %5125 = vmatprep.subr.bf16.mxu0 0
        %5126 = vmatpush1.bf16.xpose.msra.mxu0 0
        %5127 = vmatprep.subr.bf16.mxu0 0
        %5128 = vmatpush1.bf16.xpose.msra.mxu0 0
        %5129 = vmatprep.subr.bf16.mxu0 0
        %5130 = vmatpush1.bf16.xpose.msra.mxu0 0
        %5131 = vmatprep.subr.bf16.mxu0 0
        %5132 = vmatpush1.bf16.xpose.msra.mxu0 0
        %5133 = vmatprep.subr.bf16.mxu0 0
        %5134 = vmatpush1.bf16.xpose.msra.mxu0 0
        %5135 = vmatprep.subr.bf16.mxu0 0
        %5136 = vmatpush1.bf16.xpose.msra.mxu0 0
        %5137 = vmatprep.subr.bf16.mxu0 0
        %5138 = vmatpush1.bf16.xpose.msra.mxu0 0
        %5139 = vmatprep.subr.bf16.mxu0 0
        %5140 = vmatpush1.bf16.xpose.msra.mxu0 0
        %5141 = vmatprep.subr.bf16.mxu0 0
        %5142 = vmatpush1.bf16.xpose.msra.mxu0 0
        %5143 = vmatprep.subr.bf16.mxu0 0
        %5144 = vmatpush1.bf16.xpose.msra.mxu0 0
        %5145 = vmatprep.mubr.bf16.mxu0 %v827
        %5146 = vmatmul.mubr.bf16.gmra.mrb[0].mxu0 %v826
        %v5147 = vpop.f32.mrb[0].mxu0
        %v5148 = vadd.f32 %v5108, %v5147
        %v5149 = vpop.f32.mrb[0].mxu0
        %v5150 = vpop.f32.mrb[0].mxu0
        %v5151 = vpop.f32.mrb[0].mxu0
        %5152 = vdwg.mxu0
        %5153 = vmatprep.subr.bf16.mxu0 %v1418
        %5154 = vmatpush1.bf16.xpose.msra.mxu0 %v1417
        %5155 = vmatprep.subr.bf16.mxu0 0
        %5156 = vmatpush1.bf16.xpose.msra.mxu0 0
        %5157 = vmatprep.subr.bf16.mxu0 0
        %5158 = vmatpush1.bf16.xpose.msra.mxu0 0
        %5159 = vmatprep.subr.bf16.mxu0 0
        %5160 = vmatpush1.bf16.xpose.msra.mxu0 0
        %5161 = vmatprep.subr.bf16.mxu0 0
        %5162 = vmatpush1.bf16.xpose.msra.mxu0 0
        %5163 = vmatprep.subr.bf16.mxu0 0
        %5164 = vmatpush1.bf16.xpose.msra.mxu0 0
        %5165 = vmatprep.subr.bf16.mxu0 0
        %5166 = vmatpush1.bf16.xpose.msra.mxu0 0
        %5167 = vmatprep.subr.bf16.mxu0 0
        %5168 = vmatpush1.bf16.xpose.msra.mxu0 0
        %5169 = vmatprep.subr.bf16.mxu0 0
        %5170 = vmatpush1.bf16.xpose.msra.mxu0 0
        %5171 = vmatprep.subr.bf16.mxu0 0
        %5172 = vmatpush1.bf16.xpose.msra.mxu0 0
        %5173 = vmatprep.subr.bf16.mxu0 0
        %5174 = vmatpush1.bf16.xpose.msra.mxu0 0
        %5175 = vmatprep.subr.bf16.mxu0 0
        %5176 = vmatpush1.bf16.xpose.msra.mxu0 0
        %5177 = vmatprep.subr.bf16.mxu0 0
        %5178 = vmatpush1.bf16.xpose.msra.mxu0 0
        %5179 = vmatprep.subr.bf16.mxu0 0
        %5180 = vmatpush1.bf16.xpose.msra.mxu0 0
        %5181 = vmatprep.subr.bf16.mxu0 0
        %5182 = vmatpush1.bf16.xpose.msra.mxu0 0
        %5183 = vmatprep.subr.bf16.mxu0 0
        %5184 = vmatpush1.bf16.xpose.msra.mxu0 0
        %5185 = vmatprep.mubr.bf16.mxu0 %v829
        %5186 = vmatmul.mubr.bf16.gmra.mrb[0].mxu0 %v828
        %v5187 = vpop.f32.mrb[0].mxu0
        %v5188 = vadd.f32 %v5148, %v5187
        %v5189 = vpop.f32.mrb[0].mxu0
        %v5190 = vpop.f32.mrb[0].mxu0
        %v5191 = vpop.f32.mrb[0].mxu0
        %5192 = vdwg.mxu0
        %5193 = vmatprep.subr.bf16.mxu0 %v1420
        %5194 = vmatpush1.bf16.xpose.msra.mxu0 %v1419
        %5195 = vmatprep.subr.bf16.mxu0 0
        %5196 = vmatpush1.bf16.xpose.msra.mxu0 0
        %5197 = vmatprep.subr.bf16.mxu0 0
        %5198 = vmatpush1.bf16.xpose.msra.mxu0 0
        %5199 = vmatprep.subr.bf16.mxu0 0
        %5200 = vmatpush1.bf16.xpose.msra.mxu0 0
        %5201 = vmatprep.subr.bf16.mxu0 0
        %5202 = vmatpush1.bf16.xpose.msra.mxu0 0
        %5203 = vmatprep.subr.bf16.mxu0 0
        %5204 = vmatpush1.bf16.xpose.msra.mxu0 0
        %5205 = vmatprep.subr.bf16.mxu0 0
        %5206 = vmatpush1.bf16.xpose.msra.mxu0 0
        %5207 = vmatprep.subr.bf16.mxu0 0
        %5208 = vmatpush1.bf16.xpose.msra.mxu0 0
        %5209 = vmatprep.subr.bf16.mxu0 0
        %5210 = vmatpush1.bf16.xpose.msra.mxu0 0
        %5211 = vmatprep.subr.bf16.mxu0 0
        %5212 = vmatpush1.bf16.xpose.msra.mxu0 0
        %5213 = vmatprep.subr.bf16.mxu0 0
        %5214 = vmatpush1.bf16.xpose.msra.mxu0 0
        %5215 = vmatprep.subr.bf16.mxu0 0
        %5216 = vmatpush1.bf16.xpose.msra.mxu0 0
        %5217 = vmatprep.subr.bf16.mxu0 0
        %5218 = vmatpush1.bf16.xpose.msra.mxu0 0
        %5219 = vmatprep.subr.bf16.mxu0 0
        %5220 = vmatpush1.bf16.xpose.msra.mxu0 0
        %5221 = vmatprep.subr.bf16.mxu0 0
        %5222 = vmatpush1.bf16.xpose.msra.mxu0 0
        %5223 = vmatprep.subr.bf16.mxu0 0
        %5224 = vmatpush1.bf16.xpose.msra.mxu0 0
        %5225 = vmatprep.mubr.bf16.mxu0 %v831
        %5226 = vmatmul.mubr.bf16.gmra.mrb[0].mxu0 %v830
        %v5227 = vpop.f32.mrb[0].mxu0
        %v5228 = vadd.f32 %v5188, %v5227
        %v5229 = vpop.f32.mrb[0].mxu0
        %v5230 = vpop.f32.mrb[0].mxu0
        %v5231 = vpop.f32.mrb[0].mxu0
        %5232 = vdwg.mxu0
        %5233 = vmatprep.subr.bf16.mxu0 %v1422
        %5234 = vmatpush1.bf16.xpose.msra.mxu0 %v1421
        %5235 = vmatprep.subr.bf16.mxu0 0
        %5236 = vmatpush1.bf16.xpose.msra.mxu0 0
        %5237 = vmatprep.subr.bf16.mxu0 0
        %5238 = vmatpush1.bf16.xpose.msra.mxu0 0
        %5239 = vmatprep.subr.bf16.mxu0 0
        %5240 = vmatpush1.bf16.xpose.msra.mxu0 0
        %5241 = vmatprep.subr.bf16.mxu0 0
        %5242 = vmatpush1.bf16.xpose.msra.mxu0 0
        %5243 = vmatprep.subr.bf16.mxu0 0
        %5244 = vmatpush1.bf16.xpose.msra.mxu0 0
        %5245 = vmatprep.subr.bf16.mxu0 0
        %5246 = vmatpush1.bf16.xpose.msra.mxu0 0
        %5247 = vmatprep.subr.bf16.mxu0 0
        %5248 = vmatpush1.bf16.xpose.msra.mxu0 0
        %5249 = vmatprep.subr.bf16.mxu0 0
        %5250 = vmatpush1.bf16.xpose.msra.mxu0 0
        %5251 = vmatprep.subr.bf16.mxu0 0
        %5252 = vmatpush1.bf16.xpose.msra.mxu0 0
        %5253 = vmatprep.subr.bf16.mxu0 0
        %5254 = vmatpush1.bf16.xpose.msra.mxu0 0
        %5255 = vmatprep.subr.bf16.mxu0 0
        %5256 = vmatpush1.bf16.xpose.msra.mxu0 0
        %5257 = vmatprep.subr.bf16.mxu0 0
        %5258 = vmatpush1.bf16.xpose.msra.mxu0 0
        %5259 = vmatprep.subr.bf16.mxu0 0
        %5260 = vmatpush1.bf16.xpose.msra.mxu0 0
        %5261 = vmatprep.subr.bf16.mxu0 0
        %5262 = vmatpush1.bf16.xpose.msra.mxu0 0
        %5263 = vmatprep.subr.bf16.mxu0 0
        %5264 = vmatpush1.bf16.xpose.msra.mxu0 0
        %5265 = vmatprep.mubr.bf16.mxu0 %v833
        %5266 = vmatmul.mubr.bf16.gmra.mrb[0].mxu0 %v832
        %v5267 = vpop.f32.mrb[0].mxu0
        %v5268 = vadd.f32 %v5228, %v5267
        %v5269 = vpop.f32.mrb[0].mxu0
        %v5270 = vpop.f32.mrb[0].mxu0
        %v5271 = vpop.f32.mrb[0].mxu0
        %5272 = vdwg.mxu0
        %5273 = vmatprep.subr.bf16.mxu0 %v1424
        %5274 = vmatpush1.bf16.xpose.msra.mxu0 %v1423
        %5275 = vmatprep.subr.bf16.mxu0 0
        %5276 = vmatpush1.bf16.xpose.msra.mxu0 0
        %5277 = vmatprep.subr.bf16.mxu0 0
        %5278 = vmatpush1.bf16.xpose.msra.mxu0 0
        %5279 = vmatprep.subr.bf16.mxu0 0
        %5280 = vmatpush1.bf16.xpose.msra.mxu0 0
        %5281 = vmatprep.subr.bf16.mxu0 0
        %5282 = vmatpush1.bf16.xpose.msra.mxu0 0
        %5283 = vmatprep.subr.bf16.mxu0 0
        %5284 = vmatpush1.bf16.xpose.msra.mxu0 0
        %5285 = vmatprep.subr.bf16.mxu0 0
        %5286 = vmatpush1.bf16.xpose.msra.mxu0 0
        %5287 = vmatprep.subr.bf16.mxu0 0
        %5288 = vmatpush1.bf16.xpose.msra.mxu0 0
        %5289 = vmatprep.subr.bf16.mxu0 0
        %5290 = vmatpush1.bf16.xpose.msra.mxu0 0
        %5291 = vmatprep.subr.bf16.mxu0 0
        %5292 = vmatpush1.bf16.xpose.msra.mxu0 0
        %5293 = vmatprep.subr.bf16.mxu0 0
        %5294 = vmatpush1.bf16.xpose.msra.mxu0 0
        %5295 = vmatprep.subr.bf16.mxu0 0
        %5296 = vmatpush1.bf16.xpose.msra.mxu0 0
        %5297 = vmatprep.subr.bf16.mxu0 0
        %5298 = vmatpush1.bf16.xpose.msra.mxu0 0
        %5299 = vmatprep.subr.bf16.mxu0 0
        %5300 = vmatpush1.bf16.xpose.msra.mxu0 0
        %5301 = vmatprep.subr.bf16.mxu0 0
        %5302 = vmatpush1.bf16.xpose.msra.mxu0 0
        %5303 = vmatprep.subr.bf16.mxu0 0
        %5304 = vmatpush1.bf16.xpose.msra.mxu0 0
        %5305 = vmatprep.mubr.bf16.mxu0 %v835
        %5306 = vmatmul.mubr.bf16.gmra.mrb[0].mxu0 %v834
        %v5307 = vpop.f32.mrb[0].mxu0
        %v5308 = vadd.f32 %v5268, %v5307
        %v5309 = vpop.f32.mrb[0].mxu0
        %v5310 = vpop.f32.mrb[0].mxu0
        %v5311 = vpop.f32.mrb[0].mxu0
        %5312 = vdwg.mxu0
        %5313 = vmatprep.subr.bf16.mxu0 %v1426
        %5314 = vmatpush1.bf16.xpose.msra.mxu0 %v1425
        %5315 = vmatprep.subr.bf16.mxu0 0
        %5316 = vmatpush1.bf16.xpose.msra.mxu0 0
        %5317 = vmatprep.subr.bf16.mxu0 0
        %5318 = vmatpush1.bf16.xpose.msra.mxu0 0
        %5319 = vmatprep.subr.bf16.mxu0 0
        %5320 = vmatpush1.bf16.xpose.msra.mxu0 0
        %5321 = vmatprep.subr.bf16.mxu0 0
        %5322 = vmatpush1.bf16.xpose.msra.mxu0 0
        %5323 = vmatprep.subr.bf16.mxu0 0
        %5324 = vmatpush1.bf16.xpose.msra.mxu0 0
        %5325 = vmatprep.subr.bf16.mxu0 0
        %5326 = vmatpush1.bf16.xpose.msra.mxu0 0
        %5327 = vmatprep.subr.bf16.mxu0 0
        %5328 = vmatpush1.bf16.xpose.msra.mxu0 0
        %5329 = vmatprep.subr.bf16.mxu0 0
        %5330 = vmatpush1.bf16.xpose.msra.mxu0 0
        %5331 = vmatprep.subr.bf16.mxu0 0
        %5332 = vmatpush1.bf16.xpose.msra.mxu0 0
        %5333 = vmatprep.subr.bf16.mxu0 0
        %5334 = vmatpush1.bf16.xpose.msra.mxu0 0
        %5335 = vmatprep.subr.bf16.mxu0 0
        %5336 = vmatpush1.bf16.xpose.msra.mxu0 0
        %5337 = vmatprep.subr.bf16.mxu0 0
        %5338 = vmatpush1.bf16.xpose.msra.mxu0 0
        %5339 = vmatprep.subr.bf16.mxu0 0
        %5340 = vmatpush1.bf16.xpose.msra.mxu0 0
        %5341 = vmatprep.subr.bf16.mxu0 0
        %5342 = vmatpush1.bf16.xpose.msra.mxu0 0
        %5343 = vmatprep.subr.bf16.mxu0 0
        %5344 = vmatpush1.bf16.xpose.msra.mxu0 0
        %5345 = vmatprep.mubr.bf16.mxu0 %v837
        %5346 = vmatmul.mubr.bf16.gmra.mrb[0].mxu0 %v836
        %v5347 = vpop.f32.mrb[0].mxu0
        %v5348 = vadd.f32 %v5308, %v5347
        %v5349 = vpop.f32.mrb[0].mxu0
        %v5350 = vpop.f32.mrb[0].mxu0
        %v5351 = vpop.f32.mrb[0].mxu0
        %5352 = vdwg.mxu0
        %5353 = vmatprep.subr.bf16.mxu0 %v1428
        %5354 = vmatpush1.bf16.xpose.msra.mxu0 %v1427
        %5355 = vmatprep.subr.bf16.mxu0 0
        %5356 = vmatpush1.bf16.xpose.msra.mxu0 0
        %5357 = vmatprep.subr.bf16.mxu0 0
        %5358 = vmatpush1.bf16.xpose.msra.mxu0 0
        %5359 = vmatprep.subr.bf16.mxu0 0
        %5360 = vmatpush1.bf16.xpose.msra.mxu0 0
        %5361 = vmatprep.subr.bf16.mxu0 0
        %5362 = vmatpush1.bf16.xpose.msra.mxu0 0
        %5363 = vmatprep.subr.bf16.mxu0 0
        %5364 = vmatpush1.bf16.xpose.msra.mxu0 0
        %5365 = vmatprep.subr.bf16.mxu0 0
        %5366 = vmatpush1.bf16.xpose.msra.mxu0 0
        %5367 = vmatprep.subr.bf16.mxu0 0
        %5368 = vmatpush1.bf16.xpose.msra.mxu0 0
        %5369 = vmatprep.subr.bf16.mxu0 0
        %5370 = vmatpush1.bf16.xpose.msra.mxu0 0
        %5371 = vmatprep.subr.bf16.mxu0 0
        %5372 = vmatpush1.bf16.xpose.msra.mxu0 0
        %5373 = vmatprep.subr.bf16.mxu0 0
        %5374 = vmatpush1.bf16.xpose.msra.mxu0 0
        %5375 = vmatprep.subr.bf16.mxu0 0
        %5376 = vmatpush1.bf16.xpose.msra.mxu0 0
        %5377 = vmatprep.subr.bf16.mxu0 0
        %5378 = vmatpush1.bf16.xpose.msra.mxu0 0
        %5379 = vmatprep.subr.bf16.mxu0 0
        %5380 = vmatpush1.bf16.xpose.msra.mxu0 0
        %5381 = vmatprep.subr.bf16.mxu0 0
        %5382 = vmatpush1.bf16.xpose.msra.mxu0 0
        %5383 = vmatprep.subr.bf16.mxu0 0
        %5384 = vmatpush1.bf16.xpose.msra.mxu0 0
        %5385 = vmatprep.mubr.bf16.mxu0 %v839
        %5386 = vmatmul.mubr.bf16.gmra.mrb[0].mxu0 %v838
        %v5387 = vpop.f32.mrb[0].mxu0
        %v5388 = vadd.f32 %v5348, %v5387
        %v5389 = vpop.f32.mrb[0].mxu0
        %v5390 = vpop.f32.mrb[0].mxu0
        %v5391 = vpop.f32.mrb[0].mxu0
        %5392 = vdwg.mxu0
        %5393 = vmatprep.subr.bf16.mxu0 %v1430
        %5394 = vmatpush1.bf16.xpose.msra.mxu0 %v1429
        %5395 = vmatprep.subr.bf16.mxu0 0
        %5396 = vmatpush1.bf16.xpose.msra.mxu0 0
        %5397 = vmatprep.subr.bf16.mxu0 0
        %5398 = vmatpush1.bf16.xpose.msra.mxu0 0
        %5399 = vmatprep.subr.bf16.mxu0 0
        %5400 = vmatpush1.bf16.xpose.msra.mxu0 0
        %5401 = vmatprep.subr.bf16.mxu0 0
        %5402 = vmatpush1.bf16.xpose.msra.mxu0 0
        %5403 = vmatprep.subr.bf16.mxu0 0
        %5404 = vmatpush1.bf16.xpose.msra.mxu0 0
        %5405 = vmatprep.subr.bf16.mxu0 0
        %5406 = vmatpush1.bf16.xpose.msra.mxu0 0
        %5407 = vmatprep.subr.bf16.mxu0 0
        %5408 = vmatpush1.bf16.xpose.msra.mxu0 0
        %5409 = vmatprep.subr.bf16.mxu0 0
        %5410 = vmatpush1.bf16.xpose.msra.mxu0 0
        %5411 = vmatprep.subr.bf16.mxu0 0
        %5412 = vmatpush1.bf16.xpose.msra.mxu0 0
        %5413 = vmatprep.subr.bf16.mxu0 0
        %5414 = vmatpush1.bf16.xpose.msra.mxu0 0
        %5415 = vmatprep.subr.bf16.mxu0 0
        %5416 = vmatpush1.bf16.xpose.msra.mxu0 0
        %5417 = vmatprep.subr.bf16.mxu0 0
        %5418 = vmatpush1.bf16.xpose.msra.mxu0 0
        %5419 = vmatprep.subr.bf16.mxu0 0
        %5420 = vmatpush1.bf16.xpose.msra.mxu0 0
        %5421 = vmatprep.subr.bf16.mxu0 0
        %5422 = vmatpush1.bf16.xpose.msra.mxu0 0
        %5423 = vmatprep.subr.bf16.mxu0 0
        %5424 = vmatpush1.bf16.xpose.msra.mxu0 0
        %5425 = vmatprep.mubr.bf16.mxu0 %v841
        %5426 = vmatmul.mubr.bf16.gmra.mrb[0].mxu0 %v840
        %v5427 = vpop.f32.mrb[0].mxu0
        %v5428 = vadd.f32 %v5388, %v5427
        %v5429 = vpop.f32.mrb[0].mxu0
        %v5430 = vpop.f32.mrb[0].mxu0
        %v5431 = vpop.f32.mrb[0].mxu0
        %5432 = vdwg.mxu0
        %5433 = vmatprep.subr.bf16.mxu0 %v1432
        %5434 = vmatpush1.bf16.xpose.msra.mxu0 %v1431
        %5435 = vmatprep.subr.bf16.mxu0 0
        %5436 = vmatpush1.bf16.xpose.msra.mxu0 0
        %5437 = vmatprep.subr.bf16.mxu0 0
        %5438 = vmatpush1.bf16.xpose.msra.mxu0 0
        %5439 = vmatprep.subr.bf16.mxu0 0
        %5440 = vmatpush1.bf16.xpose.msra.mxu0 0
        %5441 = vmatprep.subr.bf16.mxu0 0
        %5442 = vmatpush1.bf16.xpose.msra.mxu0 0
        %5443 = vmatprep.subr.bf16.mxu0 0
        %5444 = vmatpush1.bf16.xpose.msra.mxu0 0
        %5445 = vmatprep.subr.bf16.mxu0 0
        %5446 = vmatpush1.bf16.xpose.msra.mxu0 0
        %5447 = vmatprep.subr.bf16.mxu0 0
        %5448 = vmatpush1.bf16.xpose.msra.mxu0 0
        %5449 = vmatprep.subr.bf16.mxu0 0
        %5450 = vmatpush1.bf16.xpose.msra.mxu0 0
        %5451 = vmatprep.subr.bf16.mxu0 0
        %5452 = vmatpush1.bf16.xpose.msra.mxu0 0
        %5453 = vmatprep.subr.bf16.mxu0 0
        %5454 = vmatpush1.bf16.xpose.msra.mxu0 0
        %5455 = vmatprep.subr.bf16.mxu0 0
        %5456 = vmatpush1.bf16.xpose.msra.mxu0 0
        %5457 = vmatprep.subr.bf16.mxu0 0
        %5458 = vmatpush1.bf16.xpose.msra.mxu0 0
        %5459 = vmatprep.subr.bf16.mxu0 0
        %5460 = vmatpush1.bf16.xpose.msra.mxu0 0
        %5461 = vmatprep.subr.bf16.mxu0 0
        %5462 = vmatpush1.bf16.xpose.msra.mxu0 0
        %5463 = vmatprep.subr.bf16.mxu0 0
        %5464 = vmatpush1.bf16.xpose.msra.mxu0 0
        %5465 = vmatprep.mubr.bf16.mxu0 %v843
        %5466 = vmatmul.mubr.bf16.gmra.mrb[0].mxu0 %v842
        %v5467 = vpop.f32.mrb[0].mxu0
        %v5468 = vadd.f32 %v5428, %v5467
        %v5469 = vpop.f32.mrb[0].mxu0
        %v5470 = vpop.f32.mrb[0].mxu0
        %v5471 = vpop.f32.mrb[0].mxu0
        %5472 = vdwg.mxu0
        %5473 = vmatprep.subr.bf16.mxu0 %v1434
        %5474 = vmatpush1.bf16.xpose.msra.mxu0 %v1433
        %5475 = vmatprep.subr.bf16.mxu0 0
        %5476 = vmatpush1.bf16.xpose.msra.mxu0 0
        %5477 = vmatprep.subr.bf16.mxu0 0
        %5478 = vmatpush1.bf16.xpose.msra.mxu0 0
        %5479 = vmatprep.subr.bf16.mxu0 0
        %5480 = vmatpush1.bf16.xpose.msra.mxu0 0
        %5481 = vmatprep.subr.bf16.mxu0 0
        %5482 = vmatpush1.bf16.xpose.msra.mxu0 0
        %5483 = vmatprep.subr.bf16.mxu0 0
        %5484 = vmatpush1.bf16.xpose.msra.mxu0 0
        %5485 = vmatprep.subr.bf16.mxu0 0
        %5486 = vmatpush1.bf16.xpose.msra.mxu0 0
        %5487 = vmatprep.subr.bf16.mxu0 0
        %5488 = vmatpush1.bf16.xpose.msra.mxu0 0
        %5489 = vmatprep.subr.bf16.mxu0 0
        %5490 = vmatpush1.bf16.xpose.msra.mxu0 0
        %5491 = vmatprep.subr.bf16.mxu0 0
        %5492 = vmatpush1.bf16.xpose.msra.mxu0 0
        %5493 = vmatprep.subr.bf16.mxu0 0
        %5494 = vmatpush1.bf16.xpose.msra.mxu0 0
        %5495 = vmatprep.subr.bf16.mxu0 0
        %5496 = vmatpush1.bf16.xpose.msra.mxu0 0
        %5497 = vmatprep.subr.bf16.mxu0 0
        %5498 = vmatpush1.bf16.xpose.msra.mxu0 0
        %5499 = vmatprep.subr.bf16.mxu0 0
        %5500 = vmatpush1.bf16.xpose.msra.mxu0 0
        %5501 = vmatprep.subr.bf16.mxu0 0
        %5502 = vmatpush1.bf16.xpose.msra.mxu0 0
        %5503 = vmatprep.subr.bf16.mxu0 0
        %5504 = vmatpush1.bf16.xpose.msra.mxu0 0
        %5505 = vmatprep.mubr.bf16.mxu0 %v845
        %5506 = vmatmul.mubr.bf16.gmra.mrb[0].mxu0 %v844
        %v5507 = vpop.f32.mrb[0].mxu0
        %v5508 = vadd.f32 %v5468, %v5507
        %v5509 = vpop.f32.mrb[0].mxu0
        %v5510 = vpop.f32.mrb[0].mxu0
        %v5511 = vpop.f32.mrb[0].mxu0
        %5512 = vdwg.mxu0
        %5513 = vmatprep.subr.bf16.mxu0 %v1436
        %5514 = vmatpush1.bf16.xpose.msra.mxu0 %v1435
        %5515 = vmatprep.subr.bf16.mxu0 0
        %5516 = vmatpush1.bf16.xpose.msra.mxu0 0
        %5517 = vmatprep.subr.bf16.mxu0 0
        %5518 = vmatpush1.bf16.xpose.msra.mxu0 0
        %5519 = vmatprep.subr.bf16.mxu0 0
        %5520 = vmatpush1.bf16.xpose.msra.mxu0 0
        %5521 = vmatprep.subr.bf16.mxu0 0
        %5522 = vmatpush1.bf16.xpose.msra.mxu0 0
        %5523 = vmatprep.subr.bf16.mxu0 0
        %5524 = vmatpush1.bf16.xpose.msra.mxu0 0
        %5525 = vmatprep.subr.bf16.mxu0 0
        %5526 = vmatpush1.bf16.xpose.msra.mxu0 0
        %5527 = vmatprep.subr.bf16.mxu0 0
        %5528 = vmatpush1.bf16.xpose.msra.mxu0 0
        %5529 = vmatprep.subr.bf16.mxu0 0
        %5530 = vmatpush1.bf16.xpose.msra.mxu0 0
        %5531 = vmatprep.subr.bf16.mxu0 0
        %5532 = vmatpush1.bf16.xpose.msra.mxu0 0
        %5533 = vmatprep.subr.bf16.mxu0 0
        %5534 = vmatpush1.bf16.xpose.msra.mxu0 0
        %5535 = vmatprep.subr.bf16.mxu0 0
        %5536 = vmatpush1.bf16.xpose.msra.mxu0 0
        %5537 = vmatprep.subr.bf16.mxu0 0
        %5538 = vmatpush1.bf16.xpose.msra.mxu0 0
        %5539 = vmatprep.subr.bf16.mxu0 0
        %5540 = vmatpush1.bf16.xpose.msra.mxu0 0
        %5541 = vmatprep.subr.bf16.mxu0 0
        %5542 = vmatpush1.bf16.xpose.msra.mxu0 0
        %5543 = vmatprep.subr.bf16.mxu0 0
        %5544 = vmatpush1.bf16.xpose.msra.mxu0 0
        %5545 = vmatprep.mubr.bf16.mxu0 %v847
        %5546 = vmatmul.mubr.bf16.gmra.mrb[0].mxu0 %v846
        %v5547 = vpop.f32.mrb[0].mxu0
        %v5548 = vadd.f32 %v5508, %v5547
        %v5549 = vpop.f32.mrb[0].mxu0
        %v5550 = vpop.f32.mrb[0].mxu0
        %v5551 = vpop.f32.mrb[0].mxu0
        %5552 = vdwg.mxu0
        %v5553 = vadd.f32 %v946, %v5548
        %vm5554 = vcmask 34816
        %5555 = vst.msk [vmem:[#allocation2] sm:$0x7] %vm5554, %v5553
        %v5556 = vld [vmem:[#allocation3] sm:$0x1]
        %5557 = vmatprep.subr.bf16.mxu0 %v1242
        %5558 = vmatpush1.bf16.xpose.msra.mxu0 %v1241
        %5559 = vmatprep.subr.bf16.mxu0 0
        %5560 = vmatpush1.bf16.xpose.msra.mxu0 0
        %5561 = vmatprep.subr.bf16.mxu0 0
        %5562 = vmatpush1.bf16.xpose.msra.mxu0 0
        %5563 = vmatprep.subr.bf16.mxu0 0
        %5564 = vmatpush1.bf16.xpose.msra.mxu0 0
        %5565 = vmatprep.subr.bf16.mxu0 0
        %5566 = vmatpush1.bf16.xpose.msra.mxu0 0
        %5567 = vmatprep.subr.bf16.mxu0 0
        %5568 = vmatpush1.bf16.xpose.msra.mxu0 0
        %5569 = vmatprep.subr.bf16.mxu0 0
        %5570 = vmatpush1.bf16.xpose.msra.mxu0 0
        %5571 = vmatprep.subr.bf16.mxu0 0
        %5572 = vmatpush1.bf16.xpose.msra.mxu0 0
        %5573 = vmatprep.subr.bf16.mxu0 0
        %5574 = vmatpush1.bf16.xpose.msra.mxu0 0
        %5575 = vmatprep.subr.bf16.mxu0 0
        %5576 = vmatpush1.bf16.xpose.msra.mxu0 0
        %5577 = vmatprep.subr.bf16.mxu0 0
        %5578 = vmatpush1.bf16.xpose.msra.mxu0 0
        %5579 = vmatprep.subr.bf16.mxu0 0
        %5580 = vmatpush1.bf16.xpose.msra.mxu0 0
        %5581 = vmatprep.subr.bf16.mxu0 0
        %5582 = vmatpush1.bf16.xpose.msra.mxu0 0
        %5583 = vmatprep.subr.bf16.mxu0 0
        %5584 = vmatpush1.bf16.xpose.msra.mxu0 0
        %5585 = vmatprep.subr.bf16.mxu0 0
        %5586 = vmatpush1.bf16.xpose.msra.mxu0 0
        %5587 = vmatprep.subr.bf16.mxu0 0
        %5588 = vmatpush1.bf16.xpose.msra.mxu0 0
        %5589 = vmatprep.mubr.bf16.mxu0 1065369472
        %5590 = vmatmul.mubr.bf16.gmra.mrb[0].mxu0 1065369472
        %v5591 = vpop.f32.mrb[0].mxu0
        %v5592 = vadd.f32 0.0, %v5591
        %v5593 = vpop.f32.mrb[0].mxu0
        %v5594 = vpop.f32.mrb[0].mxu0
        %v5595 = vpop.f32.mrb[0].mxu0
        %5596 = vdwg.mxu0
        %5597 = vmatprep.subr.bf16.mxu0 %v1244
        %5598 = vmatpush1.bf16.xpose.msra.mxu0 %v1243
        %5599 = vmatprep.subr.bf16.mxu0 0
        %5600 = vmatpush1.bf16.xpose.msra.mxu0 0
        %5601 = vmatprep.subr.bf16.mxu0 0
        %5602 = vmatpush1.bf16.xpose.msra.mxu0 0
        %5603 = vmatprep.subr.bf16.mxu0 0
        %5604 = vmatpush1.bf16.xpose.msra.mxu0 0
        %5605 = vmatprep.subr.bf16.mxu0 0
        %5606 = vmatpush1.bf16.xpose.msra.mxu0 0
        %5607 = vmatprep.subr.bf16.mxu0 0
        %5608 = vmatpush1.bf16.xpose.msra.mxu0 0
        %5609 = vmatprep.subr.bf16.mxu0 0
        %5610 = vmatpush1.bf16.xpose.msra.mxu0 0
        %5611 = vmatprep.subr.bf16.mxu0 0
        %5612 = vmatpush1.bf16.xpose.msra.mxu0 0
        %5613 = vmatprep.subr.bf16.mxu0 0
        %5614 = vmatpush1.bf16.xpose.msra.mxu0 0
        %5615 = vmatprep.subr.bf16.mxu0 0
        %5616 = vmatpush1.bf16.xpose.msra.mxu0 0
        %5617 = vmatprep.subr.bf16.mxu0 0
        %5618 = vmatpush1.bf16.xpose.msra.mxu0 0
        %5619 = vmatprep.subr.bf16.mxu0 0
        %5620 = vmatpush1.bf16.xpose.msra.mxu0 0
        %5621 = vmatprep.subr.bf16.mxu0 0
        %5622 = vmatpush1.bf16.xpose.msra.mxu0 0
        %5623 = vmatprep.subr.bf16.mxu0 0
        %5624 = vmatpush1.bf16.xpose.msra.mxu0 0
        %5625 = vmatprep.subr.bf16.mxu0 0
        %5626 = vmatpush1.bf16.xpose.msra.mxu0 0
        %5627 = vmatprep.subr.bf16.mxu0 0
        %5628 = vmatpush1.bf16.xpose.msra.mxu0 0
        %5629 = vmatprep.mubr.bf16.mxu0 1065369472
        %5630 = vmatmul.mubr.bf16.gmra.mrb[0].mxu0 1065369472
        %v5631 = vpop.f32.mrb[0].mxu0
        %v5632 = vadd.f32 %v5592, %v5631
        %v5633 = vpop.f32.mrb[0].mxu0
        %v5634 = vpop.f32.mrb[0].mxu0
        %v5635 = vpop.f32.mrb[0].mxu0
        %5636 = vdwg.mxu0
        %5637 = vmatprep.subr.bf16.mxu0 %v1246
        %5638 = vmatpush1.bf16.xpose.msra.mxu0 %v1245
        %5639 = vmatprep.subr.bf16.mxu0 0
        %5640 = vmatpush1.bf16.xpose.msra.mxu0 0
        %5641 = vmatprep.subr.bf16.mxu0 0
        %5642 = vmatpush1.bf16.xpose.msra.mxu0 0
        %5643 = vmatprep.subr.bf16.mxu0 0
        %5644 = vmatpush1.bf16.xpose.msra.mxu0 0
        %5645 = vmatprep.subr.bf16.mxu0 0
        %5646 = vmatpush1.bf16.xpose.msra.mxu0 0
        %5647 = vmatprep.subr.bf16.mxu0 0
        %5648 = vmatpush1.bf16.xpose.msra.mxu0 0
        %5649 = vmatprep.subr.bf16.mxu0 0
        %5650 = vmatpush1.bf16.xpose.msra.mxu0 0
        %5651 = vmatprep.subr.bf16.mxu0 0
        %5652 = vmatpush1.bf16.xpose.msra.mxu0 0
        %5653 = vmatprep.subr.bf16.mxu0 0
        %5654 = vmatpush1.bf16.xpose.msra.mxu0 0
        %5655 = vmatprep.subr.bf16.mxu0 0
        %5656 = vmatpush1.bf16.xpose.msra.mxu0 0
        %5657 = vmatprep.subr.bf16.mxu0 0
        %5658 = vmatpush1.bf16.xpose.msra.mxu0 0
        %5659 = vmatprep.subr.bf16.mxu0 0
        %5660 = vmatpush1.bf16.xpose.msra.mxu0 0
        %5661 = vmatprep.subr.bf16.mxu0 0
        %5662 = vmatpush1.bf16.xpose.msra.mxu0 0
        %5663 = vmatprep.subr.bf16.mxu0 0
        %5664 = vmatpush1.bf16.xpose.msra.mxu0 0
        %5665 = vmatprep.subr.bf16.mxu0 0
        %5666 = vmatpush1.bf16.xpose.msra.mxu0 0
        %5667 = vmatprep.subr.bf16.mxu0 0
        %5668 = vmatpush1.bf16.xpose.msra.mxu0 0
        %5669 = vmatprep.mubr.bf16.mxu0 1065369472
        %5670 = vmatmul.mubr.bf16.gmra.mrb[0].mxu0 1065369472
        %v5671 = vpop.f32.mrb[0].mxu0
        %v5672 = vadd.f32 %v5632, %v5671
        %v5673 = vpop.f32.mrb[0].mxu0
        %v5674 = vpop.f32.mrb[0].mxu0
        %v5675 = vpop.f32.mrb[0].mxu0
        %5676 = vdwg.mxu0
        %5677 = vmatprep.subr.bf16.mxu0 %v1248
        %5678 = vmatpush1.bf16.xpose.msra.mxu0 %v1247
        %5679 = vmatprep.subr.bf16.mxu0 0
        %5680 = vmatpush1.bf16.xpose.msra.mxu0 0
        %5681 = vmatprep.subr.bf16.mxu0 0
        %5682 = vmatpush1.bf16.xpose.msra.mxu0 0
        %5683 = vmatprep.subr.bf16.mxu0 0
        %5684 = vmatpush1.bf16.xpose.msra.mxu0 0
        %5685 = vmatprep.subr.bf16.mxu0 0
        %5686 = vmatpush1.bf16.xpose.msra.mxu0 0
        %5687 = vmatprep.subr.bf16.mxu0 0
        %5688 = vmatpush1.bf16.xpose.msra.mxu0 0
        %5689 = vmatprep.subr.bf16.mxu0 0
        %5690 = vmatpush1.bf16.xpose.msra.mxu0 0
        %5691 = vmatprep.subr.bf16.mxu0 0
        %5692 = vmatpush1.bf16.xpose.msra.mxu0 0
        %5693 = vmatprep.subr.bf16.mxu0 0
        %5694 = vmatpush1.bf16.xpose.msra.mxu0 0
        %5695 = vmatprep.subr.bf16.mxu0 0
        %5696 = vmatpush1.bf16.xpose.msra.mxu0 0
        %5697 = vmatprep.subr.bf16.mxu0 0
        %5698 = vmatpush1.bf16.xpose.msra.mxu0 0
        %5699 = vmatprep.subr.bf16.mxu0 0
        %5700 = vmatpush1.bf16.xpose.msra.mxu0 0
        %5701 = vmatprep.subr.bf16.mxu0 0
        %5702 = vmatpush1.bf16.xpose.msra.mxu0 0
        %5703 = vmatprep.subr.bf16.mxu0 0
        %5704 = vmatpush1.bf16.xpose.msra.mxu0 0
        %5705 = vmatprep.subr.bf16.mxu0 0
        %5706 = vmatpush1.bf16.xpose.msra.mxu0 0
        %5707 = vmatprep.subr.bf16.mxu0 0
        %5708 = vmatpush1.bf16.xpose.msra.mxu0 0
        %5709 = vmatprep.mubr.bf16.mxu0 1065369472
        %5710 = vmatmul.mubr.bf16.gmra.mrb[0].mxu0 1065369472
        %v5711 = vpop.f32.mrb[0].mxu0
        %v5712 = vadd.f32 %v5672, %v5711
        %v5713 = vpop.f32.mrb[0].mxu0
        %v5714 = vpop.f32.mrb[0].mxu0
        %v5715 = vpop.f32.mrb[0].mxu0
        %5716 = vdwg.mxu0
        %5717 = vmatprep.subr.bf16.mxu0 %v1250
        %5718 = vmatpush1.bf16.xpose.msra.mxu0 %v1249
        %5719 = vmatprep.subr.bf16.mxu0 0
        %5720 = vmatpush1.bf16.xpose.msra.mxu0 0
        %5721 = vmatprep.subr.bf16.mxu0 0
        %5722 = vmatpush1.bf16.xpose.msra.mxu0 0
        %5723 = vmatprep.subr.bf16.mxu0 0
        %5724 = vmatpush1.bf16.xpose.msra.mxu0 0
        %5725 = vmatprep.subr.bf16.mxu0 0
        %5726 = vmatpush1.bf16.xpose.msra.mxu0 0
        %5727 = vmatprep.subr.bf16.mxu0 0
        %5728 = vmatpush1.bf16.xpose.msra.mxu0 0
        %5729 = vmatprep.subr.bf16.mxu0 0
        %5730 = vmatpush1.bf16.xpose.msra.mxu0 0
        %5731 = vmatprep.subr.bf16.mxu0 0
        %5732 = vmatpush1.bf16.xpose.msra.mxu0 0
        %5733 = vmatprep.subr.bf16.mxu0 0
        %5734 = vmatpush1.bf16.xpose.msra.mxu0 0
        %5735 = vmatprep.subr.bf16.mxu0 0
        %5736 = vmatpush1.bf16.xpose.msra.mxu0 0
        %5737 = vmatprep.subr.bf16.mxu0 0
        %5738 = vmatpush1.bf16.xpose.msra.mxu0 0
        %5739 = vmatprep.subr.bf16.mxu0 0
        %5740 = vmatpush1.bf16.xpose.msra.mxu0 0
        %5741 = vmatprep.subr.bf16.mxu0 0
        %5742 = vmatpush1.bf16.xpose.msra.mxu0 0
        %5743 = vmatprep.subr.bf16.mxu0 0
        %5744 = vmatpush1.bf16.xpose.msra.mxu0 0
        %5745 = vmatprep.subr.bf16.mxu0 0
        %5746 = vmatpush1.bf16.xpose.msra.mxu0 0
        %5747 = vmatprep.subr.bf16.mxu0 0
        %5748 = vmatpush1.bf16.xpose.msra.mxu0 0
        %5749 = vmatprep.mubr.bf16.mxu0 1065369472
        %5750 = vmatmul.mubr.bf16.gmra.mrb[0].mxu0 1065369472
        %v5751 = vpop.f32.mrb[0].mxu0
        %v5752 = vadd.f32 %v5712, %v5751
        %v5753 = vpop.f32.mrb[0].mxu0
        %v5754 = vpop.f32.mrb[0].mxu0
        %v5755 = vpop.f32.mrb[0].mxu0
        %5756 = vdwg.mxu0
        %5757 = vmatprep.subr.bf16.mxu0 %v1252
        %5758 = vmatpush1.bf16.xpose.msra.mxu0 %v1251
        %5759 = vmatprep.subr.bf16.mxu0 0
        %5760 = vmatpush1.bf16.xpose.msra.mxu0 0
        %5761 = vmatprep.subr.bf16.mxu0 0
        %5762 = vmatpush1.bf16.xpose.msra.mxu0 0
        %5763 = vmatprep.subr.bf16.mxu0 0
        %5764 = vmatpush1.bf16.xpose.msra.mxu0 0
        %5765 = vmatprep.subr.bf16.mxu0 0
        %5766 = vmatpush1.bf16.xpose.msra.mxu0 0
        %5767 = vmatprep.subr.bf16.mxu0 0
        %5768 = vmatpush1.bf16.xpose.msra.mxu0 0
        %5769 = vmatprep.subr.bf16.mxu0 0
        %5770 = vmatpush1.bf16.xpose.msra.mxu0 0
        %5771 = vmatprep.subr.bf16.mxu0 0
        %5772 = vmatpush1.bf16.xpose.msra.mxu0 0
        %5773 = vmatprep.subr.bf16.mxu0 0
        %5774 = vmatpush1.bf16.xpose.msra.mxu0 0
        %5775 = vmatprep.subr.bf16.mxu0 0
        %5776 = vmatpush1.bf16.xpose.msra.mxu0 0
        %5777 = vmatprep.subr.bf16.mxu0 0
        %5778 = vmatpush1.bf16.xpose.msra.mxu0 0
        %5779 = vmatprep.subr.bf16.mxu0 0
        %5780 = vmatpush1.bf16.xpose.msra.mxu0 0
        %5781 = vmatprep.subr.bf16.mxu0 0
        %5782 = vmatpush1.bf16.xpose.msra.mxu0 0
        %5783 = vmatprep.subr.bf16.mxu0 0
        %5784 = vmatpush1.bf16.xpose.msra.mxu0 0
        %5785 = vmatprep.subr.bf16.mxu0 0
        %5786 = vmatpush1.bf16.xpose.msra.mxu0 0
        %5787 = vmatprep.subr.bf16.mxu0 0
        %5788 = vmatpush1.bf16.xpose.msra.mxu0 0
        %5789 = vmatprep.mubr.bf16.mxu0 1065369472
        %5790 = vmatmul.mubr.bf16.gmra.mrb[0].mxu0 1065369472
        %v5791 = vpop.f32.mrb[0].mxu0
        %v5792 = vadd.f32 %v5752, %v5791
        %v5793 = vpop.f32.mrb[0].mxu0
        %v5794 = vpop.f32.mrb[0].mxu0
        %v5795 = vpop.f32.mrb[0].mxu0
        %5796 = vdwg.mxu0
        %5797 = vmatprep.subr.bf16.mxu0 %v1254
        %5798 = vmatpush1.bf16.xpose.msra.mxu0 %v1253
        %5799 = vmatprep.subr.bf16.mxu0 0
        %5800 = vmatpush1.bf16.xpose.msra.mxu0 0
        %5801 = vmatprep.subr.bf16.mxu0 0
        %5802 = vmatpush1.bf16.xpose.msra.mxu0 0
        %5803 = vmatprep.subr.bf16.mxu0 0
        %5804 = vmatpush1.bf16.xpose.msra.mxu0 0
        %5805 = vmatprep.subr.bf16.mxu0 0
        %5806 = vmatpush1.bf16.xpose.msra.mxu0 0
        %5807 = vmatprep.subr.bf16.mxu0 0
        %5808 = vmatpush1.bf16.xpose.msra.mxu0 0
        %5809 = vmatprep.subr.bf16.mxu0 0
        %5810 = vmatpush1.bf16.xpose.msra.mxu0 0
        %5811 = vmatprep.subr.bf16.mxu0 0
        %5812 = vmatpush1.bf16.xpose.msra.mxu0 0
        %5813 = vmatprep.subr.bf16.mxu0 0
        %5814 = vmatpush1.bf16.xpose.msra.mxu0 0
        %5815 = vmatprep.subr.bf16.mxu0 0
        %5816 = vmatpush1.bf16.xpose.msra.mxu0 0
        %5817 = vmatprep.subr.bf16.mxu0 0
        %5818 = vmatpush1.bf16.xpose.msra.mxu0 0
        %5819 = vmatprep.subr.bf16.mxu0 0
        %5820 = vmatpush1.bf16.xpose.msra.mxu0 0
        %5821 = vmatprep.subr.bf16.mxu0 0
        %5822 = vmatpush1.bf16.xpose.msra.mxu0 0
        %5823 = vmatprep.subr.bf16.mxu0 0
        %5824 = vmatpush1.bf16.xpose.msra.mxu0 0
        %5825 = vmatprep.subr.bf16.mxu0 0
        %5826 = vmatpush1.bf16.xpose.msra.mxu0 0
        %5827 = vmatprep.subr.bf16.mxu0 0
        %5828 = vmatpush1.bf16.xpose.msra.mxu0 0
        %5829 = vmatprep.mubr.bf16.mxu0 1065369472
        %5830 = vmatmul.mubr.bf16.gmra.mrb[0].mxu0 1065369472
        %v5831 = vpop.f32.mrb[0].mxu0
        %v5832 = vadd.f32 %v5792, %v5831
        %v5833 = vpop.f32.mrb[0].mxu0
        %v5834 = vpop.f32.mrb[0].mxu0
        %v5835 = vpop.f32.mrb[0].mxu0
        %5836 = vdwg.mxu0
        %5837 = vmatprep.subr.bf16.mxu0 %v1256
        %5838 = vmatpush1.bf16.xpose.msra.mxu0 %v1255
        %5839 = vmatprep.subr.bf16.mxu0 0
        %5840 = vmatpush1.bf16.xpose.msra.mxu0 0
        %5841 = vmatprep.subr.bf16.mxu0 0
        %5842 = vmatpush1.bf16.xpose.msra.mxu0 0
        %5843 = vmatprep.subr.bf16.mxu0 0
        %5844 = vmatpush1.bf16.xpose.msra.mxu0 0
        %5845 = vmatprep.subr.bf16.mxu0 0
        %5846 = vmatpush1.bf16.xpose.msra.mxu0 0
        %5847 = vmatprep.subr.bf16.mxu0 0
        %5848 = vmatpush1.bf16.xpose.msra.mxu0 0
        %5849 = vmatprep.subr.bf16.mxu0 0
        %5850 = vmatpush1.bf16.xpose.msra.mxu0 0
        %5851 = vmatprep.subr.bf16.mxu0 0
        %5852 = vmatpush1.bf16.xpose.msra.mxu0 0
        %5853 = vmatprep.subr.bf16.mxu0 0
        %5854 = vmatpush1.bf16.xpose.msra.mxu0 0
        %5855 = vmatprep.subr.bf16.mxu0 0
        %5856 = vmatpush1.bf16.xpose.msra.mxu0 0
        %5857 = vmatprep.subr.bf16.mxu0 0
        %5858 = vmatpush1.bf16.xpose.msra.mxu0 0
        %5859 = vmatprep.subr.bf16.mxu0 0
        %5860 = vmatpush1.bf16.xpose.msra.mxu0 0
        %5861 = vmatprep.subr.bf16.mxu0 0
        %5862 = vmatpush1.bf16.xpose.msra.mxu0 0
        %5863 = vmatprep.subr.bf16.mxu0 0
        %5864 = vmatpush1.bf16.xpose.msra.mxu0 0
        %5865 = vmatprep.subr.bf16.mxu0 0
        %5866 = vmatpush1.bf16.xpose.msra.mxu0 0
        %5867 = vmatprep.subr.bf16.mxu0 0
        %5868 = vmatpush1.bf16.xpose.msra.mxu0 0
        %5869 = vmatprep.mubr.bf16.mxu0 1065369472
        %5870 = vmatmul.mubr.bf16.gmra.mrb[0].mxu0 1065369472
        %v5871 = vpop.f32.mrb[0].mxu0
        %v5872 = vadd.f32 %v5832, %v5871
        %v5873 = vpop.f32.mrb[0].mxu0
        %v5874 = vpop.f32.mrb[0].mxu0
        %v5875 = vpop.f32.mrb[0].mxu0
        %5876 = vdwg.mxu0
        %5877 = vmatprep.subr.bf16.mxu0 %v1258
        %5878 = vmatpush1.bf16.xpose.msra.mxu0 %v1257
        %5879 = vmatprep.subr.bf16.mxu0 0
        %5880 = vmatpush1.bf16.xpose.msra.mxu0 0
        %5881 = vmatprep.subr.bf16.mxu0 0
        %5882 = vmatpush1.bf16.xpose.msra.mxu0 0
        %5883 = vmatprep.subr.bf16.mxu0 0
        %5884 = vmatpush1.bf16.xpose.msra.mxu0 0
        %5885 = vmatprep.subr.bf16.mxu0 0
        %5886 = vmatpush1.bf16.xpose.msra.mxu0 0
        %5887 = vmatprep.subr.bf16.mxu0 0
        %5888 = vmatpush1.bf16.xpose.msra.mxu0 0
        %5889 = vmatprep.subr.bf16.mxu0 0
        %5890 = vmatpush1.bf16.xpose.msra.mxu0 0
        %5891 = vmatprep.subr.bf16.mxu0 0
        %5892 = vmatpush1.bf16.xpose.msra.mxu0 0
        %5893 = vmatprep.subr.bf16.mxu0 0
        %5894 = vmatpush1.bf16.xpose.msra.mxu0 0
        %5895 = vmatprep.subr.bf16.mxu0 0
        %5896 = vmatpush1.bf16.xpose.msra.mxu0 0
        %5897 = vmatprep.subr.bf16.mxu0 0
        %5898 = vmatpush1.bf16.xpose.msra.mxu0 0
        %5899 = vmatprep.subr.bf16.mxu0 0
        %5900 = vmatpush1.bf16.xpose.msra.mxu0 0
        %5901 = vmatprep.subr.bf16.mxu0 0
        %5902 = vmatpush1.bf16.xpose.msra.mxu0 0
        %5903 = vmatprep.subr.bf16.mxu0 0
        %5904 = vmatpush1.bf16.xpose.msra.mxu0 0
        %5905 = vmatprep.subr.bf16.mxu0 0
        %5906 = vmatpush1.bf16.xpose.msra.mxu0 0
        %5907 = vmatprep.subr.bf16.mxu0 0
        %5908 = vmatpush1.bf16.xpose.msra.mxu0 0
        %5909 = vmatprep.mubr.bf16.mxu0 1065369472
        %5910 = vmatmul.mubr.bf16.gmra.mrb[0].mxu0 1065369472
        %v5911 = vpop.f32.mrb[0].mxu0
        %v5912 = vadd.f32 %v5872, %v5911
        %v5913 = vpop.f32.mrb[0].mxu0
        %v5914 = vpop.f32.mrb[0].mxu0
        %v5915 = vpop.f32.mrb[0].mxu0
        %5916 = vdwg.mxu0
        %5917 = vmatprep.subr.bf16.mxu0 %v1260
        %5918 = vmatpush1.bf16.xpose.msra.mxu0 %v1259
        %5919 = vmatprep.subr.bf16.mxu0 0
        %5920 = vmatpush1.bf16.xpose.msra.mxu0 0
        %5921 = vmatprep.subr.bf16.mxu0 0
        %5922 = vmatpush1.bf16.xpose.msra.mxu0 0
        %5923 = vmatprep.subr.bf16.mxu0 0
        %5924 = vmatpush1.bf16.xpose.msra.mxu0 0
        %5925 = vmatprep.subr.bf16.mxu0 0
        %5926 = vmatpush1.bf16.xpose.msra.mxu0 0
        %5927 = vmatprep.subr.bf16.mxu0 0
        %5928 = vmatpush1.bf16.xpose.msra.mxu0 0
        %5929 = vmatprep.subr.bf16.mxu0 0
        %5930 = vmatpush1.bf16.xpose.msra.mxu0 0
        %5931 = vmatprep.subr.bf16.mxu0 0
        %5932 = vmatpush1.bf16.xpose.msra.mxu0 0
        %5933 = vmatprep.subr.bf16.mxu0 0
        %5934 = vmatpush1.bf16.xpose.msra.mxu0 0
        %5935 = vmatprep.subr.bf16.mxu0 0
        %5936 = vmatpush1.bf16.xpose.msra.mxu0 0
        %5937 = vmatprep.subr.bf16.mxu0 0
        %5938 = vmatpush1.bf16.xpose.msra.mxu0 0
        %5939 = vmatprep.subr.bf16.mxu0 0
        %5940 = vmatpush1.bf16.xpose.msra.mxu0 0
        %5941 = vmatprep.subr.bf16.mxu0 0
        %5942 = vmatpush1.bf16.xpose.msra.mxu0 0
        %5943 = vmatprep.subr.bf16.mxu0 0
        %5944 = vmatpush1.bf16.xpose.msra.mxu0 0
        %5945 = vmatprep.subr.bf16.mxu0 0
        %5946 = vmatpush1.bf16.xpose.msra.mxu0 0
        %5947 = vmatprep.subr.bf16.mxu0 0
        %5948 = vmatpush1.bf16.xpose.msra.mxu0 0
        %5949 = vmatprep.mubr.bf16.mxu0 1065369472
        %5950 = vmatmul.mubr.bf16.gmra.mrb[0].mxu0 1065369472
        %v5951 = vpop.f32.mrb[0].mxu0
        %v5952 = vadd.f32 %v5912, %v5951
        %v5953 = vpop.f32.mrb[0].mxu0
        %v5954 = vpop.f32.mrb[0].mxu0
        %v5955 = vpop.f32.mrb[0].mxu0
        %5956 = vdwg.mxu0
        %5957 = vmatprep.subr.bf16.mxu0 %v1262
        %5958 = vmatpush1.bf16.xpose.msra.mxu0 %v1261
        %5959 = vmatprep.subr.bf16.mxu0 0
        %5960 = vmatpush1.bf16.xpose.msra.mxu0 0
        %5961 = vmatprep.subr.bf16.mxu0 0
        %5962 = vmatpush1.bf16.xpose.msra.mxu0 0
        %5963 = vmatprep.subr.bf16.mxu0 0
        %5964 = vmatpush1.bf16.xpose.msra.mxu0 0
        %5965 = vmatprep.subr.bf16.mxu0 0
        %5966 = vmatpush1.bf16.xpose.msra.mxu0 0
        %5967 = vmatprep.subr.bf16.mxu0 0
        %5968 = vmatpush1.bf16.xpose.msra.mxu0 0
        %5969 = vmatprep.subr.bf16.mxu0 0
        %5970 = vmatpush1.bf16.xpose.msra.mxu0 0
        %5971 = vmatprep.subr.bf16.mxu0 0
        %5972 = vmatpush1.bf16.xpose.msra.mxu0 0
        %5973 = vmatprep.subr.bf16.mxu0 0
        %5974 = vmatpush1.bf16.xpose.msra.mxu0 0
        %5975 = vmatprep.subr.bf16.mxu0 0
        %5976 = vmatpush1.bf16.xpose.msra.mxu0 0
        %5977 = vmatprep.subr.bf16.mxu0 0
        %5978 = vmatpush1.bf16.xpose.msra.mxu0 0
        %5979 = vmatprep.subr.bf16.mxu0 0
        %5980 = vmatpush1.bf16.xpose.msra.mxu0 0
        %5981 = vmatprep.subr.bf16.mxu0 0
        %5982 = vmatpush1.bf16.xpose.msra.mxu0 0
        %5983 = vmatprep.subr.bf16.mxu0 0
        %5984 = vmatpush1.bf16.xpose.msra.mxu0 0
        %5985 = vmatprep.subr.bf16.mxu0 0
        %5986 = vmatpush1.bf16.xpose.msra.mxu0 0
        %5987 = vmatprep.subr.bf16.mxu0 0
        %5988 = vmatpush1.bf16.xpose.msra.mxu0 0
        %5989 = vmatprep.mubr.bf16.mxu0 1065369472
        %5990 = vmatmul.mubr.bf16.gmra.mrb[0].mxu0 1065369472
        %v5991 = vpop.f32.mrb[0].mxu0
        %v5992 = vadd.f32 %v5952, %v5991
        %v5993 = vpop.f32.mrb[0].mxu0
        %v5994 = vpop.f32.mrb[0].mxu0
        %v5995 = vpop.f32.mrb[0].mxu0
        %5996 = vdwg.mxu0
        %5997 = vmatprep.subr.bf16.mxu0 %v1264
        %5998 = vmatpush1.bf16.xpose.msra.mxu0 %v1263
        %5999 = vmatprep.subr.bf16.mxu0 0
        %6000 = vmatpush1.bf16.xpose.msra.mxu0 0
        %6001 = vmatprep.subr.bf16.mxu0 0
        %6002 = vmatpush1.bf16.xpose.msra.mxu0 0
        %6003 = vmatprep.subr.bf16.mxu0 0
        %6004 = vmatpush1.bf16.xpose.msra.mxu0 0
        %6005 = vmatprep.subr.bf16.mxu0 0
        %6006 = vmatpush1.bf16.xpose.msra.mxu0 0
        %6007 = vmatprep.subr.bf16.mxu0 0
        %6008 = vmatpush1.bf16.xpose.msra.mxu0 0
        %6009 = vmatprep.subr.bf16.mxu0 0
        %6010 = vmatpush1.bf16.xpose.msra.mxu0 0
        %6011 = vmatprep.subr.bf16.mxu0 0
        %6012 = vmatpush1.bf16.xpose.msra.mxu0 0
        %6013 = vmatprep.subr.bf16.mxu0 0
        %6014 = vmatpush1.bf16.xpose.msra.mxu0 0
        %6015 = vmatprep.subr.bf16.mxu0 0
        %6016 = vmatpush1.bf16.xpose.msra.mxu0 0
        %6017 = vmatprep.subr.bf16.mxu0 0
        %6018 = vmatpush1.bf16.xpose.msra.mxu0 0
        %6019 = vmatprep.subr.bf16.mxu0 0
        %6020 = vmatpush1.bf16.xpose.msra.mxu0 0
        %6021 = vmatprep.subr.bf16.mxu0 0
        %6022 = vmatpush1.bf16.xpose.msra.mxu0 0
        %6023 = vmatprep.subr.bf16.mxu0 0
        %6024 = vmatpush1.bf16.xpose.msra.mxu0 0
        %6025 = vmatprep.subr.bf16.mxu0 0
        %6026 = vmatpush1.bf16.xpose.msra.mxu0 0
        %6027 = vmatprep.subr.bf16.mxu0 0
        %6028 = vmatpush1.bf16.xpose.msra.mxu0 0
        %6029 = vmatprep.mubr.bf16.mxu0 1065369472
        %6030 = vmatmul.mubr.bf16.gmra.mrb[0].mxu0 1065369472
        %v6031 = vpop.f32.mrb[0].mxu0
        %v6032 = vadd.f32 %v5992, %v6031
        %v6033 = vpop.f32.mrb[0].mxu0
        %v6034 = vpop.f32.mrb[0].mxu0
        %v6035 = vpop.f32.mrb[0].mxu0
        %6036 = vdwg.mxu0
        %6037 = vmatprep.subr.bf16.mxu0 %v1266
        %6038 = vmatpush1.bf16.xpose.msra.mxu0 %v1265
        %6039 = vmatprep.subr.bf16.mxu0 0
        %6040 = vmatpush1.bf16.xpose.msra.mxu0 0
        %6041 = vmatprep.subr.bf16.mxu0 0
        %6042 = vmatpush1.bf16.xpose.msra.mxu0 0
        %6043 = vmatprep.subr.bf16.mxu0 0
        %6044 = vmatpush1.bf16.xpose.msra.mxu0 0
        %6045 = vmatprep.subr.bf16.mxu0 0
        %6046 = vmatpush1.bf16.xpose.msra.mxu0 0
        %6047 = vmatprep.subr.bf16.mxu0 0
        %6048 = vmatpush1.bf16.xpose.msra.mxu0 0
        %6049 = vmatprep.subr.bf16.mxu0 0
        %6050 = vmatpush1.bf16.xpose.msra.mxu0 0
        %6051 = vmatprep.subr.bf16.mxu0 0
        %6052 = vmatpush1.bf16.xpose.msra.mxu0 0
        %6053 = vmatprep.subr.bf16.mxu0 0
        %6054 = vmatpush1.bf16.xpose.msra.mxu0 0
        %6055 = vmatprep.subr.bf16.mxu0 0
        %6056 = vmatpush1.bf16.xpose.msra.mxu0 0
        %6057 = vmatprep.subr.bf16.mxu0 0
        %6058 = vmatpush1.bf16.xpose.msra.mxu0 0
        %6059 = vmatprep.subr.bf16.mxu0 0
        %6060 = vmatpush1.bf16.xpose.msra.mxu0 0
        %6061 = vmatprep.subr.bf16.mxu0 0
        %6062 = vmatpush1.bf16.xpose.msra.mxu0 0
        %6063 = vmatprep.subr.bf16.mxu0 0
        %6064 = vmatpush1.bf16.xpose.msra.mxu0 0
        %6065 = vmatprep.subr.bf16.mxu0 0
        %6066 = vmatpush1.bf16.xpose.msra.mxu0 0
        %6067 = vmatprep.subr.bf16.mxu0 0
        %6068 = vmatpush1.bf16.xpose.msra.mxu0 0
        %6069 = vmatprep.mubr.bf16.mxu0 1065369472
        %6070 = vmatmul.mubr.bf16.gmra.mrb[0].mxu0 1065369472
        %v6071 = vpop.f32.mrb[0].mxu0
        %v6072 = vadd.f32 %v6032, %v6071
        %v6073 = vpop.f32.mrb[0].mxu0
        %v6074 = vpop.f32.mrb[0].mxu0
        %v6075 = vpop.f32.mrb[0].mxu0
        %6076 = vdwg.mxu0
        %6077 = vmatprep.subr.bf16.mxu0 %v1268
        %6078 = vmatpush1.bf16.xpose.msra.mxu0 %v1267
        %6079 = vmatprep.subr.bf16.mxu0 0
        %6080 = vmatpush1.bf16.xpose.msra.mxu0 0
        %6081 = vmatprep.subr.bf16.mxu0 0
        %6082 = vmatpush1.bf16.xpose.msra.mxu0 0
        %6083 = vmatprep.subr.bf16.mxu0 0
        %6084 = vmatpush1.bf16.xpose.msra.mxu0 0
        %6085 = vmatprep.subr.bf16.mxu0 0
        %6086 = vmatpush1.bf16.xpose.msra.mxu0 0
        %6087 = vmatprep.subr.bf16.mxu0 0
        %6088 = vmatpush1.bf16.xpose.msra.mxu0 0
        %6089 = vmatprep.subr.bf16.mxu0 0
        %6090 = vmatpush1.bf16.xpose.msra.mxu0 0
        %6091 = vmatprep.subr.bf16.mxu0 0
        %6092 = vmatpush1.bf16.xpose.msra.mxu0 0
        %6093 = vmatprep.subr.bf16.mxu0 0
        %6094 = vmatpush1.bf16.xpose.msra.mxu0 0
        %6095 = vmatprep.subr.bf16.mxu0 0
        %6096 = vmatpush1.bf16.xpose.msra.mxu0 0
        %6097 = vmatprep.subr.bf16.mxu0 0
        %6098 = vmatpush1.bf16.xpose.msra.mxu0 0
        %6099 = vmatprep.subr.bf16.mxu0 0
        %6100 = vmatpush1.bf16.xpose.msra.mxu0 0
        %6101 = vmatprep.subr.bf16.mxu0 0
        %6102 = vmatpush1.bf16.xpose.msra.mxu0 0
        %6103 = vmatprep.subr.bf16.mxu0 0
        %6104 = vmatpush1.bf16.xpose.msra.mxu0 0
        %6105 = vmatprep.subr.bf16.mxu0 0
        %6106 = vmatpush1.bf16.xpose.msra.mxu0 0
        %6107 = vmatprep.subr.bf16.mxu0 0
        %6108 = vmatpush1.bf16.xpose.msra.mxu0 0
        %6109 = vmatprep.mubr.bf16.mxu0 1065369472
        %6110 = vmatmul.mubr.bf16.gmra.mrb[0].mxu0 1065369472
        %v6111 = vpop.f32.mrb[0].mxu0
        %v6112 = vadd.f32 %v6072, %v6111
        %v6113 = vpop.f32.mrb[0].mxu0
        %v6114 = vpop.f32.mrb[0].mxu0
        %v6115 = vpop.f32.mrb[0].mxu0
        %6116 = vdwg.mxu0
        %6117 = vmatprep.subr.bf16.mxu0 %v1270
        %6118 = vmatpush1.bf16.xpose.msra.mxu0 %v1269
        %6119 = vmatprep.subr.bf16.mxu0 0
        %6120 = vmatpush1.bf16.xpose.msra.mxu0 0
        %6121 = vmatprep.subr.bf16.mxu0 0
        %6122 = vmatpush1.bf16.xpose.msra.mxu0 0
        %6123 = vmatprep.subr.bf16.mxu0 0
        %6124 = vmatpush1.bf16.xpose.msra.mxu0 0
        %6125 = vmatprep.subr.bf16.mxu0 0
        %6126 = vmatpush1.bf16.xpose.msra.mxu0 0
        %6127 = vmatprep.subr.bf16.mxu0 0
        %6128 = vmatpush1.bf16.xpose.msra.mxu0 0
        %6129 = vmatprep.subr.bf16.mxu0 0
        %6130 = vmatpush1.bf16.xpose.msra.mxu0 0
        %6131 = vmatprep.subr.bf16.mxu0 0
        %6132 = vmatpush1.bf16.xpose.msra.mxu0 0
        %6133 = vmatprep.subr.bf16.mxu0 0
        %6134 = vmatpush1.bf16.xpose.msra.mxu0 0
        %6135 = vmatprep.subr.bf16.mxu0 0
        %6136 = vmatpush1.bf16.xpose.msra.mxu0 0
        %6137 = vmatprep.subr.bf16.mxu0 0
        %6138 = vmatpush1.bf16.xpose.msra.mxu0 0
        %6139 = vmatprep.subr.bf16.mxu0 0
        %6140 = vmatpush1.bf16.xpose.msra.mxu0 0
        %6141 = vmatprep.subr.bf16.mxu0 0
        %6142 = vmatpush1.bf16.xpose.msra.mxu0 0
        %6143 = vmatprep.subr.bf16.mxu0 0
        %6144 = vmatpush1.bf16.xpose.msra.mxu0 0
        %6145 = vmatprep.subr.bf16.mxu0 0
        %6146 = vmatpush1.bf16.xpose.msra.mxu0 0
        %6147 = vmatprep.subr.bf16.mxu0 0
        %6148 = vmatpush1.bf16.xpose.msra.mxu0 0
        %6149 = vmatprep.mubr.bf16.mxu0 1065369472
        %6150 = vmatmul.mubr.bf16.gmra.mrb[0].mxu0 1065369472
        %v6151 = vpop.f32.mrb[0].mxu0
        %v6152 = vadd.f32 %v6112, %v6151
        %v6153 = vpop.f32.mrb[0].mxu0
        %v6154 = vpop.f32.mrb[0].mxu0
        %v6155 = vpop.f32.mrb[0].mxu0
        %6156 = vdwg.mxu0
        %6157 = vmatprep.subr.bf16.mxu0 %v1272
        %6158 = vmatpush1.bf16.xpose.msra.mxu0 %v1271
        %6159 = vmatprep.subr.bf16.mxu0 0
        %6160 = vmatpush1.bf16.xpose.msra.mxu0 0
        %6161 = vmatprep.subr.bf16.mxu0 0
        %6162 = vmatpush1.bf16.xpose.msra.mxu0 0
        %6163 = vmatprep.subr.bf16.mxu0 0
        %6164 = vmatpush1.bf16.xpose.msra.mxu0 0
        %6165 = vmatprep.subr.bf16.mxu0 0
        %6166 = vmatpush1.bf16.xpose.msra.mxu0 0
        %6167 = vmatprep.subr.bf16.mxu0 0
        %6168 = vmatpush1.bf16.xpose.msra.mxu0 0
        %6169 = vmatprep.subr.bf16.mxu0 0
        %6170 = vmatpush1.bf16.xpose.msra.mxu0 0
        %6171 = vmatprep.subr.bf16.mxu0 0
        %6172 = vmatpush1.bf16.xpose.msra.mxu0 0
        %6173 = vmatprep.subr.bf16.mxu0 0
        %6174 = vmatpush1.bf16.xpose.msra.mxu0 0
        %6175 = vmatprep.subr.bf16.mxu0 0
        %6176 = vmatpush1.bf16.xpose.msra.mxu0 0
        %6177 = vmatprep.subr.bf16.mxu0 0
        %6178 = vmatpush1.bf16.xpose.msra.mxu0 0
        %6179 = vmatprep.subr.bf16.mxu0 0
        %6180 = vmatpush1.bf16.xpose.msra.mxu0 0
        %6181 = vmatprep.subr.bf16.mxu0 0
        %6182 = vmatpush1.bf16.xpose.msra.mxu0 0
        %6183 = vmatprep.subr.bf16.mxu0 0
        %6184 = vmatpush1.bf16.xpose.msra.mxu0 0
        %6185 = vmatprep.subr.bf16.mxu0 0
        %6186 = vmatpush1.bf16.xpose.msra.mxu0 0
        %6187 = vmatprep.subr.bf16.mxu0 0
        %6188 = vmatpush1.bf16.xpose.msra.mxu0 0
        %6189 = vmatprep.mubr.bf16.mxu0 1065369472
        %6190 = vmatmul.mubr.bf16.gmra.mrb[0].mxu0 1065369472
        %v6191 = vpop.f32.mrb[0].mxu0
        %v6192 = vadd.f32 %v6152, %v6191
        %v6193 = vpop.f32.mrb[0].mxu0
        %v6194 = vpop.f32.mrb[0].mxu0
        %v6195 = vpop.f32.mrb[0].mxu0
        %6196 = vdwg.mxu0
        %6197 = vmatprep.subr.bf16.mxu0 %v1274
        %6198 = vmatpush1.bf16.xpose.msra.mxu0 %v1273
        %6199 = vmatprep.subr.bf16.mxu0 0
        %6200 = vmatpush1.bf16.xpose.msra.mxu0 0
        %6201 = vmatprep.subr.bf16.mxu0 0
        %6202 = vmatpush1.bf16.xpose.msra.mxu0 0
        %6203 = vmatprep.subr.bf16.mxu0 0
        %6204 = vmatpush1.bf16.xpose.msra.mxu0 0
        %6205 = vmatprep.subr.bf16.mxu0 0
        %6206 = vmatpush1.bf16.xpose.msra.mxu0 0
        %6207 = vmatprep.subr.bf16.mxu0 0
        %6208 = vmatpush1.bf16.xpose.msra.mxu0 0
        %6209 = vmatprep.subr.bf16.mxu0 0
        %6210 = vmatpush1.bf16.xpose.msra.mxu0 0
        %6211 = vmatprep.subr.bf16.mxu0 0
        %6212 = vmatpush1.bf16.xpose.msra.mxu0 0
        %6213 = vmatprep.subr.bf16.mxu0 0
        %6214 = vmatpush1.bf16.xpose.msra.mxu0 0
        %6215 = vmatprep.subr.bf16.mxu0 0
        %6216 = vmatpush1.bf16.xpose.msra.mxu0 0
        %6217 = vmatprep.subr.bf16.mxu0 0
        %6218 = vmatpush1.bf16.xpose.msra.mxu0 0
        %6219 = vmatprep.subr.bf16.mxu0 0
        %6220 = vmatpush1.bf16.xpose.msra.mxu0 0
        %6221 = vmatprep.subr.bf16.mxu0 0
        %6222 = vmatpush1.bf16.xpose.msra.mxu0 0
        %6223 = vmatprep.subr.bf16.mxu0 0
        %6224 = vmatpush1.bf16.xpose.msra.mxu0 0
        %6225 = vmatprep.subr.bf16.mxu0 0
        %6226 = vmatpush1.bf16.xpose.msra.mxu0 0
        %6227 = vmatprep.subr.bf16.mxu0 0
        %6228 = vmatpush1.bf16.xpose.msra.mxu0 0
        %6229 = vmatprep.mubr.bf16.mxu0 1065369472
        %6230 = vmatmul.mubr.bf16.gmra.mrb[0].mxu0 1065369472
        %v6231 = vpop.f32.mrb[0].mxu0
        %v6232 = vadd.f32 %v6192, %v6231
        %v6233 = vpop.f32.mrb[0].mxu0
        %v6234 = vpop.f32.mrb[0].mxu0
        %v6235 = vpop.f32.mrb[0].mxu0
        %6236 = vdwg.mxu0
        %6237 = vmatprep.subr.bf16.mxu0 %v1276
        %6238 = vmatpush1.bf16.xpose.msra.mxu0 %v1275
        %6239 = vmatprep.subr.bf16.mxu0 0
        %6240 = vmatpush1.bf16.xpose.msra.mxu0 0
        %6241 = vmatprep.subr.bf16.mxu0 0
        %6242 = vmatpush1.bf16.xpose.msra.mxu0 0
        %6243 = vmatprep.subr.bf16.mxu0 0
        %6244 = vmatpush1.bf16.xpose.msra.mxu0 0
        %6245 = vmatprep.subr.bf16.mxu0 0
        %6246 = vmatpush1.bf16.xpose.msra.mxu0 0
        %6247 = vmatprep.subr.bf16.mxu0 0
        %6248 = vmatpush1.bf16.xpose.msra.mxu0 0
        %6249 = vmatprep.subr.bf16.mxu0 0
        %6250 = vmatpush1.bf16.xpose.msra.mxu0 0
        %6251 = vmatprep.subr.bf16.mxu0 0
        %6252 = vmatpush1.bf16.xpose.msra.mxu0 0
        %6253 = vmatprep.subr.bf16.mxu0 0
        %6254 = vmatpush1.bf16.xpose.msra.mxu0 0
        %6255 = vmatprep.subr.bf16.mxu0 0
        %6256 = vmatpush1.bf16.xpose.msra.mxu0 0
        %6257 = vmatprep.subr.bf16.mxu0 0
        %6258 = vmatpush1.bf16.xpose.msra.mxu0 0
        %6259 = vmatprep.subr.bf16.mxu0 0
        %6260 = vmatpush1.bf16.xpose.msra.mxu0 0
        %6261 = vmatprep.subr.bf16.mxu0 0
        %6262 = vmatpush1.bf16.xpose.msra.mxu0 0
        %6263 = vmatprep.subr.bf16.mxu0 0
        %6264 = vmatpush1.bf16.xpose.msra.mxu0 0
        %6265 = vmatprep.subr.bf16.mxu0 0
        %6266 = vmatpush1.bf16.xpose.msra.mxu0 0
        %6267 = vmatprep.subr.bf16.mxu0 0
        %6268 = vmatpush1.bf16.xpose.msra.mxu0 0
        %6269 = vmatprep.mubr.bf16.mxu0 1065369472
        %6270 = vmatmul.mubr.bf16.gmra.mrb[0].mxu0 1065369472
        %v6271 = vpop.f32.mrb[0].mxu0
        %v6272 = vadd.f32 %v6232, %v6271
        %v6273 = vpop.f32.mrb[0].mxu0
        %v6274 = vpop.f32.mrb[0].mxu0
        %v6275 = vpop.f32.mrb[0].mxu0
        %6276 = vdwg.mxu0
        %6277 = vmatprep.subr.bf16.mxu0 %v1278
        %6278 = vmatpush1.bf16.xpose.msra.mxu0 %v1277
        %6279 = vmatprep.subr.bf16.mxu0 0
        %6280 = vmatpush1.bf16.xpose.msra.mxu0 0
        %6281 = vmatprep.subr.bf16.mxu0 0
        %6282 = vmatpush1.bf16.xpose.msra.mxu0 0
        %6283 = vmatprep.subr.bf16.mxu0 0
        %6284 = vmatpush1.bf16.xpose.msra.mxu0 0
        %6285 = vmatprep.subr.bf16.mxu0 0
        %6286 = vmatpush1.bf16.xpose.msra.mxu0 0
        %6287 = vmatprep.subr.bf16.mxu0 0
        %6288 = vmatpush1.bf16.xpose.msra.mxu0 0
        %6289 = vmatprep.subr.bf16.mxu0 0
        %6290 = vmatpush1.bf16.xpose.msra.mxu0 0
        %6291 = vmatprep.subr.bf16.mxu0 0
        %6292 = vmatpush1.bf16.xpose.msra.mxu0 0
        %6293 = vmatprep.subr.bf16.mxu0 0
        %6294 = vmatpush1.bf16.xpose.msra.mxu0 0
        %6295 = vmatprep.subr.bf16.mxu0 0
        %6296 = vmatpush1.bf16.xpose.msra.mxu0 0
        %6297 = vmatprep.subr.bf16.mxu0 0
        %6298 = vmatpush1.bf16.xpose.msra.mxu0 0
        %6299 = vmatprep.subr.bf16.mxu0 0
        %6300 = vmatpush1.bf16.xpose.msra.mxu0 0
        %6301 = vmatprep.subr.bf16.mxu0 0
        %6302 = vmatpush1.bf16.xpose.msra.mxu0 0
        %6303 = vmatprep.subr.bf16.mxu0 0
        %6304 = vmatpush1.bf16.xpose.msra.mxu0 0
        %6305 = vmatprep.subr.bf16.mxu0 0
        %6306 = vmatpush1.bf16.xpose.msra.mxu0 0
        %6307 = vmatprep.subr.bf16.mxu0 0
        %6308 = vmatpush1.bf16.xpose.msra.mxu0 0
        %6309 = vmatprep.mubr.bf16.mxu0 1065369472
        %6310 = vmatmul.mubr.bf16.gmra.mrb[0].mxu0 1065369472
        %v6311 = vpop.f32.mrb[0].mxu0
        %v6312 = vadd.f32 %v6272, %v6311
        %v6313 = vpop.f32.mrb[0].mxu0
        %v6314 = vpop.f32.mrb[0].mxu0
        %v6315 = vpop.f32.mrb[0].mxu0
        %6316 = vdwg.mxu0
        %6317 = vmatprep.subr.bf16.mxu0 %v1280
        %6318 = vmatpush1.bf16.xpose.msra.mxu0 %v1279
        %6319 = vmatprep.subr.bf16.mxu0 0
        %6320 = vmatpush1.bf16.xpose.msra.mxu0 0
        %6321 = vmatprep.subr.bf16.mxu0 0
        %6322 = vmatpush1.bf16.xpose.msra.mxu0 0
        %6323 = vmatprep.subr.bf16.mxu0 0
        %6324 = vmatpush1.bf16.xpose.msra.mxu0 0
        %6325 = vmatprep.subr.bf16.mxu0 0
        %6326 = vmatpush1.bf16.xpose.msra.mxu0 0
        %6327 = vmatprep.subr.bf16.mxu0 0
        %6328 = vmatpush1.bf16.xpose.msra.mxu0 0
        %6329 = vmatprep.subr.bf16.mxu0 0
        %6330 = vmatpush1.bf16.xpose.msra.mxu0 0
        %6331 = vmatprep.subr.bf16.mxu0 0
        %6332 = vmatpush1.bf16.xpose.msra.mxu0 0
        %6333 = vmatprep.subr.bf16.mxu0 0
        %6334 = vmatpush1.bf16.xpose.msra.mxu0 0
        %6335 = vmatprep.subr.bf16.mxu0 0
        %6336 = vmatpush1.bf16.xpose.msra.mxu0 0
        %6337 = vmatprep.subr.bf16.mxu0 0
        %6338 = vmatpush1.bf16.xpose.msra.mxu0 0
        %6339 = vmatprep.subr.bf16.mxu0 0
        %6340 = vmatpush1.bf16.xpose.msra.mxu0 0
        %6341 = vmatprep.subr.bf16.mxu0 0
        %6342 = vmatpush1.bf16.xpose.msra.mxu0 0
        %6343 = vmatprep.subr.bf16.mxu0 0
        %6344 = vmatpush1.bf16.xpose.msra.mxu0 0
        %6345 = vmatprep.subr.bf16.mxu0 0
        %6346 = vmatpush1.bf16.xpose.msra.mxu0 0
        %6347 = vmatprep.subr.bf16.mxu0 0
        %6348 = vmatpush1.bf16.xpose.msra.mxu0 0
        %6349 = vmatprep.mubr.bf16.mxu0 1065369472
        %6350 = vmatmul.mubr.bf16.gmra.mrb[0].mxu0 1065369472
        %v6351 = vpop.f32.mrb[0].mxu0
        %v6352 = vadd.f32 %v6312, %v6351
        %v6353 = vpop.f32.mrb[0].mxu0
        %v6354 = vpop.f32.mrb[0].mxu0
        %v6355 = vpop.f32.mrb[0].mxu0
        %6356 = vdwg.mxu0
        %6357 = vmatprep.subr.bf16.mxu0 %v1282
        %6358 = vmatpush1.bf16.xpose.msra.mxu0 %v1281
        %6359 = vmatprep.subr.bf16.mxu0 0
        %6360 = vmatpush1.bf16.xpose.msra.mxu0 0
        %6361 = vmatprep.subr.bf16.mxu0 0
        %6362 = vmatpush1.bf16.xpose.msra.mxu0 0
        %6363 = vmatprep.subr.bf16.mxu0 0
        %6364 = vmatpush1.bf16.xpose.msra.mxu0 0
        %6365 = vmatprep.subr.bf16.mxu0 0
        %6366 = vmatpush1.bf16.xpose.msra.mxu0 0
        %6367 = vmatprep.subr.bf16.mxu0 0
        %6368 = vmatpush1.bf16.xpose.msra.mxu0 0
        %6369 = vmatprep.subr.bf16.mxu0 0
        %6370 = vmatpush1.bf16.xpose.msra.mxu0 0
        %6371 = vmatprep.subr.bf16.mxu0 0
        %6372 = vmatpush1.bf16.xpose.msra.mxu0 0
        %6373 = vmatprep.subr.bf16.mxu0 0
        %6374 = vmatpush1.bf16.xpose.msra.mxu0 0
        %6375 = vmatprep.subr.bf16.mxu0 0
        %6376 = vmatpush1.bf16.xpose.msra.mxu0 0
        %6377 = vmatprep.subr.bf16.mxu0 0
        %6378 = vmatpush1.bf16.xpose.msra.mxu0 0
        %6379 = vmatprep.subr.bf16.mxu0 0
        %6380 = vmatpush1.bf16.xpose.msra.mxu0 0
        %6381 = vmatprep.subr.bf16.mxu0 0
        %6382 = vmatpush1.bf16.xpose.msra.mxu0 0
        %6383 = vmatprep.subr.bf16.mxu0 0
        %6384 = vmatpush1.bf16.xpose.msra.mxu0 0
        %6385 = vmatprep.subr.bf16.mxu0 0
        %6386 = vmatpush1.bf16.xpose.msra.mxu0 0
        %6387 = vmatprep.subr.bf16.mxu0 0
        %6388 = vmatpush1.bf16.xpose.msra.mxu0 0
        %6389 = vmatprep.mubr.bf16.mxu0 1065369472
        %6390 = vmatmul.mubr.bf16.gmra.mrb[0].mxu0 1065369472
        %v6391 = vpop.f32.mrb[0].mxu0
        %v6392 = vadd.f32 %v6352, %v6391
        %v6393 = vpop.f32.mrb[0].mxu0
        %v6394 = vpop.f32.mrb[0].mxu0
        %v6395 = vpop.f32.mrb[0].mxu0
        %6396 = vdwg.mxu0
        %6397 = vmatprep.subr.bf16.mxu0 %v1284
        %6398 = vmatpush1.bf16.xpose.msra.mxu0 %v1283
        %6399 = vmatprep.subr.bf16.mxu0 0
        %6400 = vmatpush1.bf16.xpose.msra.mxu0 0
        %6401 = vmatprep.subr.bf16.mxu0 0
        %6402 = vmatpush1.bf16.xpose.msra.mxu0 0
        %6403 = vmatprep.subr.bf16.mxu0 0
        %6404 = vmatpush1.bf16.xpose.msra.mxu0 0
        %6405 = vmatprep.subr.bf16.mxu0 0
        %6406 = vmatpush1.bf16.xpose.msra.mxu0 0
        %6407 = vmatprep.subr.bf16.mxu0 0
        %6408 = vmatpush1.bf16.xpose.msra.mxu0 0
        %6409 = vmatprep.subr.bf16.mxu0 0
        %6410 = vmatpush1.bf16.xpose.msra.mxu0 0
        %6411 = vmatprep.subr.bf16.mxu0 0
        %6412 = vmatpush1.bf16.xpose.msra.mxu0 0
        %6413 = vmatprep.subr.bf16.mxu0 0
        %6414 = vmatpush1.bf16.xpose.msra.mxu0 0
        %6415 = vmatprep.subr.bf16.mxu0 0
        %6416 = vmatpush1.bf16.xpose.msra.mxu0 0
        %6417 = vmatprep.subr.bf16.mxu0 0
        %6418 = vmatpush1.bf16.xpose.msra.mxu0 0
        %6419 = vmatprep.subr.bf16.mxu0 0
        %6420 = vmatpush1.bf16.xpose.msra.mxu0 0
        %6421 = vmatprep.subr.bf16.mxu0 0
        %6422 = vmatpush1.bf16.xpose.msra.mxu0 0
        %6423 = vmatprep.subr.bf16.mxu0 0
        %6424 = vmatpush1.bf16.xpose.msra.mxu0 0
        %6425 = vmatprep.subr.bf16.mxu0 0
        %6426 = vmatpush1.bf16.xpose.msra.mxu0 0
        %6427 = vmatprep.subr.bf16.mxu0 0
        %6428 = vmatpush1.bf16.xpose.msra.mxu0 0
        %6429 = vmatprep.mubr.bf16.mxu0 1065369472
        %6430 = vmatmul.mubr.bf16.gmra.mrb[0].mxu0 1065369472
        %v6431 = vpop.f32.mrb[0].mxu0
        %v6432 = vadd.f32 %v6392, %v6431
        %v6433 = vpop.f32.mrb[0].mxu0
        %v6434 = vpop.f32.mrb[0].mxu0
        %v6435 = vpop.f32.mrb[0].mxu0
        %6436 = vdwg.mxu0
        %6437 = vmatprep.subr.bf16.mxu0 %v1286
        %6438 = vmatpush1.bf16.xpose.msra.mxu0 %v1285
        %6439 = vmatprep.subr.bf16.mxu0 0
        %6440 = vmatpush1.bf16.xpose.msra.mxu0 0
        %6441 = vmatprep.subr.bf16.mxu0 0
        %6442 = vmatpush1.bf16.xpose.msra.mxu0 0
        %6443 = vmatprep.subr.bf16.mxu0 0
        %6444 = vmatpush1.bf16.xpose.msra.mxu0 0
        %6445 = vmatprep.subr.bf16.mxu0 0
        %6446 = vmatpush1.bf16.xpose.msra.mxu0 0
        %6447 = vmatprep.subr.bf16.mxu0 0
        %6448 = vmatpush1.bf16.xpose.msra.mxu0 0
        %6449 = vmatprep.subr.bf16.mxu0 0
        %6450 = vmatpush1.bf16.xpose.msra.mxu0 0
        %6451 = vmatprep.subr.bf16.mxu0 0
        %6452 = vmatpush1.bf16.xpose.msra.mxu0 0
        %6453 = vmatprep.subr.bf16.mxu0 0
        %6454 = vmatpush1.bf16.xpose.msra.mxu0 0
        %6455 = vmatprep.subr.bf16.mxu0 0
        %6456 = vmatpush1.bf16.xpose.msra.mxu0 0
        %6457 = vmatprep.subr.bf16.mxu0 0
        %6458 = vmatpush1.bf16.xpose.msra.mxu0 0
        %6459 = vmatprep.subr.bf16.mxu0 0
        %6460 = vmatpush1.bf16.xpose.msra.mxu0 0
        %6461 = vmatprep.subr.bf16.mxu0 0
        %6462 = vmatpush1.bf16.xpose.msra.mxu0 0
        %6463 = vmatprep.subr.bf16.mxu0 0
        %6464 = vmatpush1.bf16.xpose.msra.mxu0 0
        %6465 = vmatprep.subr.bf16.mxu0 0
        %6466 = vmatpush1.bf16.xpose.msra.mxu0 0
        %6467 = vmatprep.subr.bf16.mxu0 0
        %6468 = vmatpush1.bf16.xpose.msra.mxu0 0
        %6469 = vmatprep.mubr.bf16.mxu0 1065369472
        %6470 = vmatmul.mubr.bf16.gmra.mrb[0].mxu0 1065369472
        %v6471 = vpop.f32.mrb[0].mxu0
        %v6472 = vadd.f32 %v6432, %v6471
        %v6473 = vpop.f32.mrb[0].mxu0
        %v6474 = vpop.f32.mrb[0].mxu0
        %v6475 = vpop.f32.mrb[0].mxu0
        %6476 = vdwg.mxu0
        %6477 = vmatprep.subr.bf16.mxu0 %v1288
        %6478 = vmatpush1.bf16.xpose.msra.mxu0 %v1287
        %6479 = vmatprep.subr.bf16.mxu0 0
        %6480 = vmatpush1.bf16.xpose.msra.mxu0 0
        %6481 = vmatprep.subr.bf16.mxu0 0
        %6482 = vmatpush1.bf16.xpose.msra.mxu0 0
        %6483 = vmatprep.subr.bf16.mxu0 0
        %6484 = vmatpush1.bf16.xpose.msra.mxu0 0
        %6485 = vmatprep.subr.bf16.mxu0 0
        %6486 = vmatpush1.bf16.xpose.msra.mxu0 0
        %6487 = vmatprep.subr.bf16.mxu0 0
        %6488 = vmatpush1.bf16.xpose.msra.mxu0 0
        %6489 = vmatprep.subr.bf16.mxu0 0
        %6490 = vmatpush1.bf16.xpose.msra.mxu0 0
        %6491 = vmatprep.subr.bf16.mxu0 0
        %6492 = vmatpush1.bf16.xpose.msra.mxu0 0
        %6493 = vmatprep.subr.bf16.mxu0 0
        %6494 = vmatpush1.bf16.xpose.msra.mxu0 0
        %6495 = vmatprep.subr.bf16.mxu0 0
        %6496 = vmatpush1.bf16.xpose.msra.mxu0 0
        %6497 = vmatprep.subr.bf16.mxu0 0
        %6498 = vmatpush1.bf16.xpose.msra.mxu0 0
        %6499 = vmatprep.subr.bf16.mxu0 0
        %6500 = vmatpush1.bf16.xpose.msra.mxu0 0
        %6501 = vmatprep.subr.bf16.mxu0 0
        %6502 = vmatpush1.bf16.xpose.msra.mxu0 0
        %6503 = vmatprep.subr.bf16.mxu0 0
        %6504 = vmatpush1.bf16.xpose.msra.mxu0 0
        %6505 = vmatprep.subr.bf16.mxu0 0
        %6506 = vmatpush1.bf16.xpose.msra.mxu0 0
        %6507 = vmatprep.subr.bf16.mxu0 0
        %6508 = vmatpush1.bf16.xpose.msra.mxu0 0
        %6509 = vmatprep.mubr.bf16.mxu0 1065369472
        %6510 = vmatmul.mubr.bf16.gmra.mrb[0].mxu0 1065369472
        %v6511 = vpop.f32.mrb[0].mxu0
        %v6512 = vadd.f32 %v6472, %v6511
        %v6513 = vpop.f32.mrb[0].mxu0
        %v6514 = vpop.f32.mrb[0].mxu0
        %v6515 = vpop.f32.mrb[0].mxu0
        %6516 = vdwg.mxu0
        %6517 = vmatprep.subr.bf16.mxu0 %v1290
        %6518 = vmatpush1.bf16.xpose.msra.mxu0 %v1289
        %6519 = vmatprep.subr.bf16.mxu0 0
        %6520 = vmatpush1.bf16.xpose.msra.mxu0 0
        %6521 = vmatprep.subr.bf16.mxu0 0
        %6522 = vmatpush1.bf16.xpose.msra.mxu0 0
        %6523 = vmatprep.subr.bf16.mxu0 0
        %6524 = vmatpush1.bf16.xpose.msra.mxu0 0
        %6525 = vmatprep.subr.bf16.mxu0 0
        %6526 = vmatpush1.bf16.xpose.msra.mxu0 0
        %6527 = vmatprep.subr.bf16.mxu0 0
        %6528 = vmatpush1.bf16.xpose.msra.mxu0 0
        %6529 = vmatprep.subr.bf16.mxu0 0
        %6530 = vmatpush1.bf16.xpose.msra.mxu0 0
        %6531 = vmatprep.subr.bf16.mxu0 0
        %6532 = vmatpush1.bf16.xpose.msra.mxu0 0
        %6533 = vmatprep.subr.bf16.mxu0 0
        %6534 = vmatpush1.bf16.xpose.msra.mxu0 0
        %6535 = vmatprep.subr.bf16.mxu0 0
        %6536 = vmatpush1.bf16.xpose.msra.mxu0 0
        %6537 = vmatprep.subr.bf16.mxu0 0
        %6538 = vmatpush1.bf16.xpose.msra.mxu0 0
        %6539 = vmatprep.subr.bf16.mxu0 0
        %6540 = vmatpush1.bf16.xpose.msra.mxu0 0
        %6541 = vmatprep.subr.bf16.mxu0 0
        %6542 = vmatpush1.bf16.xpose.msra.mxu0 0
        %6543 = vmatprep.subr.bf16.mxu0 0
        %6544 = vmatpush1.bf16.xpose.msra.mxu0 0
        %6545 = vmatprep.subr.bf16.mxu0 0
        %6546 = vmatpush1.bf16.xpose.msra.mxu0 0
        %6547 = vmatprep.subr.bf16.mxu0 0
        %6548 = vmatpush1.bf16.xpose.msra.mxu0 0
        %6549 = vmatprep.mubr.bf16.mxu0 1065369472
        %6550 = vmatmul.mubr.bf16.gmra.mrb[0].mxu0 1065369472
        %v6551 = vpop.f32.mrb[0].mxu0
        %v6552 = vadd.f32 %v6512, %v6551
        %v6553 = vpop.f32.mrb[0].mxu0
        %v6554 = vpop.f32.mrb[0].mxu0
        %v6555 = vpop.f32.mrb[0].mxu0
        %6556 = vdwg.mxu0
        %6557 = vmatprep.subr.bf16.mxu0 %v1292
        %6558 = vmatpush1.bf16.xpose.msra.mxu0 %v1291
        %6559 = vmatprep.subr.bf16.mxu0 0
        %6560 = vmatpush1.bf16.xpose.msra.mxu0 0
        %6561 = vmatprep.subr.bf16.mxu0 0
        %6562 = vmatpush1.bf16.xpose.msra.mxu0 0
        %6563 = vmatprep.subr.bf16.mxu0 0
        %6564 = vmatpush1.bf16.xpose.msra.mxu0 0
        %6565 = vmatprep.subr.bf16.mxu0 0
        %6566 = vmatpush1.bf16.xpose.msra.mxu0 0
        %6567 = vmatprep.subr.bf16.mxu0 0
        %6568 = vmatpush1.bf16.xpose.msra.mxu0 0
        %6569 = vmatprep.subr.bf16.mxu0 0
        %6570 = vmatpush1.bf16.xpose.msra.mxu0 0
        %6571 = vmatprep.subr.bf16.mxu0 0
        %6572 = vmatpush1.bf16.xpose.msra.mxu0 0
        %6573 = vmatprep.subr.bf16.mxu0 0
        %6574 = vmatpush1.bf16.xpose.msra.mxu0 0
        %6575 = vmatprep.subr.bf16.mxu0 0
        %6576 = vmatpush1.bf16.xpose.msra.mxu0 0
        %6577 = vmatprep.subr.bf16.mxu0 0
        %6578 = vmatpush1.bf16.xpose.msra.mxu0 0
        %6579 = vmatprep.subr.bf16.mxu0 0
        %6580 = vmatpush1.bf16.xpose.msra.mxu0 0
        %6581 = vmatprep.subr.bf16.mxu0 0
        %6582 = vmatpush1.bf16.xpose.msra.mxu0 0
        %6583 = vmatprep.subr.bf16.mxu0 0
        %6584 = vmatpush1.bf16.xpose.msra.mxu0 0
        %6585 = vmatprep.subr.bf16.mxu0 0
        %6586 = vmatpush1.bf16.xpose.msra.mxu0 0
        %6587 = vmatprep.subr.bf16.mxu0 0
        %6588 = vmatpush1.bf16.xpose.msra.mxu0 0
        %6589 = vmatprep.mubr.bf16.mxu0 1065369472
        %6590 = vmatmul.mubr.bf16.gmra.mrb[0].mxu0 1065369472
        %v6591 = vpop.f32.mrb[0].mxu0
        %v6592 = vadd.f32 %v6552, %v6591
        %v6593 = vpop.f32.mrb[0].mxu0
        %v6594 = vpop.f32.mrb[0].mxu0
        %v6595 = vpop.f32.mrb[0].mxu0
        %6596 = vdwg.mxu0
        %6597 = vmatprep.subr.bf16.mxu0 %v1294
        %6598 = vmatpush1.bf16.xpose.msra.mxu0 %v1293
        %6599 = vmatprep.subr.bf16.mxu0 0
        %6600 = vmatpush1.bf16.xpose.msra.mxu0 0
        %6601 = vmatprep.subr.bf16.mxu0 0
        %6602 = vmatpush1.bf16.xpose.msra.mxu0 0
        %6603 = vmatprep.subr.bf16.mxu0 0
        %6604 = vmatpush1.bf16.xpose.msra.mxu0 0
        %6605 = vmatprep.subr.bf16.mxu0 0
        %6606 = vmatpush1.bf16.xpose.msra.mxu0 0
        %6607 = vmatprep.subr.bf16.mxu0 0
        %6608 = vmatpush1.bf16.xpose.msra.mxu0 0
        %6609 = vmatprep.subr.bf16.mxu0 0
        %6610 = vmatpush1.bf16.xpose.msra.mxu0 0
        %6611 = vmatprep.subr.bf16.mxu0 0
        %6612 = vmatpush1.bf16.xpose.msra.mxu0 0
        %6613 = vmatprep.subr.bf16.mxu0 0
        %6614 = vmatpush1.bf16.xpose.msra.mxu0 0
        %6615 = vmatprep.subr.bf16.mxu0 0
        %6616 = vmatpush1.bf16.xpose.msra.mxu0 0
        %6617 = vmatprep.subr.bf16.mxu0 0
        %6618 = vmatpush1.bf16.xpose.msra.mxu0 0
        %6619 = vmatprep.subr.bf16.mxu0 0
        %6620 = vmatpush1.bf16.xpose.msra.mxu0 0
        %6621 = vmatprep.subr.bf16.mxu0 0
        %6622 = vmatpush1.bf16.xpose.msra.mxu0 0
        %6623 = vmatprep.subr.bf16.mxu0 0
        %6624 = vmatpush1.bf16.xpose.msra.mxu0 0
        %6625 = vmatprep.subr.bf16.mxu0 0
        %6626 = vmatpush1.bf16.xpose.msra.mxu0 0
        %6627 = vmatprep.subr.bf16.mxu0 0
        %6628 = vmatpush1.bf16.xpose.msra.mxu0 0
        %6629 = vmatprep.mubr.bf16.mxu0 1065369472
        %6630 = vmatmul.mubr.bf16.gmra.mrb[0].mxu0 1065369472
        %v6631 = vpop.f32.mrb[0].mxu0
        %v6632 = vadd.f32 %v6592, %v6631
        %v6633 = vpop.f32.mrb[0].mxu0
        %v6634 = vpop.f32.mrb[0].mxu0
        %v6635 = vpop.f32.mrb[0].mxu0
        %6636 = vdwg.mxu0
        %6637 = vmatprep.subr.bf16.mxu0 %v1296
        %6638 = vmatpush1.bf16.xpose.msra.mxu0 %v1295
        %6639 = vmatprep.subr.bf16.mxu0 0
        %6640 = vmatpush1.bf16.xpose.msra.mxu0 0
        %6641 = vmatprep.subr.bf16.mxu0 0
        %6642 = vmatpush1.bf16.xpose.msra.mxu0 0
        %6643 = vmatprep.subr.bf16.mxu0 0
        %6644 = vmatpush1.bf16.xpose.msra.mxu0 0
        %6645 = vmatprep.subr.bf16.mxu0 0
        %6646 = vmatpush1.bf16.xpose.msra.mxu0 0
        %6647 = vmatprep.subr.bf16.mxu0 0
        %6648 = vmatpush1.bf16.xpose.msra.mxu0 0
        %6649 = vmatprep.subr.bf16.mxu0 0
        %6650 = vmatpush1.bf16.xpose.msra.mxu0 0
        %6651 = vmatprep.subr.bf16.mxu0 0
        %6652 = vmatpush1.bf16.xpose.msra.mxu0 0
        %6653 = vmatprep.subr.bf16.mxu0 0
        %6654 = vmatpush1.bf16.xpose.msra.mxu0 0
        %6655 = vmatprep.subr.bf16.mxu0 0
        %6656 = vmatpush1.bf16.xpose.msra.mxu0 0
        %6657 = vmatprep.subr.bf16.mxu0 0
        %6658 = vmatpush1.bf16.xpose.msra.mxu0 0
        %6659 = vmatprep.subr.bf16.mxu0 0
        %6660 = vmatpush1.bf16.xpose.msra.mxu0 0
        %6661 = vmatprep.subr.bf16.mxu0 0
        %6662 = vmatpush1.bf16.xpose.msra.mxu0 0
        %6663 = vmatprep.subr.bf16.mxu0 0
        %6664 = vmatpush1.bf16.xpose.msra.mxu0 0
        %6665 = vmatprep.subr.bf16.mxu0 0
        %6666 = vmatpush1.bf16.xpose.msra.mxu0 0
        %6667 = vmatprep.subr.bf16.mxu0 0
        %6668 = vmatpush1.bf16.xpose.msra.mxu0 0
        %6669 = vmatprep.mubr.bf16.mxu0 1065369472
        %6670 = vmatmul.mubr.bf16.gmra.mrb[0].mxu0 1065369472
        %v6671 = vpop.f32.mrb[0].mxu0
        %v6672 = vadd.f32 %v6632, %v6671
        %v6673 = vpop.f32.mrb[0].mxu0
        %v6674 = vpop.f32.mrb[0].mxu0
        %v6675 = vpop.f32.mrb[0].mxu0
        %6676 = vdwg.mxu0
        %6677 = vmatprep.subr.bf16.mxu0 %v1298
        %6678 = vmatpush1.bf16.xpose.msra.mxu0 %v1297
        %6679 = vmatprep.subr.bf16.mxu0 0
        %6680 = vmatpush1.bf16.xpose.msra.mxu0 0
        %6681 = vmatprep.subr.bf16.mxu0 0
        %6682 = vmatpush1.bf16.xpose.msra.mxu0 0
        %6683 = vmatprep.subr.bf16.mxu0 0
        %6684 = vmatpush1.bf16.xpose.msra.mxu0 0
        %6685 = vmatprep.subr.bf16.mxu0 0
        %6686 = vmatpush1.bf16.xpose.msra.mxu0 0
        %6687 = vmatprep.subr.bf16.mxu0 0
        %6688 = vmatpush1.bf16.xpose.msra.mxu0 0
        %6689 = vmatprep.subr.bf16.mxu0 0
        %6690 = vmatpush1.bf16.xpose.msra.mxu0 0
        %6691 = vmatprep.subr.bf16.mxu0 0
        %6692 = vmatpush1.bf16.xpose.msra.mxu0 0
        %6693 = vmatprep.subr.bf16.mxu0 0
        %6694 = vmatpush1.bf16.xpose.msra.mxu0 0
        %6695 = vmatprep.subr.bf16.mxu0 0
        %6696 = vmatpush1.bf16.xpose.msra.mxu0 0
        %6697 = vmatprep.subr.bf16.mxu0 0
        %6698 = vmatpush1.bf16.xpose.msra.mxu0 0
        %6699 = vmatprep.subr.bf16.mxu0 0
        %6700 = vmatpush1.bf16.xpose.msra.mxu0 0
        %6701 = vmatprep.subr.bf16.mxu0 0
        %6702 = vmatpush1.bf16.xpose.msra.mxu0 0
        %6703 = vmatprep.subr.bf16.mxu0 0
        %6704 = vmatpush1.bf16.xpose.msra.mxu0 0
        %6705 = vmatprep.subr.bf16.mxu0 0
        %6706 = vmatpush1.bf16.xpose.msra.mxu0 0
        %6707 = vmatprep.subr.bf16.mxu0 0
        %6708 = vmatpush1.bf16.xpose.msra.mxu0 0
        %6709 = vmatprep.mubr.bf16.mxu0 1065369472
        %6710 = vmatmul.mubr.bf16.gmra.mrb[0].mxu0 1065369472
        %v6711 = vpop.f32.mrb[0].mxu0
        %v6712 = vadd.f32 %v6672, %v6711
        %v6713 = vpop.f32.mrb[0].mxu0
        %v6714 = vpop.f32.mrb[0].mxu0
        %v6715 = vpop.f32.mrb[0].mxu0
        %6716 = vdwg.mxu0
        %6717 = vmatprep.subr.bf16.mxu0 %v1300
        %6718 = vmatpush1.bf16.xpose.msra.mxu0 %v1299
        %6719 = vmatprep.subr.bf16.mxu0 0
        %6720 = vmatpush1.bf16.xpose.msra.mxu0 0
        %6721 = vmatprep.subr.bf16.mxu0 0
        %6722 = vmatpush1.bf16.xpose.msra.mxu0 0
        %6723 = vmatprep.subr.bf16.mxu0 0
        %6724 = vmatpush1.bf16.xpose.msra.mxu0 0
        %6725 = vmatprep.subr.bf16.mxu0 0
        %6726 = vmatpush1.bf16.xpose.msra.mxu0 0
        %6727 = vmatprep.subr.bf16.mxu0 0
        %6728 = vmatpush1.bf16.xpose.msra.mxu0 0
        %6729 = vmatprep.subr.bf16.mxu0 0
        %6730 = vmatpush1.bf16.xpose.msra.mxu0 0
        %6731 = vmatprep.subr.bf16.mxu0 0
        %6732 = vmatpush1.bf16.xpose.msra.mxu0 0
        %6733 = vmatprep.subr.bf16.mxu0 0
        %6734 = vmatpush1.bf16.xpose.msra.mxu0 0
        %6735 = vmatprep.subr.bf16.mxu0 0
        %6736 = vmatpush1.bf16.xpose.msra.mxu0 0
        %6737 = vmatprep.subr.bf16.mxu0 0
        %6738 = vmatpush1.bf16.xpose.msra.mxu0 0
        %6739 = vmatprep.subr.bf16.mxu0 0
        %6740 = vmatpush1.bf16.xpose.msra.mxu0 0
        %6741 = vmatprep.subr.bf16.mxu0 0
        %6742 = vmatpush1.bf16.xpose.msra.mxu0 0
        %6743 = vmatprep.subr.bf16.mxu0 0
        %6744 = vmatpush1.bf16.xpose.msra.mxu0 0
        %6745 = vmatprep.subr.bf16.mxu0 0
        %6746 = vmatpush1.bf16.xpose.msra.mxu0 0
        %6747 = vmatprep.subr.bf16.mxu0 0
        %6748 = vmatpush1.bf16.xpose.msra.mxu0 0
        %6749 = vmatprep.mubr.bf16.mxu0 1065369472
        %6750 = vmatmul.mubr.bf16.gmra.mrb[0].mxu0 1065369472
        %v6751 = vpop.f32.mrb[0].mxu0
        %v6752 = vadd.f32 %v6712, %v6751
        %v6753 = vpop.f32.mrb[0].mxu0
        %v6754 = vpop.f32.mrb[0].mxu0
        %v6755 = vpop.f32.mrb[0].mxu0
        %6756 = vdwg.mxu0
        %6757 = vmatprep.subr.bf16.mxu0 %v1302
        %6758 = vmatpush1.bf16.xpose.msra.mxu0 %v1301
        %6759 = vmatprep.subr.bf16.mxu0 0
        %6760 = vmatpush1.bf16.xpose.msra.mxu0 0
        %6761 = vmatprep.subr.bf16.mxu0 0
        %6762 = vmatpush1.bf16.xpose.msra.mxu0 0
        %6763 = vmatprep.subr.bf16.mxu0 0
        %6764 = vmatpush1.bf16.xpose.msra.mxu0 0
        %6765 = vmatprep.subr.bf16.mxu0 0
        %6766 = vmatpush1.bf16.xpose.msra.mxu0 0
        %6767 = vmatprep.subr.bf16.mxu0 0
        %6768 = vmatpush1.bf16.xpose.msra.mxu0 0
        %6769 = vmatprep.subr.bf16.mxu0 0
        %6770 = vmatpush1.bf16.xpose.msra.mxu0 0
        %6771 = vmatprep.subr.bf16.mxu0 0
        %6772 = vmatpush1.bf16.xpose.msra.mxu0 0
        %6773 = vmatprep.subr.bf16.mxu0 0
        %6774 = vmatpush1.bf16.xpose.msra.mxu0 0
        %6775 = vmatprep.subr.bf16.mxu0 0
        %6776 = vmatpush1.bf16.xpose.msra.mxu0 0
        %6777 = vmatprep.subr.bf16.mxu0 0
        %6778 = vmatpush1.bf16.xpose.msra.mxu0 0
        %6779 = vmatprep.subr.bf16.mxu0 0
        %6780 = vmatpush1.bf16.xpose.msra.mxu0 0
        %6781 = vmatprep.subr.bf16.mxu0 0
        %6782 = vmatpush1.bf16.xpose.msra.mxu0 0
        %6783 = vmatprep.subr.bf16.mxu0 0
        %6784 = vmatpush1.bf16.xpose.msra.mxu0 0
        %6785 = vmatprep.subr.bf16.mxu0 0
        %6786 = vmatpush1.bf16.xpose.msra.mxu0 0
        %6787 = vmatprep.subr.bf16.mxu0 0
        %6788 = vmatpush1.bf16.xpose.msra.mxu0 0
        %6789 = vmatprep.mubr.bf16.mxu0 1065369472
        %6790 = vmatmul.mubr.bf16.gmra.mrb[0].mxu0 1065369472
        %v6791 = vpop.f32.mrb[0].mxu0
        %v6792 = vadd.f32 %v6752, %v6791
        %v6793 = vpop.f32.mrb[0].mxu0
        %v6794 = vpop.f32.mrb[0].mxu0
        %v6795 = vpop.f32.mrb[0].mxu0
        %6796 = vdwg.mxu0
        %6797 = vmatprep.subr.bf16.mxu0 %v1304
        %6798 = vmatpush1.bf16.xpose.msra.mxu0 %v1303
        %6799 = vmatprep.subr.bf16.mxu0 0
        %6800 = vmatpush1.bf16.xpose.msra.mxu0 0
        %6801 = vmatprep.subr.bf16.mxu0 0
        %6802 = vmatpush1.bf16.xpose.msra.mxu0 0
        %6803 = vmatprep.subr.bf16.mxu0 0
        %6804 = vmatpush1.bf16.xpose.msra.mxu0 0
        %6805 = vmatprep.subr.bf16.mxu0 0
        %6806 = vmatpush1.bf16.xpose.msra.mxu0 0
        %6807 = vmatprep.subr.bf16.mxu0 0
        %6808 = vmatpush1.bf16.xpose.msra.mxu0 0
        %6809 = vmatprep.subr.bf16.mxu0 0
        %6810 = vmatpush1.bf16.xpose.msra.mxu0 0
        %6811 = vmatprep.subr.bf16.mxu0 0
        %6812 = vmatpush1.bf16.xpose.msra.mxu0 0
        %6813 = vmatprep.subr.bf16.mxu0 0
        %6814 = vmatpush1.bf16.xpose.msra.mxu0 0
        %6815 = vmatprep.subr.bf16.mxu0 0
        %6816 = vmatpush1.bf16.xpose.msra.mxu0 0
        %6817 = vmatprep.subr.bf16.mxu0 0
        %6818 = vmatpush1.bf16.xpose.msra.mxu0 0
        %6819 = vmatprep.subr.bf16.mxu0 0
        %6820 = vmatpush1.bf16.xpose.msra.mxu0 0
        %6821 = vmatprep.subr.bf16.mxu0 0
        %6822 = vmatpush1.bf16.xpose.msra.mxu0 0
        %6823 = vmatprep.subr.bf16.mxu0 0
        %6824 = vmatpush1.bf16.xpose.msra.mxu0 0
        %6825 = vmatprep.subr.bf16.mxu0 0
        %6826 = vmatpush1.bf16.xpose.msra.mxu0 0
        %6827 = vmatprep.subr.bf16.mxu0 0
        %6828 = vmatpush1.bf16.xpose.msra.mxu0 0
        %6829 = vmatprep.mubr.bf16.mxu0 1065369472
        %6830 = vmatmul.mubr.bf16.gmra.mrb[0].mxu0 1065369472
        %v6831 = vpop.f32.mrb[0].mxu0
        %v6832 = vadd.f32 %v6792, %v6831
        %v6833 = vpop.f32.mrb[0].mxu0
        %v6834 = vpop.f32.mrb[0].mxu0
        %v6835 = vpop.f32.mrb[0].mxu0
        %6836 = vdwg.mxu0
        %6837 = vmatprep.subr.bf16.mxu0 %v1306
        %6838 = vmatpush1.bf16.xpose.msra.mxu0 %v1305
        %6839 = vmatprep.subr.bf16.mxu0 0
        %6840 = vmatpush1.bf16.xpose.msra.mxu0 0
        %6841 = vmatprep.subr.bf16.mxu0 0
        %6842 = vmatpush1.bf16.xpose.msra.mxu0 0
        %6843 = vmatprep.subr.bf16.mxu0 0
        %6844 = vmatpush1.bf16.xpose.msra.mxu0 0
        %6845 = vmatprep.subr.bf16.mxu0 0
        %6846 = vmatpush1.bf16.xpose.msra.mxu0 0
        %6847 = vmatprep.subr.bf16.mxu0 0
        %6848 = vmatpush1.bf16.xpose.msra.mxu0 0
        %6849 = vmatprep.subr.bf16.mxu0 0
        %6850 = vmatpush1.bf16.xpose.msra.mxu0 0
        %6851 = vmatprep.subr.bf16.mxu0 0
        %6852 = vmatpush1.bf16.xpose.msra.mxu0 0
        %6853 = vmatprep.subr.bf16.mxu0 0
        %6854 = vmatpush1.bf16.xpose.msra.mxu0 0
        %6855 = vmatprep.subr.bf16.mxu0 0
        %6856 = vmatpush1.bf16.xpose.msra.mxu0 0
        %6857 = vmatprep.subr.bf16.mxu0 0
        %6858 = vmatpush1.bf16.xpose.msra.mxu0 0
        %6859 = vmatprep.subr.bf16.mxu0 0
        %6860 = vmatpush1.bf16.xpose.msra.mxu0 0
        %6861 = vmatprep.subr.bf16.mxu0 0
        %6862 = vmatpush1.bf16.xpose.msra.mxu0 0
        %6863 = vmatprep.subr.bf16.mxu0 0
        %6864 = vmatpush1.bf16.xpose.msra.mxu0 0
        %6865 = vmatprep.subr.bf16.mxu0 0
        %6866 = vmatpush1.bf16.xpose.msra.mxu0 0
        %6867 = vmatprep.subr.bf16.mxu0 0
        %6868 = vmatpush1.bf16.xpose.msra.mxu0 0
        %6869 = vmatprep.mubr.bf16.mxu0 1065369472
        %6870 = vmatmul.mubr.bf16.gmra.mrb[0].mxu0 1065369472
        %v6871 = vpop.f32.mrb[0].mxu0
        %v6872 = vadd.f32 %v6832, %v6871
        %v6873 = vpop.f32.mrb[0].mxu0
        %v6874 = vpop.f32.mrb[0].mxu0
        %v6875 = vpop.f32.mrb[0].mxu0
        %6876 = vdwg.mxu0
        %6877 = vmatprep.subr.bf16.mxu0 %v1308
        %6878 = vmatpush1.bf16.xpose.msra.mxu0 %v1307
        %6879 = vmatprep.subr.bf16.mxu0 0
        %6880 = vmatpush1.bf16.xpose.msra.mxu0 0
        %6881 = vmatprep.subr.bf16.mxu0 0
        %6882 = vmatpush1.bf16.xpose.msra.mxu0 0
        %6883 = vmatprep.subr.bf16.mxu0 0
        %6884 = vmatpush1.bf16.xpose.msra.mxu0 0
        %6885 = vmatprep.subr.bf16.mxu0 0
        %6886 = vmatpush1.bf16.xpose.msra.mxu0 0
        %6887 = vmatprep.subr.bf16.mxu0 0
        %6888 = vmatpush1.bf16.xpose.msra.mxu0 0
        %6889 = vmatprep.subr.bf16.mxu0 0
        %6890 = vmatpush1.bf16.xpose.msra.mxu0 0
        %6891 = vmatprep.subr.bf16.mxu0 0
        %6892 = vmatpush1.bf16.xpose.msra.mxu0 0
        %6893 = vmatprep.subr.bf16.mxu0 0
        %6894 = vmatpush1.bf16.xpose.msra.mxu0 0
        %6895 = vmatprep.subr.bf16.mxu0 0
        %6896 = vmatpush1.bf16.xpose.msra.mxu0 0
        %6897 = vmatprep.subr.bf16.mxu0 0
        %6898 = vmatpush1.bf16.xpose.msra.mxu0 0
        %6899 = vmatprep.subr.bf16.mxu0 0
        %6900 = vmatpush1.bf16.xpose.msra.mxu0 0
        %6901 = vmatprep.subr.bf16.mxu0 0
        %6902 = vmatpush1.bf16.xpose.msra.mxu0 0
        %6903 = vmatprep.subr.bf16.mxu0 0
        %6904 = vmatpush1.bf16.xpose.msra.mxu0 0
        %6905 = vmatprep.subr.bf16.mxu0 0
        %6906 = vmatpush1.bf16.xpose.msra.mxu0 0
        %6907 = vmatprep.subr.bf16.mxu0 0
        %6908 = vmatpush1.bf16.xpose.msra.mxu0 0
        %6909 = vmatprep.mubr.bf16.mxu0 1065369472
        %6910 = vmatmul.mubr.bf16.gmra.mrb[0].mxu0 1065369472
        %v6911 = vpop.f32.mrb[0].mxu0
        %v6912 = vadd.f32 %v6872, %v6911
        %v6913 = vpop.f32.mrb[0].mxu0
        %v6914 = vpop.f32.mrb[0].mxu0
        %v6915 = vpop.f32.mrb[0].mxu0
        %6916 = vdwg.mxu0
        %6917 = vmatprep.subr.bf16.mxu0 %v1310
        %6918 = vmatpush1.bf16.xpose.msra.mxu0 %v1309
        %6919 = vmatprep.subr.bf16.mxu0 0
        %6920 = vmatpush1.bf16.xpose.msra.mxu0 0
        %6921 = vmatprep.subr.bf16.mxu0 0
        %6922 = vmatpush1.bf16.xpose.msra.mxu0 0
        %6923 = vmatprep.subr.bf16.mxu0 0
        %6924 = vmatpush1.bf16.xpose.msra.mxu0 0
        %6925 = vmatprep.subr.bf16.mxu0 0
        %6926 = vmatpush1.bf16.xpose.msra.mxu0 0
        %6927 = vmatprep.subr.bf16.mxu0 0
        %6928 = vmatpush1.bf16.xpose.msra.mxu0 0
        %6929 = vmatprep.subr.bf16.mxu0 0
        %6930 = vmatpush1.bf16.xpose.msra.mxu0 0
        %6931 = vmatprep.subr.bf16.mxu0 0
        %6932 = vmatpush1.bf16.xpose.msra.mxu0 0
        %6933 = vmatprep.subr.bf16.mxu0 0
        %6934 = vmatpush1.bf16.xpose.msra.mxu0 0
        %6935 = vmatprep.subr.bf16.mxu0 0
        %6936 = vmatpush1.bf16.xpose.msra.mxu0 0
        %6937 = vmatprep.subr.bf16.mxu0 0
        %6938 = vmatpush1.bf16.xpose.msra.mxu0 0
        %6939 = vmatprep.subr.bf16.mxu0 0
        %6940 = vmatpush1.bf16.xpose.msra.mxu0 0
        %6941 = vmatprep.subr.bf16.mxu0 0
        %6942 = vmatpush1.bf16.xpose.msra.mxu0 0
        %6943 = vmatprep.subr.bf16.mxu0 0
        %6944 = vmatpush1.bf16.xpose.msra.mxu0 0
        %6945 = vmatprep.subr.bf16.mxu0 0
        %6946 = vmatpush1.bf16.xpose.msra.mxu0 0
        %6947 = vmatprep.subr.bf16.mxu0 0
        %6948 = vmatpush1.bf16.xpose.msra.mxu0 0
        %6949 = vmatprep.mubr.bf16.mxu0 1065369472
        %6950 = vmatmul.mubr.bf16.gmra.mrb[0].mxu0 1065369472
        %v6951 = vpop.f32.mrb[0].mxu0
        %v6952 = vadd.f32 %v6912, %v6951
        %v6953 = vpop.f32.mrb[0].mxu0
        %v6954 = vpop.f32.mrb[0].mxu0
        %v6955 = vpop.f32.mrb[0].mxu0
        %6956 = vdwg.mxu0
        %6957 = vmatprep.subr.bf16.mxu0 %v1312
        %6958 = vmatpush1.bf16.xpose.msra.mxu0 %v1311
        %6959 = vmatprep.subr.bf16.mxu0 0
        %6960 = vmatpush1.bf16.xpose.msra.mxu0 0
        %6961 = vmatprep.subr.bf16.mxu0 0
        %6962 = vmatpush1.bf16.xpose.msra.mxu0 0
        %6963 = vmatprep.subr.bf16.mxu0 0
        %6964 = vmatpush1.bf16.xpose.msra.mxu0 0
        %6965 = vmatprep.subr.bf16.mxu0 0
        %6966 = vmatpush1.bf16.xpose.msra.mxu0 0
        %6967 = vmatprep.subr.bf16.mxu0 0
        %6968 = vmatpush1.bf16.xpose.msra.mxu0 0
        %6969 = vmatprep.subr.bf16.mxu0 0
        %6970 = vmatpush1.bf16.xpose.msra.mxu0 0
        %6971 = vmatprep.subr.bf16.mxu0 0
        %6972 = vmatpush1.bf16.xpose.msra.mxu0 0
        %6973 = vmatprep.subr.bf16.mxu0 0
        %6974 = vmatpush1.bf16.xpose.msra.mxu0 0
        %6975 = vmatprep.subr.bf16.mxu0 0
        %6976 = vmatpush1.bf16.xpose.msra.mxu0 0
        %6977 = vmatprep.subr.bf16.mxu0 0
        %6978 = vmatpush1.bf16.xpose.msra.mxu0 0
        %6979 = vmatprep.subr.bf16.mxu0 0
        %6980 = vmatpush1.bf16.xpose.msra.mxu0 0
        %6981 = vmatprep.subr.bf16.mxu0 0
        %6982 = vmatpush1.bf16.xpose.msra.mxu0 0
        %6983 = vmatprep.subr.bf16.mxu0 0
        %6984 = vmatpush1.bf16.xpose.msra.mxu0 0
        %6985 = vmatprep.subr.bf16.mxu0 0
        %6986 = vmatpush1.bf16.xpose.msra.mxu0 0
        %6987 = vmatprep.subr.bf16.mxu0 0
        %6988 = vmatpush1.bf16.xpose.msra.mxu0 0
        %6989 = vmatprep.mubr.bf16.mxu0 1065369472
        %6990 = vmatmul.mubr.bf16.gmra.mrb[0].mxu0 1065369472
        %v6991 = vpop.f32.mrb[0].mxu0
        %v6992 = vadd.f32 %v6952, %v6991
        %v6993 = vpop.f32.mrb[0].mxu0
        %v6994 = vpop.f32.mrb[0].mxu0
        %v6995 = vpop.f32.mrb[0].mxu0
        %6996 = vdwg.mxu0
        %6997 = vmatprep.subr.bf16.mxu0 %v1314
        %6998 = vmatpush1.bf16.xpose.msra.mxu0 %v1313
        %6999 = vmatprep.subr.bf16.mxu0 0
        %7000 = vmatpush1.bf16.xpose.msra.mxu0 0
        %7001 = vmatprep.subr.bf16.mxu0 0
        %7002 = vmatpush1.bf16.xpose.msra.mxu0 0
        %7003 = vmatprep.subr.bf16.mxu0 0
        %7004 = vmatpush1.bf16.xpose.msra.mxu0 0
        %7005 = vmatprep.subr.bf16.mxu0 0
        %7006 = vmatpush1.bf16.xpose.msra.mxu0 0
        %7007 = vmatprep.subr.bf16.mxu0 0
        %7008 = vmatpush1.bf16.xpose.msra.mxu0 0
        %7009 = vmatprep.subr.bf16.mxu0 0
        %7010 = vmatpush1.bf16.xpose.msra.mxu0 0
        %7011 = vmatprep.subr.bf16.mxu0 0
        %7012 = vmatpush1.bf16.xpose.msra.mxu0 0
        %7013 = vmatprep.subr.bf16.mxu0 0
        %7014 = vmatpush1.bf16.xpose.msra.mxu0 0
        %7015 = vmatprep.subr.bf16.mxu0 0
        %7016 = vmatpush1.bf16.xpose.msra.mxu0 0
        %7017 = vmatprep.subr.bf16.mxu0 0
        %7018 = vmatpush1.bf16.xpose.msra.mxu0 0
        %7019 = vmatprep.subr.bf16.mxu0 0
        %7020 = vmatpush1.bf16.xpose.msra.mxu0 0
        %7021 = vmatprep.subr.bf16.mxu0 0
        %7022 = vmatpush1.bf16.xpose.msra.mxu0 0
        %7023 = vmatprep.subr.bf16.mxu0 0
        %7024 = vmatpush1.bf16.xpose.msra.mxu0 0
        %7025 = vmatprep.subr.bf16.mxu0 0
        %7026 = vmatpush1.bf16.xpose.msra.mxu0 0
        %7027 = vmatprep.subr.bf16.mxu0 0
        %7028 = vmatpush1.bf16.xpose.msra.mxu0 0
        %7029 = vmatprep.mubr.bf16.mxu0 1065369472
        %7030 = vmatmul.mubr.bf16.gmra.mrb[0].mxu0 1065369472
        %v7031 = vpop.f32.mrb[0].mxu0
        %v7032 = vadd.f32 %v6992, %v7031
        %v7033 = vpop.f32.mrb[0].mxu0
        %v7034 = vpop.f32.mrb[0].mxu0
        %v7035 = vpop.f32.mrb[0].mxu0
        %7036 = vdwg.mxu0
        %7037 = vmatprep.subr.bf16.mxu0 %v1316
        %7038 = vmatpush1.bf16.xpose.msra.mxu0 %v1315
        %7039 = vmatprep.subr.bf16.mxu0 0
        %7040 = vmatpush1.bf16.xpose.msra.mxu0 0
        %7041 = vmatprep.subr.bf16.mxu0 0
        %7042 = vmatpush1.bf16.xpose.msra.mxu0 0
        %7043 = vmatprep.subr.bf16.mxu0 0
        %7044 = vmatpush1.bf16.xpose.msra.mxu0 0
        %7045 = vmatprep.subr.bf16.mxu0 0
        %7046 = vmatpush1.bf16.xpose.msra.mxu0 0
        %7047 = vmatprep.subr.bf16.mxu0 0
        %7048 = vmatpush1.bf16.xpose.msra.mxu0 0
        %7049 = vmatprep.subr.bf16.mxu0 0
        %7050 = vmatpush1.bf16.xpose.msra.mxu0 0
        %7051 = vmatprep.subr.bf16.mxu0 0
        %7052 = vmatpush1.bf16.xpose.msra.mxu0 0
        %7053 = vmatprep.subr.bf16.mxu0 0
        %7054 = vmatpush1.bf16.xpose.msra.mxu0 0
        %7055 = vmatprep.subr.bf16.mxu0 0
        %7056 = vmatpush1.bf16.xpose.msra.mxu0 0
        %7057 = vmatprep.subr.bf16.mxu0 0
        %7058 = vmatpush1.bf16.xpose.msra.mxu0 0
        %7059 = vmatprep.subr.bf16.mxu0 0
        %7060 = vmatpush1.bf16.xpose.msra.mxu0 0
        %7061 = vmatprep.subr.bf16.mxu0 0
        %7062 = vmatpush1.bf16.xpose.msra.mxu0 0
        %7063 = vmatprep.subr.bf16.mxu0 0
        %7064 = vmatpush1.bf16.xpose.msra.mxu0 0
        %7065 = vmatprep.subr.bf16.mxu0 0
        %7066 = vmatpush1.bf16.xpose.msra.mxu0 0
        %7067 = vmatprep.subr.bf16.mxu0 0
        %7068 = vmatpush1.bf16.xpose.msra.mxu0 0
        %7069 = vmatprep.mubr.bf16.mxu0 1065369472
        %7070 = vmatmul.mubr.bf16.gmra.mrb[0].mxu0 1065369472
        %v7071 = vpop.f32.mrb[0].mxu0
        %v7072 = vadd.f32 %v7032, %v7071
        %v7073 = vpop.f32.mrb[0].mxu0
        %v7074 = vpop.f32.mrb[0].mxu0
        %v7075 = vpop.f32.mrb[0].mxu0
        %7076 = vdwg.mxu0
        %7077 = vmatprep.subr.bf16.mxu0 %v1318
        %7078 = vmatpush1.bf16.xpose.msra.mxu0 %v1317
        %7079 = vmatprep.subr.bf16.mxu0 0
        %7080 = vmatpush1.bf16.xpose.msra.mxu0 0
        %7081 = vmatprep.subr.bf16.mxu0 0
        %7082 = vmatpush1.bf16.xpose.msra.mxu0 0
        %7083 = vmatprep.subr.bf16.mxu0 0
        %7084 = vmatpush1.bf16.xpose.msra.mxu0 0
        %7085 = vmatprep.subr.bf16.mxu0 0
        %7086 = vmatpush1.bf16.xpose.msra.mxu0 0
        %7087 = vmatprep.subr.bf16.mxu0 0
        %7088 = vmatpush1.bf16.xpose.msra.mxu0 0
        %7089 = vmatprep.subr.bf16.mxu0 0
        %7090 = vmatpush1.bf16.xpose.msra.mxu0 0
        %7091 = vmatprep.subr.bf16.mxu0 0
        %7092 = vmatpush1.bf16.xpose.msra.mxu0 0
        %7093 = vmatprep.subr.bf16.mxu0 0
        %7094 = vmatpush1.bf16.xpose.msra.mxu0 0
        %7095 = vmatprep.subr.bf16.mxu0 0
        %7096 = vmatpush1.bf16.xpose.msra.mxu0 0
        %7097 = vmatprep.subr.bf16.mxu0 0
        %7098 = vmatpush1.bf16.xpose.msra.mxu0 0
        %7099 = vmatprep.subr.bf16.mxu0 0
        %7100 = vmatpush1.bf16.xpose.msra.mxu0 0
        %7101 = vmatprep.subr.bf16.mxu0 0
        %7102 = vmatpush1.bf16.xpose.msra.mxu0 0
        %7103 = vmatprep.subr.bf16.mxu0 0
        %7104 = vmatpush1.bf16.xpose.msra.mxu0 0
        %7105 = vmatprep.subr.bf16.mxu0 0
        %7106 = vmatpush1.bf16.xpose.msra.mxu0 0
        %7107 = vmatprep.subr.bf16.mxu0 0
        %7108 = vmatpush1.bf16.xpose.msra.mxu0 0
        %7109 = vmatprep.mubr.bf16.mxu0 1065369472
        %7110 = vmatmul.mubr.bf16.gmra.mrb[0].mxu0 1065369472
        %v7111 = vpop.f32.mrb[0].mxu0
        %v7112 = vadd.f32 %v7072, %v7111
        %v7113 = vpop.f32.mrb[0].mxu0
        %v7114 = vpop.f32.mrb[0].mxu0
        %v7115 = vpop.f32.mrb[0].mxu0
        %7116 = vdwg.mxu0
        %7117 = vmatprep.subr.bf16.mxu0 %v1320
        %7118 = vmatpush1.bf16.xpose.msra.mxu0 %v1319
        %7119 = vmatprep.subr.bf16.mxu0 0
        %7120 = vmatpush1.bf16.xpose.msra.mxu0 0
        %7121 = vmatprep.subr.bf16.mxu0 0
        %7122 = vmatpush1.bf16.xpose.msra.mxu0 0
        %7123 = vmatprep.subr.bf16.mxu0 0
        %7124 = vmatpush1.bf16.xpose.msra.mxu0 0
        %7125 = vmatprep.subr.bf16.mxu0 0
        %7126 = vmatpush1.bf16.xpose.msra.mxu0 0
        %7127 = vmatprep.subr.bf16.mxu0 0
        %7128 = vmatpush1.bf16.xpose.msra.mxu0 0
        %7129 = vmatprep.subr.bf16.mxu0 0
        %7130 = vmatpush1.bf16.xpose.msra.mxu0 0
        %7131 = vmatprep.subr.bf16.mxu0 0
        %7132 = vmatpush1.bf16.xpose.msra.mxu0 0
        %7133 = vmatprep.subr.bf16.mxu0 0
        %7134 = vmatpush1.bf16.xpose.msra.mxu0 0
        %7135 = vmatprep.subr.bf16.mxu0 0
        %7136 = vmatpush1.bf16.xpose.msra.mxu0 0
        %7137 = vmatprep.subr.bf16.mxu0 0
        %7138 = vmatpush1.bf16.xpose.msra.mxu0 0
        %7139 = vmatprep.subr.bf16.mxu0 0
        %7140 = vmatpush1.bf16.xpose.msra.mxu0 0
        %7141 = vmatprep.subr.bf16.mxu0 0
        %7142 = vmatpush1.bf16.xpose.msra.mxu0 0
        %7143 = vmatprep.subr.bf16.mxu0 0
        %7144 = vmatpush1.bf16.xpose.msra.mxu0 0
        %7145 = vmatprep.subr.bf16.mxu0 0
        %7146 = vmatpush1.bf16.xpose.msra.mxu0 0
        %7147 = vmatprep.subr.bf16.mxu0 0
        %7148 = vmatpush1.bf16.xpose.msra.mxu0 0
        %7149 = vmatprep.mubr.bf16.mxu0 1065369472
        %7150 = vmatmul.mubr.bf16.gmra.mrb[0].mxu0 1065369472
        %v7151 = vpop.f32.mrb[0].mxu0
        %v7152 = vadd.f32 %v7112, %v7151
        %v7153 = vpop.f32.mrb[0].mxu0
        %v7154 = vpop.f32.mrb[0].mxu0
        %v7155 = vpop.f32.mrb[0].mxu0
        %7156 = vdwg.mxu0
        %7157 = vmatprep.subr.bf16.mxu0 %v1322
        %7158 = vmatpush1.bf16.xpose.msra.mxu0 %v1321
        %7159 = vmatprep.subr.bf16.mxu0 0
        %7160 = vmatpush1.bf16.xpose.msra.mxu0 0
        %7161 = vmatprep.subr.bf16.mxu0 0
        %7162 = vmatpush1.bf16.xpose.msra.mxu0 0
        %7163 = vmatprep.subr.bf16.mxu0 0
        %7164 = vmatpush1.bf16.xpose.msra.mxu0 0
        %7165 = vmatprep.subr.bf16.mxu0 0
        %7166 = vmatpush1.bf16.xpose.msra.mxu0 0
        %7167 = vmatprep.subr.bf16.mxu0 0
        %7168 = vmatpush1.bf16.xpose.msra.mxu0 0
        %7169 = vmatprep.subr.bf16.mxu0 0
        %7170 = vmatpush1.bf16.xpose.msra.mxu0 0
        %7171 = vmatprep.subr.bf16.mxu0 0
        %7172 = vmatpush1.bf16.xpose.msra.mxu0 0
        %7173 = vmatprep.subr.bf16.mxu0 0
        %7174 = vmatpush1.bf16.xpose.msra.mxu0 0
        %7175 = vmatprep.subr.bf16.mxu0 0
        %7176 = vmatpush1.bf16.xpose.msra.mxu0 0
        %7177 = vmatprep.subr.bf16.mxu0 0
        %7178 = vmatpush1.bf16.xpose.msra.mxu0 0
        %7179 = vmatprep.subr.bf16.mxu0 0
        %7180 = vmatpush1.bf16.xpose.msra.mxu0 0
        %7181 = vmatprep.subr.bf16.mxu0 0
        %7182 = vmatpush1.bf16.xpose.msra.mxu0 0
        %7183 = vmatprep.subr.bf16.mxu0 0
        %7184 = vmatpush1.bf16.xpose.msra.mxu0 0
        %7185 = vmatprep.subr.bf16.mxu0 0
        %7186 = vmatpush1.bf16.xpose.msra.mxu0 0
        %7187 = vmatprep.subr.bf16.mxu0 0
        %7188 = vmatpush1.bf16.xpose.msra.mxu0 0
        %7189 = vmatprep.mubr.bf16.mxu0 1065369472
        %7190 = vmatmul.mubr.bf16.gmra.mrb[0].mxu0 1065369472
        %v7191 = vpop.f32.mrb[0].mxu0
        %v7192 = vadd.f32 %v7152, %v7191
        %v7193 = vpop.f32.mrb[0].mxu0
        %v7194 = vpop.f32.mrb[0].mxu0
        %v7195 = vpop.f32.mrb[0].mxu0
        %7196 = vdwg.mxu0
        %7197 = vmatprep.subr.bf16.mxu0 %v1324
        %7198 = vmatpush1.bf16.xpose.msra.mxu0 %v1323
        %7199 = vmatprep.subr.bf16.mxu0 0
        %7200 = vmatpush1.bf16.xpose.msra.mxu0 0
        %7201 = vmatprep.subr.bf16.mxu0 0
        %7202 = vmatpush1.bf16.xpose.msra.mxu0 0
        %7203 = vmatprep.subr.bf16.mxu0 0
        %7204 = vmatpush1.bf16.xpose.msra.mxu0 0
        %7205 = vmatprep.subr.bf16.mxu0 0
        %7206 = vmatpush1.bf16.xpose.msra.mxu0 0
        %7207 = vmatprep.subr.bf16.mxu0 0
        %7208 = vmatpush1.bf16.xpose.msra.mxu0 0
        %7209 = vmatprep.subr.bf16.mxu0 0
        %7210 = vmatpush1.bf16.xpose.msra.mxu0 0
        %7211 = vmatprep.subr.bf16.mxu0 0
        %7212 = vmatpush1.bf16.xpose.msra.mxu0 0
        %7213 = vmatprep.subr.bf16.mxu0 0
        %7214 = vmatpush1.bf16.xpose.msra.mxu0 0
        %7215 = vmatprep.subr.bf16.mxu0 0
        %7216 = vmatpush1.bf16.xpose.msra.mxu0 0
        %7217 = vmatprep.subr.bf16.mxu0 0
        %7218 = vmatpush1.bf16.xpose.msra.mxu0 0
        %7219 = vmatprep.subr.bf16.mxu0 0
        %7220 = vmatpush1.bf16.xpose.msra.mxu0 0
        %7221 = vmatprep.subr.bf16.mxu0 0
        %7222 = vmatpush1.bf16.xpose.msra.mxu0 0
        %7223 = vmatprep.subr.bf16.mxu0 0
        %7224 = vmatpush1.bf16.xpose.msra.mxu0 0
        %7225 = vmatprep.subr.bf16.mxu0 0
        %7226 = vmatpush1.bf16.xpose.msra.mxu0 0
        %7227 = vmatprep.subr.bf16.mxu0 0
        %7228 = vmatpush1.bf16.xpose.msra.mxu0 0
        %7229 = vmatprep.mubr.bf16.mxu0 1065369472
        %7230 = vmatmul.mubr.bf16.gmra.mrb[0].mxu0 1065369472
        %v7231 = vpop.f32.mrb[0].mxu0
        %v7232 = vadd.f32 %v7192, %v7231
        %v7233 = vpop.f32.mrb[0].mxu0
        %v7234 = vpop.f32.mrb[0].mxu0
        %v7235 = vpop.f32.mrb[0].mxu0
        %7236 = vdwg.mxu0
        %7237 = vmatprep.subr.bf16.mxu0 %v1326
        %7238 = vmatpush1.bf16.xpose.msra.mxu0 %v1325
        %7239 = vmatprep.subr.bf16.mxu0 0
        %7240 = vmatpush1.bf16.xpose.msra.mxu0 0
        %7241 = vmatprep.subr.bf16.mxu0 0
        %7242 = vmatpush1.bf16.xpose.msra.mxu0 0
        %7243 = vmatprep.subr.bf16.mxu0 0
        %7244 = vmatpush1.bf16.xpose.msra.mxu0 0
        %7245 = vmatprep.subr.bf16.mxu0 0
        %7246 = vmatpush1.bf16.xpose.msra.mxu0 0
        %7247 = vmatprep.subr.bf16.mxu0 0
        %7248 = vmatpush1.bf16.xpose.msra.mxu0 0
        %7249 = vmatprep.subr.bf16.mxu0 0
        %7250 = vmatpush1.bf16.xpose.msra.mxu0 0
        %7251 = vmatprep.subr.bf16.mxu0 0
        %7252 = vmatpush1.bf16.xpose.msra.mxu0 0
        %7253 = vmatprep.subr.bf16.mxu0 0
        %7254 = vmatpush1.bf16.xpose.msra.mxu0 0
        %7255 = vmatprep.subr.bf16.mxu0 0
        %7256 = vmatpush1.bf16.xpose.msra.mxu0 0
        %7257 = vmatprep.subr.bf16.mxu0 0
        %7258 = vmatpush1.bf16.xpose.msra.mxu0 0
        %7259 = vmatprep.subr.bf16.mxu0 0
        %7260 = vmatpush1.bf16.xpose.msra.mxu0 0
        %7261 = vmatprep.subr.bf16.mxu0 0
        %7262 = vmatpush1.bf16.xpose.msra.mxu0 0
        %7263 = vmatprep.subr.bf16.mxu0 0
        %7264 = vmatpush1.bf16.xpose.msra.mxu0 0
        %7265 = vmatprep.subr.bf16.mxu0 0
        %7266 = vmatpush1.bf16.xpose.msra.mxu0 0
        %7267 = vmatprep.subr.bf16.mxu0 0
        %7268 = vmatpush1.bf16.xpose.msra.mxu0 0
        %7269 = vmatprep.mubr.bf16.mxu0 1065369472
        %7270 = vmatmul.mubr.bf16.gmra.mrb[0].mxu0 1065369472
        %v7271 = vpop.f32.mrb[0].mxu0
        %v7272 = vadd.f32 %v7232, %v7271
        %v7273 = vpop.f32.mrb[0].mxu0
        %v7274 = vpop.f32.mrb[0].mxu0
        %v7275 = vpop.f32.mrb[0].mxu0
        %7276 = vdwg.mxu0
        %7277 = vmatprep.subr.bf16.mxu0 %v1328
        %7278 = vmatpush1.bf16.xpose.msra.mxu0 %v1327
        %7279 = vmatprep.subr.bf16.mxu0 0
        %7280 = vmatpush1.bf16.xpose.msra.mxu0 0
        %7281 = vmatprep.subr.bf16.mxu0 0
        %7282 = vmatpush1.bf16.xpose.msra.mxu0 0
        %7283 = vmatprep.subr.bf16.mxu0 0
        %7284 = vmatpush1.bf16.xpose.msra.mxu0 0
        %7285 = vmatprep.subr.bf16.mxu0 0
        %7286 = vmatpush1.bf16.xpose.msra.mxu0 0
        %7287 = vmatprep.subr.bf16.mxu0 0
        %7288 = vmatpush1.bf16.xpose.msra.mxu0 0
        %7289 = vmatprep.subr.bf16.mxu0 0
        %7290 = vmatpush1.bf16.xpose.msra.mxu0 0
        %7291 = vmatprep.subr.bf16.mxu0 0
        %7292 = vmatpush1.bf16.xpose.msra.mxu0 0
        %7293 = vmatprep.subr.bf16.mxu0 0
        %7294 = vmatpush1.bf16.xpose.msra.mxu0 0
        %7295 = vmatprep.subr.bf16.mxu0 0
        %7296 = vmatpush1.bf16.xpose.msra.mxu0 0
        %7297 = vmatprep.subr.bf16.mxu0 0
        %7298 = vmatpush1.bf16.xpose.msra.mxu0 0
        %7299 = vmatprep.subr.bf16.mxu0 0
        %7300 = vmatpush1.bf16.xpose.msra.mxu0 0
        %7301 = vmatprep.subr.bf16.mxu0 0
        %7302 = vmatpush1.bf16.xpose.msra.mxu0 0
        %7303 = vmatprep.subr.bf16.mxu0 0
        %7304 = vmatpush1.bf16.xpose.msra.mxu0 0
        %7305 = vmatprep.subr.bf16.mxu0 0
        %7306 = vmatpush1.bf16.xpose.msra.mxu0 0
        %7307 = vmatprep.subr.bf16.mxu0 0
        %7308 = vmatpush1.bf16.xpose.msra.mxu0 0
        %7309 = vmatprep.mubr.bf16.mxu0 1065369472
        %7310 = vmatmul.mubr.bf16.gmra.mrb[0].mxu0 1065369472
        %v7311 = vpop.f32.mrb[0].mxu0
        %v7312 = vadd.f32 %v7272, %v7311
        %v7313 = vpop.f32.mrb[0].mxu0
        %v7314 = vpop.f32.mrb[0].mxu0
        %v7315 = vpop.f32.mrb[0].mxu0
        %7316 = vdwg.mxu0
        %7317 = vmatprep.subr.bf16.mxu0 %v1330
        %7318 = vmatpush1.bf16.xpose.msra.mxu0 %v1329
        %7319 = vmatprep.subr.bf16.mxu0 0
        %7320 = vmatpush1.bf16.xpose.msra.mxu0 0
        %7321 = vmatprep.subr.bf16.mxu0 0
        %7322 = vmatpush1.bf16.xpose.msra.mxu0 0
        %7323 = vmatprep.subr.bf16.mxu0 0
        %7324 = vmatpush1.bf16.xpose.msra.mxu0 0
        %7325 = vmatprep.subr.bf16.mxu0 0
        %7326 = vmatpush1.bf16.xpose.msra.mxu0 0
        %7327 = vmatprep.subr.bf16.mxu0 0
        %7328 = vmatpush1.bf16.xpose.msra.mxu0 0
        %7329 = vmatprep.subr.bf16.mxu0 0
        %7330 = vmatpush1.bf16.xpose.msra.mxu0 0
        %7331 = vmatprep.subr.bf16.mxu0 0
        %7332 = vmatpush1.bf16.xpose.msra.mxu0 0
        %7333 = vmatprep.subr.bf16.mxu0 0
        %7334 = vmatpush1.bf16.xpose.msra.mxu0 0
        %7335 = vmatprep.subr.bf16.mxu0 0
        %7336 = vmatpush1.bf16.xpose.msra.mxu0 0
        %7337 = vmatprep.subr.bf16.mxu0 0
        %7338 = vmatpush1.bf16.xpose.msra.mxu0 0
        %7339 = vmatprep.subr.bf16.mxu0 0
        %7340 = vmatpush1.bf16.xpose.msra.mxu0 0
        %7341 = vmatprep.subr.bf16.mxu0 0
        %7342 = vmatpush1.bf16.xpose.msra.mxu0 0
        %7343 = vmatprep.subr.bf16.mxu0 0
        %7344 = vmatpush1.bf16.xpose.msra.mxu0 0
        %7345 = vmatprep.subr.bf16.mxu0 0
        %7346 = vmatpush1.bf16.xpose.msra.mxu0 0
        %7347 = vmatprep.subr.bf16.mxu0 0
        %7348 = vmatpush1.bf16.xpose.msra.mxu0 0
        %7349 = vmatprep.mubr.bf16.mxu0 1065369472
        %7350 = vmatmul.mubr.bf16.gmra.mrb[0].mxu0 1065369472
        %v7351 = vpop.f32.mrb[0].mxu0
        %v7352 = vadd.f32 %v7312, %v7351
        %v7353 = vpop.f32.mrb[0].mxu0
        %v7354 = vpop.f32.mrb[0].mxu0
        %v7355 = vpop.f32.mrb[0].mxu0
        %7356 = vdwg.mxu0
        %7357 = vmatprep.subr.bf16.mxu0 %v1332
        %7358 = vmatpush1.bf16.xpose.msra.mxu0 %v1331
        %7359 = vmatprep.subr.bf16.mxu0 0
        %7360 = vmatpush1.bf16.xpose.msra.mxu0 0
        %7361 = vmatprep.subr.bf16.mxu0 0
        %7362 = vmatpush1.bf16.xpose.msra.mxu0 0
        %7363 = vmatprep.subr.bf16.mxu0 0
        %7364 = vmatpush1.bf16.xpose.msra.mxu0 0
        %7365 = vmatprep.subr.bf16.mxu0 0
        %7366 = vmatpush1.bf16.xpose.msra.mxu0 0
        %7367 = vmatprep.subr.bf16.mxu0 0
        %7368 = vmatpush1.bf16.xpose.msra.mxu0 0
        %7369 = vmatprep.subr.bf16.mxu0 0
        %7370 = vmatpush1.bf16.xpose.msra.mxu0 0
        %7371 = vmatprep.subr.bf16.mxu0 0
        %7372 = vmatpush1.bf16.xpose.msra.mxu0 0
        %7373 = vmatprep.subr.bf16.mxu0 0
        %7374 = vmatpush1.bf16.xpose.msra.mxu0 0
        %7375 = vmatprep.subr.bf16.mxu0 0
        %7376 = vmatpush1.bf16.xpose.msra.mxu0 0
        %7377 = vmatprep.subr.bf16.mxu0 0
        %7378 = vmatpush1.bf16.xpose.msra.mxu0 0
        %7379 = vmatprep.subr.bf16.mxu0 0
        %7380 = vmatpush1.bf16.xpose.msra.mxu0 0
        %7381 = vmatprep.subr.bf16.mxu0 0
        %7382 = vmatpush1.bf16.xpose.msra.mxu0 0
        %7383 = vmatprep.subr.bf16.mxu0 0
        %7384 = vmatpush1.bf16.xpose.msra.mxu0 0
        %7385 = vmatprep.subr.bf16.mxu0 0
        %7386 = vmatpush1.bf16.xpose.msra.mxu0 0
        %7387 = vmatprep.subr.bf16.mxu0 0
        %7388 = vmatpush1.bf16.xpose.msra.mxu0 0
        %7389 = vmatprep.mubr.bf16.mxu0 1065369472
        %7390 = vmatmul.mubr.bf16.gmra.mrb[0].mxu0 1065369472
        %v7391 = vpop.f32.mrb[0].mxu0
        %v7392 = vadd.f32 %v7352, %v7391
        %v7393 = vpop.f32.mrb[0].mxu0
        %v7394 = vpop.f32.mrb[0].mxu0
        %v7395 = vpop.f32.mrb[0].mxu0
        %7396 = vdwg.mxu0
        %7397 = vmatprep.subr.bf16.mxu0 %v1334
        %7398 = vmatpush1.bf16.xpose.msra.mxu0 %v1333
        %7399 = vmatprep.subr.bf16.mxu0 0
        %7400 = vmatpush1.bf16.xpose.msra.mxu0 0
        %7401 = vmatprep.subr.bf16.mxu0 0
        %7402 = vmatpush1.bf16.xpose.msra.mxu0 0
        %7403 = vmatprep.subr.bf16.mxu0 0
        %7404 = vmatpush1.bf16.xpose.msra.mxu0 0
        %7405 = vmatprep.subr.bf16.mxu0 0
        %7406 = vmatpush1.bf16.xpose.msra.mxu0 0
        %7407 = vmatprep.subr.bf16.mxu0 0
        %7408 = vmatpush1.bf16.xpose.msra.mxu0 0
        %7409 = vmatprep.subr.bf16.mxu0 0
        %7410 = vmatpush1.bf16.xpose.msra.mxu0 0
        %7411 = vmatprep.subr.bf16.mxu0 0
        %7412 = vmatpush1.bf16.xpose.msra.mxu0 0
        %7413 = vmatprep.subr.bf16.mxu0 0
        %7414 = vmatpush1.bf16.xpose.msra.mxu0 0
        %7415 = vmatprep.subr.bf16.mxu0 0
        %7416 = vmatpush1.bf16.xpose.msra.mxu0 0
        %7417 = vmatprep.subr.bf16.mxu0 0
        %7418 = vmatpush1.bf16.xpose.msra.mxu0 0
        %7419 = vmatprep.subr.bf16.mxu0 0
        %7420 = vmatpush1.bf16.xpose.msra.mxu0 0
        %7421 = vmatprep.subr.bf16.mxu0 0
        %7422 = vmatpush1.bf16.xpose.msra.mxu0 0
        %7423 = vmatprep.subr.bf16.mxu0 0
        %7424 = vmatpush1.bf16.xpose.msra.mxu0 0
        %7425 = vmatprep.subr.bf16.mxu0 0
        %7426 = vmatpush1.bf16.xpose.msra.mxu0 0
        %7427 = vmatprep.subr.bf16.mxu0 0
        %7428 = vmatpush1.bf16.xpose.msra.mxu0 0
        %7429 = vmatprep.mubr.bf16.mxu0 1065369472
        %7430 = vmatmul.mubr.bf16.gmra.mrb[0].mxu0 1065369472
        %v7431 = vpop.f32.mrb[0].mxu0
        %v7432 = vadd.f32 %v7392, %v7431
        %v7433 = vpop.f32.mrb[0].mxu0
        %v7434 = vpop.f32.mrb[0].mxu0
        %v7435 = vpop.f32.mrb[0].mxu0
        %7436 = vdwg.mxu0
        %7437 = vmatprep.subr.bf16.mxu0 %v1336
        %7438 = vmatpush1.bf16.xpose.msra.mxu0 %v1335
        %7439 = vmatprep.subr.bf16.mxu0 0
        %7440 = vmatpush1.bf16.xpose.msra.mxu0 0
        %7441 = vmatprep.subr.bf16.mxu0 0
        %7442 = vmatpush1.bf16.xpose.msra.mxu0 0
        %7443 = vmatprep.subr.bf16.mxu0 0
        %7444 = vmatpush1.bf16.xpose.msra.mxu0 0
        %7445 = vmatprep.subr.bf16.mxu0 0
        %7446 = vmatpush1.bf16.xpose.msra.mxu0 0
        %7447 = vmatprep.subr.bf16.mxu0 0
        %7448 = vmatpush1.bf16.xpose.msra.mxu0 0
        %7449 = vmatprep.subr.bf16.mxu0 0
        %7450 = vmatpush1.bf16.xpose.msra.mxu0 0
        %7451 = vmatprep.subr.bf16.mxu0 0
        %7452 = vmatpush1.bf16.xpose.msra.mxu0 0
        %7453 = vmatprep.subr.bf16.mxu0 0
        %7454 = vmatpush1.bf16.xpose.msra.mxu0 0
        %7455 = vmatprep.subr.bf16.mxu0 0
        %7456 = vmatpush1.bf16.xpose.msra.mxu0 0
        %7457 = vmatprep.subr.bf16.mxu0 0
        %7458 = vmatpush1.bf16.xpose.msra.mxu0 0
        %7459 = vmatprep.subr.bf16.mxu0 0
        %7460 = vmatpush1.bf16.xpose.msra.mxu0 0
        %7461 = vmatprep.subr.bf16.mxu0 0
        %7462 = vmatpush1.bf16.xpose.msra.mxu0 0
        %7463 = vmatprep.subr.bf16.mxu0 0
        %7464 = vmatpush1.bf16.xpose.msra.mxu0 0
        %7465 = vmatprep.subr.bf16.mxu0 0
        %7466 = vmatpush1.bf16.xpose.msra.mxu0 0
        %7467 = vmatprep.subr.bf16.mxu0 0
        %7468 = vmatpush1.bf16.xpose.msra.mxu0 0
        %7469 = vmatprep.mubr.bf16.mxu0 1065369472
        %7470 = vmatmul.mubr.bf16.gmra.mrb[0].mxu0 1065369472
        %v7471 = vpop.f32.mrb[0].mxu0
        %v7472 = vadd.f32 %v7432, %v7471
        %v7473 = vpop.f32.mrb[0].mxu0
        %v7474 = vpop.f32.mrb[0].mxu0
        %v7475 = vpop.f32.mrb[0].mxu0
        %7476 = vdwg.mxu0
        %7477 = vmatprep.subr.bf16.mxu0 %v1338
        %7478 = vmatpush1.bf16.xpose.msra.mxu0 %v1337
        %7479 = vmatprep.subr.bf16.mxu0 0
        %7480 = vmatpush1.bf16.xpose.msra.mxu0 0
        %7481 = vmatprep.subr.bf16.mxu0 0
        %7482 = vmatpush1.bf16.xpose.msra.mxu0 0
        %7483 = vmatprep.subr.bf16.mxu0 0
        %7484 = vmatpush1.bf16.xpose.msra.mxu0 0
        %7485 = vmatprep.subr.bf16.mxu0 0
        %7486 = vmatpush1.bf16.xpose.msra.mxu0 0
        %7487 = vmatprep.subr.bf16.mxu0 0
        %7488 = vmatpush1.bf16.xpose.msra.mxu0 0
        %7489 = vmatprep.subr.bf16.mxu0 0
        %7490 = vmatpush1.bf16.xpose.msra.mxu0 0
        %7491 = vmatprep.subr.bf16.mxu0 0
        %7492 = vmatpush1.bf16.xpose.msra.mxu0 0
        %7493 = vmatprep.subr.bf16.mxu0 0
        %7494 = vmatpush1.bf16.xpose.msra.mxu0 0
        %7495 = vmatprep.subr.bf16.mxu0 0
        %7496 = vmatpush1.bf16.xpose.msra.mxu0 0
        %7497 = vmatprep.subr.bf16.mxu0 0
        %7498 = vmatpush1.bf16.xpose.msra.mxu0 0
        %7499 = vmatprep.subr.bf16.mxu0 0
        %7500 = vmatpush1.bf16.xpose.msra.mxu0 0
        %7501 = vmatprep.subr.bf16.mxu0 0
        %7502 = vmatpush1.bf16.xpose.msra.mxu0 0
        %7503 = vmatprep.subr.bf16.mxu0 0
        %7504 = vmatpush1.bf16.xpose.msra.mxu0 0
        %7505 = vmatprep.subr.bf16.mxu0 0
        %7506 = vmatpush1.bf16.xpose.msra.mxu0 0
        %7507 = vmatprep.subr.bf16.mxu0 0
        %7508 = vmatpush1.bf16.xpose.msra.mxu0 0
        %7509 = vmatprep.mubr.bf16.mxu0 1065369472
        %7510 = vmatmul.mubr.bf16.gmra.mrb[0].mxu0 1065369472
        %v7511 = vpop.f32.mrb[0].mxu0
        %v7512 = vadd.f32 %v7472, %v7511
        %v7513 = vpop.f32.mrb[0].mxu0
        %v7514 = vpop.f32.mrb[0].mxu0
        %v7515 = vpop.f32.mrb[0].mxu0
        %7516 = vdwg.mxu0
        %7517 = vmatprep.subr.bf16.mxu0 %v1340
        %7518 = vmatpush1.bf16.xpose.msra.mxu0 %v1339
        %7519 = vmatprep.subr.bf16.mxu0 0
        %7520 = vmatpush1.bf16.xpose.msra.mxu0 0
        %7521 = vmatprep.subr.bf16.mxu0 0
        %7522 = vmatpush1.bf16.xpose.msra.mxu0 0
        %7523 = vmatprep.subr.bf16.mxu0 0
        %7524 = vmatpush1.bf16.xpose.msra.mxu0 0
        %7525 = vmatprep.subr.bf16.mxu0 0
        %7526 = vmatpush1.bf16.xpose.msra.mxu0 0
        %7527 = vmatprep.subr.bf16.mxu0 0
        %7528 = vmatpush1.bf16.xpose.msra.mxu0 0
        %7529 = vmatprep.subr.bf16.mxu0 0
        %7530 = vmatpush1.bf16.xpose.msra.mxu0 0
        %7531 = vmatprep.subr.bf16.mxu0 0
        %7532 = vmatpush1.bf16.xpose.msra.mxu0 0
        %7533 = vmatprep.subr.bf16.mxu0 0
        %7534 = vmatpush1.bf16.xpose.msra.mxu0 0
        %7535 = vmatprep.subr.bf16.mxu0 0
        %7536 = vmatpush1.bf16.xpose.msra.mxu0 0
        %7537 = vmatprep.subr.bf16.mxu0 0
        %7538 = vmatpush1.bf16.xpose.msra.mxu0 0
        %7539 = vmatprep.subr.bf16.mxu0 0
        %7540 = vmatpush1.bf16.xpose.msra.mxu0 0
        %7541 = vmatprep.subr.bf16.mxu0 0
        %7542 = vmatpush1.bf16.xpose.msra.mxu0 0
        %7543 = vmatprep.subr.bf16.mxu0 0
        %7544 = vmatpush1.bf16.xpose.msra.mxu0 0
        %7545 = vmatprep.subr.bf16.mxu0 0
        %7546 = vmatpush1.bf16.xpose.msra.mxu0 0
        %7547 = vmatprep.subr.bf16.mxu0 0
        %7548 = vmatpush1.bf16.xpose.msra.mxu0 0
        %7549 = vmatprep.mubr.bf16.mxu0 1065369472
        %7550 = vmatmul.mubr.bf16.gmra.mrb[0].mxu0 1065369472
        %v7551 = vpop.f32.mrb[0].mxu0
        %v7552 = vadd.f32 %v7512, %v7551
        %v7553 = vpop.f32.mrb[0].mxu0
        %v7554 = vpop.f32.mrb[0].mxu0
        %v7555 = vpop.f32.mrb[0].mxu0
        %7556 = vdwg.mxu0
        %7557 = vmatprep.subr.bf16.mxu0 %v1342
        %7558 = vmatpush1.bf16.xpose.msra.mxu0 %v1341
        %7559 = vmatprep.subr.bf16.mxu0 0
        %7560 = vmatpush1.bf16.xpose.msra.mxu0 0
        %7561 = vmatprep.subr.bf16.mxu0 0
        %7562 = vmatpush1.bf16.xpose.msra.mxu0 0
        %7563 = vmatprep.subr.bf16.mxu0 0
        %7564 = vmatpush1.bf16.xpose.msra.mxu0 0
        %7565 = vmatprep.subr.bf16.mxu0 0
        %7566 = vmatpush1.bf16.xpose.msra.mxu0 0
        %7567 = vmatprep.subr.bf16.mxu0 0
        %7568 = vmatpush1.bf16.xpose.msra.mxu0 0
        %7569 = vmatprep.subr.bf16.mxu0 0
        %7570 = vmatpush1.bf16.xpose.msra.mxu0 0
        %7571 = vmatprep.subr.bf16.mxu0 0
        %7572 = vmatpush1.bf16.xpose.msra.mxu0 0
        %7573 = vmatprep.subr.bf16.mxu0 0
        %7574 = vmatpush1.bf16.xpose.msra.mxu0 0
        %7575 = vmatprep.subr.bf16.mxu0 0
        %7576 = vmatpush1.bf16.xpose.msra.mxu0 0
        %7577 = vmatprep.subr.bf16.mxu0 0
        %7578 = vmatpush1.bf16.xpose.msra.mxu0 0
        %7579 = vmatprep.subr.bf16.mxu0 0
        %7580 = vmatpush1.bf16.xpose.msra.mxu0 0
        %7581 = vmatprep.subr.bf16.mxu0 0
        %7582 = vmatpush1.bf16.xpose.msra.mxu0 0
        %7583 = vmatprep.subr.bf16.mxu0 0
        %7584 = vmatpush1.bf16.xpose.msra.mxu0 0
        %7585 = vmatprep.subr.bf16.mxu0 0
        %7586 = vmatpush1.bf16.xpose.msra.mxu0 0
        %7587 = vmatprep.subr.bf16.mxu0 0
        %7588 = vmatpush1.bf16.xpose.msra.mxu0 0
        %7589 = vmatprep.mubr.bf16.mxu0 1065369472
        %7590 = vmatmul.mubr.bf16.gmra.mrb[0].mxu0 1065369472
        %v7591 = vpop.f32.mrb[0].mxu0
        %v7592 = vadd.f32 %v7552, %v7591
        %v7593 = vpop.f32.mrb[0].mxu0
        %v7594 = vpop.f32.mrb[0].mxu0
        %v7595 = vpop.f32.mrb[0].mxu0
        %7596 = vdwg.mxu0
        %7597 = vmatprep.subr.bf16.mxu0 %v1344
        %7598 = vmatpush1.bf16.xpose.msra.mxu0 %v1343
        %7599 = vmatprep.subr.bf16.mxu0 0
        %7600 = vmatpush1.bf16.xpose.msra.mxu0 0
        %7601 = vmatprep.subr.bf16.mxu0 0
        %7602 = vmatpush1.bf16.xpose.msra.mxu0 0
        %7603 = vmatprep.subr.bf16.mxu0 0
        %7604 = vmatpush1.bf16.xpose.msra.mxu0 0
        %7605 = vmatprep.subr.bf16.mxu0 0
        %7606 = vmatpush1.bf16.xpose.msra.mxu0 0
        %7607 = vmatprep.subr.bf16.mxu0 0
        %7608 = vmatpush1.bf16.xpose.msra.mxu0 0
        %7609 = vmatprep.subr.bf16.mxu0 0
        %7610 = vmatpush1.bf16.xpose.msra.mxu0 0
        %7611 = vmatprep.subr.bf16.mxu0 0
        %7612 = vmatpush1.bf16.xpose.msra.mxu0 0
        %7613 = vmatprep.subr.bf16.mxu0 0
        %7614 = vmatpush1.bf16.xpose.msra.mxu0 0
        %7615 = vmatprep.subr.bf16.mxu0 0
        %7616 = vmatpush1.bf16.xpose.msra.mxu0 0
        %7617 = vmatprep.subr.bf16.mxu0 0
        %7618 = vmatpush1.bf16.xpose.msra.mxu0 0
        %7619 = vmatprep.subr.bf16.mxu0 0
        %7620 = vmatpush1.bf16.xpose.msra.mxu0 0
        %7621 = vmatprep.subr.bf16.mxu0 0
        %7622 = vmatpush1.bf16.xpose.msra.mxu0 0
        %7623 = vmatprep.subr.bf16.mxu0 0
        %7624 = vmatpush1.bf16.xpose.msra.mxu0 0
        %7625 = vmatprep.subr.bf16.mxu0 0
        %7626 = vmatpush1.bf16.xpose.msra.mxu0 0
        %7627 = vmatprep.subr.bf16.mxu0 0
        %7628 = vmatpush1.bf16.xpose.msra.mxu0 0
        %7629 = vmatprep.mubr.bf16.mxu0 1065369472
        %7630 = vmatmul.mubr.bf16.gmra.mrb[0].mxu0 1065369472
        %v7631 = vpop.f32.mrb[0].mxu0
        %v7632 = vadd.f32 %v7592, %v7631
        %v7633 = vpop.f32.mrb[0].mxu0
        %v7634 = vpop.f32.mrb[0].mxu0
        %v7635 = vpop.f32.mrb[0].mxu0
        %7636 = vdwg.mxu0
        %7637 = vmatprep.subr.bf16.mxu0 %v1346
        %7638 = vmatpush1.bf16.xpose.msra.mxu0 %v1345
        %7639 = vmatprep.subr.bf16.mxu0 0
        %7640 = vmatpush1.bf16.xpose.msra.mxu0 0
        %7641 = vmatprep.subr.bf16.mxu0 0
        %7642 = vmatpush1.bf16.xpose.msra.mxu0 0
        %7643 = vmatprep.subr.bf16.mxu0 0
        %7644 = vmatpush1.bf16.xpose.msra.mxu0 0
        %7645 = vmatprep.subr.bf16.mxu0 0
        %7646 = vmatpush1.bf16.xpose.msra.mxu0 0
        %7647 = vmatprep.subr.bf16.mxu0 0
        %7648 = vmatpush1.bf16.xpose.msra.mxu0 0
        %7649 = vmatprep.subr.bf16.mxu0 0
        %7650 = vmatpush1.bf16.xpose.msra.mxu0 0
        %7651 = vmatprep.subr.bf16.mxu0 0
        %7652 = vmatpush1.bf16.xpose.msra.mxu0 0
        %7653 = vmatprep.subr.bf16.mxu0 0
        %7654 = vmatpush1.bf16.xpose.msra.mxu0 0
        %7655 = vmatprep.subr.bf16.mxu0 0
        %7656 = vmatpush1.bf16.xpose.msra.mxu0 0
        %7657 = vmatprep.subr.bf16.mxu0 0
        %7658 = vmatpush1.bf16.xpose.msra.mxu0 0
        %7659 = vmatprep.subr.bf16.mxu0 0
        %7660 = vmatpush1.bf16.xpose.msra.mxu0 0
        %7661 = vmatprep.subr.bf16.mxu0 0
        %7662 = vmatpush1.bf16.xpose.msra.mxu0 0
        %7663 = vmatprep.subr.bf16.mxu0 0
        %7664 = vmatpush1.bf16.xpose.msra.mxu0 0
        %7665 = vmatprep.subr.bf16.mxu0 0
        %7666 = vmatpush1.bf16.xpose.msra.mxu0 0
        %7667 = vmatprep.subr.bf16.mxu0 0
        %7668 = vmatpush1.bf16.xpose.msra.mxu0 0
        %7669 = vmatprep.mubr.bf16.mxu0 1065369472
        %7670 = vmatmul.mubr.bf16.gmra.mrb[0].mxu0 1065369472
        %v7671 = vpop.f32.mrb[0].mxu0
        %v7672 = vadd.f32 %v7632, %v7671
        %v7673 = vpop.f32.mrb[0].mxu0
        %v7674 = vpop.f32.mrb[0].mxu0
        %v7675 = vpop.f32.mrb[0].mxu0
        %7676 = vdwg.mxu0
        %7677 = vmatprep.subr.bf16.mxu0 %v1348
        %7678 = vmatpush1.bf16.xpose.msra.mxu0 %v1347
        %7679 = vmatprep.subr.bf16.mxu0 0
        %7680 = vmatpush1.bf16.xpose.msra.mxu0 0
        %7681 = vmatprep.subr.bf16.mxu0 0
        %7682 = vmatpush1.bf16.xpose.msra.mxu0 0
        %7683 = vmatprep.subr.bf16.mxu0 0
        %7684 = vmatpush1.bf16.xpose.msra.mxu0 0
        %7685 = vmatprep.subr.bf16.mxu0 0
        %7686 = vmatpush1.bf16.xpose.msra.mxu0 0
        %7687 = vmatprep.subr.bf16.mxu0 0
        %7688 = vmatpush1.bf16.xpose.msra.mxu0 0
        %7689 = vmatprep.subr.bf16.mxu0 0
        %7690 = vmatpush1.bf16.xpose.msra.mxu0 0
        %7691 = vmatprep.subr.bf16.mxu0 0
        %7692 = vmatpush1.bf16.xpose.msra.mxu0 0
        %7693 = vmatprep.subr.bf16.mxu0 0
        %7694 = vmatpush1.bf16.xpose.msra.mxu0 0
        %7695 = vmatprep.subr.bf16.mxu0 0
        %7696 = vmatpush1.bf16.xpose.msra.mxu0 0
        %7697 = vmatprep.subr.bf16.mxu0 0
        %7698 = vmatpush1.bf16.xpose.msra.mxu0 0
        %7699 = vmatprep.subr.bf16.mxu0 0
        %7700 = vmatpush1.bf16.xpose.msra.mxu0 0
        %7701 = vmatprep.subr.bf16.mxu0 0
        %7702 = vmatpush1.bf16.xpose.msra.mxu0 0
        %7703 = vmatprep.subr.bf16.mxu0 0
        %7704 = vmatpush1.bf16.xpose.msra.mxu0 0
        %7705 = vmatprep.subr.bf16.mxu0 0
        %7706 = vmatpush1.bf16.xpose.msra.mxu0 0
        %7707 = vmatprep.subr.bf16.mxu0 0
        %7708 = vmatpush1.bf16.xpose.msra.mxu0 0
        %7709 = vmatprep.mubr.bf16.mxu0 1065369472
        %7710 = vmatmul.mubr.bf16.gmra.mrb[0].mxu0 1065369472
        %v7711 = vpop.f32.mrb[0].mxu0
        %v7712 = vadd.f32 %v7672, %v7711
        %v7713 = vpop.f32.mrb[0].mxu0
        %v7714 = vpop.f32.mrb[0].mxu0
        %v7715 = vpop.f32.mrb[0].mxu0
        %7716 = vdwg.mxu0
        %7717 = vmatprep.subr.bf16.mxu0 %v1350
        %7718 = vmatpush1.bf16.xpose.msra.mxu0 %v1349
        %7719 = vmatprep.subr.bf16.mxu0 0
        %7720 = vmatpush1.bf16.xpose.msra.mxu0 0
        %7721 = vmatprep.subr.bf16.mxu0 0
        %7722 = vmatpush1.bf16.xpose.msra.mxu0 0
        %7723 = vmatprep.subr.bf16.mxu0 0
        %7724 = vmatpush1.bf16.xpose.msra.mxu0 0
        %7725 = vmatprep.subr.bf16.mxu0 0
        %7726 = vmatpush1.bf16.xpose.msra.mxu0 0
        %7727 = vmatprep.subr.bf16.mxu0 0
        %7728 = vmatpush1.bf16.xpose.msra.mxu0 0
        %7729 = vmatprep.subr.bf16.mxu0 0
        %7730 = vmatpush1.bf16.xpose.msra.mxu0 0
        %7731 = vmatprep.subr.bf16.mxu0 0
        %7732 = vmatpush1.bf16.xpose.msra.mxu0 0
        %7733 = vmatprep.subr.bf16.mxu0 0
        %7734 = vmatpush1.bf16.xpose.msra.mxu0 0
        %7735 = vmatprep.subr.bf16.mxu0 0
        %7736 = vmatpush1.bf16.xpose.msra.mxu0 0
        %7737 = vmatprep.subr.bf16.mxu0 0
        %7738 = vmatpush1.bf16.xpose.msra.mxu0 0
        %7739 = vmatprep.subr.bf16.mxu0 0
        %7740 = vmatpush1.bf16.xpose.msra.mxu0 0
        %7741 = vmatprep.subr.bf16.mxu0 0
        %7742 = vmatpush1.bf16.xpose.msra.mxu0 0
        %7743 = vmatprep.subr.bf16.mxu0 0
        %7744 = vmatpush1.bf16.xpose.msra.mxu0 0
        %7745 = vmatprep.subr.bf16.mxu0 0
        %7746 = vmatpush1.bf16.xpose.msra.mxu0 0
        %7747 = vmatprep.subr.bf16.mxu0 0
        %7748 = vmatpush1.bf16.xpose.msra.mxu0 0
        %7749 = vmatprep.mubr.bf16.mxu0 1065369472
        %7750 = vmatmul.mubr.bf16.gmra.mrb[0].mxu0 1065369472
        %v7751 = vpop.f32.mrb[0].mxu0
        %v7752 = vadd.f32 %v7712, %v7751
        %v7753 = vpop.f32.mrb[0].mxu0
        %v7754 = vpop.f32.mrb[0].mxu0
        %v7755 = vpop.f32.mrb[0].mxu0
        %7756 = vdwg.mxu0
        %7757 = vmatprep.subr.bf16.mxu0 %v1352
        %7758 = vmatpush1.bf16.xpose.msra.mxu0 %v1351
        %7759 = vmatprep.subr.bf16.mxu0 0
        %7760 = vmatpush1.bf16.xpose.msra.mxu0 0
        %7761 = vmatprep.subr.bf16.mxu0 0
        %7762 = vmatpush1.bf16.xpose.msra.mxu0 0
        %7763 = vmatprep.subr.bf16.mxu0 0
        %7764 = vmatpush1.bf16.xpose.msra.mxu0 0
        %7765 = vmatprep.subr.bf16.mxu0 0
        %7766 = vmatpush1.bf16.xpose.msra.mxu0 0
        %7767 = vmatprep.subr.bf16.mxu0 0
        %7768 = vmatpush1.bf16.xpose.msra.mxu0 0
        %7769 = vmatprep.subr.bf16.mxu0 0
        %7770 = vmatpush1.bf16.xpose.msra.mxu0 0
        %7771 = vmatprep.subr.bf16.mxu0 0
        %7772 = vmatpush1.bf16.xpose.msra.mxu0 0
        %7773 = vmatprep.subr.bf16.mxu0 0
        %7774 = vmatpush1.bf16.xpose.msra.mxu0 0
        %7775 = vmatprep.subr.bf16.mxu0 0
        %7776 = vmatpush1.bf16.xpose.msra.mxu0 0
        %7777 = vmatprep.subr.bf16.mxu0 0
        %7778 = vmatpush1.bf16.xpose.msra.mxu0 0
        %7779 = vmatprep.subr.bf16.mxu0 0
        %7780 = vmatpush1.bf16.xpose.msra.mxu0 0
        %7781 = vmatprep.subr.bf16.mxu0 0
        %7782 = vmatpush1.bf16.xpose.msra.mxu0 0
        %7783 = vmatprep.subr.bf16.mxu0 0
        %7784 = vmatpush1.bf16.xpose.msra.mxu0 0
        %7785 = vmatprep.subr.bf16.mxu0 0
        %7786 = vmatpush1.bf16.xpose.msra.mxu0 0
        %7787 = vmatprep.subr.bf16.mxu0 0
        %7788 = vmatpush1.bf16.xpose.msra.mxu0 0
        %7789 = vmatprep.mubr.bf16.mxu0 1065369472
        %7790 = vmatmul.mubr.bf16.gmra.mrb[0].mxu0 1065369472
        %v7791 = vpop.f32.mrb[0].mxu0
        %v7792 = vadd.f32 %v7752, %v7791
        %v7793 = vpop.f32.mrb[0].mxu0
        %v7794 = vpop.f32.mrb[0].mxu0
        %v7795 = vpop.f32.mrb[0].mxu0
        %7796 = vdwg.mxu0
        %7797 = vmatprep.subr.bf16.mxu0 %v1354
        %7798 = vmatpush1.bf16.xpose.msra.mxu0 %v1353
        %7799 = vmatprep.subr.bf16.mxu0 0
        %7800 = vmatpush1.bf16.xpose.msra.mxu0 0
        %7801 = vmatprep.subr.bf16.mxu0 0
        %7802 = vmatpush1.bf16.xpose.msra.mxu0 0
        %7803 = vmatprep.subr.bf16.mxu0 0
        %7804 = vmatpush1.bf16.xpose.msra.mxu0 0
        %7805 = vmatprep.subr.bf16.mxu0 0
        %7806 = vmatpush1.bf16.xpose.msra.mxu0 0
        %7807 = vmatprep.subr.bf16.mxu0 0
        %7808 = vmatpush1.bf16.xpose.msra.mxu0 0
        %7809 = vmatprep.subr.bf16.mxu0 0
        %7810 = vmatpush1.bf16.xpose.msra.mxu0 0
        %7811 = vmatprep.subr.bf16.mxu0 0
        %7812 = vmatpush1.bf16.xpose.msra.mxu0 0
        %7813 = vmatprep.subr.bf16.mxu0 0
        %7814 = vmatpush1.bf16.xpose.msra.mxu0 0
        %7815 = vmatprep.subr.bf16.mxu0 0
        %7816 = vmatpush1.bf16.xpose.msra.mxu0 0
        %7817 = vmatprep.subr.bf16.mxu0 0
        %7818 = vmatpush1.bf16.xpose.msra.mxu0 0
        %7819 = vmatprep.subr.bf16.mxu0 0
        %7820 = vmatpush1.bf16.xpose.msra.mxu0 0
        %7821 = vmatprep.subr.bf16.mxu0 0
        %7822 = vmatpush1.bf16.xpose.msra.mxu0 0
        %7823 = vmatprep.subr.bf16.mxu0 0
        %7824 = vmatpush1.bf16.xpose.msra.mxu0 0
        %7825 = vmatprep.subr.bf16.mxu0 0
        %7826 = vmatpush1.bf16.xpose.msra.mxu0 0
        %7827 = vmatprep.subr.bf16.mxu0 0
        %7828 = vmatpush1.bf16.xpose.msra.mxu0 0
        %7829 = vmatprep.mubr.bf16.mxu0 1065369472
        %7830 = vmatmul.mubr.bf16.gmra.mrb[0].mxu0 1065369472
        %v7831 = vpop.f32.mrb[0].mxu0
        %v7832 = vadd.f32 %v7792, %v7831
        %v7833 = vpop.f32.mrb[0].mxu0
        %v7834 = vpop.f32.mrb[0].mxu0
        %v7835 = vpop.f32.mrb[0].mxu0
        %7836 = vdwg.mxu0
        %7837 = vmatprep.subr.bf16.mxu0 %v1356
        %7838 = vmatpush1.bf16.xpose.msra.mxu0 %v1355
        %7839 = vmatprep.subr.bf16.mxu0 0
        %7840 = vmatpush1.bf16.xpose.msra.mxu0 0
        %7841 = vmatprep.subr.bf16.mxu0 0
        %7842 = vmatpush1.bf16.xpose.msra.mxu0 0
        %7843 = vmatprep.subr.bf16.mxu0 0
        %7844 = vmatpush1.bf16.xpose.msra.mxu0 0
        %7845 = vmatprep.subr.bf16.mxu0 0
        %7846 = vmatpush1.bf16.xpose.msra.mxu0 0
        %7847 = vmatprep.subr.bf16.mxu0 0
        %7848 = vmatpush1.bf16.xpose.msra.mxu0 0
        %7849 = vmatprep.subr.bf16.mxu0 0
        %7850 = vmatpush1.bf16.xpose.msra.mxu0 0
        %7851 = vmatprep.subr.bf16.mxu0 0
        %7852 = vmatpush1.bf16.xpose.msra.mxu0 0
        %7853 = vmatprep.subr.bf16.mxu0 0
        %7854 = vmatpush1.bf16.xpose.msra.mxu0 0
        %7855 = vmatprep.subr.bf16.mxu0 0
        %7856 = vmatpush1.bf16.xpose.msra.mxu0 0
        %7857 = vmatprep.subr.bf16.mxu0 0
        %7858 = vmatpush1.bf16.xpose.msra.mxu0 0
        %7859 = vmatprep.subr.bf16.mxu0 0
        %7860 = vmatpush1.bf16.xpose.msra.mxu0 0
        %7861 = vmatprep.subr.bf16.mxu0 0
        %7862 = vmatpush1.bf16.xpose.msra.mxu0 0
        %7863 = vmatprep.subr.bf16.mxu0 0
        %7864 = vmatpush1.bf16.xpose.msra.mxu0 0
        %7865 = vmatprep.subr.bf16.mxu0 0
        %7866 = vmatpush1.bf16.xpose.msra.mxu0 0
        %7867 = vmatprep.subr.bf16.mxu0 0
        %7868 = vmatpush1.bf16.xpose.msra.mxu0 0
        %7869 = vmatprep.mubr.bf16.mxu0 1065369472
        %7870 = vmatmul.mubr.bf16.gmra.mrb[0].mxu0 1065369472
        %v7871 = vpop.f32.mrb[0].mxu0
        %v7872 = vadd.f32 %v7832, %v7871
        %v7873 = vpop.f32.mrb[0].mxu0
        %v7874 = vpop.f32.mrb[0].mxu0
        %v7875 = vpop.f32.mrb[0].mxu0
        %7876 = vdwg.mxu0
        %7877 = vmatprep.subr.bf16.mxu0 %v1358
        %7878 = vmatpush1.bf16.xpose.msra.mxu0 %v1357
        %7879 = vmatprep.subr.bf16.mxu0 0
        %7880 = vmatpush1.bf16.xpose.msra.mxu0 0
        %7881 = vmatprep.subr.bf16.mxu0 0
        %7882 = vmatpush1.bf16.xpose.msra.mxu0 0
        %7883 = vmatprep.subr.bf16.mxu0 0
        %7884 = vmatpush1.bf16.xpose.msra.mxu0 0
        %7885 = vmatprep.subr.bf16.mxu0 0
        %7886 = vmatpush1.bf16.xpose.msra.mxu0 0
        %7887 = vmatprep.subr.bf16.mxu0 0
        %7888 = vmatpush1.bf16.xpose.msra.mxu0 0
        %7889 = vmatprep.subr.bf16.mxu0 0
        %7890 = vmatpush1.bf16.xpose.msra.mxu0 0
        %7891 = vmatprep.subr.bf16.mxu0 0
        %7892 = vmatpush1.bf16.xpose.msra.mxu0 0
        %7893 = vmatprep.subr.bf16.mxu0 0
        %7894 = vmatpush1.bf16.xpose.msra.mxu0 0
        %7895 = vmatprep.subr.bf16.mxu0 0
        %7896 = vmatpush1.bf16.xpose.msra.mxu0 0
        %7897 = vmatprep.subr.bf16.mxu0 0
        %7898 = vmatpush1.bf16.xpose.msra.mxu0 0
        %7899 = vmatprep.subr.bf16.mxu0 0
        %7900 = vmatpush1.bf16.xpose.msra.mxu0 0
        %7901 = vmatprep.subr.bf16.mxu0 0
        %7902 = vmatpush1.bf16.xpose.msra.mxu0 0
        %7903 = vmatprep.subr.bf16.mxu0 0
        %7904 = vmatpush1.bf16.xpose.msra.mxu0 0
        %7905 = vmatprep.subr.bf16.mxu0 0
        %7906 = vmatpush1.bf16.xpose.msra.mxu0 0
        %7907 = vmatprep.subr.bf16.mxu0 0
        %7908 = vmatpush1.bf16.xpose.msra.mxu0 0
        %7909 = vmatprep.mubr.bf16.mxu0 1065369472
        %7910 = vmatmul.mubr.bf16.gmra.mrb[0].mxu0 1065369472
        %v7911 = vpop.f32.mrb[0].mxu0
        %v7912 = vadd.f32 %v7872, %v7911
        %v7913 = vpop.f32.mrb[0].mxu0
        %v7914 = vpop.f32.mrb[0].mxu0
        %v7915 = vpop.f32.mrb[0].mxu0
        %7916 = vdwg.mxu0
        %7917 = vmatprep.subr.bf16.mxu0 %v1360
        %7918 = vmatpush1.bf16.xpose.msra.mxu0 %v1359
        %7919 = vmatprep.subr.bf16.mxu0 0
        %7920 = vmatpush1.bf16.xpose.msra.mxu0 0
        %7921 = vmatprep.subr.bf16.mxu0 0
        %7922 = vmatpush1.bf16.xpose.msra.mxu0 0
        %7923 = vmatprep.subr.bf16.mxu0 0
        %7924 = vmatpush1.bf16.xpose.msra.mxu0 0
        %7925 = vmatprep.subr.bf16.mxu0 0
        %7926 = vmatpush1.bf16.xpose.msra.mxu0 0
        %7927 = vmatprep.subr.bf16.mxu0 0
        %7928 = vmatpush1.bf16.xpose.msra.mxu0 0
        %7929 = vmatprep.subr.bf16.mxu0 0
        %7930 = vmatpush1.bf16.xpose.msra.mxu0 0
        %7931 = vmatprep.subr.bf16.mxu0 0
        %7932 = vmatpush1.bf16.xpose.msra.mxu0 0
        %7933 = vmatprep.subr.bf16.mxu0 0
        %7934 = vmatpush1.bf16.xpose.msra.mxu0 0
        %7935 = vmatprep.subr.bf16.mxu0 0
        %7936 = vmatpush1.bf16.xpose.msra.mxu0 0
        %7937 = vmatprep.subr.bf16.mxu0 0
        %7938 = vmatpush1.bf16.xpose.msra.mxu0 0
        %7939 = vmatprep.subr.bf16.mxu0 0
        %7940 = vmatpush1.bf16.xpose.msra.mxu0 0
        %7941 = vmatprep.subr.bf16.mxu0 0
        %7942 = vmatpush1.bf16.xpose.msra.mxu0 0
        %7943 = vmatprep.subr.bf16.mxu0 0
        %7944 = vmatpush1.bf16.xpose.msra.mxu0 0
        %7945 = vmatprep.subr.bf16.mxu0 0
        %7946 = vmatpush1.bf16.xpose.msra.mxu0 0
        %7947 = vmatprep.subr.bf16.mxu0 0
        %7948 = vmatpush1.bf16.xpose.msra.mxu0 0
        %7949 = vmatprep.mubr.bf16.mxu0 1065369472
        %7950 = vmatmul.mubr.bf16.gmra.mrb[0].mxu0 1065369472
        %v7951 = vpop.f32.mrb[0].mxu0
        %v7952 = vadd.f32 %v7912, %v7951
        %v7953 = vpop.f32.mrb[0].mxu0
        %v7954 = vpop.f32.mrb[0].mxu0
        %v7955 = vpop.f32.mrb[0].mxu0
        %7956 = vdwg.mxu0
        %7957 = vmatprep.subr.bf16.mxu0 %v1362
        %7958 = vmatpush1.bf16.xpose.msra.mxu0 %v1361
        %7959 = vmatprep.subr.bf16.mxu0 0
        %7960 = vmatpush1.bf16.xpose.msra.mxu0 0
        %7961 = vmatprep.subr.bf16.mxu0 0
        %7962 = vmatpush1.bf16.xpose.msra.mxu0 0
        %7963 = vmatprep.subr.bf16.mxu0 0
        %7964 = vmatpush1.bf16.xpose.msra.mxu0 0
        %7965 = vmatprep.subr.bf16.mxu0 0
        %7966 = vmatpush1.bf16.xpose.msra.mxu0 0
        %7967 = vmatprep.subr.bf16.mxu0 0
        %7968 = vmatpush1.bf16.xpose.msra.mxu0 0
        %7969 = vmatprep.subr.bf16.mxu0 0
        %7970 = vmatpush1.bf16.xpose.msra.mxu0 0
        %7971 = vmatprep.subr.bf16.mxu0 0
        %7972 = vmatpush1.bf16.xpose.msra.mxu0 0
        %7973 = vmatprep.subr.bf16.mxu0 0
        %7974 = vmatpush1.bf16.xpose.msra.mxu0 0
        %7975 = vmatprep.subr.bf16.mxu0 0
        %7976 = vmatpush1.bf16.xpose.msra.mxu0 0
        %7977 = vmatprep.subr.bf16.mxu0 0
        %7978 = vmatpush1.bf16.xpose.msra.mxu0 0
        %7979 = vmatprep.subr.bf16.mxu0 0
        %7980 = vmatpush1.bf16.xpose.msra.mxu0 0
        %7981 = vmatprep.subr.bf16.mxu0 0
        %7982 = vmatpush1.bf16.xpose.msra.mxu0 0
        %7983 = vmatprep.subr.bf16.mxu0 0
        %7984 = vmatpush1.bf16.xpose.msra.mxu0 0
        %7985 = vmatprep.subr.bf16.mxu0 0
        %7986 = vmatpush1.bf16.xpose.msra.mxu0 0
        %7987 = vmatprep.subr.bf16.mxu0 0
        %7988 = vmatpush1.bf16.xpose.msra.mxu0 0
        %7989 = vmatprep.mubr.bf16.mxu0 1065369472
        %7990 = vmatmul.mubr.bf16.gmra.mrb[0].mxu0 1065369472
        %v7991 = vpop.f32.mrb[0].mxu0
        %v7992 = vadd.f32 %v7952, %v7991
        %v7993 = vpop.f32.mrb[0].mxu0
        %v7994 = vpop.f32.mrb[0].mxu0
        %v7995 = vpop.f32.mrb[0].mxu0
        %7996 = vdwg.mxu0
        %7997 = vmatprep.subr.bf16.mxu0 %v1364
        %7998 = vmatpush1.bf16.xpose.msra.mxu0 %v1363
        %7999 = vmatprep.subr.bf16.mxu0 0
        %8000 = vmatpush1.bf16.xpose.msra.mxu0 0
        %8001 = vmatprep.subr.bf16.mxu0 0
        %8002 = vmatpush1.bf16.xpose.msra.mxu0 0
        %8003 = vmatprep.subr.bf16.mxu0 0
        %8004 = vmatpush1.bf16.xpose.msra.mxu0 0
        %8005 = vmatprep.subr.bf16.mxu0 0
        %8006 = vmatpush1.bf16.xpose.msra.mxu0 0
        %8007 = vmatprep.subr.bf16.mxu0 0
        %8008 = vmatpush1.bf16.xpose.msra.mxu0 0
        %8009 = vmatprep.subr.bf16.mxu0 0
        %8010 = vmatpush1.bf16.xpose.msra.mxu0 0
        %8011 = vmatprep.subr.bf16.mxu0 0
        %8012 = vmatpush1.bf16.xpose.msra.mxu0 0
        %8013 = vmatprep.subr.bf16.mxu0 0
        %8014 = vmatpush1.bf16.xpose.msra.mxu0 0
        %8015 = vmatprep.subr.bf16.mxu0 0
        %8016 = vmatpush1.bf16.xpose.msra.mxu0 0
        %8017 = vmatprep.subr.bf16.mxu0 0
        %8018 = vmatpush1.bf16.xpose.msra.mxu0 0
        %8019 = vmatprep.subr.bf16.mxu0 0
        %8020 = vmatpush1.bf16.xpose.msra.mxu0 0
        %8021 = vmatprep.subr.bf16.mxu0 0
        %8022 = vmatpush1.bf16.xpose.msra.mxu0 0
        %8023 = vmatprep.subr.bf16.mxu0 0
        %8024 = vmatpush1.bf16.xpose.msra.mxu0 0
        %8025 = vmatprep.subr.bf16.mxu0 0
        %8026 = vmatpush1.bf16.xpose.msra.mxu0 0
        %8027 = vmatprep.subr.bf16.mxu0 0
        %8028 = vmatpush1.bf16.xpose.msra.mxu0 0
        %8029 = vmatprep.mubr.bf16.mxu0 1065369472
        %8030 = vmatmul.mubr.bf16.gmra.mrb[0].mxu0 1065369472
        %v8031 = vpop.f32.mrb[0].mxu0
        %v8032 = vadd.f32 %v7992, %v8031
        %v8033 = vpop.f32.mrb[0].mxu0
        %v8034 = vpop.f32.mrb[0].mxu0
        %v8035 = vpop.f32.mrb[0].mxu0
        %8036 = vdwg.mxu0
        %8037 = vmatprep.subr.bf16.mxu0 %v1366
        %8038 = vmatpush1.bf16.xpose.msra.mxu0 %v1365
        %8039 = vmatprep.subr.bf16.mxu0 0
        %8040 = vmatpush1.bf16.xpose.msra.mxu0 0
        %8041 = vmatprep.subr.bf16.mxu0 0
        %8042 = vmatpush1.bf16.xpose.msra.mxu0 0
        %8043 = vmatprep.subr.bf16.mxu0 0
        %8044 = vmatpush1.bf16.xpose.msra.mxu0 0
        %8045 = vmatprep.subr.bf16.mxu0 0
        %8046 = vmatpush1.bf16.xpose.msra.mxu0 0
        %8047 = vmatprep.subr.bf16.mxu0 0
        %8048 = vmatpush1.bf16.xpose.msra.mxu0 0
        %8049 = vmatprep.subr.bf16.mxu0 0
        %8050 = vmatpush1.bf16.xpose.msra.mxu0 0
        %8051 = vmatprep.subr.bf16.mxu0 0
        %8052 = vmatpush1.bf16.xpose.msra.mxu0 0
        %8053 = vmatprep.subr.bf16.mxu0 0
        %8054 = vmatpush1.bf16.xpose.msra.mxu0 0
        %8055 = vmatprep.subr.bf16.mxu0 0
        %8056 = vmatpush1.bf16.xpose.msra.mxu0 0
        %8057 = vmatprep.subr.bf16.mxu0 0
        %8058 = vmatpush1.bf16.xpose.msra.mxu0 0
        %8059 = vmatprep.subr.bf16.mxu0 0
        %8060 = vmatpush1.bf16.xpose.msra.mxu0 0
        %8061 = vmatprep.subr.bf16.mxu0 0
        %8062 = vmatpush1.bf16.xpose.msra.mxu0 0
        %8063 = vmatprep.subr.bf16.mxu0 0
        %8064 = vmatpush1.bf16.xpose.msra.mxu0 0
        %8065 = vmatprep.subr.bf16.mxu0 0
        %8066 = vmatpush1.bf16.xpose.msra.mxu0 0
        %8067 = vmatprep.subr.bf16.mxu0 0
        %8068 = vmatpush1.bf16.xpose.msra.mxu0 0
        %8069 = vmatprep.mubr.bf16.mxu0 1065369472
        %8070 = vmatmul.mubr.bf16.gmra.mrb[0].mxu0 1065369472
        %v8071 = vpop.f32.mrb[0].mxu0
        %v8072 = vadd.f32 %v8032, %v8071
        %v8073 = vpop.f32.mrb[0].mxu0
        %v8074 = vpop.f32.mrb[0].mxu0
        %v8075 = vpop.f32.mrb[0].mxu0
        %8076 = vdwg.mxu0
        %8077 = vmatprep.subr.bf16.mxu0 %v1368
        %8078 = vmatpush1.bf16.xpose.msra.mxu0 %v1367
        %8079 = vmatprep.subr.bf16.mxu0 0
        %8080 = vmatpush1.bf16.xpose.msra.mxu0 0
        %8081 = vmatprep.subr.bf16.mxu0 0
        %8082 = vmatpush1.bf16.xpose.msra.mxu0 0
        %8083 = vmatprep.subr.bf16.mxu0 0
        %8084 = vmatpush1.bf16.xpose.msra.mxu0 0
        %8085 = vmatprep.subr.bf16.mxu0 0
        %8086 = vmatpush1.bf16.xpose.msra.mxu0 0
        %8087 = vmatprep.subr.bf16.mxu0 0
        %8088 = vmatpush1.bf16.xpose.msra.mxu0 0
        %8089 = vmatprep.subr.bf16.mxu0 0
        %8090 = vmatpush1.bf16.xpose.msra.mxu0 0
        %8091 = vmatprep.subr.bf16.mxu0 0
        %8092 = vmatpush1.bf16.xpose.msra.mxu0 0
        %8093 = vmatprep.subr.bf16.mxu0 0
        %8094 = vmatpush1.bf16.xpose.msra.mxu0 0
        %8095 = vmatprep.subr.bf16.mxu0 0
        %8096 = vmatpush1.bf16.xpose.msra.mxu0 0
        %8097 = vmatprep.subr.bf16.mxu0 0
        %8098 = vmatpush1.bf16.xpose.msra.mxu0 0
        %8099 = vmatprep.subr.bf16.mxu0 0
        %8100 = vmatpush1.bf16.xpose.msra.mxu0 0
        %8101 = vmatprep.subr.bf16.mxu0 0
        %8102 = vmatpush1.bf16.xpose.msra.mxu0 0
        %8103 = vmatprep.subr.bf16.mxu0 0
        %8104 = vmatpush1.bf16.xpose.msra.mxu0 0
        %8105 = vmatprep.subr.bf16.mxu0 0
        %8106 = vmatpush1.bf16.xpose.msra.mxu0 0
        %8107 = vmatprep.subr.bf16.mxu0 0
        %8108 = vmatpush1.bf16.xpose.msra.mxu0 0
        %8109 = vmatprep.mubr.bf16.mxu0 1065369472
        %8110 = vmatmul.mubr.bf16.gmra.mrb[0].mxu0 1065369472
        %v8111 = vpop.f32.mrb[0].mxu0
        %v8112 = vadd.f32 %v8072, %v8111
        %v8113 = vpop.f32.mrb[0].mxu0
        %v8114 = vpop.f32.mrb[0].mxu0
        %v8115 = vpop.f32.mrb[0].mxu0
        %8116 = vdwg.mxu0
        %8117 = vmatprep.subr.bf16.mxu0 %v1370
        %8118 = vmatpush1.bf16.xpose.msra.mxu0 %v1369
        %8119 = vmatprep.subr.bf16.mxu0 0
        %8120 = vmatpush1.bf16.xpose.msra.mxu0 0
        %8121 = vmatprep.subr.bf16.mxu0 0
        %8122 = vmatpush1.bf16.xpose.msra.mxu0 0
        %8123 = vmatprep.subr.bf16.mxu0 0
        %8124 = vmatpush1.bf16.xpose.msra.mxu0 0
        %8125 = vmatprep.subr.bf16.mxu0 0
        %8126 = vmatpush1.bf16.xpose.msra.mxu0 0
        %8127 = vmatprep.subr.bf16.mxu0 0
        %8128 = vmatpush1.bf16.xpose.msra.mxu0 0
        %8129 = vmatprep.subr.bf16.mxu0 0
        %8130 = vmatpush1.bf16.xpose.msra.mxu0 0
        %8131 = vmatprep.subr.bf16.mxu0 0
        %8132 = vmatpush1.bf16.xpose.msra.mxu0 0
        %8133 = vmatprep.subr.bf16.mxu0 0
        %8134 = vmatpush1.bf16.xpose.msra.mxu0 0
        %8135 = vmatprep.subr.bf16.mxu0 0
        %8136 = vmatpush1.bf16.xpose.msra.mxu0 0
        %8137 = vmatprep.subr.bf16.mxu0 0
        %8138 = vmatpush1.bf16.xpose.msra.mxu0 0
        %8139 = vmatprep.subr.bf16.mxu0 0
        %8140 = vmatpush1.bf16.xpose.msra.mxu0 0
        %8141 = vmatprep.subr.bf16.mxu0 0
        %8142 = vmatpush1.bf16.xpose.msra.mxu0 0
        %8143 = vmatprep.subr.bf16.mxu0 0
        %8144 = vmatpush1.bf16.xpose.msra.mxu0 0
        %8145 = vmatprep.subr.bf16.mxu0 0
        %8146 = vmatpush1.bf16.xpose.msra.mxu0 0
        %8147 = vmatprep.subr.bf16.mxu0 0
        %8148 = vmatpush1.bf16.xpose.msra.mxu0 0
        %8149 = vmatprep.mubr.bf16.mxu0 1065369472
        %8150 = vmatmul.mubr.bf16.gmra.mrb[0].mxu0 1065369472
        %v8151 = vpop.f32.mrb[0].mxu0
        %v8152 = vadd.f32 %v8112, %v8151
        %v8153 = vpop.f32.mrb[0].mxu0
        %v8154 = vpop.f32.mrb[0].mxu0
        %v8155 = vpop.f32.mrb[0].mxu0
        %8156 = vdwg.mxu0
        %8157 = vmatprep.subr.bf16.mxu0 %v1372
        %8158 = vmatpush1.bf16.xpose.msra.mxu0 %v1371
        %8159 = vmatprep.subr.bf16.mxu0 0
        %8160 = vmatpush1.bf16.xpose.msra.mxu0 0
        %8161 = vmatprep.subr.bf16.mxu0 0
        %8162 = vmatpush1.bf16.xpose.msra.mxu0 0
        %8163 = vmatprep.subr.bf16.mxu0 0
        %8164 = vmatpush1.bf16.xpose.msra.mxu0 0
        %8165 = vmatprep.subr.bf16.mxu0 0
        %8166 = vmatpush1.bf16.xpose.msra.mxu0 0
        %8167 = vmatprep.subr.bf16.mxu0 0
        %8168 = vmatpush1.bf16.xpose.msra.mxu0 0
        %8169 = vmatprep.subr.bf16.mxu0 0
        %8170 = vmatpush1.bf16.xpose.msra.mxu0 0
        %8171 = vmatprep.subr.bf16.mxu0 0
        %8172 = vmatpush1.bf16.xpose.msra.mxu0 0
        %8173 = vmatprep.subr.bf16.mxu0 0
        %8174 = vmatpush1.bf16.xpose.msra.mxu0 0
        %8175 = vmatprep.subr.bf16.mxu0 0
        %8176 = vmatpush1.bf16.xpose.msra.mxu0 0
        %8177 = vmatprep.subr.bf16.mxu0 0
        %8178 = vmatpush1.bf16.xpose.msra.mxu0 0
        %8179 = vmatprep.subr.bf16.mxu0 0
        %8180 = vmatpush1.bf16.xpose.msra.mxu0 0
        %8181 = vmatprep.subr.bf16.mxu0 0
        %8182 = vmatpush1.bf16.xpose.msra.mxu0 0
        %8183 = vmatprep.subr.bf16.mxu0 0
        %8184 = vmatpush1.bf16.xpose.msra.mxu0 0
        %8185 = vmatprep.subr.bf16.mxu0 0
        %8186 = vmatpush1.bf16.xpose.msra.mxu0 0
        %8187 = vmatprep.subr.bf16.mxu0 0
        %8188 = vmatpush1.bf16.xpose.msra.mxu0 0
        %8189 = vmatprep.mubr.bf16.mxu0 1065369472
        %8190 = vmatmul.mubr.bf16.gmra.mrb[0].mxu0 1065369472
        %v8191 = vpop.f32.mrb[0].mxu0
        %v8192 = vadd.f32 %v8152, %v8191
        %v8193 = vpop.f32.mrb[0].mxu0
        %v8194 = vpop.f32.mrb[0].mxu0
        %v8195 = vpop.f32.mrb[0].mxu0
        %8196 = vdwg.mxu0
        %8197 = vmatprep.subr.bf16.mxu0 %v1374
        %8198 = vmatpush1.bf16.xpose.msra.mxu0 %v1373
        %8199 = vmatprep.subr.bf16.mxu0 0
        %8200 = vmatpush1.bf16.xpose.msra.mxu0 0
        %8201 = vmatprep.subr.bf16.mxu0 0
        %8202 = vmatpush1.bf16.xpose.msra.mxu0 0
        %8203 = vmatprep.subr.bf16.mxu0 0
        %8204 = vmatpush1.bf16.xpose.msra.mxu0 0
        %8205 = vmatprep.subr.bf16.mxu0 0
        %8206 = vmatpush1.bf16.xpose.msra.mxu0 0
        %8207 = vmatprep.subr.bf16.mxu0 0
        %8208 = vmatpush1.bf16.xpose.msra.mxu0 0
        %8209 = vmatprep.subr.bf16.mxu0 0
        %8210 = vmatpush1.bf16.xpose.msra.mxu0 0
        %8211 = vmatprep.subr.bf16.mxu0 0
        %8212 = vmatpush1.bf16.xpose.msra.mxu0 0
        %8213 = vmatprep.subr.bf16.mxu0 0
        %8214 = vmatpush1.bf16.xpose.msra.mxu0 0
        %8215 = vmatprep.subr.bf16.mxu0 0
        %8216 = vmatpush1.bf16.xpose.msra.mxu0 0
        %8217 = vmatprep.subr.bf16.mxu0 0
        %8218 = vmatpush1.bf16.xpose.msra.mxu0 0
        %8219 = vmatprep.subr.bf16.mxu0 0
        %8220 = vmatpush1.bf16.xpose.msra.mxu0 0
        %8221 = vmatprep.subr.bf16.mxu0 0
        %8222 = vmatpush1.bf16.xpose.msra.mxu0 0
        %8223 = vmatprep.subr.bf16.mxu0 0
        %8224 = vmatpush1.bf16.xpose.msra.mxu0 0
        %8225 = vmatprep.subr.bf16.mxu0 0
        %8226 = vmatpush1.bf16.xpose.msra.mxu0 0
        %8227 = vmatprep.subr.bf16.mxu0 0
        %8228 = vmatpush1.bf16.xpose.msra.mxu0 0
        %8229 = vmatprep.mubr.bf16.mxu0 1065369472
        %8230 = vmatmul.mubr.bf16.gmra.mrb[0].mxu0 1065369472
        %v8231 = vpop.f32.mrb[0].mxu0
        %v8232 = vadd.f32 %v8192, %v8231
        %v8233 = vpop.f32.mrb[0].mxu0
        %v8234 = vpop.f32.mrb[0].mxu0
        %v8235 = vpop.f32.mrb[0].mxu0
        %8236 = vdwg.mxu0
        %8237 = vmatprep.subr.bf16.mxu0 %v1376
        %8238 = vmatpush1.bf16.xpose.msra.mxu0 %v1375
        %8239 = vmatprep.subr.bf16.mxu0 0
        %8240 = vmatpush1.bf16.xpose.msra.mxu0 0
        %8241 = vmatprep.subr.bf16.mxu0 0
        %8242 = vmatpush1.bf16.xpose.msra.mxu0 0
        %8243 = vmatprep.subr.bf16.mxu0 0
        %8244 = vmatpush1.bf16.xpose.msra.mxu0 0
        %8245 = vmatprep.subr.bf16.mxu0 0
        %8246 = vmatpush1.bf16.xpose.msra.mxu0 0
        %8247 = vmatprep.subr.bf16.mxu0 0
        %8248 = vmatpush1.bf16.xpose.msra.mxu0 0
        %8249 = vmatprep.subr.bf16.mxu0 0
        %8250 = vmatpush1.bf16.xpose.msra.mxu0 0
        %8251 = vmatprep.subr.bf16.mxu0 0
        %8252 = vmatpush1.bf16.xpose.msra.mxu0 0
        %8253 = vmatprep.subr.bf16.mxu0 0
        %8254 = vmatpush1.bf16.xpose.msra.mxu0 0
        %8255 = vmatprep.subr.bf16.mxu0 0
        %8256 = vmatpush1.bf16.xpose.msra.mxu0 0
        %8257 = vmatprep.subr.bf16.mxu0 0
        %8258 = vmatpush1.bf16.xpose.msra.mxu0 0
        %8259 = vmatprep.subr.bf16.mxu0 0
        %8260 = vmatpush1.bf16.xpose.msra.mxu0 0
        %8261 = vmatprep.subr.bf16.mxu0 0
        %8262 = vmatpush1.bf16.xpose.msra.mxu0 0
        %8263 = vmatprep.subr.bf16.mxu0 0
        %8264 = vmatpush1.bf16.xpose.msra.mxu0 0
        %8265 = vmatprep.subr.bf16.mxu0 0
        %8266 = vmatpush1.bf16.xpose.msra.mxu0 0
        %8267 = vmatprep.subr.bf16.mxu0 0
        %8268 = vmatpush1.bf16.xpose.msra.mxu0 0
        %8269 = vmatprep.mubr.bf16.mxu0 1065369472
        %8270 = vmatmul.mubr.bf16.gmra.mrb[0].mxu0 1065369472
        %v8271 = vpop.f32.mrb[0].mxu0
        %v8272 = vadd.f32 %v8232, %v8271
        %v8273 = vpop.f32.mrb[0].mxu0
        %v8274 = vpop.f32.mrb[0].mxu0
        %v8275 = vpop.f32.mrb[0].mxu0
        %8276 = vdwg.mxu0
        %8277 = vmatprep.subr.bf16.mxu0 %v1378
        %8278 = vmatpush1.bf16.xpose.msra.mxu0 %v1377
        %8279 = vmatprep.subr.bf16.mxu0 0
        %8280 = vmatpush1.bf16.xpose.msra.mxu0 0
        %8281 = vmatprep.subr.bf16.mxu0 0
        %8282 = vmatpush1.bf16.xpose.msra.mxu0 0
        %8283 = vmatprep.subr.bf16.mxu0 0
        %8284 = vmatpush1.bf16.xpose.msra.mxu0 0
        %8285 = vmatprep.subr.bf16.mxu0 0
        %8286 = vmatpush1.bf16.xpose.msra.mxu0 0
        %8287 = vmatprep.subr.bf16.mxu0 0
        %8288 = vmatpush1.bf16.xpose.msra.mxu0 0
        %8289 = vmatprep.subr.bf16.mxu0 0
        %8290 = vmatpush1.bf16.xpose.msra.mxu0 0
        %8291 = vmatprep.subr.bf16.mxu0 0
        %8292 = vmatpush1.bf16.xpose.msra.mxu0 0
        %8293 = vmatprep.subr.bf16.mxu0 0
        %8294 = vmatpush1.bf16.xpose.msra.mxu0 0
        %8295 = vmatprep.subr.bf16.mxu0 0
        %8296 = vmatpush1.bf16.xpose.msra.mxu0 0
        %8297 = vmatprep.subr.bf16.mxu0 0
        %8298 = vmatpush1.bf16.xpose.msra.mxu0 0
        %8299 = vmatprep.subr.bf16.mxu0 0
        %8300 = vmatpush1.bf16.xpose.msra.mxu0 0
        %8301 = vmatprep.subr.bf16.mxu0 0
        %8302 = vmatpush1.bf16.xpose.msra.mxu0 0
        %8303 = vmatprep.subr.bf16.mxu0 0
        %8304 = vmatpush1.bf16.xpose.msra.mxu0 0
        %8305 = vmatprep.subr.bf16.mxu0 0
        %8306 = vmatpush1.bf16.xpose.msra.mxu0 0
        %8307 = vmatprep.subr.bf16.mxu0 0
        %8308 = vmatpush1.bf16.xpose.msra.mxu0 0
        %8309 = vmatprep.mubr.bf16.mxu0 1065369472
        %8310 = vmatmul.mubr.bf16.gmra.mrb[0].mxu0 1065369472
        %v8311 = vpop.f32.mrb[0].mxu0
        %v8312 = vadd.f32 %v8272, %v8311
        %v8313 = vpop.f32.mrb[0].mxu0
        %v8314 = vpop.f32.mrb[0].mxu0
        %v8315 = vpop.f32.mrb[0].mxu0
        %8316 = vdwg.mxu0
        %8317 = vmatprep.subr.bf16.mxu0 %v1380
        %8318 = vmatpush1.bf16.xpose.msra.mxu0 %v1379
        %8319 = vmatprep.subr.bf16.mxu0 0
        %8320 = vmatpush1.bf16.xpose.msra.mxu0 0
        %8321 = vmatprep.subr.bf16.mxu0 0
        %8322 = vmatpush1.bf16.xpose.msra.mxu0 0
        %8323 = vmatprep.subr.bf16.mxu0 0
        %8324 = vmatpush1.bf16.xpose.msra.mxu0 0
        %8325 = vmatprep.subr.bf16.mxu0 0
        %8326 = vmatpush1.bf16.xpose.msra.mxu0 0
        %8327 = vmatprep.subr.bf16.mxu0 0
        %8328 = vmatpush1.bf16.xpose.msra.mxu0 0
        %8329 = vmatprep.subr.bf16.mxu0 0
        %8330 = vmatpush1.bf16.xpose.msra.mxu0 0
        %8331 = vmatprep.subr.bf16.mxu0 0
        %8332 = vmatpush1.bf16.xpose.msra.mxu0 0
        %8333 = vmatprep.subr.bf16.mxu0 0
        %8334 = vmatpush1.bf16.xpose.msra.mxu0 0
        %8335 = vmatprep.subr.bf16.mxu0 0
        %8336 = vmatpush1.bf16.xpose.msra.mxu0 0
        %8337 = vmatprep.subr.bf16.mxu0 0
        %8338 = vmatpush1.bf16.xpose.msra.mxu0 0
        %8339 = vmatprep.subr.bf16.mxu0 0
        %8340 = vmatpush1.bf16.xpose.msra.mxu0 0
        %8341 = vmatprep.subr.bf16.mxu0 0
        %8342 = vmatpush1.bf16.xpose.msra.mxu0 0
        %8343 = vmatprep.subr.bf16.mxu0 0
        %8344 = vmatpush1.bf16.xpose.msra.mxu0 0
        %8345 = vmatprep.subr.bf16.mxu0 0
        %8346 = vmatpush1.bf16.xpose.msra.mxu0 0
        %8347 = vmatprep.subr.bf16.mxu0 0
        %8348 = vmatpush1.bf16.xpose.msra.mxu0 0
        %8349 = vmatprep.mubr.bf16.mxu0 1065369472
        %8350 = vmatmul.mubr.bf16.gmra.mrb[0].mxu0 1065369472
        %v8351 = vpop.f32.mrb[0].mxu0
        %v8352 = vadd.f32 %v8312, %v8351
        %v8353 = vpop.f32.mrb[0].mxu0
        %v8354 = vpop.f32.mrb[0].mxu0
        %v8355 = vpop.f32.mrb[0].mxu0
        %8356 = vdwg.mxu0
        %8357 = vmatprep.subr.bf16.mxu0 %v1382
        %8358 = vmatpush1.bf16.xpose.msra.mxu0 %v1381
        %8359 = vmatprep.subr.bf16.mxu0 0
        %8360 = vmatpush1.bf16.xpose.msra.mxu0 0
        %8361 = vmatprep.subr.bf16.mxu0 0
        %8362 = vmatpush1.bf16.xpose.msra.mxu0 0
        %8363 = vmatprep.subr.bf16.mxu0 0
        %8364 = vmatpush1.bf16.xpose.msra.mxu0 0
        %8365 = vmatprep.subr.bf16.mxu0 0
        %8366 = vmatpush1.bf16.xpose.msra.mxu0 0
        %8367 = vmatprep.subr.bf16.mxu0 0
        %8368 = vmatpush1.bf16.xpose.msra.mxu0 0
        %8369 = vmatprep.subr.bf16.mxu0 0
        %8370 = vmatpush1.bf16.xpose.msra.mxu0 0
        %8371 = vmatprep.subr.bf16.mxu0 0
        %8372 = vmatpush1.bf16.xpose.msra.mxu0 0
        %8373 = vmatprep.subr.bf16.mxu0 0
        %8374 = vmatpush1.bf16.xpose.msra.mxu0 0
        %8375 = vmatprep.subr.bf16.mxu0 0
        %8376 = vmatpush1.bf16.xpose.msra.mxu0 0
        %8377 = vmatprep.subr.bf16.mxu0 0
        %8378 = vmatpush1.bf16.xpose.msra.mxu0 0
        %8379 = vmatprep.subr.bf16.mxu0 0
        %8380 = vmatpush1.bf16.xpose.msra.mxu0 0
        %8381 = vmatprep.subr.bf16.mxu0 0
        %8382 = vmatpush1.bf16.xpose.msra.mxu0 0
        %8383 = vmatprep.subr.bf16.mxu0 0
        %8384 = vmatpush1.bf16.xpose.msra.mxu0 0
        %8385 = vmatprep.subr.bf16.mxu0 0
        %8386 = vmatpush1.bf16.xpose.msra.mxu0 0
        %8387 = vmatprep.subr.bf16.mxu0 0
        %8388 = vmatpush1.bf16.xpose.msra.mxu0 0
        %8389 = vmatprep.mubr.bf16.mxu0 1065369472
        %8390 = vmatmul.mubr.bf16.gmra.mrb[0].mxu0 1065369472
        %v8391 = vpop.f32.mrb[0].mxu0
        %v8392 = vadd.f32 %v8352, %v8391
        %v8393 = vpop.f32.mrb[0].mxu0
        %v8394 = vpop.f32.mrb[0].mxu0
        %v8395 = vpop.f32.mrb[0].mxu0
        %8396 = vdwg.mxu0
        %8397 = vmatprep.subr.bf16.mxu0 %v1384
        %8398 = vmatpush1.bf16.xpose.msra.mxu0 %v1383
        %8399 = vmatprep.subr.bf16.mxu0 0
        %8400 = vmatpush1.bf16.xpose.msra.mxu0 0
        %8401 = vmatprep.subr.bf16.mxu0 0
        %8402 = vmatpush1.bf16.xpose.msra.mxu0 0
        %8403 = vmatprep.subr.bf16.mxu0 0
        %8404 = vmatpush1.bf16.xpose.msra.mxu0 0
        %8405 = vmatprep.subr.bf16.mxu0 0
        %8406 = vmatpush1.bf16.xpose.msra.mxu0 0
        %8407 = vmatprep.subr.bf16.mxu0 0
        %8408 = vmatpush1.bf16.xpose.msra.mxu0 0
        %8409 = vmatprep.subr.bf16.mxu0 0
        %8410 = vmatpush1.bf16.xpose.msra.mxu0 0
        %8411 = vmatprep.subr.bf16.mxu0 0
        %8412 = vmatpush1.bf16.xpose.msra.mxu0 0
        %8413 = vmatprep.subr.bf16.mxu0 0
        %8414 = vmatpush1.bf16.xpose.msra.mxu0 0
        %8415 = vmatprep.subr.bf16.mxu0 0
        %8416 = vmatpush1.bf16.xpose.msra.mxu0 0
        %8417 = vmatprep.subr.bf16.mxu0 0
        %8418 = vmatpush1.bf16.xpose.msra.mxu0 0
        %8419 = vmatprep.subr.bf16.mxu0 0
        %8420 = vmatpush1.bf16.xpose.msra.mxu0 0
        %8421 = vmatprep.subr.bf16.mxu0 0
        %8422 = vmatpush1.bf16.xpose.msra.mxu0 0
        %8423 = vmatprep.subr.bf16.mxu0 0
        %8424 = vmatpush1.bf16.xpose.msra.mxu0 0
        %8425 = vmatprep.subr.bf16.mxu0 0
        %8426 = vmatpush1.bf16.xpose.msra.mxu0 0
        %8427 = vmatprep.subr.bf16.mxu0 0
        %8428 = vmatpush1.bf16.xpose.msra.mxu0 0
        %8429 = vmatprep.mubr.bf16.mxu0 1065369472
        %8430 = vmatmul.mubr.bf16.gmra.mrb[0].mxu0 1065369472
        %v8431 = vpop.f32.mrb[0].mxu0
        %v8432 = vadd.f32 %v8392, %v8431
        %v8433 = vpop.f32.mrb[0].mxu0
        %v8434 = vpop.f32.mrb[0].mxu0
        %v8435 = vpop.f32.mrb[0].mxu0
        %8436 = vdwg.mxu0
        %8437 = vmatprep.subr.bf16.mxu0 %v1386
        %8438 = vmatpush1.bf16.xpose.msra.mxu0 %v1385
        %8439 = vmatprep.subr.bf16.mxu0 0
        %8440 = vmatpush1.bf16.xpose.msra.mxu0 0
        %8441 = vmatprep.subr.bf16.mxu0 0
        %8442 = vmatpush1.bf16.xpose.msra.mxu0 0
        %8443 = vmatprep.subr.bf16.mxu0 0
        %8444 = vmatpush1.bf16.xpose.msra.mxu0 0
        %8445 = vmatprep.subr.bf16.mxu0 0
        %8446 = vmatpush1.bf16.xpose.msra.mxu0 0
        %8447 = vmatprep.subr.bf16.mxu0 0
        %8448 = vmatpush1.bf16.xpose.msra.mxu0 0
        %8449 = vmatprep.subr.bf16.mxu0 0
        %8450 = vmatpush1.bf16.xpose.msra.mxu0 0
        %8451 = vmatprep.subr.bf16.mxu0 0
        %8452 = vmatpush1.bf16.xpose.msra.mxu0 0
        %8453 = vmatprep.subr.bf16.mxu0 0
        %8454 = vmatpush1.bf16.xpose.msra.mxu0 0
        %8455 = vmatprep.subr.bf16.mxu0 0
        %8456 = vmatpush1.bf16.xpose.msra.mxu0 0
        %8457 = vmatprep.subr.bf16.mxu0 0
        %8458 = vmatpush1.bf16.xpose.msra.mxu0 0
        %8459 = vmatprep.subr.bf16.mxu0 0
        %8460 = vmatpush1.bf16.xpose.msra.mxu0 0
        %8461 = vmatprep.subr.bf16.mxu0 0
        %8462 = vmatpush1.bf16.xpose.msra.mxu0 0
        %8463 = vmatprep.subr.bf16.mxu0 0
        %8464 = vmatpush1.bf16.xpose.msra.mxu0 0
        %8465 = vmatprep.subr.bf16.mxu0 0
        %8466 = vmatpush1.bf16.xpose.msra.mxu0 0
        %8467 = vmatprep.subr.bf16.mxu0 0
        %8468 = vmatpush1.bf16.xpose.msra.mxu0 0
        %8469 = vmatprep.mubr.bf16.mxu0 1065369472
        %8470 = vmatmul.mubr.bf16.gmra.mrb[0].mxu0 1065369472
        %v8471 = vpop.f32.mrb[0].mxu0
        %v8472 = vadd.f32 %v8432, %v8471
        %v8473 = vpop.f32.mrb[0].mxu0
        %v8474 = vpop.f32.mrb[0].mxu0
        %v8475 = vpop.f32.mrb[0].mxu0
        %8476 = vdwg.mxu0
        %8477 = vmatprep.subr.bf16.mxu0 %v1388
        %8478 = vmatpush1.bf16.xpose.msra.mxu0 %v1387
        %8479 = vmatprep.subr.bf16.mxu0 0
        %8480 = vmatpush1.bf16.xpose.msra.mxu0 0
        %8481 = vmatprep.subr.bf16.mxu0 0
        %8482 = vmatpush1.bf16.xpose.msra.mxu0 0
        %8483 = vmatprep.subr.bf16.mxu0 0
        %8484 = vmatpush1.bf16.xpose.msra.mxu0 0
        %8485 = vmatprep.subr.bf16.mxu0 0
        %8486 = vmatpush1.bf16.xpose.msra.mxu0 0
        %8487 = vmatprep.subr.bf16.mxu0 0
        %8488 = vmatpush1.bf16.xpose.msra.mxu0 0
        %8489 = vmatprep.subr.bf16.mxu0 0
        %8490 = vmatpush1.bf16.xpose.msra.mxu0 0
        %8491 = vmatprep.subr.bf16.mxu0 0
        %8492 = vmatpush1.bf16.xpose.msra.mxu0 0
        %8493 = vmatprep.subr.bf16.mxu0 0
        %8494 = vmatpush1.bf16.xpose.msra.mxu0 0
        %8495 = vmatprep.subr.bf16.mxu0 0
        %8496 = vmatpush1.bf16.xpose.msra.mxu0 0
        %8497 = vmatprep.subr.bf16.mxu0 0
        %8498 = vmatpush1.bf16.xpose.msra.mxu0 0
        %8499 = vmatprep.subr.bf16.mxu0 0
        %8500 = vmatpush1.bf16.xpose.msra.mxu0 0
        %8501 = vmatprep.subr.bf16.mxu0 0
        %8502 = vmatpush1.bf16.xpose.msra.mxu0 0
        %8503 = vmatprep.subr.bf16.mxu0 0
        %8504 = vmatpush1.bf16.xpose.msra.mxu0 0
        %8505 = vmatprep.subr.bf16.mxu0 0
        %8506 = vmatpush1.bf16.xpose.msra.mxu0 0
        %8507 = vmatprep.subr.bf16.mxu0 0
        %8508 = vmatpush1.bf16.xpose.msra.mxu0 0
        %8509 = vmatprep.mubr.bf16.mxu0 1065369472
        %8510 = vmatmul.mubr.bf16.gmra.mrb[0].mxu0 1065369472
        %v8511 = vpop.f32.mrb[0].mxu0
        %v8512 = vadd.f32 %v8472, %v8511
        %v8513 = vpop.f32.mrb[0].mxu0
        %v8514 = vpop.f32.mrb[0].mxu0
        %v8515 = vpop.f32.mrb[0].mxu0
        %8516 = vdwg.mxu0
        %8517 = vmatprep.subr.bf16.mxu0 %v1390
        %8518 = vmatpush1.bf16.xpose.msra.mxu0 %v1389
        %8519 = vmatprep.subr.bf16.mxu0 0
        %8520 = vmatpush1.bf16.xpose.msra.mxu0 0
        %8521 = vmatprep.subr.bf16.mxu0 0
        %8522 = vmatpush1.bf16.xpose.msra.mxu0 0
        %8523 = vmatprep.subr.bf16.mxu0 0
        %8524 = vmatpush1.bf16.xpose.msra.mxu0 0
        %8525 = vmatprep.subr.bf16.mxu0 0
        %8526 = vmatpush1.bf16.xpose.msra.mxu0 0
        %8527 = vmatprep.subr.bf16.mxu0 0
        %8528 = vmatpush1.bf16.xpose.msra.mxu0 0
        %8529 = vmatprep.subr.bf16.mxu0 0
        %8530 = vmatpush1.bf16.xpose.msra.mxu0 0
        %8531 = vmatprep.subr.bf16.mxu0 0
        %8532 = vmatpush1.bf16.xpose.msra.mxu0 0
        %8533 = vmatprep.subr.bf16.mxu0 0
        %8534 = vmatpush1.bf16.xpose.msra.mxu0 0
        %8535 = vmatprep.subr.bf16.mxu0 0
        %8536 = vmatpush1.bf16.xpose.msra.mxu0 0
        %8537 = vmatprep.subr.bf16.mxu0 0
        %8538 = vmatpush1.bf16.xpose.msra.mxu0 0
        %8539 = vmatprep.subr.bf16.mxu0 0
        %8540 = vmatpush1.bf16.xpose.msra.mxu0 0
        %8541 = vmatprep.subr.bf16.mxu0 0
        %8542 = vmatpush1.bf16.xpose.msra.mxu0 0
        %8543 = vmatprep.subr.bf16.mxu0 0
        %8544 = vmatpush1.bf16.xpose.msra.mxu0 0
        %8545 = vmatprep.subr.bf16.mxu0 0
        %8546 = vmatpush1.bf16.xpose.msra.mxu0 0
        %8547 = vmatprep.subr.bf16.mxu0 0
        %8548 = vmatpush1.bf16.xpose.msra.mxu0 0
        %8549 = vmatprep.mubr.bf16.mxu0 1065369472
        %8550 = vmatmul.mubr.bf16.gmra.mrb[0].mxu0 1065369472
        %v8551 = vpop.f32.mrb[0].mxu0
        %v8552 = vadd.f32 %v8512, %v8551
        %v8553 = vpop.f32.mrb[0].mxu0
        %v8554 = vpop.f32.mrb[0].mxu0
        %v8555 = vpop.f32.mrb[0].mxu0
        %8556 = vdwg.mxu0
        %8557 = vmatprep.subr.bf16.mxu0 %v1392
        %8558 = vmatpush1.bf16.xpose.msra.mxu0 %v1391
        %8559 = vmatprep.subr.bf16.mxu0 0
        %8560 = vmatpush1.bf16.xpose.msra.mxu0 0
        %8561 = vmatprep.subr.bf16.mxu0 0
        %8562 = vmatpush1.bf16.xpose.msra.mxu0 0
        %8563 = vmatprep.subr.bf16.mxu0 0
        %8564 = vmatpush1.bf16.xpose.msra.mxu0 0
        %8565 = vmatprep.subr.bf16.mxu0 0
        %8566 = vmatpush1.bf16.xpose.msra.mxu0 0
        %8567 = vmatprep.subr.bf16.mxu0 0
        %8568 = vmatpush1.bf16.xpose.msra.mxu0 0
        %8569 = vmatprep.subr.bf16.mxu0 0
        %8570 = vmatpush1.bf16.xpose.msra.mxu0 0
        %8571 = vmatprep.subr.bf16.mxu0 0
        %8572 = vmatpush1.bf16.xpose.msra.mxu0 0
        %8573 = vmatprep.subr.bf16.mxu0 0
        %8574 = vmatpush1.bf16.xpose.msra.mxu0 0
        %8575 = vmatprep.subr.bf16.mxu0 0
        %8576 = vmatpush1.bf16.xpose.msra.mxu0 0
        %8577 = vmatprep.subr.bf16.mxu0 0
        %8578 = vmatpush1.bf16.xpose.msra.mxu0 0
        %8579 = vmatprep.subr.bf16.mxu0 0
        %8580 = vmatpush1.bf16.xpose.msra.mxu0 0
        %8581 = vmatprep.subr.bf16.mxu0 0
        %8582 = vmatpush1.bf16.xpose.msra.mxu0 0
        %8583 = vmatprep.subr.bf16.mxu0 0
        %8584 = vmatpush1.bf16.xpose.msra.mxu0 0
        %8585 = vmatprep.subr.bf16.mxu0 0
        %8586 = vmatpush1.bf16.xpose.msra.mxu0 0
        %8587 = vmatprep.subr.bf16.mxu0 0
        %8588 = vmatpush1.bf16.xpose.msra.mxu0 0
        %8589 = vmatprep.mubr.bf16.mxu0 1065369472
        %8590 = vmatmul.mubr.bf16.gmra.mrb[0].mxu0 1065369472
        %v8591 = vpop.f32.mrb[0].mxu0
        %v8592 = vadd.f32 %v8552, %v8591
        %v8593 = vpop.f32.mrb[0].mxu0
        %v8594 = vpop.f32.mrb[0].mxu0
        %v8595 = vpop.f32.mrb[0].mxu0
        %8596 = vdwg.mxu0
        %8597 = vmatprep.subr.bf16.mxu0 %v1394
        %8598 = vmatpush1.bf16.xpose.msra.mxu0 %v1393
        %8599 = vmatprep.subr.bf16.mxu0 0
        %8600 = vmatpush1.bf16.xpose.msra.mxu0 0
        %8601 = vmatprep.subr.bf16.mxu0 0
        %8602 = vmatpush1.bf16.xpose.msra.mxu0 0
        %8603 = vmatprep.subr.bf16.mxu0 0
        %8604 = vmatpush1.bf16.xpose.msra.mxu0 0
        %8605 = vmatprep.subr.bf16.mxu0 0
        %8606 = vmatpush1.bf16.xpose.msra.mxu0 0
        %8607 = vmatprep.subr.bf16.mxu0 0
        %8608 = vmatpush1.bf16.xpose.msra.mxu0 0
        %8609 = vmatprep.subr.bf16.mxu0 0
        %8610 = vmatpush1.bf16.xpose.msra.mxu0 0
        %8611 = vmatprep.subr.bf16.mxu0 0
        %8612 = vmatpush1.bf16.xpose.msra.mxu0 0
        %8613 = vmatprep.subr.bf16.mxu0 0
        %8614 = vmatpush1.bf16.xpose.msra.mxu0 0
        %8615 = vmatprep.subr.bf16.mxu0 0
        %8616 = vmatpush1.bf16.xpose.msra.mxu0 0
        %8617 = vmatprep.subr.bf16.mxu0 0
        %8618 = vmatpush1.bf16.xpose.msra.mxu0 0
        %8619 = vmatprep.subr.bf16.mxu0 0
        %8620 = vmatpush1.bf16.xpose.msra.mxu0 0
        %8621 = vmatprep.subr.bf16.mxu0 0
        %8622 = vmatpush1.bf16.xpose.msra.mxu0 0
        %8623 = vmatprep.subr.bf16.mxu0 0
        %8624 = vmatpush1.bf16.xpose.msra.mxu0 0
        %8625 = vmatprep.subr.bf16.mxu0 0
        %8626 = vmatpush1.bf16.xpose.msra.mxu0 0
        %8627 = vmatprep.subr.bf16.mxu0 0
        %8628 = vmatpush1.bf16.xpose.msra.mxu0 0
        %8629 = vmatprep.mubr.bf16.mxu0 1065369472
        %8630 = vmatmul.mubr.bf16.gmra.mrb[0].mxu0 1065369472
        %v8631 = vpop.f32.mrb[0].mxu0
        %v8632 = vadd.f32 %v8592, %v8631
        %v8633 = vpop.f32.mrb[0].mxu0
        %v8634 = vpop.f32.mrb[0].mxu0
        %v8635 = vpop.f32.mrb[0].mxu0
        %8636 = vdwg.mxu0
        %8637 = vmatprep.subr.bf16.mxu0 %v1396
        %8638 = vmatpush1.bf16.xpose.msra.mxu0 %v1395
        %8639 = vmatprep.subr.bf16.mxu0 0
        %8640 = vmatpush1.bf16.xpose.msra.mxu0 0
        %8641 = vmatprep.subr.bf16.mxu0 0
        %8642 = vmatpush1.bf16.xpose.msra.mxu0 0
        %8643 = vmatprep.subr.bf16.mxu0 0
        %8644 = vmatpush1.bf16.xpose.msra.mxu0 0
        %8645 = vmatprep.subr.bf16.mxu0 0
        %8646 = vmatpush1.bf16.xpose.msra.mxu0 0
        %8647 = vmatprep.subr.bf16.mxu0 0
        %8648 = vmatpush1.bf16.xpose.msra.mxu0 0
        %8649 = vmatprep.subr.bf16.mxu0 0
        %8650 = vmatpush1.bf16.xpose.msra.mxu0 0
        %8651 = vmatprep.subr.bf16.mxu0 0
        %8652 = vmatpush1.bf16.xpose.msra.mxu0 0
        %8653 = vmatprep.subr.bf16.mxu0 0
        %8654 = vmatpush1.bf16.xpose.msra.mxu0 0
        %8655 = vmatprep.subr.bf16.mxu0 0
        %8656 = vmatpush1.bf16.xpose.msra.mxu0 0
        %8657 = vmatprep.subr.bf16.mxu0 0
        %8658 = vmatpush1.bf16.xpose.msra.mxu0 0
        %8659 = vmatprep.subr.bf16.mxu0 0
        %8660 = vmatpush1.bf16.xpose.msra.mxu0 0
        %8661 = vmatprep.subr.bf16.mxu0 0
        %8662 = vmatpush1.bf16.xpose.msra.mxu0 0
        %8663 = vmatprep.subr.bf16.mxu0 0
        %8664 = vmatpush1.bf16.xpose.msra.mxu0 0
        %8665 = vmatprep.subr.bf16.mxu0 0
        %8666 = vmatpush1.bf16.xpose.msra.mxu0 0
        %8667 = vmatprep.subr.bf16.mxu0 0
        %8668 = vmatpush1.bf16.xpose.msra.mxu0 0
        %8669 = vmatprep.mubr.bf16.mxu0 1065369472
        %8670 = vmatmul.mubr.bf16.gmra.mrb[0].mxu0 1065369472
        %v8671 = vpop.f32.mrb[0].mxu0
        %v8672 = vadd.f32 %v8632, %v8671
        %v8673 = vpop.f32.mrb[0].mxu0
        %v8674 = vpop.f32.mrb[0].mxu0
        %v8675 = vpop.f32.mrb[0].mxu0
        %8676 = vdwg.mxu0
        %8677 = vmatprep.subr.bf16.mxu0 %v1398
        %8678 = vmatpush1.bf16.xpose.msra.mxu0 %v1397
        %8679 = vmatprep.subr.bf16.mxu0 0
        %8680 = vmatpush1.bf16.xpose.msra.mxu0 0
        %8681 = vmatprep.subr.bf16.mxu0 0
        %8682 = vmatpush1.bf16.xpose.msra.mxu0 0
        %8683 = vmatprep.subr.bf16.mxu0 0
        %8684 = vmatpush1.bf16.xpose.msra.mxu0 0
        %8685 = vmatprep.subr.bf16.mxu0 0
        %8686 = vmatpush1.bf16.xpose.msra.mxu0 0
        %8687 = vmatprep.subr.bf16.mxu0 0
        %8688 = vmatpush1.bf16.xpose.msra.mxu0 0
        %8689 = vmatprep.subr.bf16.mxu0 0
        %8690 = vmatpush1.bf16.xpose.msra.mxu0 0
        %8691 = vmatprep.subr.bf16.mxu0 0
        %8692 = vmatpush1.bf16.xpose.msra.mxu0 0
        %8693 = vmatprep.subr.bf16.mxu0 0
        %8694 = vmatpush1.bf16.xpose.msra.mxu0 0
        %8695 = vmatprep.subr.bf16.mxu0 0
        %8696 = vmatpush1.bf16.xpose.msra.mxu0 0
        %8697 = vmatprep.subr.bf16.mxu0 0
        %8698 = vmatpush1.bf16.xpose.msra.mxu0 0
        %8699 = vmatprep.subr.bf16.mxu0 0
        %8700 = vmatpush1.bf16.xpose.msra.mxu0 0
        %8701 = vmatprep.subr.bf16.mxu0 0
        %8702 = vmatpush1.bf16.xpose.msra.mxu0 0
        %8703 = vmatprep.subr.bf16.mxu0 0
        %8704 = vmatpush1.bf16.xpose.msra.mxu0 0
        %8705 = vmatprep.subr.bf16.mxu0 0
        %8706 = vmatpush1.bf16.xpose.msra.mxu0 0
        %8707 = vmatprep.subr.bf16.mxu0 0
        %8708 = vmatpush1.bf16.xpose.msra.mxu0 0
        %8709 = vmatprep.mubr.bf16.mxu0 1065369472
        %8710 = vmatmul.mubr.bf16.gmra.mrb[0].mxu0 1065369472
        %v8711 = vpop.f32.mrb[0].mxu0
        %v8712 = vadd.f32 %v8672, %v8711
        %v8713 = vpop.f32.mrb[0].mxu0
        %v8714 = vpop.f32.mrb[0].mxu0
        %v8715 = vpop.f32.mrb[0].mxu0
        %8716 = vdwg.mxu0
        %8717 = vmatprep.subr.bf16.mxu0 %v1400
        %8718 = vmatpush1.bf16.xpose.msra.mxu0 %v1399
        %8719 = vmatprep.subr.bf16.mxu0 0
        %8720 = vmatpush1.bf16.xpose.msra.mxu0 0
        %8721 = vmatprep.subr.bf16.mxu0 0
        %8722 = vmatpush1.bf16.xpose.msra.mxu0 0
        %8723 = vmatprep.subr.bf16.mxu0 0
        %8724 = vmatpush1.bf16.xpose.msra.mxu0 0
        %8725 = vmatprep.subr.bf16.mxu0 0
        %8726 = vmatpush1.bf16.xpose.msra.mxu0 0
        %8727 = vmatprep.subr.bf16.mxu0 0
        %8728 = vmatpush1.bf16.xpose.msra.mxu0 0
        %8729 = vmatprep.subr.bf16.mxu0 0
        %8730 = vmatpush1.bf16.xpose.msra.mxu0 0
        %8731 = vmatprep.subr.bf16.mxu0 0
        %8732 = vmatpush1.bf16.xpose.msra.mxu0 0
        %8733 = vmatprep.subr.bf16.mxu0 0
        %8734 = vmatpush1.bf16.xpose.msra.mxu0 0
        %8735 = vmatprep.subr.bf16.mxu0 0
        %8736 = vmatpush1.bf16.xpose.msra.mxu0 0
        %8737 = vmatprep.subr.bf16.mxu0 0
        %8738 = vmatpush1.bf16.xpose.msra.mxu0 0
        %8739 = vmatprep.subr.bf16.mxu0 0
        %8740 = vmatpush1.bf16.xpose.msra.mxu0 0
        %8741 = vmatprep.subr.bf16.mxu0 0
        %8742 = vmatpush1.bf16.xpose.msra.mxu0 0
        %8743 = vmatprep.subr.bf16.mxu0 0
        %8744 = vmatpush1.bf16.xpose.msra.mxu0 0
        %8745 = vmatprep.subr.bf16.mxu0 0
        %8746 = vmatpush1.bf16.xpose.msra.mxu0 0
        %8747 = vmatprep.subr.bf16.mxu0 0
        %8748 = vmatpush1.bf16.xpose.msra.mxu0 0
        %8749 = vmatprep.mubr.bf16.mxu0 1065369472
        %8750 = vmatmul.mubr.bf16.gmra.mrb[0].mxu0 1065369472
        %v8751 = vpop.f32.mrb[0].mxu0
        %v8752 = vadd.f32 %v8712, %v8751
        %v8753 = vpop.f32.mrb[0].mxu0
        %v8754 = vpop.f32.mrb[0].mxu0
        %v8755 = vpop.f32.mrb[0].mxu0
        %8756 = vdwg.mxu0
        %8757 = vmatprep.subr.bf16.mxu0 %v1402
        %8758 = vmatpush1.bf16.xpose.msra.mxu0 %v1401
        %8759 = vmatprep.subr.bf16.mxu0 0
        %8760 = vmatpush1.bf16.xpose.msra.mxu0 0
        %8761 = vmatprep.subr.bf16.mxu0 0
        %8762 = vmatpush1.bf16.xpose.msra.mxu0 0
        %8763 = vmatprep.subr.bf16.mxu0 0
        %8764 = vmatpush1.bf16.xpose.msra.mxu0 0
        %8765 = vmatprep.subr.bf16.mxu0 0
        %8766 = vmatpush1.bf16.xpose.msra.mxu0 0
        %8767 = vmatprep.subr.bf16.mxu0 0
        %8768 = vmatpush1.bf16.xpose.msra.mxu0 0
        %8769 = vmatprep.subr.bf16.mxu0 0
        %8770 = vmatpush1.bf16.xpose.msra.mxu0 0
        %8771 = vmatprep.subr.bf16.mxu0 0
        %8772 = vmatpush1.bf16.xpose.msra.mxu0 0
        %8773 = vmatprep.subr.bf16.mxu0 0
        %8774 = vmatpush1.bf16.xpose.msra.mxu0 0
        %8775 = vmatprep.subr.bf16.mxu0 0
        %8776 = vmatpush1.bf16.xpose.msra.mxu0 0
        %8777 = vmatprep.subr.bf16.mxu0 0
        %8778 = vmatpush1.bf16.xpose.msra.mxu0 0
        %8779 = vmatprep.subr.bf16.mxu0 0
        %8780 = vmatpush1.bf16.xpose.msra.mxu0 0
        %8781 = vmatprep.subr.bf16.mxu0 0
        %8782 = vmatpush1.bf16.xpose.msra.mxu0 0
        %8783 = vmatprep.subr.bf16.mxu0 0
        %8784 = vmatpush1.bf16.xpose.msra.mxu0 0
        %8785 = vmatprep.subr.bf16.mxu0 0
        %8786 = vmatpush1.bf16.xpose.msra.mxu0 0
        %8787 = vmatprep.subr.bf16.mxu0 0
        %8788 = vmatpush1.bf16.xpose.msra.mxu0 0
        %8789 = vmatprep.mubr.bf16.mxu0 1065369472
        %8790 = vmatmul.mubr.bf16.gmra.mrb[0].mxu0 1065369472
        %v8791 = vpop.f32.mrb[0].mxu0
        %v8792 = vadd.f32 %v8752, %v8791
        %v8793 = vpop.f32.mrb[0].mxu0
        %v8794 = vpop.f32.mrb[0].mxu0
        %v8795 = vpop.f32.mrb[0].mxu0
        %8796 = vdwg.mxu0
        %8797 = vmatprep.subr.bf16.mxu0 %v1404
        %8798 = vmatpush1.bf16.xpose.msra.mxu0 %v1403
        %8799 = vmatprep.subr.bf16.mxu0 0
        %8800 = vmatpush1.bf16.xpose.msra.mxu0 0
        %8801 = vmatprep.subr.bf16.mxu0 0
        %8802 = vmatpush1.bf16.xpose.msra.mxu0 0
        %8803 = vmatprep.subr.bf16.mxu0 0
        %8804 = vmatpush1.bf16.xpose.msra.mxu0 0
        %8805 = vmatprep.subr.bf16.mxu0 0
        %8806 = vmatpush1.bf16.xpose.msra.mxu0 0
        %8807 = vmatprep.subr.bf16.mxu0 0
        %8808 = vmatpush1.bf16.xpose.msra.mxu0 0
        %8809 = vmatprep.subr.bf16.mxu0 0
        %8810 = vmatpush1.bf16.xpose.msra.mxu0 0
        %8811 = vmatprep.subr.bf16.mxu0 0
        %8812 = vmatpush1.bf16.xpose.msra.mxu0 0
        %8813 = vmatprep.subr.bf16.mxu0 0
        %8814 = vmatpush1.bf16.xpose.msra.mxu0 0
        %8815 = vmatprep.subr.bf16.mxu0 0
        %8816 = vmatpush1.bf16.xpose.msra.mxu0 0
        %8817 = vmatprep.subr.bf16.mxu0 0
        %8818 = vmatpush1.bf16.xpose.msra.mxu0 0
        %8819 = vmatprep.subr.bf16.mxu0 0
        %8820 = vmatpush1.bf16.xpose.msra.mxu0 0
        %8821 = vmatprep.subr.bf16.mxu0 0
        %8822 = vmatpush1.bf16.xpose.msra.mxu0 0
        %8823 = vmatprep.subr.bf16.mxu0 0
        %8824 = vmatpush1.bf16.xpose.msra.mxu0 0
        %8825 = vmatprep.subr.bf16.mxu0 0
        %8826 = vmatpush1.bf16.xpose.msra.mxu0 0
        %8827 = vmatprep.subr.bf16.mxu0 0
        %8828 = vmatpush1.bf16.xpose.msra.mxu0 0
        %8829 = vmatprep.mubr.bf16.mxu0 1065369472
        %8830 = vmatmul.mubr.bf16.gmra.mrb[0].mxu0 1065369472
        %v8831 = vpop.f32.mrb[0].mxu0
        %v8832 = vadd.f32 %v8792, %v8831
        %v8833 = vpop.f32.mrb[0].mxu0
        %v8834 = vpop.f32.mrb[0].mxu0
        %v8835 = vpop.f32.mrb[0].mxu0
        %8836 = vdwg.mxu0
        %8837 = vmatprep.subr.bf16.mxu0 %v1406
        %8838 = vmatpush1.bf16.xpose.msra.mxu0 %v1405
        %8839 = vmatprep.subr.bf16.mxu0 0
        %8840 = vmatpush1.bf16.xpose.msra.mxu0 0
        %8841 = vmatprep.subr.bf16.mxu0 0
        %8842 = vmatpush1.bf16.xpose.msra.mxu0 0
        %8843 = vmatprep.subr.bf16.mxu0 0
        %8844 = vmatpush1.bf16.xpose.msra.mxu0 0
        %8845 = vmatprep.subr.bf16.mxu0 0
        %8846 = vmatpush1.bf16.xpose.msra.mxu0 0
        %8847 = vmatprep.subr.bf16.mxu0 0
        %8848 = vmatpush1.bf16.xpose.msra.mxu0 0
        %8849 = vmatprep.subr.bf16.mxu0 0
        %8850 = vmatpush1.bf16.xpose.msra.mxu0 0
        %8851 = vmatprep.subr.bf16.mxu0 0
        %8852 = vmatpush1.bf16.xpose.msra.mxu0 0
        %8853 = vmatprep.subr.bf16.mxu0 0
        %8854 = vmatpush1.bf16.xpose.msra.mxu0 0
        %8855 = vmatprep.subr.bf16.mxu0 0
        %8856 = vmatpush1.bf16.xpose.msra.mxu0 0
        %8857 = vmatprep.subr.bf16.mxu0 0
        %8858 = vmatpush1.bf16.xpose.msra.mxu0 0
        %8859 = vmatprep.subr.bf16.mxu0 0
        %8860 = vmatpush1.bf16.xpose.msra.mxu0 0
        %8861 = vmatprep.subr.bf16.mxu0 0
        %8862 = vmatpush1.bf16.xpose.msra.mxu0 0
        %8863 = vmatprep.subr.bf16.mxu0 0
        %8864 = vmatpush1.bf16.xpose.msra.mxu0 0
        %8865 = vmatprep.subr.bf16.mxu0 0
        %8866 = vmatpush1.bf16.xpose.msra.mxu0 0
        %8867 = vmatprep.subr.bf16.mxu0 0
        %8868 = vmatpush1.bf16.xpose.msra.mxu0 0
        %8869 = vmatprep.mubr.bf16.mxu0 1065369472
        %8870 = vmatmul.mubr.bf16.gmra.mrb[0].mxu0 1065369472
        %v8871 = vpop.f32.mrb[0].mxu0
        %v8872 = vadd.f32 %v8832, %v8871
        %v8873 = vpop.f32.mrb[0].mxu0
        %v8874 = vpop.f32.mrb[0].mxu0
        %v8875 = vpop.f32.mrb[0].mxu0
        %8876 = vdwg.mxu0
        %8877 = vmatprep.subr.bf16.mxu0 %v1408
        %8878 = vmatpush1.bf16.xpose.msra.mxu0 %v1407
        %8879 = vmatprep.subr.bf16.mxu0 0
        %8880 = vmatpush1.bf16.xpose.msra.mxu0 0
        %8881 = vmatprep.subr.bf16.mxu0 0
        %8882 = vmatpush1.bf16.xpose.msra.mxu0 0
        %8883 = vmatprep.subr.bf16.mxu0 0
        %8884 = vmatpush1.bf16.xpose.msra.mxu0 0
        %8885 = vmatprep.subr.bf16.mxu0 0
        %8886 = vmatpush1.bf16.xpose.msra.mxu0 0
        %8887 = vmatprep.subr.bf16.mxu0 0
        %8888 = vmatpush1.bf16.xpose.msra.mxu0 0
        %8889 = vmatprep.subr.bf16.mxu0 0
        %8890 = vmatpush1.bf16.xpose.msra.mxu0 0
        %8891 = vmatprep.subr.bf16.mxu0 0
        %8892 = vmatpush1.bf16.xpose.msra.mxu0 0
        %8893 = vmatprep.subr.bf16.mxu0 0
        %8894 = vmatpush1.bf16.xpose.msra.mxu0 0
        %8895 = vmatprep.subr.bf16.mxu0 0
        %8896 = vmatpush1.bf16.xpose.msra.mxu0 0
        %8897 = vmatprep.subr.bf16.mxu0 0
        %8898 = vmatpush1.bf16.xpose.msra.mxu0 0
        %8899 = vmatprep.subr.bf16.mxu0 0
        %8900 = vmatpush1.bf16.xpose.msra.mxu0 0
        %8901 = vmatprep.subr.bf16.mxu0 0
        %8902 = vmatpush1.bf16.xpose.msra.mxu0 0
        %8903 = vmatprep.subr.bf16.mxu0 0
        %8904 = vmatpush1.bf16.xpose.msra.mxu0 0
        %8905 = vmatprep.subr.bf16.mxu0 0
        %8906 = vmatpush1.bf16.xpose.msra.mxu0 0
        %8907 = vmatprep.subr.bf16.mxu0 0
        %8908 = vmatpush1.bf16.xpose.msra.mxu0 0
        %8909 = vmatprep.mubr.bf16.mxu0 1065369472
        %8910 = vmatmul.mubr.bf16.gmra.mrb[0].mxu0 1065369472
        %v8911 = vpop.f32.mrb[0].mxu0
        %v8912 = vadd.f32 %v8872, %v8911
        %v8913 = vpop.f32.mrb[0].mxu0
        %v8914 = vpop.f32.mrb[0].mxu0
        %v8915 = vpop.f32.mrb[0].mxu0
        %8916 = vdwg.mxu0
        %8917 = vmatprep.subr.bf16.mxu0 %v1410
        %8918 = vmatpush1.bf16.xpose.msra.mxu0 %v1409
        %8919 = vmatprep.subr.bf16.mxu0 0
        %8920 = vmatpush1.bf16.xpose.msra.mxu0 0
        %8921 = vmatprep.subr.bf16.mxu0 0
        %8922 = vmatpush1.bf16.xpose.msra.mxu0 0
        %8923 = vmatprep.subr.bf16.mxu0 0
        %8924 = vmatpush1.bf16.xpose.msra.mxu0 0
        %8925 = vmatprep.subr.bf16.mxu0 0
        %8926 = vmatpush1.bf16.xpose.msra.mxu0 0
        %8927 = vmatprep.subr.bf16.mxu0 0
        %8928 = vmatpush1.bf16.xpose.msra.mxu0 0
        %8929 = vmatprep.subr.bf16.mxu0 0
        %8930 = vmatpush1.bf16.xpose.msra.mxu0 0
        %8931 = vmatprep.subr.bf16.mxu0 0
        %8932 = vmatpush1.bf16.xpose.msra.mxu0 0
        %8933 = vmatprep.subr.bf16.mxu0 0
        %8934 = vmatpush1.bf16.xpose.msra.mxu0 0
        %8935 = vmatprep.subr.bf16.mxu0 0
        %8936 = vmatpush1.bf16.xpose.msra.mxu0 0
        %8937 = vmatprep.subr.bf16.mxu0 0
        %8938 = vmatpush1.bf16.xpose.msra.mxu0 0
        %8939 = vmatprep.subr.bf16.mxu0 0
        %8940 = vmatpush1.bf16.xpose.msra.mxu0 0
        %8941 = vmatprep.subr.bf16.mxu0 0
        %8942 = vmatpush1.bf16.xpose.msra.mxu0 0
        %8943 = vmatprep.subr.bf16.mxu0 0
        %8944 = vmatpush1.bf16.xpose.msra.mxu0 0
        %8945 = vmatprep.subr.bf16.mxu0 0
        %8946 = vmatpush1.bf16.xpose.msra.mxu0 0
        %8947 = vmatprep.subr.bf16.mxu0 0
        %8948 = vmatpush1.bf16.xpose.msra.mxu0 0
        %8949 = vmatprep.mubr.bf16.mxu0 1065369472
        %8950 = vmatmul.mubr.bf16.gmra.mrb[0].mxu0 1065369472
        %v8951 = vpop.f32.mrb[0].mxu0
        %v8952 = vadd.f32 %v8912, %v8951
        %v8953 = vpop.f32.mrb[0].mxu0
        %v8954 = vpop.f32.mrb[0].mxu0
        %v8955 = vpop.f32.mrb[0].mxu0
        %8956 = vdwg.mxu0
        %8957 = vmatprep.subr.bf16.mxu0 %v1412
        %8958 = vmatpush1.bf16.xpose.msra.mxu0 %v1411
        %8959 = vmatprep.subr.bf16.mxu0 0
        %8960 = vmatpush1.bf16.xpose.msra.mxu0 0
        %8961 = vmatprep.subr.bf16.mxu0 0
        %8962 = vmatpush1.bf16.xpose.msra.mxu0 0
        %8963 = vmatprep.subr.bf16.mxu0 0
        %8964 = vmatpush1.bf16.xpose.msra.mxu0 0
        %8965 = vmatprep.subr.bf16.mxu0 0
        %8966 = vmatpush1.bf16.xpose.msra.mxu0 0
        %8967 = vmatprep.subr.bf16.mxu0 0
        %8968 = vmatpush1.bf16.xpose.msra.mxu0 0
        %8969 = vmatprep.subr.bf16.mxu0 0
        %8970 = vmatpush1.bf16.xpose.msra.mxu0 0
        %8971 = vmatprep.subr.bf16.mxu0 0
        %8972 = vmatpush1.bf16.xpose.msra.mxu0 0
        %8973 = vmatprep.subr.bf16.mxu0 0
        %8974 = vmatpush1.bf16.xpose.msra.mxu0 0
        %8975 = vmatprep.subr.bf16.mxu0 0
        %8976 = vmatpush1.bf16.xpose.msra.mxu0 0
        %8977 = vmatprep.subr.bf16.mxu0 0
        %8978 = vmatpush1.bf16.xpose.msra.mxu0 0
        %8979 = vmatprep.subr.bf16.mxu0 0
        %8980 = vmatpush1.bf16.xpose.msra.mxu0 0
        %8981 = vmatprep.subr.bf16.mxu0 0
        %8982 = vmatpush1.bf16.xpose.msra.mxu0 0
        %8983 = vmatprep.subr.bf16.mxu0 0
        %8984 = vmatpush1.bf16.xpose.msra.mxu0 0
        %8985 = vmatprep.subr.bf16.mxu0 0
        %8986 = vmatpush1.bf16.xpose.msra.mxu0 0
        %8987 = vmatprep.subr.bf16.mxu0 0
        %8988 = vmatpush1.bf16.xpose.msra.mxu0 0
        %8989 = vmatprep.mubr.bf16.mxu0 1065369472
        %8990 = vmatmul.mubr.bf16.gmra.mrb[0].mxu0 1065369472
        %v8991 = vpop.f32.mrb[0].mxu0
        %v8992 = vadd.f32 %v8952, %v8991
        %v8993 = vpop.f32.mrb[0].mxu0
        %v8994 = vpop.f32.mrb[0].mxu0
        %v8995 = vpop.f32.mrb[0].mxu0
        %8996 = vdwg.mxu0
        %8997 = vmatprep.subr.bf16.mxu0 %v1414
        %8998 = vmatpush1.bf16.xpose.msra.mxu0 %v1413
        %8999 = vmatprep.subr.bf16.mxu0 0
        %9000 = vmatpush1.bf16.xpose.msra.mxu0 0
        %9001 = vmatprep.subr.bf16.mxu0 0
        %9002 = vmatpush1.bf16.xpose.msra.mxu0 0
        %9003 = vmatprep.subr.bf16.mxu0 0
        %9004 = vmatpush1.bf16.xpose.msra.mxu0 0
        %9005 = vmatprep.subr.bf16.mxu0 0
        %9006 = vmatpush1.bf16.xpose.msra.mxu0 0
        %9007 = vmatprep.subr.bf16.mxu0 0
        %9008 = vmatpush1.bf16.xpose.msra.mxu0 0
        %9009 = vmatprep.subr.bf16.mxu0 0
        %9010 = vmatpush1.bf16.xpose.msra.mxu0 0
        %9011 = vmatprep.subr.bf16.mxu0 0
        %9012 = vmatpush1.bf16.xpose.msra.mxu0 0
        %9013 = vmatprep.subr.bf16.mxu0 0
        %9014 = vmatpush1.bf16.xpose.msra.mxu0 0
        %9015 = vmatprep.subr.bf16.mxu0 0
        %9016 = vmatpush1.bf16.xpose.msra.mxu0 0
        %9017 = vmatprep.subr.bf16.mxu0 0
        %9018 = vmatpush1.bf16.xpose.msra.mxu0 0
        %9019 = vmatprep.subr.bf16.mxu0 0
        %9020 = vmatpush1.bf16.xpose.msra.mxu0 0
        %9021 = vmatprep.subr.bf16.mxu0 0
        %9022 = vmatpush1.bf16.xpose.msra.mxu0 0
        %9023 = vmatprep.subr.bf16.mxu0 0
        %9024 = vmatpush1.bf16.xpose.msra.mxu0 0
        %9025 = vmatprep.subr.bf16.mxu0 0
        %9026 = vmatpush1.bf16.xpose.msra.mxu0 0
        %9027 = vmatprep.subr.bf16.mxu0 0
        %9028 = vmatpush1.bf16.xpose.msra.mxu0 0
        %9029 = vmatprep.mubr.bf16.mxu0 1065369472
        %9030 = vmatmul.mubr.bf16.gmra.mrb[0].mxu0 1065369472
        %v9031 = vpop.f32.mrb[0].mxu0
        %v9032 = vadd.f32 %v8992, %v9031
        %v9033 = vpop.f32.mrb[0].mxu0
        %v9034 = vpop.f32.mrb[0].mxu0
        %v9035 = vpop.f32.mrb[0].mxu0
        %9036 = vdwg.mxu0
        %9037 = vmatprep.subr.bf16.mxu0 %v1416
        %9038 = vmatpush1.bf16.xpose.msra.mxu0 %v1415
        %9039 = vmatprep.subr.bf16.mxu0 0
        %9040 = vmatpush1.bf16.xpose.msra.mxu0 0
        %9041 = vmatprep.subr.bf16.mxu0 0
        %9042 = vmatpush1.bf16.xpose.msra.mxu0 0
        %9043 = vmatprep.subr.bf16.mxu0 0
        %9044 = vmatpush1.bf16.xpose.msra.mxu0 0
        %9045 = vmatprep.subr.bf16.mxu0 0
        %9046 = vmatpush1.bf16.xpose.msra.mxu0 0
        %9047 = vmatprep.subr.bf16.mxu0 0
        %9048 = vmatpush1.bf16.xpose.msra.mxu0 0
        %9049 = vmatprep.subr.bf16.mxu0 0
        %9050 = vmatpush1.bf16.xpose.msra.mxu0 0
        %9051 = vmatprep.subr.bf16.mxu0 0
        %9052 = vmatpush1.bf16.xpose.msra.mxu0 0
        %9053 = vmatprep.subr.bf16.mxu0 0
        %9054 = vmatpush1.bf16.xpose.msra.mxu0 0
        %9055 = vmatprep.subr.bf16.mxu0 0
        %9056 = vmatpush1.bf16.xpose.msra.mxu0 0
        %9057 = vmatprep.subr.bf16.mxu0 0
        %9058 = vmatpush1.bf16.xpose.msra.mxu0 0
        %9059 = vmatprep.subr.bf16.mxu0 0
        %9060 = vmatpush1.bf16.xpose.msra.mxu0 0
        %9061 = vmatprep.subr.bf16.mxu0 0
        %9062 = vmatpush1.bf16.xpose.msra.mxu0 0
        %9063 = vmatprep.subr.bf16.mxu0 0
        %9064 = vmatpush1.bf16.xpose.msra.mxu0 0
        %9065 = vmatprep.subr.bf16.mxu0 0
        %9066 = vmatpush1.bf16.xpose.msra.mxu0 0
        %9067 = vmatprep.subr.bf16.mxu0 0
        %9068 = vmatpush1.bf16.xpose.msra.mxu0 0
        %9069 = vmatprep.mubr.bf16.mxu0 1065369472
        %9070 = vmatmul.mubr.bf16.gmra.mrb[0].mxu0 1065369472
        %v9071 = vpop.f32.mrb[0].mxu0
        %v9072 = vadd.f32 %v9032, %v9071
        %v9073 = vpop.f32.mrb[0].mxu0
        %v9074 = vpop.f32.mrb[0].mxu0
        %v9075 = vpop.f32.mrb[0].mxu0
        %9076 = vdwg.mxu0
        %9077 = vmatprep.subr.bf16.mxu0 %v1418
        %9078 = vmatpush1.bf16.xpose.msra.mxu0 %v1417
        %9079 = vmatprep.subr.bf16.mxu0 0
        %9080 = vmatpush1.bf16.xpose.msra.mxu0 0
        %9081 = vmatprep.subr.bf16.mxu0 0
        %9082 = vmatpush1.bf16.xpose.msra.mxu0 0
        %9083 = vmatprep.subr.bf16.mxu0 0
        %9084 = vmatpush1.bf16.xpose.msra.mxu0 0
        %9085 = vmatprep.subr.bf16.mxu0 0
        %9086 = vmatpush1.bf16.xpose.msra.mxu0 0
        %9087 = vmatprep.subr.bf16.mxu0 0
        %9088 = vmatpush1.bf16.xpose.msra.mxu0 0
        %9089 = vmatprep.subr.bf16.mxu0 0
        %9090 = vmatpush1.bf16.xpose.msra.mxu0 0
        %9091 = vmatprep.subr.bf16.mxu0 0
        %9092 = vmatpush1.bf16.xpose.msra.mxu0 0
        %9093 = vmatprep.subr.bf16.mxu0 0
        %9094 = vmatpush1.bf16.xpose.msra.mxu0 0
        %9095 = vmatprep.subr.bf16.mxu0 0
        %9096 = vmatpush1.bf16.xpose.msra.mxu0 0
        %9097 = vmatprep.subr.bf16.mxu0 0
        %9098 = vmatpush1.bf16.xpose.msra.mxu0 0
        %9099 = vmatprep.subr.bf16.mxu0 0
        %9100 = vmatpush1.bf16.xpose.msra.mxu0 0
        %9101 = vmatprep.subr.bf16.mxu0 0
        %9102 = vmatpush1.bf16.xpose.msra.mxu0 0
        %9103 = vmatprep.subr.bf16.mxu0 0
        %9104 = vmatpush1.bf16.xpose.msra.mxu0 0
        %9105 = vmatprep.subr.bf16.mxu0 0
        %9106 = vmatpush1.bf16.xpose.msra.mxu0 0
        %9107 = vmatprep.subr.bf16.mxu0 0
        %9108 = vmatpush1.bf16.xpose.msra.mxu0 0
        %9109 = vmatprep.mubr.bf16.mxu0 1065369472
        %9110 = vmatmul.mubr.bf16.gmra.mrb[0].mxu0 1065369472
        %v9111 = vpop.f32.mrb[0].mxu0
        %v9112 = vadd.f32 %v9072, %v9111
        %v9113 = vpop.f32.mrb[0].mxu0
        %v9114 = vpop.f32.mrb[0].mxu0
        %v9115 = vpop.f32.mrb[0].mxu0
        %9116 = vdwg.mxu0
        %9117 = vmatprep.subr.bf16.mxu0 %v1420
        %9118 = vmatpush1.bf16.xpose.msra.mxu0 %v1419
        %9119 = vmatprep.subr.bf16.mxu0 0
        %9120 = vmatpush1.bf16.xpose.msra.mxu0 0
        %9121 = vmatprep.subr.bf16.mxu0 0
        %9122 = vmatpush1.bf16.xpose.msra.mxu0 0
        %9123 = vmatprep.subr.bf16.mxu0 0
        %9124 = vmatpush1.bf16.xpose.msra.mxu0 0
        %9125 = vmatprep.subr.bf16.mxu0 0
        %9126 = vmatpush1.bf16.xpose.msra.mxu0 0
        %9127 = vmatprep.subr.bf16.mxu0 0
        %9128 = vmatpush1.bf16.xpose.msra.mxu0 0
        %9129 = vmatprep.subr.bf16.mxu0 0
        %9130 = vmatpush1.bf16.xpose.msra.mxu0 0
        %9131 = vmatprep.subr.bf16.mxu0 0
        %9132 = vmatpush1.bf16.xpose.msra.mxu0 0
        %9133 = vmatprep.subr.bf16.mxu0 0
        %9134 = vmatpush1.bf16.xpose.msra.mxu0 0
        %9135 = vmatprep.subr.bf16.mxu0 0
        %9136 = vmatpush1.bf16.xpose.msra.mxu0 0
        %9137 = vmatprep.subr.bf16.mxu0 0
        %9138 = vmatpush1.bf16.xpose.msra.mxu0 0
        %9139 = vmatprep.subr.bf16.mxu0 0
        %9140 = vmatpush1.bf16.xpose.msra.mxu0 0
        %9141 = vmatprep.subr.bf16.mxu0 0
        %9142 = vmatpush1.bf16.xpose.msra.mxu0 0
        %9143 = vmatprep.subr.bf16.mxu0 0
        %9144 = vmatpush1.bf16.xpose.msra.mxu0 0
        %9145 = vmatprep.subr.bf16.mxu0 0
        %9146 = vmatpush1.bf16.xpose.msra.mxu0 0
        %9147 = vmatprep.subr.bf16.mxu0 0
        %9148 = vmatpush1.bf16.xpose.msra.mxu0 0
        %9149 = vmatprep.mubr.bf16.mxu0 1065369472
        %9150 = vmatmul.mubr.bf16.gmra.mrb[0].mxu0 1065369472
        %v9151 = vpop.f32.mrb[0].mxu0
        %v9152 = vadd.f32 %v9112, %v9151
        %v9153 = vpop.f32.mrb[0].mxu0
        %v9154 = vpop.f32.mrb[0].mxu0
        %v9155 = vpop.f32.mrb[0].mxu0
        %9156 = vdwg.mxu0
        %9157 = vmatprep.subr.bf16.mxu0 %v1422
        %9158 = vmatpush1.bf16.xpose.msra.mxu0 %v1421
        %9159 = vmatprep.subr.bf16.mxu0 0
        %9160 = vmatpush1.bf16.xpose.msra.mxu0 0
        %9161 = vmatprep.subr.bf16.mxu0 0
        %9162 = vmatpush1.bf16.xpose.msra.mxu0 0
        %9163 = vmatprep.subr.bf16.mxu0 0
        %9164 = vmatpush1.bf16.xpose.msra.mxu0 0
        %9165 = vmatprep.subr.bf16.mxu0 0
        %9166 = vmatpush1.bf16.xpose.msra.mxu0 0
        %9167 = vmatprep.subr.bf16.mxu0 0
        %9168 = vmatpush1.bf16.xpose.msra.mxu0 0
        %9169 = vmatprep.subr.bf16.mxu0 0
        %9170 = vmatpush1.bf16.xpose.msra.mxu0 0
        %9171 = vmatprep.subr.bf16.mxu0 0
        %9172 = vmatpush1.bf16.xpose.msra.mxu0 0
        %9173 = vmatprep.subr.bf16.mxu0 0
        %9174 = vmatpush1.bf16.xpose.msra.mxu0 0
        %9175 = vmatprep.subr.bf16.mxu0 0
        %9176 = vmatpush1.bf16.xpose.msra.mxu0 0
        %9177 = vmatprep.subr.bf16.mxu0 0
        %9178 = vmatpush1.bf16.xpose.msra.mxu0 0
        %9179 = vmatprep.subr.bf16.mxu0 0
        %9180 = vmatpush1.bf16.xpose.msra.mxu0 0
        %9181 = vmatprep.subr.bf16.mxu0 0
        %9182 = vmatpush1.bf16.xpose.msra.mxu0 0
        %9183 = vmatprep.subr.bf16.mxu0 0
        %9184 = vmatpush1.bf16.xpose.msra.mxu0 0
        %9185 = vmatprep.subr.bf16.mxu0 0
        %9186 = vmatpush1.bf16.xpose.msra.mxu0 0
        %9187 = vmatprep.subr.bf16.mxu0 0
        %9188 = vmatpush1.bf16.xpose.msra.mxu0 0
        %9189 = vmatprep.mubr.bf16.mxu0 1065369472
        %9190 = vmatmul.mubr.bf16.gmra.mrb[0].mxu0 1065369472
        %v9191 = vpop.f32.mrb[0].mxu0
        %v9192 = vadd.f32 %v9152, %v9191
        %v9193 = vpop.f32.mrb[0].mxu0
        %v9194 = vpop.f32.mrb[0].mxu0
        %v9195 = vpop.f32.mrb[0].mxu0
        %9196 = vdwg.mxu0
        %9197 = vmatprep.subr.bf16.mxu0 %v1424
        %9198 = vmatpush1.bf16.xpose.msra.mxu0 %v1423
        %9199 = vmatprep.subr.bf16.mxu0 0
        %9200 = vmatpush1.bf16.xpose.msra.mxu0 0
        %9201 = vmatprep.subr.bf16.mxu0 0
        %9202 = vmatpush1.bf16.xpose.msra.mxu0 0
        %9203 = vmatprep.subr.bf16.mxu0 0
        %9204 = vmatpush1.bf16.xpose.msra.mxu0 0
        %9205 = vmatprep.subr.bf16.mxu0 0
        %9206 = vmatpush1.bf16.xpose.msra.mxu0 0
        %9207 = vmatprep.subr.bf16.mxu0 0
        %9208 = vmatpush1.bf16.xpose.msra.mxu0 0
        %9209 = vmatprep.subr.bf16.mxu0 0
        %9210 = vmatpush1.bf16.xpose.msra.mxu0 0
        %9211 = vmatprep.subr.bf16.mxu0 0
        %9212 = vmatpush1.bf16.xpose.msra.mxu0 0
        %9213 = vmatprep.subr.bf16.mxu0 0
        %9214 = vmatpush1.bf16.xpose.msra.mxu0 0
        %9215 = vmatprep.subr.bf16.mxu0 0
        %9216 = vmatpush1.bf16.xpose.msra.mxu0 0
        %9217 = vmatprep.subr.bf16.mxu0 0
        %9218 = vmatpush1.bf16.xpose.msra.mxu0 0
        %9219 = vmatprep.subr.bf16.mxu0 0
        %9220 = vmatpush1.bf16.xpose.msra.mxu0 0
        %9221 = vmatprep.subr.bf16.mxu0 0
        %9222 = vmatpush1.bf16.xpose.msra.mxu0 0
        %9223 = vmatprep.subr.bf16.mxu0 0
        %9224 = vmatpush1.bf16.xpose.msra.mxu0 0
        %9225 = vmatprep.subr.bf16.mxu0 0
        %9226 = vmatpush1.bf16.xpose.msra.mxu0 0
        %9227 = vmatprep.subr.bf16.mxu0 0
        %9228 = vmatpush1.bf16.xpose.msra.mxu0 0
        %9229 = vmatprep.mubr.bf16.mxu0 1065369472
        %9230 = vmatmul.mubr.bf16.gmra.mrb[0].mxu0 1065369472
        %v9231 = vpop.f32.mrb[0].mxu0
        %v9232 = vadd.f32 %v9192, %v9231
        %v9233 = vpop.f32.mrb[0].mxu0
        %v9234 = vpop.f32.mrb[0].mxu0
        %v9235 = vpop.f32.mrb[0].mxu0
        %9236 = vdwg.mxu0
        %9237 = vmatprep.subr.bf16.mxu0 %v1426
        %9238 = vmatpush1.bf16.xpose.msra.mxu0 %v1425
        %9239 = vmatprep.subr.bf16.mxu0 0
        %9240 = vmatpush1.bf16.xpose.msra.mxu0 0
        %9241 = vmatprep.subr.bf16.mxu0 0
        %9242 = vmatpush1.bf16.xpose.msra.mxu0 0
        %9243 = vmatprep.subr.bf16.mxu0 0
        %9244 = vmatpush1.bf16.xpose.msra.mxu0 0
        %9245 = vmatprep.subr.bf16.mxu0 0
        %9246 = vmatpush1.bf16.xpose.msra.mxu0 0
        %9247 = vmatprep.subr.bf16.mxu0 0
        %9248 = vmatpush1.bf16.xpose.msra.mxu0 0
        %9249 = vmatprep.subr.bf16.mxu0 0
        %9250 = vmatpush1.bf16.xpose.msra.mxu0 0
        %9251 = vmatprep.subr.bf16.mxu0 0
        %9252 = vmatpush1.bf16.xpose.msra.mxu0 0
        %9253 = vmatprep.subr.bf16.mxu0 0
        %9254 = vmatpush1.bf16.xpose.msra.mxu0 0
        %9255 = vmatprep.subr.bf16.mxu0 0
        %9256 = vmatpush1.bf16.xpose.msra.mxu0 0
        %9257 = vmatprep.subr.bf16.mxu0 0
        %9258 = vmatpush1.bf16.xpose.msra.mxu0 0
        %9259 = vmatprep.subr.bf16.mxu0 0
        %9260 = vmatpush1.bf16.xpose.msra.mxu0 0
        %9261 = vmatprep.subr.bf16.mxu0 0
        %9262 = vmatpush1.bf16.xpose.msra.mxu0 0
        %9263 = vmatprep.subr.bf16.mxu0 0
        %9264 = vmatpush1.bf16.xpose.msra.mxu0 0
        %9265 = vmatprep.subr.bf16.mxu0 0
        %9266 = vmatpush1.bf16.xpose.msra.mxu0 0
        %9267 = vmatprep.subr.bf16.mxu0 0
        %9268 = vmatpush1.bf16.xpose.msra.mxu0 0
        %9269 = vmatprep.mubr.bf16.mxu0 1065369472
        %9270 = vmatmul.mubr.bf16.gmra.mrb[0].mxu0 1065369472
        %v9271 = vpop.f32.mrb[0].mxu0
        %v9272 = vadd.f32 %v9232, %v9271
        %v9273 = vpop.f32.mrb[0].mxu0
        %v9274 = vpop.f32.mrb[0].mxu0
        %v9275 = vpop.f32.mrb[0].mxu0
        %9276 = vdwg.mxu0
        %9277 = vmatprep.subr.bf16.mxu0 %v1428
        %9278 = vmatpush1.bf16.xpose.msra.mxu0 %v1427
        %9279 = vmatprep.subr.bf16.mxu0 0
        %9280 = vmatpush1.bf16.xpose.msra.mxu0 0
        %9281 = vmatprep.subr.bf16.mxu0 0
        %9282 = vmatpush1.bf16.xpose.msra.mxu0 0
        %9283 = vmatprep.subr.bf16.mxu0 0
        %9284 = vmatpush1.bf16.xpose.msra.mxu0 0
        %9285 = vmatprep.subr.bf16.mxu0 0
        %9286 = vmatpush1.bf16.xpose.msra.mxu0 0
        %9287 = vmatprep.subr.bf16.mxu0 0
        %9288 = vmatpush1.bf16.xpose.msra.mxu0 0
        %9289 = vmatprep.subr.bf16.mxu0 0
        %9290 = vmatpush1.bf16.xpose.msra.mxu0 0
        %9291 = vmatprep.subr.bf16.mxu0 0
        %9292 = vmatpush1.bf16.xpose.msra.mxu0 0
        %9293 = vmatprep.subr.bf16.mxu0 0
        %9294 = vmatpush1.bf16.xpose.msra.mxu0 0
        %9295 = vmatprep.subr.bf16.mxu0 0
        %9296 = vmatpush1.bf16.xpose.msra.mxu0 0
        %9297 = vmatprep.subr.bf16.mxu0 0
        %9298 = vmatpush1.bf16.xpose.msra.mxu0 0
        %9299 = vmatprep.subr.bf16.mxu0 0
        %9300 = vmatpush1.bf16.xpose.msra.mxu0 0
        %9301 = vmatprep.subr.bf16.mxu0 0
        %9302 = vmatpush1.bf16.xpose.msra.mxu0 0
        %9303 = vmatprep.subr.bf16.mxu0 0
        %9304 = vmatpush1.bf16.xpose.msra.mxu0 0
        %9305 = vmatprep.subr.bf16.mxu0 0
        %9306 = vmatpush1.bf16.xpose.msra.mxu0 0
        %9307 = vmatprep.subr.bf16.mxu0 0
        %9308 = vmatpush1.bf16.xpose.msra.mxu0 0
        %9309 = vmatprep.mubr.bf16.mxu0 1065369472
        %9310 = vmatmul.mubr.bf16.gmra.mrb[0].mxu0 1065369472
        %v9311 = vpop.f32.mrb[0].mxu0
        %v9312 = vadd.f32 %v9272, %v9311
        %v9313 = vpop.f32.mrb[0].mxu0
        %v9314 = vpop.f32.mrb[0].mxu0
        %v9315 = vpop.f32.mrb[0].mxu0
        %9316 = vdwg.mxu0
        %9317 = vmatprep.subr.bf16.mxu0 %v1430
        %9318 = vmatpush1.bf16.xpose.msra.mxu0 %v1429
        %9319 = vmatprep.subr.bf16.mxu0 0
        %9320 = vmatpush1.bf16.xpose.msra.mxu0 0
        %9321 = vmatprep.subr.bf16.mxu0 0
        %9322 = vmatpush1.bf16.xpose.msra.mxu0 0
        %9323 = vmatprep.subr.bf16.mxu0 0
        %9324 = vmatpush1.bf16.xpose.msra.mxu0 0
        %9325 = vmatprep.subr.bf16.mxu0 0
        %9326 = vmatpush1.bf16.xpose.msra.mxu0 0
        %9327 = vmatprep.subr.bf16.mxu0 0
        %9328 = vmatpush1.bf16.xpose.msra.mxu0 0
        %9329 = vmatprep.subr.bf16.mxu0 0
        %9330 = vmatpush1.bf16.xpose.msra.mxu0 0
        %9331 = vmatprep.subr.bf16.mxu0 0
        %9332 = vmatpush1.bf16.xpose.msra.mxu0 0
        %9333 = vmatprep.subr.bf16.mxu0 0
        %9334 = vmatpush1.bf16.xpose.msra.mxu0 0
        %9335 = vmatprep.subr.bf16.mxu0 0
        %9336 = vmatpush1.bf16.xpose.msra.mxu0 0
        %9337 = vmatprep.subr.bf16.mxu0 0
        %9338 = vmatpush1.bf16.xpose.msra.mxu0 0
        %9339 = vmatprep.subr.bf16.mxu0 0
        %9340 = vmatpush1.bf16.xpose.msra.mxu0 0
        %9341 = vmatprep.subr.bf16.mxu0 0
        %9342 = vmatpush1.bf16.xpose.msra.mxu0 0
        %9343 = vmatprep.subr.bf16.mxu0 0
        %9344 = vmatpush1.bf16.xpose.msra.mxu0 0
        %9345 = vmatprep.subr.bf16.mxu0 0
        %9346 = vmatpush1.bf16.xpose.msra.mxu0 0
        %9347 = vmatprep.subr.bf16.mxu0 0
        %9348 = vmatpush1.bf16.xpose.msra.mxu0 0
        %9349 = vmatprep.mubr.bf16.mxu0 1065369472
        %9350 = vmatmul.mubr.bf16.gmra.mrb[0].mxu0 1065369472
        %v9351 = vpop.f32.mrb[0].mxu0
        %v9352 = vadd.f32 %v9312, %v9351
        %v9353 = vpop.f32.mrb[0].mxu0
        %v9354 = vpop.f32.mrb[0].mxu0
        %v9355 = vpop.f32.mrb[0].mxu0
        %9356 = vdwg.mxu0
        %9357 = vmatprep.subr.bf16.mxu0 %v1432
        %9358 = vmatpush1.bf16.xpose.msra.mxu0 %v1431
        %9359 = vmatprep.subr.bf16.mxu0 0
        %9360 = vmatpush1.bf16.xpose.msra.mxu0 0
        %9361 = vmatprep.subr.bf16.mxu0 0
        %9362 = vmatpush1.bf16.xpose.msra.mxu0 0
        %9363 = vmatprep.subr.bf16.mxu0 0
        %9364 = vmatpush1.bf16.xpose.msra.mxu0 0
        %9365 = vmatprep.subr.bf16.mxu0 0
        %9366 = vmatpush1.bf16.xpose.msra.mxu0 0
        %9367 = vmatprep.subr.bf16.mxu0 0
        %9368 = vmatpush1.bf16.xpose.msra.mxu0 0
        %9369 = vmatprep.subr.bf16.mxu0 0
        %9370 = vmatpush1.bf16.xpose.msra.mxu0 0
        %9371 = vmatprep.subr.bf16.mxu0 0
        %9372 = vmatpush1.bf16.xpose.msra.mxu0 0
        %9373 = vmatprep.subr.bf16.mxu0 0
        %9374 = vmatpush1.bf16.xpose.msra.mxu0 0
        %9375 = vmatprep.subr.bf16.mxu0 0
        %9376 = vmatpush1.bf16.xpose.msra.mxu0 0
        %9377 = vmatprep.subr.bf16.mxu0 0
        %9378 = vmatpush1.bf16.xpose.msra.mxu0 0
        %9379 = vmatprep.subr.bf16.mxu0 0
        %9380 = vmatpush1.bf16.xpose.msra.mxu0 0
        %9381 = vmatprep.subr.bf16.mxu0 0
        %9382 = vmatpush1.bf16.xpose.msra.mxu0 0
        %9383 = vmatprep.subr.bf16.mxu0 0
        %9384 = vmatpush1.bf16.xpose.msra.mxu0 0
        %9385 = vmatprep.subr.bf16.mxu0 0
        %9386 = vmatpush1.bf16.xpose.msra.mxu0 0
        %9387 = vmatprep.subr.bf16.mxu0 0
        %9388 = vmatpush1.bf16.xpose.msra.mxu0 0
        %9389 = vmatprep.mubr.bf16.mxu0 1065369472
        %9390 = vmatmul.mubr.bf16.gmra.mrb[0].mxu0 1065369472
        %v9391 = vpop.f32.mrb[0].mxu0
        %v9392 = vadd.f32 %v9352, %v9391
        %v9393 = vpop.f32.mrb[0].mxu0
        %v9394 = vpop.f32.mrb[0].mxu0
        %v9395 = vpop.f32.mrb[0].mxu0
        %9396 = vdwg.mxu0
        %9397 = vmatprep.subr.bf16.mxu0 %v1434
        %9398 = vmatpush1.bf16.xpose.msra.mxu0 %v1433
        %9399 = vmatprep.subr.bf16.mxu0 0
        %9400 = vmatpush1.bf16.xpose.msra.mxu0 0
        %9401 = vmatprep.subr.bf16.mxu0 0
        %9402 = vmatpush1.bf16.xpose.msra.mxu0 0
        %9403 = vmatprep.subr.bf16.mxu0 0
        %9404 = vmatpush1.bf16.xpose.msra.mxu0 0
        %9405 = vmatprep.subr.bf16.mxu0 0
        %9406 = vmatpush1.bf16.xpose.msra.mxu0 0
        %9407 = vmatprep.subr.bf16.mxu0 0
        %9408 = vmatpush1.bf16.xpose.msra.mxu0 0
        %9409 = vmatprep.subr.bf16.mxu0 0
        %9410 = vmatpush1.bf16.xpose.msra.mxu0 0
        %9411 = vmatprep.subr.bf16.mxu0 0
        %9412 = vmatpush1.bf16.xpose.msra.mxu0 0
        %9413 = vmatprep.subr.bf16.mxu0 0
        %9414 = vmatpush1.bf16.xpose.msra.mxu0 0
        %9415 = vmatprep.subr.bf16.mxu0 0
        %9416 = vmatpush1.bf16.xpose.msra.mxu0 0
        %9417 = vmatprep.subr.bf16.mxu0 0
        %9418 = vmatpush1.bf16.xpose.msra.mxu0 0
        %9419 = vmatprep.subr.bf16.mxu0 0
        %9420 = vmatpush1.bf16.xpose.msra.mxu0 0
        %9421 = vmatprep.subr.bf16.mxu0 0
        %9422 = vmatpush1.bf16.xpose.msra.mxu0 0
        %9423 = vmatprep.subr.bf16.mxu0 0
        %9424 = vmatpush1.bf16.xpose.msra.mxu0 0
        %9425 = vmatprep.subr.bf16.mxu0 0
        %9426 = vmatpush1.bf16.xpose.msra.mxu0 0
        %9427 = vmatprep.subr.bf16.mxu0 0
        %9428 = vmatpush1.bf16.xpose.msra.mxu0 0
        %9429 = vmatprep.mubr.bf16.mxu0 1065369472
        %9430 = vmatmul.mubr.bf16.gmra.mrb[0].mxu0 1065369472
        %v9431 = vpop.f32.mrb[0].mxu0
        %v9432 = vadd.f32 %v9392, %v9431
        %v9433 = vpop.f32.mrb[0].mxu0
        %v9434 = vpop.f32.mrb[0].mxu0
        %v9435 = vpop.f32.mrb[0].mxu0
        %9436 = vdwg.mxu0
        %9437 = vmatprep.subr.bf16.mxu0 %v1436
        %9438 = vmatpush1.bf16.xpose.msra.mxu0 %v1435
        %9439 = vmatprep.subr.bf16.mxu0 0
        %9440 = vmatpush1.bf16.xpose.msra.mxu0 0
        %9441 = vmatprep.subr.bf16.mxu0 0
        %9442 = vmatpush1.bf16.xpose.msra.mxu0 0
        %9443 = vmatprep.subr.bf16.mxu0 0
        %9444 = vmatpush1.bf16.xpose.msra.mxu0 0
        %9445 = vmatprep.subr.bf16.mxu0 0
        %9446 = vmatpush1.bf16.xpose.msra.mxu0 0
        %9447 = vmatprep.subr.bf16.mxu0 0
        %9448 = vmatpush1.bf16.xpose.msra.mxu0 0
        %9449 = vmatprep.subr.bf16.mxu0 0
        %9450 = vmatpush1.bf16.xpose.msra.mxu0 0
        %9451 = vmatprep.subr.bf16.mxu0 0
        %9452 = vmatpush1.bf16.xpose.msra.mxu0 0
        %9453 = vmatprep.subr.bf16.mxu0 0
        %9454 = vmatpush1.bf16.xpose.msra.mxu0 0
        %9455 = vmatprep.subr.bf16.mxu0 0
        %9456 = vmatpush1.bf16.xpose.msra.mxu0 0
        %9457 = vmatprep.subr.bf16.mxu0 0
        %9458 = vmatpush1.bf16.xpose.msra.mxu0 0
        %9459 = vmatprep.subr.bf16.mxu0 0
        %9460 = vmatpush1.bf16.xpose.msra.mxu0 0
        %9461 = vmatprep.subr.bf16.mxu0 0
        %9462 = vmatpush1.bf16.xpose.msra.mxu0 0
        %9463 = vmatprep.subr.bf16.mxu0 0
        %9464 = vmatpush1.bf16.xpose.msra.mxu0 0
        %9465 = vmatprep.subr.bf16.mxu0 0
        %9466 = vmatpush1.bf16.xpose.msra.mxu0 0
        %9467 = vmatprep.subr.bf16.mxu0 0
        %9468 = vmatpush1.bf16.xpose.msra.mxu0 0
        %9469 = vmatprep.mubr.bf16.mxu0 1065369472
        %9470 = vmatmul.mubr.bf16.gmra.mrb[0].mxu0 1065369472
        %v9471 = vpop.f32.mrb[0].mxu0
        %v9472 = vadd.f32 %v9432, %v9471
        %v9473 = vpop.f32.mrb[0].mxu0
        %v9474 = vpop.f32.mrb[0].mxu0
        %v9475 = vpop.f32.mrb[0].mxu0
        %9476 = vdwg.mxu0
        %v9477 = vadd.f32 %v5556, %v9472
        %vm9478 = vcmask 32768
        %9479 = vst.msk [vmem:[#allocation3] sm:$0x1] %vm9478, %v9477
        %p9480 = scmp.eq.s32.totalorder %s19, 1
        // Predicated region
        $region49: #{fused_conv_linear.1} parent=39 // pred_check
          %p9481 = pneg %p9480
        $region50: #{fused_conv_linear.1} parent=39 // pred_check_branch
          %9483 = sbr.rel (%p9481) target = $region52
        $region51: #{fused_conv_linear.1} parent=39 // pred_region
          %v9484 = vld [vmem:[#allocation2] sm:$0x7]
          %s9485 = sld [smem:[#allocation5]]
          %v9486 = vstv %s9485
          %v9487 = vmul.f32 %v9486, %v9484
          %s9488 = sld [smem:[#allocation5 + $0x1]]
          %v9489 = vstv %s9488
          %v9490 = vmul.f32 %v9489, %v9484
          %v9492 = vrot.slane %v9490, 1
          %v9494 = vadd.f32 %v9487, %v9492
          %s9495 = sld [smem:[#allocation5 + $0x2]]
          %v9496 = vstv %s9495
          %v9497 = vmul.f32 %v9496, %v9484
          %v9499 = vrot.slane %v9497, 2
          %v9501 = vadd.f32 %v9494, %v9499
          %s9502 = sld [smem:[#allocation4]]
          %v9503 = vld [vmem:[#allocation3] sm:$0x1]
          %v9504 = vstv %s9502
          %v9505 = vmul.f32 %v9504, %v9503
          %v9506 = vadd.f32 %v9501, %v9505
          %v9507 = vld [vmem:[%s4] sm:$0x1]
          %v9508 = vadd.f32 %v9506, %v9507
          %9509 = vst.msk [vmem:[#allocation8] sm:$0x1] %vm9478, %v9508
        $region52: #{fused_conv_linear.1} parent=39 // pred_fallthru
          _
        // Predicated region
        $region53: #{fused_conv_linear.1} parent=39 // pred_check
          %p9510 = pneg %p147
        $region54: #{fused_conv_linear.1} parent=39 // pred_check_branch
          %9512 = sbr.rel (%p9510) target = $region56
        $region55: #{fused_conv_linear.1} parent=39 // pred_region
          %s9514 = ssub.s32 16, 16
          %9515 = vsyncadd [#allocation6], %s9514
          %s9517 = sshll.u32 [#allocation8], 4
          %s9518 = int_to_ptr.vmem [resolvable:$true] %s9517
          %9520 = dma.vmem_to_hbm [thread:$0]  %s9518, 16, %s5, [#allocation6]
        $region56: #{fused_conv_linear.1} parent=39 // pred_fallthru
          _
        // Predicated region
        $region57: #{fused_conv_linear.1} parent=39 // pred_check
          %p9521 = pneg %p147
        $region58: #{fused_conv_linear.1} parent=39 // pred_check_branch
          %9523 = sbr.rel (%p9521) target = $region60
        $region59: #{fused_conv_linear.1} parent=39 // pred_region
          %9524 = dma.done [#allocation6], 16
        $region60: #{fused_conv_linear.1} parent=39 // pred_fallthru
          _
      $region40: #{fused_conv_linear.1} parent=5 // pred_fallthru
        _
      %p9525 = scmp.le.s32.totalorder 2, %s14
      // Predicated region
      $region61: #{fused_conv_linear.1} parent=5 // pred_check
        %p9526 = pneg %p9525
      $region62: #{fused_conv_linear.1} parent=5 // pred_check_branch
        %9528 = sbr.rel (%p9526) target = $region64
      $region63: #{fused_conv_linear.1} parent=5 // pred_region
        %s9529 = ssub.s32 %s14, 2
      $region64: #{fused_conv_linear.1} parent=5 // pred_fallthru
        _
    $region6: #{fused_conv_linear.1} parent=1 // loop_footer
      %s18 = sadd.s32 1, %s14
    $region7: #{fused_conv_linear.1} parent=1 // loop_footer_branch
      %13 = sbr.rel target = $region3
    $region8: #{fused_conv_linear.1} parent=1 // loop_exit
      _
    %9530 = vsyncpa [#allocation6], 1
    %s9531 = scalar_lea.sflag [#allocation6], 1
    %9532 = vsyncpa %s9531, 1
    %9533 = vsyncpa [#allocation7], 1
    %s9534 = scalar_lea.sflag [#allocation7], 1
    %9535 = vsyncpa %s9534, 1

</llo_original>
